<compile_context>
chip_gen: v7x
topology: tpu7x:2x2x1
jax: 0.10.0
libtpu: 0.0.40
codegen_flags: <defaults>
</compile_context>

<pallas_src>
import functools

import jax
import jax.numpy as jnp
import numpy as np
from jax.experimental import pallas as pl
from jax.experimental.pallas import tpu as pltpu


# ----------------------------- in-kernel helpers -----------------------------

def _layernorm(x, g, b, eps=1e-5):
    mu = jnp.mean(x, axis=-1, keepdims=True)
    var = jnp.mean((x - mu) ** 2, axis=-1, keepdims=True)
    return (x - mu) * jax.lax.rsqrt(var + eps) * g + b


def _erf(x):
    # Abramowitz & Stegun 7.1.26, |error| <= 1.5e-7.  Uses only exp/abs/where,
    # which always lower in Mosaic, while keeping exact-GELU fidelity.
    p = 0.3275911
    a1, a2, a3, a4, a5 = (0.254829592, -0.284496736, 1.421413741,
                          -1.453152027, 1.061405429)
    ax = jnp.abs(x)
    t = 1.0 / (1.0 + p * ax)
    poly = ((((a5 * t + a4) * t + a3) * t + a2) * t + a1) * t
    y = 1.0 - poly * jnp.exp(-ax * ax)
    return jnp.where(x < 0.0, -y, y)


def _gelu_exact(x):
    return 0.5 * x * (1.0 + _erf(x * 0.7071067811865476))


# ------------------------------- Pallas kernels ------------------------------

def visual_embed_kernel(patch_ref, w_ref, b_ref, pos_ref, g_ref, beta_ref, out_ref):
    # patch_ref: (N, P) bf16   w_ref: (P, E) bf16   b/g/beta: (1, E)   pos: (N, E)
    x = jnp.dot(patch_ref[...], w_ref[...], preferred_element_type=jnp.float32)
    x = x + b_ref[...] + pos_ref[...]
    out_ref[...] = _layernorm(x, g_ref[...], beta_ref[...])


def token_embed_kernel(emb_ref, pos_ref, tok_ref, g_ref, beta_ref, out_ref):
    # emb_ref/pos_ref: (L, E)   tok/g/beta: (1, E)
    x = emb_ref[...] + pos_ref[...] + tok_ref[...]
    out_ref[...] = _layernorm(x, g_ref[...], beta_ref[...])


def layer_stack_kernel(xs_ref, wqkv_ref, bqkv_ref, wo_ref, bo_ref,
                       w1_ref, b1_ref, w2_ref, b2_ref, vec_ref,
                       out_ref, *, num_heads, s_real):
    """One grid step = one (batch-block, layer) pair.

    xs_ref : (Bt, Sp, C) padded joint [visual ; text] tokens (read at layer 0).
    weights: layer `l` slab selected by the BlockSpec index_map (depth squeezed).
    vec_ref: (6, C) rows = [ln1_g, ln1_b, ln2_g, ln2_b, gamma_1, gamma_2].
    out_ref: VMEM-resident residual stream carried across the layer grid axis.
    """
    l = pl.program_id(1)

    @pl.when(l == 0)
    def _():
        out_ref[...] = xs_ref[...]

    bt, sp, c = out_ref.shape
    nh = num_heads
    hd = c // nh
    m = bt * sp
    bf16 = jnp.bfloat16

    vec = vec_ref[...]
    ln1_g, ln1_b = vec[0:1, :], vec[1:2, :]
    ln2_g, ln2_b = vec[2:3, :], vec[3:4, :]
    gamma1, gamma2 = vec[4:5, :], vec[5:6, :]

    x = out_ref[...].reshape(m, c)                           # f32 residual stream

    # --------------- pre-LN multi-head self-attention (batch x heads) ----------
    h = _layernorm(x, ln1_g, ln1_b)
    qkv = jnp.dot(h.astype(bf16), wqkv_ref[...],
                  preferred_element_type=jnp.float32) + bqkv_ref[...]     # (m, 3c)

    def to_heads(z):                                         # (m, c) -> (nh*bt, sp, hd)
        z = z.reshape(m, nh, hd).swapaxes(0, 1)              # (nh, m, hd)
        return z.reshape(nh * bt, sp, hd)

    def from_heads(z):                                       # (nh*bt, sp, hd) -> (m, c)
        z = z.reshape(nh, m, hd).swapaxes(0, 1)              # (m, nh, hd)
        return z.reshape(m, c)

    # 1/sqrt(hd) scale is pre-folded into the q columns of w_qkv / b_qkv.
    q = to_heads(qkv[:, 0:c].astype(bf16))
    k = to_heads(qkv[:, c:2 * c].astype(bf16))
    v = to_heads(qkv[:, 2 * c:3 * c].astype(bf16))

    s = jnp.einsum("bqd,bkd->bqk", q, k,
                   preferred_element_type=jnp.float32)       # (nh*bt, sp, sp)
    if sp > s_real:                                          # mask padded key cols
        kcol = jax.lax.broadcasted_iota(jnp.int32, (1, 1, sp), 2)
        s = jnp.where(kcol < s_real, s, -1e30)
    s = s - jnp.max(s, axis=-1, keepdims=True)
    p = jnp.exp(s)
    p = p * pl.reciprocal(jnp.sum(p, axis=-1, keepdims=True), approx=True)
    o = jnp.einsum("bqk,bkd->bqd", p.astype(bf16), v,
                   preferred_element_type=jnp.float32)       # (nh*bt, sp, hd)
    attn = from_heads(o)                                     # (m, c)

    attn = jnp.dot(attn.astype(bf16), wo_ref[...],
                   preferred_element_type=jnp.float32) + bo_ref[...]
    x = x + gamma1 * attn

    # ------------------------------ pre-LN GELU MLP ---------------------------
    h = _layernorm(x, ln2_g, ln2_b)
    h = jnp.dot(h.astype(bf16), w1_ref[...],
                preferred_element_type=jnp.float32) + b1_ref[...]
    h = _gelu_exact(h)                                       # exact-erf nn.GELU()
    h = jnp.dot(h.astype(bf16), w2_ref[...],
                preferred_element_type=jnp.float32) + b2_ref[...]
    x = x + gamma2 * h

    out_ref[...] = x.reshape(bt, sp, c)


# ------------------------------ pallas wrappers -------------------------------

def visual_embed_call(patches, w_bf16, b, pos, ln_g, ln_b):
    B, N, P = patches.shape
    E = w_bf16.shape[1]
    return pl.pallas_call(
        visual_embed_kernel,
        out_shape=jax.ShapeDtypeStruct((B, N, E), jnp.float32),
        grid=(B,),
        in_specs=[
            pl.BlockSpec((None, N, P), lambda i: (i, 0, 0)),   # bf16 patches, tiled
            pl.BlockSpec((P, E), lambda i: (0, 0)),            # weight, resident
            pl.BlockSpec((1, E), lambda i: (0, 0)),
            pl.BlockSpec((N, E), lambda i: (0, 0)),            # pos, passed once
            pl.BlockSpec((1, E), lambda i: (0, 0)),
            pl.BlockSpec((1, E), lambda i: (0, 0)),
        ],
        out_specs=pl.BlockSpec((None, N, E), lambda i: (i, 0, 0)),
        compiler_params=pltpu.CompilerParams(dimension_semantics=("parallel",)),
    )(patches, w_bf16, b, pos, ln_g, ln_b)


def token_embed_call(tok_emb, pos, tok_type, ln_g, ln_b):
    B, L, E = tok_emb.shape
    return pl.pallas_call(
        token_embed_kernel,
        out_shape=jax.ShapeDtypeStruct((B, L, E), jnp.float32),
        grid=(B,),
        in_specs=[
            pl.BlockSpec((None, L, E), lambda i: (i, 0, 0)),
            pl.BlockSpec((L, E), lambda i: (0, 0)),            # pos, passed once
            pl.BlockSpec((1, E), lambda i: (0, 0)),
            pl.BlockSpec((1, E), lambda i: (0, 0)),
            pl.BlockSpec((1, E), lambda i: (0, 0)),
        ],
        out_specs=pl.BlockSpec((None, L, E), lambda i: (i, 0, 0)),
        compiler_params=pltpu.CompilerParams(dimension_semantics=("parallel",)),
    )(tok_emb, pos, tok_type, ln_g, ln_b)


def _pick_block_batch(B, requested):
    bt = max(1, min(int(requested), B))
    while B % bt:
        bt -= 1
    return bt


def _vmem_limit_bytes(needed):
    cap = 64 * 1024 * 1024                     # v7x-safe fallback
    try:
        info = pltpu.get_tpu_info()
        cap = int(getattr(info, "vmem_capacity_bytes", cap))
    except Exception:
        pass
    limit = max(int(needed * 1.5), 32 * 1024 * 1024)
    return min(limit, cap - 8 * 1024 * 1024)   # headroom for Mosaic scratch


def layer_stack_call(xs, stacked, num_heads, s_real, block_batch):
    B, Sp, C = xs.shape
    D, _, I = stacked["w1"].shape
    Bt = block_batch
    assert B % Bt == 0
    m = Bt * Sp

    kernel = functools.partial(layer_stack_kernel,
                               num_heads=num_heads, s_real=s_real)

    def wspec(shape):
        # leading depth axis squeezed; block index tracks the layer grid axis.
        return pl.BlockSpec((None,) + shape, lambda bi, l: (l, 0, 0))

    # VMEM budget: double-buffered per-layer weight slab + activation blocks
    # + in-kernel intermediates (qkv, mlp, scores), with headroom in the helper.
    weight_slab = (2 * (3 * C * C + C * C + 2 * C * I)       # bf16 weights
                   + 4 * (5 * C + I) + 4 * 6 * C)            # f32 biases + vecs
    act_block = m * C * 4
    intermediates = 4 * (m * (3 * C + I + 2 * C) + Bt * num_heads * Sp * Sp * 2)
    needed = 2 * weight_slab + 4 * act_block + intermediates

    return pl.pallas_call(
        kernel,
        out_shape=jax.ShapeDtypeStruct((B, Sp, C), jnp.float32),
        grid=(B // Bt, D),
        in_specs=[
            pl.BlockSpec((Bt, Sp, C), lambda bi, l: (bi, 0, 0)),  # xs, resident over l
            wspec((C, 3 * C)), wspec((1, 3 * C)),                 # w_qkv, b_qkv
            wspec((C, C)),     wspec((1, C)),                     # w_o,  b_o
            wspec((C, I)),     wspec((1, I)),                     # w1,   b1
            wspec((I, C)),     wspec((1, C)),                     # w2,   b2
            wspec((6, C)),                                        # ln/gamma vecs
        ],
        out_specs=pl.BlockSpec((Bt, Sp, C), lambda bi, l: (bi, 0, 0)),
        compiler_params=pltpu.CompilerParams(
            dimension_semantics=("parallel", "arbitrary"),
            vmem_limit_bytes=_vmem_limit_bytes(needed)),
    )(xs, stacked["w_qkv"], stacked["b_qkv"], stacked["w_o"], stacked["b_o"],
      stacked["w1"], stacked["b1"], stacked["w2"], stacked["b2"], stacked["vecs"])


# ---------------------------------- glue --------------------------------------

def patchify(img, ps, dtype=jnp.float32):
    """NCHW image -> (B, num_patches, Cin*ps*ps), matching Conv2d(k=s=ps)."""
    B, Cin, H, W = img.shape
    Hp, Wp = H // ps, W // ps
    x = img.reshape(B, Cin, Hp, ps, Wp, ps)
    x = x.transpose(0, 2, 4, 1, 3, 5)                 # (B, Hp, Wp, Cin, ps, ps)
    return x.reshape(B, Hp * Wp, Cin * ps * ps).astype(dtype)


def _stack_layers(layers, num_heads):
    """Stack per-layer params along a leading depth axis.

    Matmul weights -> bf16; the 1/sqrt(hd) attention scale is folded into the
    q columns of w_qkv / b_qkv so the kernel never multiplies by it.
    """
    E = layers[0]["w_qkv"].shape[0]
    hd = E // num_heads
    scale = hd ** (-0.5)
    qscale = jnp.concatenate([jnp.full((E,), scale, jnp.float32),
                              jnp.ones((2 * E,), jnp.float32)])

    def cat(key):
        return jnp.stack([lp[key] for lp in layers], axis=0)

    return {
        "w_qkv": (cat("w_qkv") * qscale).astype(jnp.bfloat16),
        "b_qkv": cat("b_qkv") * qscale,
        "w_o":   cat("w_o").astype(jnp.bfloat16), "b_o": cat("b_o"),
        "w1":    cat("w1").astype(jnp.bfloat16),  "b1":  cat("b1"),
        "w2":    cat("w2").astype(jnp.bfloat16),  "b2":  cat("b2"),
        "vecs":  cat("vecs"),
    }


def unified_bert_encoder(img, question, params, cfg):
    ps, nh = cfg["patch_size"], cfg["num_heads"]
    B = img.shape[0]

    # --- VisualPatchEmbedding (conv == patchify + matmul; pos resize is identity) ---
    patches = patchify(img, ps, jnp.bfloat16)                      # (B, N, P) bf16
    _, N, P = patches.shape
    pos = params["spatial_pos"] + params["temporal_pos"][0:1]      # (N, E)
    vis = visual_embed_call(
        patches, params["patch_w"].astype(jnp.bfloat16), params["patch_b"],
        pos, params["vis_ln_g"], params["vis_ln_b"])               # (B, N, E)
    E = vis.shape[-1]

    # --- TokenBaseEmbedding (vocab gather stays in XLA) ---
    L = question.shape[1]
    tok_emb = jnp.take(params["word_emb"], question, axis=0)       # (B, L, E)
    tok = token_embed_call(tok_emb, params["pos_emb"][:L],
                           params["tok_type"][0:1],
                           params["tok_ln_g"], params["tok_ln_b"])  # (B, L, E)

    # --- fused MultiModelBertLayer stack over the padded joint sequence ---
    xs = jnp.concatenate([vis, tok], axis=1)                       # (B, S, E)
    S = N + L
    Sp = -(-S // 16) * 16      # sublane/bf16-pack aligned; padded keys masked in-kernel
    if Sp != S:
        xs = jnp.pad(xs, ((0, 0), (0, Sp - S), (0, 0)))

    stacked = _stack_layers(params["layers"], nh)
    # Tuning note: on v5e/v6e (1 TC) set block_batch = B (weights streamed once);
    # on v7x keep B // block_batch >= 2 so both TensorCores get a batch block.
    Bt = _pick_block_batch(B, cfg.get("block_batch", max(1, B // 2)))
    xs = layer_stack_call(xs, stacked, nh, S, Bt)

    return xs[:, :N, :], xs[:, N:S, :]


# ----------------------------- pure-JAX reference ------------------------------

def _ln_ref(x, g, b, eps=1e-5):
    mu = x.mean(-1, keepdims=True)
    var = ((x - mu) ** 2).mean(-1, keepdims=True)
    return (x - mu) * jax.lax.rsqrt(var + eps) * g + b


def _layer_ref(xs, p, nh):
    B, S, C = xs.shape
    hd = C // nh
    scale = hd ** (-0.5)
    vec = p["vecs"]
    h = _ln_ref(xs, vec[0], vec[1])
    qkv = h @ p["w_qkv"] + p["b_qkv"]
    qkv = qkv.reshape(B, S, 3, nh, hd).transpose(2, 0, 3, 1, 4)
    q, k, v = qkv[0], qkv[1], qkv[2]
    attn = jnp.einsum("bhqd,bhkd->bhqk", q, k) * scale
    attn = jax.nn.softmax(attn, axis=-1)
    o = jnp.einsum("bhqk,bhkd->bhqd", attn, v).transpose(0, 2, 1, 3).reshape(B, S, C)
    o = o @ p["w_o"] + p["b_o"]
    xs = xs + vec[4] * o
    h = _ln_ref(xs, vec[2], vec[3])
    h = jax.nn.gelu(h @ p["w1"] + p["b1"], approximate=False) @ p["w2"] + p["b2"]
    return xs + vec[5] * h


def reference_forward(img, question, params, cfg):
    ps, nh = cfg["patch_size"], cfg["num_heads"]
    patches = patchify(img, ps)
    vis = patches @ params["patch_w"] + params["patch_b"]
    pos = params["spatial_pos"] + params["temporal_pos"][0:1]
    vis = _ln_ref(vis + pos[None], params["vis_ln_g"], params["vis_ln_b"])

    L = question.shape[1]
    tok = jnp.take(params["word_emb"], question, axis=0)
    tok = tok + params["pos_emb"][:L][None] + params["tok_type"][0:1][None]
    tok = _ln_ref(tok, params["tok_ln_g"], params["tok_ln_b"])

    xs = jnp.concatenate([vis, tok], axis=1)
    for lp in params["layers"]:
        xs = _layer_ref(xs, lp, nh)
    N = vis.shape[1]
    return xs[:, :N, :], xs[:, N:, :]


# ------------------------------ param construction -----------------------------

def init_params(key, cfg):
    E = cfg["embed_dim"]
    I = int(E * cfg["mlp_ratio"])
    ps, Cin = cfg["patch_size"], cfg["in_chans"]
    P = Cin * ps * ps
    N = (cfg["img_size"] // ps) ** 2

    def nrm(k, shape, scale=0.02):
        return (scale * jax.random.normal(k, shape)).astype(jnp.float32)

    keys = jax.random.split(key, 16 + cfg["depth"])
    params = {
        "patch_w": nrm(keys[0], (P, E)),
        "patch_b": nrm(keys[1], (1, E)),
        "spatial_pos": nrm(keys[2], (N, E)),
        "temporal_pos": nrm(keys[3], (8, E)),
        "vis_ln_g": jnp.ones((1, E), jnp.float32),
        "vis_ln_b": jnp.zeros((1, E), jnp.float32),
        "word_emb": nrm(keys[4], (cfg["vocab_size"], E)),
        "pos_emb": nrm(keys[5], (512, E)),
        "tok_type": nrm(keys[6], (2, E)),
        "tok_ln_g": jnp.ones((1, E), jnp.float32),
        "tok_ln_b": jnp.zeros((1, E), jnp.float32),
        "layers": [],
    }
    for d in range(cfg["depth"]):
        lk = jax.random.split(keys[16 + d], 10)
        vecs = jnp.concatenate(
            [jnp.ones((1, E), jnp.float32),       # ln1 gamma
             jnp.zeros((1, E), jnp.float32),      # ln1 beta
             jnp.ones((1, E), jnp.float32),       # ln2 gamma
             jnp.zeros((1, E), jnp.float32),      # ln2 beta
             nrm(lk[8], (1, E), 0.1),             # gamma_1 (nonzero for a meaningful test)
             nrm(lk[9], (1, E), 0.1)],            # gamma_2
            axis=0)
        params["layers"].append({
            "w_qkv": nrm(lk[0], (E, 3 * E)),
            "b_qkv": nrm(lk[1], (1, 3 * E)),
            "w_o": nrm(lk[2], (E, E)),
            "b_o": nrm(lk[3], (1, E)),
            "w1": nrm(lk[4], (E, I)),
            "b1": nrm(lk[5], (1, I)),
            "w2": nrm(lk[6], (I, E)),
            "b2": nrm(lk[7], (1, E)),
            "vecs": vecs,
        })
    return params


# ------------------------------------ main -------------------------------------

if __name__ == "__main__":
    cfg = dict(img_size=32, patch_size=16, in_chans=3, embed_dim=256,
               depth=2, num_heads=2, mlp_ratio=4.0, vocab_size=49411,
               # v7x: keep B // block_batch >= 2 (dual TensorCore sharding);
               # v5e/v6e: set block_batch = B to stream the weight stack once.
               block_batch=2)

    key = jax.random.PRNGKey(0)
    k_img, k_q, k_p = jax.random.split(key, 3)

    B, Lq = 4, 8
    img = jax.random.normal(k_img, (B, cfg["in_chans"], cfg["img_size"],
                                    cfg["img_size"]), dtype=jnp.float32)
    question = jax.random.randint(k_q, (B, Lq), 0, cfg["vocab_size"],
                                  dtype=jnp.int32)
    params = init_params(k_p, cfg)

    fwd = jax.jit(functools.partial(unified_bert_encoder, cfg=cfg))
    x_out, q_out = fwd(img, question, params)
    jax.block_until_ready((x_out, q_out))

    # correctness check against the pure-JAX f32 reference (bf16 MXU inputs in
    # the kernel keep errors well inside this tolerance at these magnitudes).
    x_ref, q_ref = reference_forward(img, question, params, cfg)
    np.testing.assert_allclose(np.asarray(x_out), np.asarray(x_ref),
                               rtol=2e-2, atol=2e-2)
    np.testing.assert_allclose(np.asarray(q_out), np.asarray(q_ref),
                               rtol=2e-2, atol=2e-2)

    print("KERNEL_OK")
</pallas_src>

<mosaic_0001>
module attributes {stable_mosaic.version = 11 : i64} {
  func.func @visual_embed_kernel(%arg0: i32, %arg1: memref<1x4x768xbf16, #tpu.memory_space<vmem>>, %arg2: memref<768x256xbf16, #tpu.memory_space<vmem>>, %arg3: memref<1x256xf32, #tpu.memory_space<vmem>>, %arg4: memref<4x256xf32, #tpu.memory_space<vmem>>, %arg5: memref<1x256xf32, #tpu.memory_space<vmem>>, %arg6: memref<1x256xf32, #tpu.memory_space<vmem>>, %arg7: memref<1x4x256xf32, #tpu.memory_space<vmem>>) attributes {dimension_semantics = [#tpu.dimension_semantics<parallel>], iteration_bounds = array<i64: 4>, scalar_prefetch = 0 : i64, scratch_operands = 0 : i64, tpu.core_type = #tpu.core_type<tc>, window_params = [{transform_indices = @transform_0, window_bounds = array<i64: 1, 4, 768>}, {pipeline_mode = #tpu.pipeline_mode<synchronous>, transform_indices = @transform_1, window_bounds = array<i64: 768, 256>}, {pipeline_mode = #tpu.pipeline_mode<synchronous>, transform_indices = @transform_2, window_bounds = array<i64: 1, 256>}, {pipeline_mode = #tpu.pipeline_mode<synchronous>, transform_indices = @transform_3, window_bounds = array<i64: 4, 256>}, {pipeline_mode = #tpu.pipeline_mode<synchronous>, transform_indices = @transform_4, window_bounds = array<i64: 1, 256>}, {pipeline_mode = #tpu.pipeline_mode<synchronous>, transform_indices = @transform_5, window_bounds = array<i64: 1, 256>}, {transform_indices = @transform_6, window_bounds = array<i64: 1, 4, 256>}]} {
    %c0 = arith.constant 0 : index
    %c0_0 = arith.constant 0 : index
    %c0_1 = arith.constant 0 : index
    %0 = vector.load %arg1[%c0, %c0_0, %c0_1] : memref<1x4x768xbf16, #tpu.memory_space<vmem>>, vector<1x4x768xbf16>
    %1 = vector.shape_cast %0 : vector<1x4x768xbf16> to vector<4x768xbf16>
    %c0_2 = arith.constant 0 : index
    %c0_3 = arith.constant 0 : index
    %2 = vector.load %arg2[%c0_2, %c0_3] : memref<768x256xbf16, #tpu.memory_space<vmem>>, vector<768x256xbf16>
    %cst = arith.constant dense<0.000000e+00> : vector<4x256xf32>
    %3 = tpu.matmul %1, %2, %cst {dimension_numbers = #tpu.dot_dimension_numbers<[1], [0], [0], [1], [0, 0, 1, 1], [], []>} : vector<4x768xbf16>, vector<768x256xbf16>, vector<4x256xf32> -> vector<4x256xf32>
    %c0_4 = arith.constant 0 : index
    %c0_5 = arith.constant 0 : index
    %4 = vector.load %arg3[%c0_4, %c0_5] : memref<1x256xf32, #tpu.memory_space<vmem>>, vector<1x256xf32>
    %5 = vector.broadcast %4 : vector<1x256xf32> to vector<4x256xf32>
    %6 = arith.addf %3, %5 : vector<4x256xf32>
    %c0_6 = arith.constant 0 : index
    %c0_7 = arith.constant 0 : index
    %7 = vector.load %arg4[%c0_6, %c0_7] : memref<4x256xf32, #tpu.memory_space<vmem>>, vector<4x256xf32>
    %8 = arith.addf %6, %7 : vector<4x256xf32>
    %c0_8 = arith.constant 0 : index
    %c0_9 = arith.constant 0 : index
    %9 = vector.load %arg5[%c0_8, %c0_9] : memref<1x256xf32, #tpu.memory_space<vmem>>, vector<1x256xf32>
    %c0_10 = arith.constant 0 : index
    %c0_11 = arith.constant 0 : index
    %10 = vector.load %arg6[%c0_10, %c0_11] : memref<1x256xf32, #tpu.memory_space<vmem>>, vector<1x256xf32>
    %cst_12 = arith.constant dense<0.000000e+00> : vector<4xf32>
    %11 = vector.multi_reduction <add>, %8, %cst_12 [1] : vector<4x256xf32> to vector<4xf32>
    %12 = vector.shape_cast %11 : vector<4xf32> to vector<4x1xf32>
    %cst_13 = arith.constant 2.560000e+02 : f32
    %13 = vector.broadcast %cst_13 : f32 to vector<4x1xf32>
    %14 = arith.divf %12, %13 : vector<4x1xf32>
    %15 = vector.broadcast %14 : vector<4x1xf32> to vector<4x256xf32>
    %16 = arith.subf %8, %15 : vector<4x256xf32>
    %17 = arith.mulf %16, %16 : vector<4x256xf32>
    %cst_14 = arith.constant dense<0.000000e+00> : vector<4xf32>
    %18 = vector.multi_reduction <add>, %17, %cst_14 [1] : vector<4x256xf32> to vector<4xf32>
    %19 = vector.shape_cast %18 : vector<4xf32> to vector<4x1xf32>
    %cst_15 = arith.constant 2.560000e+02 : f32
    %20 = vector.broadcast %cst_15 : f32 to vector<4x1xf32>
    %21 = arith.divf %19, %20 : vector<4x1xf32>
    %22 = vector.broadcast %14 : vector<4x1xf32> to vector<4x256xf32>
    %23 = arith.subf %8, %22 : vector<4x256xf32>
    %cst_16 = arith.constant 9.99999974E-6 : f32
    %24 = vector.broadcast %cst_16 : f32 to vector<4x1xf32>
    %25 = arith.addf %21, %24 : vector<4x1xf32>
    %26 = math.rsqrt %25 : vector<4x1xf32>
    %27 = vector.broadcast %26 : vector<4x1xf32> to vector<4x256xf32>
    %28 = arith.mulf %23, %27 : vector<4x256xf32>
    %29 = vector.broadcast %9 : vector<1x256xf32> to vector<4x256xf32>
    %30 = arith.mulf %28, %29 : vector<4x256xf32>
    %31 = vector.broadcast %10 : vector<1x256xf32> to vector<4x256xf32>
    %32 = arith.addf %30, %31 : vector<4x256xf32>
    %c0_17 = arith.constant 0 : index
    %c0_18 = arith.constant 0 : index
    %c0_19 = arith.constant 0 : index
    %33 = vector.load %arg7[%c0_17, %c0_18, %c0_19] : memref<1x4x256xf32, #tpu.memory_space<vmem>>, vector<1x4x256xf32>
    %34 = vector.shape_cast %33 : vector<1x4x256xf32> to vector<4x256xf32>
    %35 = vector.shape_cast %32 : vector<4x256xf32> to vector<1x4x256xf32>
    tpu.vector_store %arg7[%c0_17, %c0_18, %c0_19], %35 {strides = array<i32>} : memref<1x4x256xf32, #tpu.memory_space<vmem>>, vector<1x4x256xf32>,
    return
  }
  func.func @transform_0(%arg0: i32) -> (i32, i32, i32) {
    %c0_i32 = arith.constant 0 : i32
    %c0_i32_0 = arith.constant 0 : i32
    %c0_i32_1 = arith.constant 0 : i32
    return %arg0, %c0_i32, %c0_i32_0 : i32, i32, i32
  }
  func.func @transform_1(%arg0: i32) -> (i32, i32) {
    %c0_i32 = arith.constant 0 : i32
    %c0_i32_0 = arith.constant 0 : i32
    %c0_i32_1 = arith.constant 0 : i32
    return %c0_i32, %c0_i32_0 : i32, i32
  }
  func.func @transform_2(%arg0: i32) -> (i32, i32) {
    %c0_i32 = arith.constant 0 : i32
    %c0_i32_0 = arith.constant 0 : i32
    %c0_i32_1 = arith.constant 0 : i32
    return %c0_i32, %c0_i32_0 : i32, i32
  }
  func.func @transform_3(%arg0: i32) -> (i32, i32) {
    %c0_i32 = arith.constant 0 : i32
    %c0_i32_0 = arith.constant 0 : i32
    %c0_i32_1 = arith.constant 0 : i32
    return %c0_i32, %c0_i32_0 : i32, i32
  }
  func.func @transform_4(%arg0: i32) -> (i32, i32) {
    %c0_i32 = arith.constant 0 : i32
    %c0_i32_0 = arith.constant 0 : i32
    %c0_i32_1 = arith.constant 0 : i32
    return %c0_i32, %c0_i32_0 : i32, i32
  }
  func.func @transform_5(%arg0: i32) -> (i32, i32) {
    %c0_i32 = arith.constant 0 : i32
    %c0_i32_0 = arith.constant 0 : i32
    %c0_i32_1 = arith.constant 0 : i32
    return %c0_i32, %c0_i32_0 : i32, i32
  }
  func.func @transform_6(%arg0: i32) -> (i32, i32, i32) {
    %c0_i32 = arith.constant 0 : i32
    %c0_i32_0 = arith.constant 0 : i32
    %c0_i32_1 = arith.constant 0 : i32
    return %arg0, %c0_i32, %c0_i32_0 : i32, i32, i32
  }
}

module attributes {stable_mosaic.version = 11 : i64} {
  func.func @token_embed_kernel(%arg0: i32, %arg1: memref<1x8x256xf32, #tpu.memory_space<vmem>>, %arg2: memref<8x256xf32, #tpu.memory_space<vmem>>, %arg3: memref<1x256xf32, #tpu.memory_space<vmem>>, %arg4: memref<1x256xf32, #tpu.memory_space<vmem>>, %arg5: memref<1x256xf32, #tpu.memory_space<vmem>>, %arg6: memref<1x8x256xf32, #tpu.memory_space<vmem>>) attributes {dimension_semantics = [#tpu.dimension_semantics<parallel>], iteration_bounds = array<i64: 4>, scalar_prefetch = 0 : i64, scratch_operands = 0 : i64, tpu.core_type = #tpu.core_type<tc>, window_params = [{transform_indices = @transform_0, window_bounds = array<i64: 1, 8, 256>}, {pipeline_mode = #tpu.pipeline_mode<synchronous>, transform_indices = @transform_1, window_bounds = array<i64: 8, 256>}, {pipeline_mode = #tpu.pipeline_mode<synchronous>, transform_indices = @transform_2, window_bounds = array<i64: 1, 256>}, {pipeline_mode = #tpu.pipeline_mode<synchronous>, transform_indices = @transform_3, window_bounds = array<i64: 1, 256>}, {pipeline_mode = #tpu.pipeline_mode<synchronous>, transform_indices = @transform_4, window_bounds = array<i64: 1, 256>}, {transform_indices = @transform_5, window_bounds = array<i64: 1, 8, 256>}]} {
    %c0 = arith.constant 0 : index
    %c0_0 = arith.constant 0 : index
    %c0_1 = arith.constant 0 : index
    %0 = vector.load %arg1[%c0, %c0_0, %c0_1] : memref<1x8x256xf32, #tpu.memory_space<vmem>>, vector<1x8x256xf32>
    %1 = vector.shape_cast %0 : vector<1x8x256xf32> to vector<8x256xf32>
    %c0_2 = arith.constant 0 : index
    %c0_3 = arith.constant 0 : index
    %2 = vector.load %arg2[%c0_2, %c0_3] : memref<8x256xf32, #tpu.memory_space<vmem>>, vector<8x256xf32>
    %3 = arith.addf %1, %2 : vector<8x256xf32>
    %c0_4 = arith.constant 0 : index
    %c0_5 = arith.constant 0 : index
    %4 = vector.load %arg3[%c0_4, %c0_5] : memref<1x256xf32, #tpu.memory_space<vmem>>, vector<1x256xf32>
    %5 = vector.broadcast %4 : vector<1x256xf32> to vector<8x256xf32>
    %6 = arith.addf %3, %5 : vector<8x256xf32>
    %c0_6 = arith.constant 0 : index
    %c0_7 = arith.constant 0 : index
    %7 = vector.load %arg4[%c0_6, %c0_7] : memref<1x256xf32, #tpu.memory_space<vmem>>, vector<1x256xf32>
    %c0_8 = arith.constant 0 : index
    %c0_9 = arith.constant 0 : index
    %8 = vector.load %arg5[%c0_8, %c0_9] : memref<1x256xf32, #tpu.memory_space<vmem>>, vector<1x256xf32>
    %cst = arith.constant dense<0.000000e+00> : vector<8xf32>
    %9 = vector.multi_reduction <add>, %6, %cst [1] : vector<8x256xf32> to vector<8xf32>
    %10 = vector.shape_cast %9 : vector<8xf32> to vector<8x1xf32>
    %cst_10 = arith.constant 2.560000e+02 : f32
    %11 = vector.broadcast %cst_10 : f32 to vector<8x1xf32>
    %12 = arith.divf %10, %11 : vector<8x1xf32>
    %13 = vector.broadcast %12 : vector<8x1xf32> to vector<8x256xf32>
    %14 = arith.subf %6, %13 : vector<8x256xf32>
    %15 = arith.mulf %14, %14 : vector<8x256xf32>
    %cst_11 = arith.constant dense<0.000000e+00> : vector<8xf32>
    %16 = vector.multi_reduction <add>, %15, %cst_11 [1] : vector<8x256xf32> to vector<8xf32>
    %17 = vector.shape_cast %16 : vector<8xf32> to vector<8x1xf32>
    %cst_12 = arith.constant 2.560000e+02 : f32
    %18 = vector.broadcast %cst_12 : f32 to vector<8x1xf32>
    %19 = arith.divf %17, %18 : vector<8x1xf32>
    %20 = vector.broadcast %12 : vector<8x1xf32> to vector<8x256xf32>
    %21 = arith.subf %6, %20 : vector<8x256xf32>
    %cst_13 = arith.constant 9.99999974E-6 : f32
    %22 = vector.broadcast %cst_13 : f32 to vector<8x1xf32>
    %23 = arith.addf %19, %22 : vector<8x1xf32>
    %24 = math.rsqrt %23 : vector<8x1xf32>
    %25 = vector.broadcast %24 : vector<8x1xf32> to vector<8x256xf32>
    %26 = arith.mulf %21, %25 : vector<8x256xf32>
    %27 = vector.broadcast %7 : vector<1x256xf32> to vector<8x256xf32>
    %28 = arith.mulf %26, %27 : vector<8x256xf32>
    %29 = vector.broadcast %8 : vector<1x256xf32> to vector<8x256xf32>
    %30 = arith.addf %28, %29 : vector<8x256xf32>
    %c0_14 = arith.constant 0 : index
    %c0_15 = arith.constant 0 : index
    %c0_16 = arith.constant 0 : index
    %31 = vector.load %arg6[%c0_14, %c0_15, %c0_16] : memref<1x8x256xf32, #tpu.memory_space<vmem>>, vector<1x8x256xf32>
    %32 = vector.shape_cast %31 : vector<1x8x256xf32> to vector<8x256xf32>
    %33 = vector.shape_cast %30 : vector<8x256xf32> to vector<1x8x256xf32>
    tpu.vector_store %arg6[%c0_14, %c0_15, %c0_16], %33 {strides = array<i32>} : memref<1x8x256xf32, #tpu.memory_space<vmem>>, vector<1x8x256xf32>,
    return
  }
  func.func @transform_0(%arg0: i32) -> (i32, i32, i32) {
    %c0_i32 = arith.constant 0 : i32
    %c0_i32_0 = arith.constant 0 : i32
    %c0_i32_1 = arith.constant 0 : i32
    return %arg0, %c0_i32, %c0_i32_0 : i32, i32, i32
  }
  func.func @transform_1(%arg0: i32) -> (i32, i32) {
    %c0_i32 = arith.constant 0 : i32
    %c0_i32_0 = arith.constant 0 : i32
    %c0_i32_1 = arith.constant 0 : i32
    return %c0_i32, %c0_i32_0 : i32, i32
  }
  func.func @transform_2(%arg0: i32) -> (i32, i32) {
    %c0_i32 = arith.constant 0 : i32
    %c0_i32_0 = arith.constant 0 : i32
    %c0_i32_1 = arith.constant 0 : i32
    return %c0_i32, %c0_i32_0 : i32, i32
  }
  func.func @transform_3(%arg0: i32) -> (i32, i32) {
    %c0_i32 = arith.constant 0 : i32
    %c0_i32_0 = arith.constant 0 : i32
    %c0_i32_1 = arith.constant 0 : i32
    return %c0_i32, %c0_i32_0 : i32, i32
  }
  func.func @transform_4(%arg0: i32) -> (i32, i32) {
    %c0_i32 = arith.constant 0 : i32
    %c0_i32_0 = arith.constant 0 : i32
    %c0_i32_1 = arith.constant 0 : i32
    return %c0_i32, %c0_i32_0 : i32, i32
  }
  func.func @transform_5(%arg0: i32) -> (i32, i32, i32) {
    %c0_i32 = arith.constant 0 : i32
    %c0_i32_0 = arith.constant 0 : i32
    %c0_i32_1 = arith.constant 0 : i32
    return %arg0, %c0_i32, %c0_i32_0 : i32, i32, i32
  }
}

module attributes {stable_mosaic.version = 11 : i64} {
  func.func @layer_stack_kernel(%arg0: i32, %arg1: i32, %arg2: memref<2x16x256xf32, #tpu.memory_space<vmem>>, %arg3: memref<1x256x768xbf16, #tpu.memory_space<vmem>>, %arg4: memref<1x1x768xf32, #tpu.memory_space<vmem>>, %arg5: memref<1x256x256xbf16, #tpu.memory_space<vmem>>, %arg6: memref<1x1x256xf32, #tpu.memory_space<vmem>>, %arg7: memref<1x256x1024xbf16, #tpu.memory_space<vmem>>, %arg8: memref<1x1x1024xf32, #tpu.memory_space<vmem>>, %arg9: memref<1x1024x256xbf16, #tpu.memory_space<vmem>>, %arg10: memref<1x1x256xf32, #tpu.memory_space<vmem>>, %arg11: memref<1x6x256xf32, #tpu.memory_space<vmem>>, %arg12: memref<2x16x256xf32, #tpu.memory_space<vmem>>) attributes {dimension_semantics = [#tpu.dimension_semantics<parallel>, #tpu.dimension_semantics<arbitrary>], iteration_bounds = array<i64: 2, 2>, scalar_prefetch = 0 : i64, scratch_operands = 0 : i64, tpu.core_type = #tpu.core_type<tc>, window_params = [{transform_indices = @transform_0, window_bounds = array<i64: 2, 16, 256>}, {transform_indices = @transform_1, window_bounds = array<i64: 1, 256, 768>}, {transform_indices = @transform_2, window_bounds = array<i64: 1, 1, 768>}, {transform_indices = @transform_3, window_bounds = array<i64: 1, 256, 256>}, {transform_indices = @transform_4, window_bounds = array<i64: 1, 1, 256>}, {transform_indices = @transform_5, window_bounds = array<i64: 1, 256, 1024>}, {transform_indices = @transform_6, window_bounds = array<i64: 1, 1, 1024>}, {transform_indices = @transform_7, window_bounds = array<i64: 1, 1024, 256>}, {transform_indices = @transform_8, window_bounds = array<i64: 1, 1, 256>}, {transform_indices = @transform_9, window_bounds = array<i64: 1, 6, 256>}, {transform_indices = @transform_10, window_bounds = array<i64: 2, 16, 256>}]} {
    %c0_i32 = arith.constant 0 : i32
    %0 = arith.cmpi eq, %arg1, %c0_i32 : i32
    %1 = arith.extui %0 : i1 to i32
    %c0_i32_0 = arith.constant 0 : i32
    %2 = arith.cmpi ne, %1, %c0_i32_0 : i32
    scf.if %2 {
      %c0_66 = arith.constant 0 : index
      %c0_67 = arith.constant 0 : index
      %c0_68 = arith.constant 0 : index
      %175 = vector.load %arg2[%c0_66, %c0_67, %c0_68] : memref<2x16x256xf32, #tpu.memory_space<vmem>>, vector<2x16x256xf32>
      %c0_69 = arith.constant 0 : index
      %c0_70 = arith.constant 0 : index
      %c0_71 = arith.constant 0 : index
      %176 = vector.load %arg12[%c0_69, %c0_70, %c0_71] : memref<2x16x256xf32, #tpu.memory_space<vmem>>, vector<2x16x256xf32>
      tpu.vector_store %arg12[%c0_69, %c0_70, %c0_71], %175 {strides = array<i32>} : memref<2x16x256xf32, #tpu.memory_space<vmem>>, vector<2x16x256xf32>,
    } else {
    }
    %c0 = arith.constant 0 : index
    %c0_1 = arith.constant 0 : index
    %c0_2 = arith.constant 0 : index
    %3 = vector.load %arg11[%c0, %c0_1, %c0_2] : memref<1x6x256xf32, #tpu.memory_space<vmem>>, vector<1x6x256xf32>
    %4 = vector.shape_cast %3 : vector<1x6x256xf32> to vector<6x256xf32>
    %5 = vector.extract_strided_slice %4 {offsets = [0, 0], sizes = [1, 256], strides = [1, 1]} : vector<6x256xf32> to vector<1x256xf32>
    %6 = vector.extract_strided_slice %4 {offsets = [1, 0], sizes = [1, 256], strides = [1, 1]} : vector<6x256xf32> to vector<1x256xf32>
    %7 = vector.extract_strided_slice %4 {offsets = [2, 0], sizes = [1, 256], strides = [1, 1]} : vector<6x256xf32> to vector<1x256xf32>
    %8 = vector.extract_strided_slice %4 {offsets = [3, 0], sizes = [1, 256], strides = [1, 1]} : vector<6x256xf32> to vector<1x256xf32>
    %9 = vector.extract_strided_slice %4 {offsets = [4, 0], sizes = [1, 256], strides = [1, 1]} : vector<6x256xf32> to vector<1x256xf32>
    %10 = vector.extract_strided_slice %4 {offsets = [5, 0], sizes = [1, 256], strides = [1, 1]} : vector<6x256xf32> to vector<1x256xf32>
    %c0_3 = arith.constant 0 : index
    %c0_4 = arith.constant 0 : index
    %c0_5 = arith.constant 0 : index
    %11 = vector.load %arg12[%c0_3, %c0_4, %c0_5] : memref<2x16x256xf32, #tpu.memory_space<vmem>>, vector<2x16x256xf32>
    %12 = vector.shape_cast %11 : vector<2x16x256xf32> to vector<32x256xf32>
    %cst = arith.constant dense<0.000000e+00> : vector<32xf32>
    %13 = vector.multi_reduction <add>, %12, %cst [1] : vector<32x256xf32> to vector<32xf32>
    %14 = vector.shape_cast %13 : vector<32xf32> to vector<32x1xf32>
    %cst_6 = arith.constant 2.560000e+02 : f32
    %15 = vector.broadcast %cst_6 : f32 to vector<32x1xf32>
    %16 = arith.divf %14, %15 : vector<32x1xf32>
    %17 = vector.broadcast %16 : vector<32x1xf32> to vector<32x256xf32>
    %18 = arith.subf %12, %17 : vector<32x256xf32>
    %19 = arith.mulf %18, %18 : vector<32x256xf32>
    %cst_7 = arith.constant dense<0.000000e+00> : vector<32xf32>
    %20 = vector.multi_reduction <add>, %19, %cst_7 [1] : vector<32x256xf32> to vector<32xf32>
    %21 = vector.shape_cast %20 : vector<32xf32> to vector<32x1xf32>
    %cst_8 = arith.constant 2.560000e+02 : f32
    %22 = vector.broadcast %cst_8 : f32 to vector<32x1xf32>
    %23 = arith.divf %21, %22 : vector<32x1xf32>
    %24 = vector.broadcast %16 : vector<32x1xf32> to vector<32x256xf32>
    %25 = arith.subf %12, %24 : vector<32x256xf32>
    %cst_9 = arith.constant 9.99999974E-6 : f32
    %26 = vector.broadcast %cst_9 : f32 to vector<32x1xf32>
    %27 = arith.addf %23, %26 : vector<32x1xf32>
    %28 = math.rsqrt %27 : vector<32x1xf32>
    %29 = vector.broadcast %28 : vector<32x1xf32> to vector<32x256xf32>
    %30 = arith.mulf %25, %29 : vector<32x256xf32>
    %31 = vector.broadcast %5 : vector<1x256xf32> to vector<32x256xf32>
    %32 = arith.mulf %30, %31 : vector<32x256xf32>
    %33 = vector.broadcast %6 : vector<1x256xf32> to vector<32x256xf32>
    %34 = arith.addf %32, %33 : vector<32x256xf32>
    %35 = arith.truncf %34 : vector<32x256xf32> to vector<32x256xbf16>
    %c0_10 = arith.constant 0 : index
    %c0_11 = arith.constant 0 : index
    %c0_12 = arith.constant 0 : index
    %36 = vector.load %arg3[%c0_10, %c0_11, %c0_12] : memref<1x256x768xbf16, #tpu.memory_space<vmem>>, vector<1x256x768xbf16>
    %37 = vector.shape_cast %36 : vector<1x256x768xbf16> to vector<256x768xbf16>
    %cst_13 = arith.constant dense<0.000000e+00> : vector<32x768xf32>
    %38 = tpu.matmul %35, %37, %cst_13 {dimension_numbers = #tpu.dot_dimension_numbers<[1], [0], [0], [1], [0, 0, 1, 1], [], []>} : vector<32x256xbf16>, vector<256x768xbf16>, vector<32x768xf32> -> vector<32x768xf32>
    %c0_14 = arith.constant 0 : index
    %c0_15 = arith.constant 0 : index
    %c0_16 = arith.constant 0 : index
    %39 = vector.load %arg4[%c0_14, %c0_15, %c0_16] : memref<1x1x768xf32, #tpu.memory_space<vmem>>, vector<1x1x768xf32>
    %40 = vector.shape_cast %39 : vector<1x1x768xf32> to vector<1x768xf32>
    %41 = vector.broadcast %40 : vector<1x768xf32> to vector<32x768xf32>
    %42 = arith.addf %38, %41 : vector<32x768xf32>
    %43 = vector.extract_strided_slice %42 {offsets = [0, 0], sizes = [32, 256], strides = [1, 1]} : vector<32x768xf32> to vector<32x256xf32>
    %44 = arith.truncf %43 : vector<32x256xf32> to vector<32x256xbf16>
    %45 = vector.shape_cast %44 : vector<32x256xbf16> to vector<32x2x128xbf16>
    %46 = tpu.transpose %45, [1, 0, 2] : vector<32x2x128xbf16> -> vector<2x32x128xbf16>
    %47 = vector.shape_cast %46 : vector<2x32x128xbf16> to vector<4x16x128xbf16>
    %48 = vector.extract_strided_slice %42 {offsets = [0, 256], sizes = [32, 256], strides = [1, 1]} : vector<32x768xf32> to vector<32x256xf32>
    %49 = arith.truncf %48 : vector<32x256xf32> to vector<32x256xbf16>
    %50 = vector.shape_cast %49 : vector<32x256xbf16> to vector<32x2x128xbf16>
    %51 = tpu.transpose %50, [1, 0, 2] : vector<32x2x128xbf16> -> vector<2x32x128xbf16>
    %52 = vector.shape_cast %51 : vector<2x32x128xbf16> to vector<4x16x128xbf16>
    %53 = vector.extract_strided_slice %42 {offsets = [0, 512], sizes = [32, 256], strides = [1, 1]} : vector<32x768xf32> to vector<32x256xf32>
    %54 = arith.truncf %53 : vector<32x256xf32> to vector<32x256xbf16>
    %55 = vector.shape_cast %54 : vector<32x256xbf16> to vector<32x2x128xbf16>
    %56 = tpu.transpose %55, [1, 0, 2] : vector<32x2x128xbf16> -> vector<2x32x128xbf16>
    %57 = vector.shape_cast %56 : vector<2x32x128xbf16> to vector<4x16x128xbf16>
    "tpu.trace_start"() <{level = 10 : i32, message = "bqd,bkd->bqk"}> : () -> ()
    %cst_17 = arith.constant dense<0.000000e+00> : vector<4x16x16xf32>
    %58 = tpu.matmul %47, %52, %cst_17 {dimension_numbers = #tpu.dot_dimension_numbers<[2], [2], [1], [1], [0, 0, 0, 1, 1, 1], [0], [0]>} : vector<4x16x128xbf16>, vector<4x16x128xbf16>, vector<4x16x16xf32> -> vector<4x16x16xf32>
    "tpu.trace_stop"() : () -> ()
    %59 = tpu.iota {dimensions = array<i32: 2>} : vector<1x1x16xi32>
    %c12_i32 = arith.constant 12 : i32
    %60 = vector.broadcast %c12_i32 : i32 to vector<1x1x16xi32>
    %61 = arith.cmpi slt, %59, %60 : vector<1x1x16xi32>
    %cst_18 = arith.constant -1.000000e+30 : f32
    %62 = vector.shape_cast %61 : vector<1x1x16xi1> to vector<1x1x16xi1>
    %63 = vector.broadcast %62 : vector<1x1x16xi1> to vector<4x16x16xi1>
    %64 = vector.broadcast %cst_18 : f32 to vector<4x16x16xf32>
    %65 = arith.select %63, %58, %64 : vector<4x16x16xi1>, vector<4x16x16xf32>
    %cst_19 = arith.constant dense<0xFF800000> : vector<4x16xf32>
    %66 = vector.multi_reduction <maximumf>, %65, %cst_19 [2] : vector<4x16x16xf32> to vector<4x16xf32>
    %67 = vector.shape_cast %66 : vector<4x16xf32> to vector<4x16x1xf32>
    %68 = vector.broadcast %67 : vector<4x16x1xf32> to vector<4x16x16xf32>
    %69 = arith.subf %65, %68 : vector<4x16x16xf32>
    %70 = math.exp %69 : vector<4x16x16xf32>
    %cst_20 = arith.constant dense<0.000000e+00> : vector<4x16xf32>
    %71 = vector.multi_reduction <add>, %70, %cst_20 [2] : vector<4x16x16xf32> to vector<4x16xf32>
    %72 = vector.shape_cast %71 : vector<4x16xf32> to vector<4x16x1xf32>
    %73 = tpu.reciprocal %72 {approx = true} : vector<4x16x1xf32> -> vector<4x16x1xf32>
    %74 = vector.broadcast %73 : vector<4x16x1xf32> to vector<4x16x16xf32>
    %75 = arith.mulf %70, %74 : vector<4x16x16xf32>
    %76 = arith.truncf %75 : vector<4x16x16xf32> to vector<4x16x16xbf16>
    "tpu.trace_start"() <{level = 10 : i32, message = "bqk,bkd->bqd"}> : () -> ()
    %cst_21 = arith.constant dense<0.000000e+00> : vector<4x16x128xf32>
    %77 = tpu.matmul %76, %57, %cst_21 {dimension_numbers = #tpu.dot_dimension_numbers<[2], [1], [1], [2], [0, 0, 0, 1, 1, 2], [0], [0]>} : vector<4x16x16xbf16>, vector<4x16x128xbf16>, vector<4x16x128xf32> -> vector<4x16x128xf32>
    "tpu.trace_stop"() : () -> ()
    %78 = vector.shape_cast %77 : vector<4x16x128xf32> to vector<2x32x128xf32>
    %79 = tpu.transpose %78, [1, 0, 2] : vector<2x32x128xf32> -> vector<32x2x128xf32>
    %80 = vector.shape_cast %79 : vector<32x2x128xf32> to vector<32x256xf32>
    %81 = arith.truncf %80 : vector<32x256xf32> to vector<32x256xbf16>
    %c0_22 = arith.constant 0 : index
    %c0_23 = arith.constant 0 : index
    %c0_24 = arith.constant 0 : index
    %82 = vector.load %arg5[%c0_22, %c0_23, %c0_24] : memref<1x256x256xbf16, #tpu.memory_space<vmem>>, vector<1x256x256xbf16>
    %83 = vector.shape_cast %82 : vector<1x256x256xbf16> to vector<256x256xbf16>
    %cst_25 = arith.constant dense<0.000000e+00> : vector<32x256xf32>
    %84 = tpu.matmul %81, %83, %cst_25 {dimension_numbers = #tpu.dot_dimension_numbers<[1], [0], [0], [1], [0, 0, 1, 1], [], []>} : vector<32x256xbf16>, vector<256x256xbf16>, vector<32x256xf32> -> vector<32x256xf32>
    %c0_26 = arith.constant 0 : index
    %c0_27 = arith.constant 0 : index
    %c0_28 = arith.constant 0 : index
    %85 = vector.load %arg6[%c0_26, %c0_27, %c0_28] : memref<1x1x256xf32, #tpu.memory_space<vmem>>, vector<1x1x256xf32>
    %86 = vector.shape_cast %85 : vector<1x1x256xf32> to vector<1x256xf32>
    %87 = vector.broadcast %86 : vector<1x256xf32> to vector<32x256xf32>
    %88 = arith.addf %84, %87 : vector<32x256xf32>
    %89 = vector.broadcast %9 : vector<1x256xf32> to vector<32x256xf32>
    %90 = arith.mulf %89, %88 : vector<32x256xf32>
    %91 = arith.addf %12, %90 : vector<32x256xf32>
    %cst_29 = arith.constant dense<0.000000e+00> : vector<32xf32>
    %92 = vector.multi_reduction <add>, %91, %cst_29 [1] : vector<32x256xf32> to vector<32xf32>
    %93 = vector.shape_cast %92 : vector<32xf32> to vector<32x1xf32>
    %cst_30 = arith.constant 2.560000e+02 : f32
    %94 = vector.broadcast %cst_30 : f32 to vector<32x1xf32>
    %95 = arith.divf %93, %94 : vector<32x1xf32>
    %96 = vector.broadcast %95 : vector<32x1xf32> to vector<32x256xf32>
    %97 = arith.subf %91, %96 : vector<32x256xf32>
    %98 = arith.mulf %97, %97 : vector<32x256xf32>
    %cst_31 = arith.constant dense<0.000000e+00> : vector<32xf32>
    %99 = vector.multi_reduction <add>, %98, %cst_31 [1] : vector<32x256xf32> to vector<32xf32>
    %100 = vector.shape_cast %99 : vector<32xf32> to vector<32x1xf32>
    %cst_32 = arith.constant 2.560000e+02 : f32
    %101 = vector.broadcast %cst_32 : f32 to vector<32x1xf32>
    %102 = arith.divf %100, %101 : vector<32x1xf32>
    %103 = vector.broadcast %95 : vector<32x1xf32> to vector<32x256xf32>
    %104 = arith.subf %91, %103 : vector<32x256xf32>
    %cst_33 = arith.constant 9.99999974E-6 : f32
    %105 = vector.broadcast %cst_33 : f32 to vector<32x1xf32>
    %106 = arith.addf %102, %105 : vector<32x1xf32>
    %107 = math.rsqrt %106 : vector<32x1xf32>
    %108 = vector.broadcast %107 : vector<32x1xf32> to vector<32x256xf32>
    %109 = arith.mulf %104, %108 : vector<32x256xf32>
    %110 = vector.broadcast %7 : vector<1x256xf32> to vector<32x256xf32>
    %111 = arith.mulf %109, %110 : vector<32x256xf32>
    %112 = vector.broadcast %8 : vector<1x256xf32> to vector<32x256xf32>
    %113 = arith.addf %111, %112 : vector<32x256xf32>
    %114 = arith.truncf %113 : vector<32x256xf32> to vector<32x256xbf16>
    %c0_34 = arith.constant 0 : index
    %c0_35 = arith.constant 0 : index
    %c0_36 = arith.constant 0 : index
    %115 = vector.load %arg7[%c0_34, %c0_35, %c0_36] : memref<1x256x1024xbf16, #tpu.memory_space<vmem>>, vector<1x256x1024xbf16>
    %116 = vector.shape_cast %115 : vector<1x256x1024xbf16> to vector<256x1024xbf16>
    %cst_37 = arith.constant dense<0.000000e+00> : vector<32x1024xf32>
    %117 = tpu.matmul %114, %116, %cst_37 {dimension_numbers = #tpu.dot_dimension_numbers<[1], [0], [0], [1], [0, 0, 1, 1], [], []>} : vector<32x256xbf16>, vector<256x1024xbf16>, vector<32x1024xf32> -> vector<32x1024xf32>
    %c0_38 = arith.constant 0 : index
    %c0_39 = arith.constant 0 : index
    %c0_40 = arith.constant 0 : index
    %118 = vector.load %arg8[%c0_38, %c0_39, %c0_40] : memref<1x1x1024xf32, #tpu.memory_space<vmem>>, vector<1x1x1024xf32>
    %119 = vector.shape_cast %118 : vector<1x1x1024xf32> to vector<1x1024xf32>
    %120 = vector.broadcast %119 : vector<1x1024xf32> to vector<32x1024xf32>
    %121 = arith.addf %117, %120 : vector<32x1024xf32>
    %cst_41 = arith.constant 5.000000e-01 : f32
    %122 = vector.broadcast %cst_41 : f32 to vector<32x1024xf32>
    %123 = arith.mulf %122, %121 : vector<32x1024xf32>
    %cst_42 = arith.constant 0.707106769 : f32
    %124 = vector.broadcast %cst_42 : f32 to vector<32x1024xf32>
    %125 = arith.mulf %121, %124 : vector<32x1024xf32>
    %126 = math.absf %125 : vector<32x1024xf32>
    %cst_43 = arith.constant 0.327591091 : f32
    %127 = vector.broadcast %cst_43 : f32 to vector<32x1024xf32>
    %128 = arith.mulf %127, %126 : vector<32x1024xf32>
    %cst_44 = arith.constant 1.000000e+00 : f32
    %129 = vector.broadcast %cst_44 : f32 to vector<32x1024xf32>
    %130 = arith.addf %129, %128 : vector<32x1024xf32>
    %cst_45 = arith.constant 1.000000e+00 : f32
    %131 = vector.broadcast %cst_45 : f32 to vector<32x1024xf32>
    %132 = arith.divf %131, %130 : vector<32x1024xf32>
    %cst_46 = arith.constant 1.06140542 : f32
    %133 = vector.broadcast %cst_46 : f32 to vector<32x1024xf32>
    %134 = arith.mulf %133, %132 : vector<32x1024xf32>
    %cst_47 = arith.constant -1.45315206 : f32
    %135 = vector.broadcast %cst_47 : f32 to vector<32x1024xf32>
    %136 = arith.addf %134, %135 : vector<32x1024xf32>
    %137 = arith.mulf %136, %132 : vector<32x1024xf32>
    %cst_48 = arith.constant 1.42141378 : f32
    %138 = vector.broadcast %cst_48 : f32 to vector<32x1024xf32>
    %139 = arith.addf %137, %138 : vector<32x1024xf32>
    %140 = arith.mulf %139, %132 : vector<32x1024xf32>
    %cst_49 = arith.constant -0.284496725 : f32
    %141 = vector.broadcast %cst_49 : f32 to vector<32x1024xf32>
    %142 = arith.addf %140, %141 : vector<32x1024xf32>
    %143 = arith.mulf %142, %132 : vector<32x1024xf32>
    %cst_50 = arith.constant 0.254829586 : f32
    %144 = vector.broadcast %cst_50 : f32 to vector<32x1024xf32>
    %145 = arith.addf %143, %144 : vector<32x1024xf32>
    %146 = arith.mulf %145, %132 : vector<32x1024xf32>
    %cst_51 = arith.constant 0.000000e+00 : f32
    %147 = vector.broadcast %cst_51 : f32 to vector<32x1024xf32>
    %148 = arith.subf %147, %126 : vector<32x1024xf32>
    %149 = arith.mulf %148, %126 : vector<32x1024xf32>
    %150 = math.exp %149 : vector<32x1024xf32>
    %151 = arith.mulf %146, %150 : vector<32x1024xf32>
    %cst_52 = arith.constant 1.000000e+00 : f32
    %152 = vector.broadcast %cst_52 : f32 to vector<32x1024xf32>
    %153 = arith.subf %152, %151 : vector<32x1024xf32>
    %cst_53 = arith.constant 0.000000e+00 : f32
    %154 = vector.broadcast %cst_53 : f32 to vector<32x1024xf32>
    %155 = arith.cmpf olt, %125, %154 : vector<32x1024xf32>
    %cst_54 = arith.constant 0.000000e+00 : f32
    %156 = vector.broadcast %cst_54 : f32 to vector<32x1024xf32>
    %157 = arith.subf %156, %153 : vector<32x1024xf32>
    %158 = arith.select %155, %157, %153 : vector<32x1024xi1>, vector<32x1024xf32>
    %cst_55 = arith.constant 1.000000e+00 : f32
    %159 = vector.broadcast %cst_55 : f32 to vector<32x1024xf32>
    %160 = arith.addf %159, %158 : vector<32x1024xf32>
    %161 = arith.mulf %123, %160 : vector<32x1024xf32>
    %162 = arith.truncf %161 : vector<32x1024xf32> to vector<32x1024xbf16>
    %c0_56 = arith.constant 0 : index
    %c0_57 = arith.constant 0 : index
    %c0_58 = arith.constant 0 : index
    %163 = vector.load %arg9[%c0_56, %c0_57, %c0_58] : memref<1x1024x256xbf16, #tpu.memory_space<vmem>>, vector<1x1024x256xbf16>
    %164 = vector.shape_cast %163 : vector<1x1024x256xbf16> to vector<1024x256xbf16>
    %cst_59 = arith.constant dense<0.000000e+00> : vector<32x256xf32>
    %165 = tpu.matmul %162, %164, %cst_59 {dimension_numbers = #tpu.dot_dimension_numbers<[1], [0], [0], [1], [0, 0, 1, 1], [], []>} : vector<32x1024xbf16>, vector<1024x256xbf16>, vector<32x256xf32> -> vector<32x256xf32>
    %c0_60 = arith.constant 0 : index
    %c0_61 = arith.constant 0 : index
    %c0_62 = arith.constant 0 : index
    %166 = vector.load %arg10[%c0_60, %c0_61, %c0_62] : memref<1x1x256xf32, #tpu.memory_space<vmem>>, vector<1x1x256xf32>
    %167 = vector.shape_cast %166 : vector<1x1x256xf32> to vector<1x256xf32>
    %168 = vector.broadcast %167 : vector<1x256xf32> to vector<32x256xf32>
    %169 = arith.addf %165, %168 : vector<32x256xf32>
    %170 = vector.broadcast %10 : vector<1x256xf32> to vector<32x256xf32>
    %171 = arith.mulf %170, %169 : vector<32x256xf32>
    %172 = arith.addf %91, %171 : vector<32x256xf32>
    %173 = vector.shape_cast %172 : vector<32x256xf32> to vector<2x16x256xf32>
    %c0_63 = arith.constant 0 : index
    %c0_64 = arith.constant 0 : index
    %c0_65 = arith.constant 0 : index
    %174 = vector.load %arg12[%c0_63, %c0_64, %c0_65] : memref<2x16x256xf32, #tpu.memory_space<vmem>>, vector<2x16x256xf32>
    tpu.vector_store %arg12[%c0_63, %c0_64, %c0_65], %173 {strides = array<i32>} : memref<2x16x256xf32, #tpu.memory_space<vmem>>, vector<2x16x256xf32>,
    return
  }
  func.func @transform_0(%arg0: i32, %arg1: i32) -> (i32, i32, i32) {
    %c0_i32 = arith.constant 0 : i32
    %c0_i32_0 = arith.constant 0 : i32
    %c0_i32_1 = arith.constant 0 : i32
    return %arg0, %c0_i32, %c0_i32_0 : i32, i32, i32
  }
  func.func @transform_1(%arg0: i32, %arg1: i32) -> (i32, i32, i32) {
    %c0_i32 = arith.constant 0 : i32
    %c0_i32_0 = arith.constant 0 : i32
    %c0_i32_1 = arith.constant 0 : i32
    return %arg1, %c0_i32, %c0_i32_0 : i32, i32, i32
  }
  func.func @transform_2(%arg0: i32, %arg1: i32) -> (i32, i32, i32) {
    %c0_i32 = arith.constant 0 : i32
    %c0_i32_0 = arith.constant 0 : i32
    %c0_i32_1 = arith.constant 0 : i32
    return %arg1, %c0_i32, %c0_i32_0 : i32, i32, i32
  }
  func.func @transform_3(%arg0: i32, %arg1: i32) -> (i32, i32, i32) {
    %c0_i32 = arith.constant 0 : i32
    %c0_i32_0 = arith.constant 0 : i32
    %c0_i32_1 = arith.constant 0 : i32
    return %arg1, %c0_i32, %c0_i32_0 : i32, i32, i32
  }
  func.func @transform_4(%arg0: i32, %arg1: i32) -> (i32, i32, i32) {
    %c0_i32 = arith.constant 0 : i32
    %c0_i32_0 = arith.constant 0 : i32
    %c0_i32_1 = arith.constant 0 : i32
    return %arg1, %c0_i32, %c0_i32_0 : i32, i32, i32
  }
  func.func @transform_5(%arg0: i32, %arg1: i32) -> (i32, i32, i32) {
    %c0_i32 = arith.constant 0 : i32
    %c0_i32_0 = arith.constant 0 : i32
    %c0_i32_1 = arith.constant 0 : i32
    return %arg1, %c0_i32, %c0_i32_0 : i32, i32, i32
  }
  func.func @transform_6(%arg0: i32, %arg1: i32) -> (i32, i32, i32) {
    %c0_i32 = arith.constant 0 : i32
    %c0_i32_0 = arith.constant 0 : i32
    %c0_i32_1 = arith.constant 0 : i32
    return %arg1, %c0_i32, %c0_i32_0 : i32, i32, i32
  }
  func.func @transform_7(%arg0: i32, %arg1: i32) -> (i32, i32, i32) {
    %c0_i32 = arith.constant 0 : i32
    %c0_i32_0 = arith.constant 0 : i32
    %c0_i32_1 = arith.constant 0 : i32
    return %arg1, %c0_i32, %c0_i32_0 : i32, i32, i32
  }
  func.func @transform_8(%arg0: i32, %arg1: i32) -> (i32, i32, i32) {
    %c0_i32 = arith.constant 0 : i32
    %c0_i32_0 = arith.constant 0 : i32
    %c0_i32_1 = arith.constant 0 : i32
    return %arg1, %c0_i32, %c0_i32_0 : i32, i32, i32
  }
  func.func @transform_9(%arg0: i32, %arg1: i32) -> (i32, i32, i32) {
    %c0_i32 = arith.constant 0 : i32
    %c0_i32_0 = arith.constant 0 : i32
    %c0_i32_1 = arith.constant 0 : i32
    return %arg1, %c0_i32, %c0_i32_0 : i32, i32, i32
  }
  func.func @transform_10(%arg0: i32, %arg1: i32) -> (i32, i32, i32) {
    %c0_i32 = arith.constant 0 : i32
    %c0_i32_0 = arith.constant 0 : i32
    %c0_i32_1 = arith.constant 0 : i32
    return %arg0, %c0_i32, %c0_i32_0 : i32, i32, i32
  }
}

</mosaic_0001>

<llo_original>
// kernel: unified_bert_encoder.4
$region0: #{unified_bert_encoder.4}
  #allocation0 [shape = 'u32[]', space=smem, size = 0x4, offset = 0x4, fixed_abs, tag = 'smem constant byte address 0x4 - core index']
  #allocation1 [shape = 'u32[144,128]{1,0:T(1,128)}', space=vmem, size = 0x12000, scoped, tag = 'internal scratch']
  %s0 = inlined_call_operand.vmem [shape: f32[4,8,256], index: 0, kind: input, shape index: {}]
  %s1 = inlined_call_operand.vmem [shape: f32[8,256], index: 1, kind: input, shape index: {}]
  %s2 = inlined_call_operand.vmem [shape: f32[1,256], index: 2, kind: input, shape index: {}]
  %s3 = inlined_call_operand.vmem [shape: f32[1,256], index: 3, kind: input, shape index: {}]
  %s4 = inlined_call_operand.vmem [shape: f32[1,256], index: 4, kind: input, shape index: {}]
  %s5 = inlined_call_operand.vmem [shape: f32[4,8,256], index: 5, kind: output, shape index: {}]
  %s6 = sld [smem:[#allocation0]]
  $region53: #{unified_bert_encoder.4} parent=0
    _
  %s8 = ssub.s32 1, %s6
  %s9 = scalar_select 0, %s8, %s6
  loop: start=0, step=1, limit=6
  $region2: #{unified_bert_encoder.4} parent=0 // loop_pre_header
    _
  $region3: #{unified_bert_encoder.4} parent=0 // loop_header
    %s11 = sphi 0, %s15
    %p12 = scmp.ge.s32.totalorder %s11, 6
    %s21 = sphi 0, %s23
    %s24 = sphi 0, %s21
    %s25 = sphi 0, %s24
    %s41 = sphi 0, %s25
    %s45 = sphi 0, %s45
    %s47 = sphi 0, %s45
    %s48 = sphi 0, %s47
    %s62 = sphi 0, %s48
    %s66 = sphi 0, %s66
    %s68 = sphi 0, %s66
    %s69 = sphi 0, %s68
    %s83 = sphi 0, %s69
    %s87 = sphi 0, %s87
    %s89 = sphi 0, %s87
    %s90 = sphi 0, %s89
    %s104 = sphi 0, %s90
    %s108 = sphi 0, %s108
    %s110 = sphi 0, %s108
    %s111 = sphi 0, %s110
    %s125 = sphi 0, %s111
    %s131 = sphi 0, %s133
    %s134 = sphi 0, %s131
    %s135 = sphi 0, %s134
    %s151 = sphi 0, %s135
  $region4: #{unified_bert_encoder.4} parent=0 // loop_header_branch
    %14 = sbr.rel (%p12) target = $region8
  $region5: #{unified_bert_encoder.4} parent=0 // loop_body
    %s16 = ssub.s32 %s11, 1
    %s17 = ssub.s32 %s11, 2
    %s18 = sadd.s32 %s11, 1
    %s19 = ssub.s32 %s11, %s18
    %p20 = scmp.eq.s32.totalorder %s19, 0
    %s22 = sadd.s32 %s21, 1
    %s23 = scalar_select %p20, %s21, %s22
    %p26 = pneg %p20
    %p27 = scmp.eq.s32.totalorder %s11, 3
    %p28 = por %p26, %p27
    %p29 = scmp.ne.s32.totalorder %s21, %s24
    %p30 = scmp.eq.s32.totalorder %s11, 0
    %p31 = por %p29, %p30
    %p32 = scmp.ne.s32.totalorder %s21, %s24
    %p33 = scmp.eq.s32.totalorder %s16, 3
    %p34 = por %p32, %p33
    %p35 = scmp.ne.s32.totalorder %s24, %s25
    %p36 = scmp.eq.s32.totalorder %s16, 0
    %p37 = por %p35, %p36
    %p38 = scmp.ne.s32.totalorder %s24, %s25
    %p39 = scmp.eq.s32.totalorder %s17, 3
    %p40 = por %p38, %p39
    %p42 = scmp.ne.s32.totalorder %s25, %s41
    %p43 = scmp.eq.s32.totalorder %s17, 0
    %p44 = por %p42, %p43
    %s46 = sadd.s32 %s45, 1
    %p49 = scmp.eq.s32.totalorder %s11, 3
    %p50 = scmp.ne.s32.totalorder %s45, %s47
    %p51 = scmp.eq.s32.totalorder %s11, 0
    %p52 = por %p50, %p51
    %p53 = scmp.ne.s32.totalorder %s45, %s47
    %p54 = scmp.eq.s32.totalorder %s16, 3
    %p55 = por %p53, %p54
    %p56 = scmp.ne.s32.totalorder %s47, %s48
    %p57 = scmp.eq.s32.totalorder %s16, 0
    %p58 = por %p56, %p57
    %p59 = scmp.ne.s32.totalorder %s47, %s48
    %p60 = scmp.eq.s32.totalorder %s17, 3
    %p61 = por %p59, %p60
    %p63 = scmp.ne.s32.totalorder %s48, %s62
    %p64 = scmp.eq.s32.totalorder %s17, 0
    %p65 = por %p63, %p64
    %s67 = sadd.s32 %s66, 1
    %p70 = scmp.eq.s32.totalorder %s11, 3
    %p71 = scmp.ne.s32.totalorder %s66, %s68
    %p72 = scmp.eq.s32.totalorder %s11, 0
    %p73 = por %p71, %p72
    %p74 = scmp.ne.s32.totalorder %s66, %s68
    %p75 = scmp.eq.s32.totalorder %s16, 3
    %p76 = por %p74, %p75
    %p77 = scmp.ne.s32.totalorder %s68, %s69
    %p78 = scmp.eq.s32.totalorder %s16, 0
    %p79 = por %p77, %p78
    %p80 = scmp.ne.s32.totalorder %s68, %s69
    %p81 = scmp.eq.s32.totalorder %s17, 3
    %p82 = por %p80, %p81
    %p84 = scmp.ne.s32.totalorder %s69, %s83
    %p85 = scmp.eq.s32.totalorder %s17, 0
    %p86 = por %p84, %p85
    %s88 = sadd.s32 %s87, 1
    %p91 = scmp.eq.s32.totalorder %s11, 3
    %p92 = scmp.ne.s32.totalorder %s87, %s89
    %p93 = scmp.eq.s32.totalorder %s11, 0
    %p94 = por %p92, %p93
    %p95 = scmp.ne.s32.totalorder %s87, %s89
    %p96 = scmp.eq.s32.totalorder %s16, 3
    %p97 = por %p95, %p96
    %p98 = scmp.ne.s32.totalorder %s89, %s90
    %p99 = scmp.eq.s32.totalorder %s16, 0
    %p100 = por %p98, %p99
    %p101 = scmp.ne.s32.totalorder %s89, %s90
    %p102 = scmp.eq.s32.totalorder %s17, 3
    %p103 = por %p101, %p102
    %p105 = scmp.ne.s32.totalorder %s90, %s104
    %p106 = scmp.eq.s32.totalorder %s17, 0
    %p107 = por %p105, %p106
    %s109 = sadd.s32 %s108, 1
    %p112 = scmp.eq.s32.totalorder %s11, 3
    %p113 = scmp.ne.s32.totalorder %s108, %s110
    %p114 = scmp.eq.s32.totalorder %s11, 0
    %p115 = por %p113, %p114
    %p116 = scmp.ne.s32.totalorder %s108, %s110
    %p117 = scmp.eq.s32.totalorder %s16, 3
    %p118 = por %p116, %p117
    %p119 = scmp.ne.s32.totalorder %s110, %s111
    %p120 = scmp.eq.s32.totalorder %s16, 0
    %p121 = por %p119, %p120
    %p122 = scmp.ne.s32.totalorder %s110, %s111
    %p123 = scmp.eq.s32.totalorder %s17, 3
    %p124 = por %p122, %p123
    %p126 = scmp.ne.s32.totalorder %s111, %s125
    %p127 = scmp.eq.s32.totalorder %s17, 0
    %p128 = por %p126, %p127
    %s129 = ssub.s32 %s11, %s18
    %p130 = scmp.eq.s32.totalorder %s129, 0
    %s132 = sadd.s32 %s131, 1
    %s133 = scalar_select %p130, %s131, %s132
    %p136 = pneg %p130
    %p137 = scmp.eq.s32.totalorder %s11, 3
    %p138 = por %p136, %p137
    %p139 = scmp.ne.s32.totalorder %s131, %s134
    %p140 = scmp.eq.s32.totalorder %s11, 0
    %p141 = por %p139, %p140
    %p142 = scmp.ne.s32.totalorder %s131, %s134
    %p143 = scmp.eq.s32.totalorder %s16, 3
    %p144 = por %p142, %p143
    %p145 = scmp.ne.s32.totalorder %s134, %s135
    %p146 = scmp.eq.s32.totalorder %s16, 0
    %p147 = por %p145, %p146
    %p148 = scmp.ne.s32.totalorder %s134, %s135
    %p149 = scmp.eq.s32.totalorder %s17, 3
    %p150 = por %p148, %p149
    %p152 = scmp.ne.s32.totalorder %s135, %s151
    %p153 = scmp.eq.s32.totalorder %s17, 0
    %p154 = por %p152, %p153
    %p155 = scmp.le.s32.totalorder 1, %s11
    %p156 = scmp.lt.s32.totalorder %s11, 5
    %p157 = pnand %p155, %p156
    %p158 = pneg %p157
    // Predicated region
    $region9: #{unified_bert_encoder.4} parent=5 // pred_check
      _
    $region10: #{unified_bert_encoder.4} parent=5 // pred_check_branch
      %160 = sbr.rel (%p157) target = $region12
    $region11: #{unified_bert_encoder.4} parent=5 // pred_region
      %s161 = ssub.s32 %s11, 1
      // Predicated region
      $region13: #{unified_bert_encoder.4} parent=11 // pred_check
        %p162 = pneg %p58
      $region14: #{unified_bert_encoder.4} parent=11 // pred_check_branch
        %164 = sbr.rel (%p162) target = $region16
      $region15: #{unified_bert_encoder.4} parent=11 // pred_region
        _
      $region16: #{unified_bert_encoder.4} parent=11 // pred_fallthru
        _
      // Predicated region
      $region17: #{unified_bert_encoder.4} parent=11 // pred_check
        %p165 = pneg %p79
      $region18: #{unified_bert_encoder.4} parent=11 // pred_check_branch
        %167 = sbr.rel (%p165) target = $region20
      $region19: #{unified_bert_encoder.4} parent=11 // pred_region
        _
      $region20: #{unified_bert_encoder.4} parent=11 // pred_fallthru
        _
      // Predicated region
      $region21: #{unified_bert_encoder.4} parent=11 // pred_check
        %p168 = pneg %p100
      $region22: #{unified_bert_encoder.4} parent=11 // pred_check_branch
        %170 = sbr.rel (%p168) target = $region24
      $region23: #{unified_bert_encoder.4} parent=11 // pred_region
        _
      $region24: #{unified_bert_encoder.4} parent=11 // pred_fallthru
        _
      // Predicated region
      $region25: #{unified_bert_encoder.4} parent=11 // pred_check
        %p171 = pneg %p121
      $region26: #{unified_bert_encoder.4} parent=11 // pred_check_branch
        %173 = sbr.rel (%p171) target = $region28
      $region27: #{unified_bert_encoder.4} parent=11 // pred_region
        _
      $region28: #{unified_bert_encoder.4} parent=11 // pred_fallthru
        _
    $region12: #{unified_bert_encoder.4} parent=5 // pred_fallthru
      _
    %p174 = scmp.lt.s32.totalorder %s11, 4
    // Predicated region
    $region29: #{unified_bert_encoder.4} parent=5 // pred_check
      %p175 = pneg %p174
    $region30: #{unified_bert_encoder.4} parent=5 // pred_check_branch
      %177 = sbr.rel (%p175) target = $region32
    $region31: #{unified_bert_encoder.4} parent=5 // pred_region
      // Predicated region
      $region33: #{unified_bert_encoder.4} parent=31 // pred_check
        %p178 = pneg %p31
      $region34: #{unified_bert_encoder.4} parent=31 // pred_check_branch
        %180 = sbr.rel (%p178) target = $region36
      $region35: #{unified_bert_encoder.4} parent=31 // pred_region
        %p181 = scmp.lt.s32.totalorder %s11, 3
        %s182 = scalar_select %p181, %s11, 3
        %s183 = smul.addr %s182, 2
        %s184 = smul.addr %s183, 8
        %s185 = scalar_lea.vmem %s0, %s184
      $region36: #{unified_bert_encoder.4} parent=31 // pred_fallthru
        _
    $region32: #{unified_bert_encoder.4} parent=5 // pred_fallthru
      _
    %p186 = scmp.le.s32.totalorder 1, %s11
    %p187 = scmp.lt.s32.totalorder %s11, 5
    %p188 = pnand %p186, %p187
    %p189 = pneg %p188
    // Predicated region
    $region37: #{unified_bert_encoder.4} parent=5 // pred_check
      _
    $region38: #{unified_bert_encoder.4} parent=5 // pred_check_branch
      %191 = sbr.rel (%p188) target = $region40
    $region39: #{unified_bert_encoder.4} parent=5 // pred_region
      %s192 = ssub.s32 %s11, 1
      %p193 = scmp.lt.s32.totalorder %s16, 3
      %s194 = scalar_select %p193, %s16, 3
      %s195 = smul.addr %s194, 2
      %s196 = smul.addr %s195, 8
      %s197 = scalar_lea.vmem %s0, %s196
      %p198 = pneg %p37
      %p199 = pneg %p34
      %p200 = pneg %p58
      %p201 = pneg %p55
      %p202 = pneg %p79
      %p203 = pneg %p76
      %p204 = pneg %p100
      %p205 = pneg %p97
      %p206 = pneg %p121
      %p207 = pneg %p118
      %p208 = pneg %p147
      %p209 = pneg %p144
      %p210 = scmp.lt.s32.totalorder %s16, 3
      %s211 = scalar_select %p210, %s16, 3
      %s212 = smul.addr %s211, 2
      %s213 = smul.addr %s212, 8
      %s214 = scalar_lea.vmem %s5, %s213
      %p215 = scmp.lt.s32.totalorder %s16, 3
      %s216 = scalar_select %p215, %s16, 3
      %s217 = smul.addr %s216, 2
      %s218 = smul.addr %s217, 8
      %s219 = scalar_lea.vmem %s0, %s218
      %p220 = scmp.lt.s32.totalorder %s16, 3
      %s221 = scalar_select %p220, %s16, 3
      %s222 = smul.addr %s221, 2
      %s223 = smul.addr %s222, 8
      %s224 = scalar_lea.vmem %s5, %s223
      %v225 = vld [vmem:[%s219] sm:$0xff]
      %v226 = vld [vmem:[%s219 + $0x8] sm:$0xff]
      %v227 = vld [vmem:[%s1] sm:$0xff]
      %v228 = vld [vmem:[%s1 + $0x8] sm:$0xff]
      %v229 = vadd.f32 %v225, %v227
      %v230 = vadd.f32 %v226, %v228
      %v231 = vld [vmem:[%s2] sm:$0x3]
      %v233 = vlaneseq
      %v234 = vshrl.u32 %v233, 7
      %v235 = vsub.s32 0, %v234
      %v236 = vrot.slane %v231, %v235
      %v237 = vlaneseq
      %v238 = vshrl.u32 %v237, 7
      %v239 = vsub.s32 1, %v238
      %v240 = vrot.slane %v231, %v239
      %v243 = vadd.f32 %v229, %v236
      %v244 = vadd.f32 %v230, %v240
      %v245 = vld [vmem:[%s3] sm:$0x3]
      %v246 = vld [vmem:[%s4] sm:$0x3]
      %v247 = vadd.f32 %v243, %v244
      %248 = vadd.xlane.f32.xlu0 %v247
      %v249 = vpop.xlane.xlu0 %248
      %v250 = vrcp.pop 256.0
      %v251 = vmul.f32 %v249, %v250
      %v252 = vsub.f32 %v243, %v251
      %v253 = vsub.f32 %v244, %v251
      %v254 = vmul.f32 %v252, %v252
      %v255 = vmul.f32 %v253, %v253
      %v256 = vadd.f32 %v254, %v255
      %257 = vadd.xlane.f32.xlu0 %v256
      %v258 = vpop.xlane.xlu0 %257
      %v259 = vmul.f32 %v258, %v250
      %v260 = vadd.f32 %v259, 1e-05
      %v261 = vrsqrt.pop %v260
      %v262 = vmul.f32 %v252, %v261
      %v263 = vmul.f32 %v253, %v261
      %v265 = vlaneseq
      %v266 = vshrl.u32 %v265, 7
      %v267 = vsub.s32 0, %v266
      %v268 = vrot.slane %v245, %v267
      %v269 = vlaneseq
      %v270 = vshrl.u32 %v269, 7
      %v271 = vsub.s32 1, %v270
      %v272 = vrot.slane %v245, %v271
      %v275 = vmul.f32 %v262, %v268
      %v276 = vmul.f32 %v263, %v272
      %v278 = vlaneseq
      %v279 = vshrl.u32 %v278, 7
      %v280 = vsub.s32 0, %v279
      %v281 = vrot.slane %v246, %v280
      %v282 = vlaneseq
      %v283 = vshrl.u32 %v282, 7
      %v284 = vsub.s32 1, %v283
      %v285 = vrot.slane %v246, %v284
      %v288 = vadd.f32 %v275, %v281
      %v289 = vadd.f32 %v276, %v285
      %290 = vst [vmem:[%s224] sm:$0xff] %v288
      %291 = vst [vmem:[%s224 + $0x8] sm:$0xff] %v289
      %p292 = scmp.lt.s32.totalorder %s16, 3
      %s293 = scalar_select %p292, %s16, 3
      %s294 = smul.addr %s293, 2
      %s295 = smul.addr %s294, 8
      %s296 = scalar_lea.vmem %s5, %s295
      // Predicated region
      $region41: #{unified_bert_encoder.4} parent=39 // pred_check
        %p297 = pneg %p144
      $region42: #{unified_bert_encoder.4} parent=39 // pred_check_branch
        %299 = sbr.rel (%p297) target = $region44
      $region43: #{unified_bert_encoder.4} parent=39 // pred_region
        _
      $region44: #{unified_bert_encoder.4} parent=39 // pred_fallthru
        _
    $region40: #{unified_bert_encoder.4} parent=5 // pred_fallthru
      _
    %p300 = scmp.le.s32.totalorder 2, %s11
    // Predicated region
    $region45: #{unified_bert_encoder.4} parent=5 // pred_check
      %p301 = pneg %p300
    $region46: #{unified_bert_encoder.4} parent=5 // pred_check_branch
      %303 = sbr.rel (%p301) target = $region48
    $region47: #{unified_bert_encoder.4} parent=5 // pred_region
      %s304 = ssub.s32 %s11, 2
      // Predicated region
      $region49: #{unified_bert_encoder.4} parent=47 // pred_check
        %p305 = pneg %p150
      $region50: #{unified_bert_encoder.4} parent=47 // pred_check_branch
        %307 = sbr.rel (%p305) target = $region52
      $region51: #{unified_bert_encoder.4} parent=47 // pred_region
        %p308 = scmp.lt.s32.totalorder %s17, 3
        %s309 = scalar_select %p308, %s17, 3
        %s310 = smul.addr %s309, 2
        %s311 = smul.addr %s310, 8
        %s312 = scalar_lea.vmem %s5, %s311
      $region52: #{unified_bert_encoder.4} parent=47 // pred_fallthru
        _
    $region48: #{unified_bert_encoder.4} parent=5 // pred_fallthru
      _
  $region6: #{unified_bert_encoder.4} parent=0 // loop_footer
    %s15 = sadd.s32 1, %s11
  $region7: #{unified_bert_encoder.4} parent=0 // loop_footer_branch
    %10 = sbr.rel target = $region3
  $region8: #{unified_bert_encoder.4} parent=0 // loop_exit
    _

// kernel: unified_bert_encoder.3
$region0: #{unified_bert_encoder.3}
  #allocation0 [shape = 'u32[]', space=smem, size = 0x4, offset = 0x4, fixed_abs, tag = 'smem constant byte address 0x4 - core index']
  #allocation1 [shape = 'u32[144,128]{1,0:T(1,128)}', space=vmem, size = 0x12000, scoped, tag = 'internal scratch']
  %s0 = inlined_call_operand.vmem [shape: bf16[4,4,768], index: 0, kind: input, shape index: {}]
  %s1 = inlined_call_operand.vmem [shape: bf16[768,256], index: 1, kind: input, shape index: {}]
  %s2 = inlined_call_operand.vmem [shape: f32[1,256], index: 2, kind: input, shape index: {}]
  %s3 = inlined_call_operand.vmem [shape: f32[4,256], index: 3, kind: input, shape index: {}]
  %s4 = inlined_call_operand.vmem [shape: f32[1,256], index: 4, kind: input, shape index: {}]
  %s5 = inlined_call_operand.vmem [shape: f32[1,256], index: 5, kind: input, shape index: {}]
  %s6 = inlined_call_operand.vmem [shape: f32[4,4,256], index: 6, kind: output, shape index: {}]
  %s7 = sld [smem:[#allocation0]]
  $region57: #{unified_bert_encoder.3} parent=0
    _
  %s9 = ssub.s32 1, %s7
  %s10 = scalar_select 0, %s9, %s7
  loop: start=0, step=1, limit=6
  $region2: #{unified_bert_encoder.3} parent=0 // loop_pre_header
    _
  $region3: #{unified_bert_encoder.3} parent=0 // loop_header
    %s12 = sphi 0, %s16
    %p13 = scmp.ge.s32.totalorder %s12, 6
    %s22 = sphi 0, %s24
    %s25 = sphi 0, %s22
    %s26 = sphi 0, %s25
    %s42 = sphi 0, %s26
    %s46 = sphi 0, %s46
    %s48 = sphi 0, %s46
    %s49 = sphi 0, %s48
    %s63 = sphi 0, %s49
    %s67 = sphi 0, %s67
    %s69 = sphi 0, %s67
    %s70 = sphi 0, %s69
    %s84 = sphi 0, %s70
    %s88 = sphi 0, %s88
    %s90 = sphi 0, %s88
    %s91 = sphi 0, %s90
    %s105 = sphi 0, %s91
    %s109 = sphi 0, %s109
    %s111 = sphi 0, %s109
    %s112 = sphi 0, %s111
    %s126 = sphi 0, %s112
    %s130 = sphi 0, %s130
    %s132 = sphi 0, %s130
    %s133 = sphi 0, %s132
    %s147 = sphi 0, %s133
    %s153 = sphi 0, %s155
    %s156 = sphi 0, %s153
    %s157 = sphi 0, %s156
    %s173 = sphi 0, %s157
  $region4: #{unified_bert_encoder.3} parent=0 // loop_header_branch
    %15 = sbr.rel (%p13) target = $region8
  $region5: #{unified_bert_encoder.3} parent=0 // loop_body
    %s17 = ssub.s32 %s12, 1
    %s18 = ssub.s32 %s12, 2
    %s19 = sadd.s32 %s12, 1
    %s20 = ssub.s32 %s12, %s19
    %p21 = scmp.eq.s32.totalorder %s20, 0
    %s23 = sadd.s32 %s22, 1
    %s24 = scalar_select %p21, %s22, %s23
    %p27 = pneg %p21
    %p28 = scmp.eq.s32.totalorder %s12, 3
    %p29 = por %p27, %p28
    %p30 = scmp.ne.s32.totalorder %s22, %s25
    %p31 = scmp.eq.s32.totalorder %s12, 0
    %p32 = por %p30, %p31
    %p33 = scmp.ne.s32.totalorder %s22, %s25
    %p34 = scmp.eq.s32.totalorder %s17, 3
    %p35 = por %p33, %p34
    %p36 = scmp.ne.s32.totalorder %s25, %s26
    %p37 = scmp.eq.s32.totalorder %s17, 0
    %p38 = por %p36, %p37
    %p39 = scmp.ne.s32.totalorder %s25, %s26
    %p40 = scmp.eq.s32.totalorder %s18, 3
    %p41 = por %p39, %p40
    %p43 = scmp.ne.s32.totalorder %s26, %s42
    %p44 = scmp.eq.s32.totalorder %s18, 0
    %p45 = por %p43, %p44
    %s47 = sadd.s32 %s46, 1
    %p50 = scmp.eq.s32.totalorder %s12, 3
    %p51 = scmp.ne.s32.totalorder %s46, %s48
    %p52 = scmp.eq.s32.totalorder %s12, 0
    %p53 = por %p51, %p52
    %p54 = scmp.ne.s32.totalorder %s46, %s48
    %p55 = scmp.eq.s32.totalorder %s17, 3
    %p56 = por %p54, %p55
    %p57 = scmp.ne.s32.totalorder %s48, %s49
    %p58 = scmp.eq.s32.totalorder %s17, 0
    %p59 = por %p57, %p58
    %p60 = scmp.ne.s32.totalorder %s48, %s49
    %p61 = scmp.eq.s32.totalorder %s18, 3
    %p62 = por %p60, %p61
    %p64 = scmp.ne.s32.totalorder %s49, %s63
    %p65 = scmp.eq.s32.totalorder %s18, 0
    %p66 = por %p64, %p65
    %s68 = sadd.s32 %s67, 1
    %p71 = scmp.eq.s32.totalorder %s12, 3
    %p72 = scmp.ne.s32.totalorder %s67, %s69
    %p73 = scmp.eq.s32.totalorder %s12, 0
    %p74 = por %p72, %p73
    %p75 = scmp.ne.s32.totalorder %s67, %s69
    %p76 = scmp.eq.s32.totalorder %s17, 3
    %p77 = por %p75, %p76
    %p78 = scmp.ne.s32.totalorder %s69, %s70
    %p79 = scmp.eq.s32.totalorder %s17, 0
    %p80 = por %p78, %p79
    %p81 = scmp.ne.s32.totalorder %s69, %s70
    %p82 = scmp.eq.s32.totalorder %s18, 3
    %p83 = por %p81, %p82
    %p85 = scmp.ne.s32.totalorder %s70, %s84
    %p86 = scmp.eq.s32.totalorder %s18, 0
    %p87 = por %p85, %p86
    %s89 = sadd.s32 %s88, 1
    %p92 = scmp.eq.s32.totalorder %s12, 3
    %p93 = scmp.ne.s32.totalorder %s88, %s90
    %p94 = scmp.eq.s32.totalorder %s12, 0
    %p95 = por %p93, %p94
    %p96 = scmp.ne.s32.totalorder %s88, %s90
    %p97 = scmp.eq.s32.totalorder %s17, 3
    %p98 = por %p96, %p97
    %p99 = scmp.ne.s32.totalorder %s90, %s91
    %p100 = scmp.eq.s32.totalorder %s17, 0
    %p101 = por %p99, %p100
    %p102 = scmp.ne.s32.totalorder %s90, %s91
    %p103 = scmp.eq.s32.totalorder %s18, 3
    %p104 = por %p102, %p103
    %p106 = scmp.ne.s32.totalorder %s91, %s105
    %p107 = scmp.eq.s32.totalorder %s18, 0
    %p108 = por %p106, %p107
    %s110 = sadd.s32 %s109, 1
    %p113 = scmp.eq.s32.totalorder %s12, 3
    %p114 = scmp.ne.s32.totalorder %s109, %s111
    %p115 = scmp.eq.s32.totalorder %s12, 0
    %p116 = por %p114, %p115
    %p117 = scmp.ne.s32.totalorder %s109, %s111
    %p118 = scmp.eq.s32.totalorder %s17, 3
    %p119 = por %p117, %p118
    %p120 = scmp.ne.s32.totalorder %s111, %s112
    %p121 = scmp.eq.s32.totalorder %s17, 0
    %p122 = por %p120, %p121
    %p123 = scmp.ne.s32.totalorder %s111, %s112
    %p124 = scmp.eq.s32.totalorder %s18, 3
    %p125 = por %p123, %p124
    %p127 = scmp.ne.s32.totalorder %s112, %s126
    %p128 = scmp.eq.s32.totalorder %s18, 0
    %p129 = por %p127, %p128
    %s131 = sadd.s32 %s130, 1
    %p134 = scmp.eq.s32.totalorder %s12, 3
    %p135 = scmp.ne.s32.totalorder %s130, %s132
    %p136 = scmp.eq.s32.totalorder %s12, 0
    %p137 = por %p135, %p136
    %p138 = scmp.ne.s32.totalorder %s130, %s132
    %p139 = scmp.eq.s32.totalorder %s17, 3
    %p140 = por %p138, %p139
    %p141 = scmp.ne.s32.totalorder %s132, %s133
    %p142 = scmp.eq.s32.totalorder %s17, 0
    %p143 = por %p141, %p142
    %p144 = scmp.ne.s32.totalorder %s132, %s133
    %p145 = scmp.eq.s32.totalorder %s18, 3
    %p146 = por %p144, %p145
    %p148 = scmp.ne.s32.totalorder %s133, %s147
    %p149 = scmp.eq.s32.totalorder %s18, 0
    %p150 = por %p148, %p149
    %s151 = ssub.s32 %s12, %s19
    %p152 = scmp.eq.s32.totalorder %s151, 0
    %s154 = sadd.s32 %s153, 1
    %s155 = scalar_select %p152, %s153, %s154
    %p158 = pneg %p152
    %p159 = scmp.eq.s32.totalorder %s12, 3
    %p160 = por %p158, %p159
    %p161 = scmp.ne.s32.totalorder %s153, %s156
    %p162 = scmp.eq.s32.totalorder %s12, 0
    %p163 = por %p161, %p162
    %p164 = scmp.ne.s32.totalorder %s153, %s156
    %p165 = scmp.eq.s32.totalorder %s17, 3
    %p166 = por %p164, %p165
    %p167 = scmp.ne.s32.totalorder %s156, %s157
    %p168 = scmp.eq.s32.totalorder %s17, 0
    %p169 = por %p167, %p168
    %p170 = scmp.ne.s32.totalorder %s156, %s157
    %p171 = scmp.eq.s32.totalorder %s18, 3
    %p172 = por %p170, %p171
    %p174 = scmp.ne.s32.totalorder %s157, %s173
    %p175 = scmp.eq.s32.totalorder %s18, 0
    %p176 = por %p174, %p175
    %p177 = scmp.le.s32.totalorder 1, %s12
    %p178 = scmp.lt.s32.totalorder %s12, 5
    %p179 = pnand %p177, %p178
    %p180 = pneg %p179
    // Predicated region
    $region9: #{unified_bert_encoder.3} parent=5 // pred_check
      _
    $region10: #{unified_bert_encoder.3} parent=5 // pred_check_branch
      %182 = sbr.rel (%p179) target = $region12
    $region11: #{unified_bert_encoder.3} parent=5 // pred_region
      %s183 = ssub.s32 %s12, 1
      // Predicated region
      $region13: #{unified_bert_encoder.3} parent=11 // pred_check
        %p184 = pneg %p59
      $region14: #{unified_bert_encoder.3} parent=11 // pred_check_branch
        %186 = sbr.rel (%p184) target = $region16
      $region15: #{unified_bert_encoder.3} parent=11 // pred_region
        _
      $region16: #{unified_bert_encoder.3} parent=11 // pred_fallthru
        _
      // Predicated region
      $region17: #{unified_bert_encoder.3} parent=11 // pred_check
        %p187 = pneg %p80
      $region18: #{unified_bert_encoder.3} parent=11 // pred_check_branch
        %189 = sbr.rel (%p187) target = $region20
      $region19: #{unified_bert_encoder.3} parent=11 // pred_region
        _
      $region20: #{unified_bert_encoder.3} parent=11 // pred_fallthru
        _
      // Predicated region
      $region21: #{unified_bert_encoder.3} parent=11 // pred_check
        %p190 = pneg %p101
      $region22: #{unified_bert_encoder.3} parent=11 // pred_check_branch
        %192 = sbr.rel (%p190) target = $region24
      $region23: #{unified_bert_encoder.3} parent=11 // pred_region
        _
      $region24: #{unified_bert_encoder.3} parent=11 // pred_fallthru
        _
      // Predicated region
      $region25: #{unified_bert_encoder.3} parent=11 // pred_check
        %p193 = pneg %p122
      $region26: #{unified_bert_encoder.3} parent=11 // pred_check_branch
        %195 = sbr.rel (%p193) target = $region28
      $region27: #{unified_bert_encoder.3} parent=11 // pred_region
        _
      $region28: #{unified_bert_encoder.3} parent=11 // pred_fallthru
        _
      // Predicated region
      $region29: #{unified_bert_encoder.3} parent=11 // pred_check
        %p196 = pneg %p143
      $region30: #{unified_bert_encoder.3} parent=11 // pred_check_branch
        %198 = sbr.rel (%p196) target = $region32
      $region31: #{unified_bert_encoder.3} parent=11 // pred_region
        _
      $region32: #{unified_bert_encoder.3} parent=11 // pred_fallthru
        _
    $region12: #{unified_bert_encoder.3} parent=5 // pred_fallthru
      _
    %p199 = scmp.lt.s32.totalorder %s12, 4
    // Predicated region
    $region33: #{unified_bert_encoder.3} parent=5 // pred_check
      %p200 = pneg %p199
    $region34: #{unified_bert_encoder.3} parent=5 // pred_check_branch
      %202 = sbr.rel (%p200) target = $region36
    $region35: #{unified_bert_encoder.3} parent=5 // pred_region
      // Predicated region
      $region37: #{unified_bert_encoder.3} parent=35 // pred_check
        %p203 = pneg %p32
      $region38: #{unified_bert_encoder.3} parent=35 // pred_check_branch
        %205 = sbr.rel (%p203) target = $region40
      $region39: #{unified_bert_encoder.3} parent=35 // pred_region
        %p206 = scmp.lt.s32.totalorder %s12, 3
        %s207 = scalar_select %p206, %s12, 3
        %s208 = smul.addr %s207, 6
        %s209 = smul.addr %s208, 2
        %s210 = scalar_lea.vmem %s0, %s209
      $region40: #{unified_bert_encoder.3} parent=35 // pred_fallthru
        _
    $region36: #{unified_bert_encoder.3} parent=5 // pred_fallthru
      _
    %p211 = scmp.le.s32.totalorder 1, %s12
    %p212 = scmp.lt.s32.totalorder %s12, 5
    %p213 = pnand %p211, %p212
    %p214 = pneg %p213
    // Predicated region
    $region41: #{unified_bert_encoder.3} parent=5 // pred_check
      _
    $region42: #{unified_bert_encoder.3} parent=5 // pred_check_branch
      %216 = sbr.rel (%p213) target = $region44
    $region43: #{unified_bert_encoder.3} parent=5 // pred_region
      %s217 = ssub.s32 %s12, 1
      %p218 = scmp.lt.s32.totalorder %s17, 3
      %s219 = scalar_select %p218, %s17, 3
      %s220 = smul.addr %s219, 6
      %s221 = smul.addr %s220, 2
      %s222 = scalar_lea.vmem %s0, %s221
      %p223 = pneg %p38
      %p224 = pneg %p35
      %p225 = pneg %p59
      %p226 = pneg %p56
      %p227 = pneg %p80
      %p228 = pneg %p77
      %p229 = pneg %p101
      %p230 = pneg %p98
      %p231 = pneg %p122
      %p232 = pneg %p119
      %p233 = pneg %p143
      %p234 = pneg %p140
      %p235 = pneg %p169
      %p236 = pneg %p166
      %p237 = scmp.lt.s32.totalorder %s17, 3
      %s238 = scalar_select %p237, %s17, 3
      %s239 = smul.addr %s238, 2
      %s240 = smul.addr %s239, 4
      %s241 = scalar_lea.vmem %s6, %s240
      %p242 = scmp.lt.s32.totalorder %s17, 3
      %s243 = scalar_select %p242, %s17, 3
      %s244 = smul.addr %s243, 6
      %s245 = smul.addr %s244, 2
      %s246 = scalar_lea.vmem %s0, %s245
      %p247 = scmp.lt.s32.totalorder %s17, 3
      %s248 = scalar_select %p247, %s17, 3
      %s249 = smul.addr %s248, 2
      %s250 = smul.addr %s249, 4
      %s251 = scalar_lea.vmem %s6, %s250
      %v252 = vld [vmem:[%s246] sm:$0xff]
      %v253 = vld [vmem:[%s246 + $0x8] sm:$0xf]
      %v254 = vld [vmem:[%s1] sm:$0xff]
      %v255 = vld [vmem:[%s1 + $0x8] sm:$0xff]
      %v256 = vld [vmem:[%s1 + $0x10] sm:$0xff]
      %v257 = vld [vmem:[%s1 + $0x18] sm:$0xff]
      %v258 = vld [vmem:[%s1 + $0x20] sm:$0xff]
      %v259 = vld [vmem:[%s1 + $0x28] sm:$0xff]
      %v260 = vld [vmem:[%s1 + $0x30] sm:$0xff]
      %v261 = vld [vmem:[%s1 + $0x38] sm:$0xff]
      %v262 = vld [vmem:[%s1 + $0x40] sm:$0xff]
      %v263 = vld [vmem:[%s1 + $0x48] sm:$0xff]
      %v264 = vld [vmem:[%s1 + $0x50] sm:$0xff]
      %v265 = vld [vmem:[%s1 + $0x58] sm:$0xff]
      %v266 = vld [vmem:[%s1 + $0x60] sm:$0xff]
      %v267 = vld [vmem:[%s1 + $0x68] sm:$0xff]
      %v268 = vld [vmem:[%s1 + $0x70] sm:$0xff]
      %v269 = vld [vmem:[%s1 + $0x78] sm:$0xff]
      %v270 = vld [vmem:[%s1 + $0x80] sm:$0xff]
      %v271 = vld [vmem:[%s1 + $0x88] sm:$0xff]
      %v272 = vld [vmem:[%s1 + $0x90] sm:$0xff]
      %v273 = vld [vmem:[%s1 + $0x98] sm:$0xff]
      %v274 = vld [vmem:[%s1 + $0xa0] sm:$0xff]
      %v275 = vld [vmem:[%s1 + $0xa8] sm:$0xff]
      %v276 = vld [vmem:[%s1 + $0xb0] sm:$0xff]
      %v277 = vld [vmem:[%s1 + $0xb8] sm:$0xff]
      %v278 = vld [vmem:[%s1 + $0xc0] sm:$0xff]
      %v279 = vld [vmem:[%s1 + $0xc8] sm:$0xff]
      %v280 = vld [vmem:[%s1 + $0xd0] sm:$0xff]
      %v281 = vld [vmem:[%s1 + $0xd8] sm:$0xff]
      %v282 = vld [vmem:[%s1 + $0xe0] sm:$0xff]
      %v283 = vld [vmem:[%s1 + $0xe8] sm:$0xff]
      %v284 = vld [vmem:[%s1 + $0xf0] sm:$0xff]
      %v285 = vld [vmem:[%s1 + $0xf8] sm:$0xff]
      %v286 = vld [vmem:[%s1 + $0x100] sm:$0xff]
      %v287 = vld [vmem:[%s1 + $0x108] sm:$0xff]
      %v288 = vld [vmem:[%s1 + $0x110] sm:$0xff]
      %v289 = vld [vmem:[%s1 + $0x118] sm:$0xff]
      %v290 = vld [vmem:[%s1 + $0x120] sm:$0xff]
      %v291 = vld [vmem:[%s1 + $0x128] sm:$0xff]
      %v292 = vld [vmem:[%s1 + $0x130] sm:$0xff]
      %v293 = vld [vmem:[%s1 + $0x138] sm:$0xff]
      %v294 = vld [vmem:[%s1 + $0x140] sm:$0xff]
      %v295 = vld [vmem:[%s1 + $0x148] sm:$0xff]
      %v296 = vld [vmem:[%s1 + $0x150] sm:$0xff]
      %v297 = vld [vmem:[%s1 + $0x158] sm:$0xff]
      %v298 = vld [vmem:[%s1 + $0x160] sm:$0xff]
      %v299 = vld [vmem:[%s1 + $0x168] sm:$0xff]
      %v300 = vld [vmem:[%s1 + $0x170] sm:$0xff]
      %v301 = vld [vmem:[%s1 + $0x178] sm:$0xff]
      %v302 = vld [vmem:[%s1 + $0x180] sm:$0xff]
      %v303 = vld [vmem:[%s1 + $0x188] sm:$0xff]
      %v304 = vld [vmem:[%s1 + $0x190] sm:$0xff]
      %v305 = vld [vmem:[%s1 + $0x198] sm:$0xff]
      %v306 = vld [vmem:[%s1 + $0x1a0] sm:$0xff]
      %v307 = vld [vmem:[%s1 + $0x1a8] sm:$0xff]
      %v308 = vld [vmem:[%s1 + $0x1b0] sm:$0xff]
      %v309 = vld [vmem:[%s1 + $0x1b8] sm:$0xff]
      %v310 = vld [vmem:[%s1 + $0x1c0] sm:$0xff]
      %v311 = vld [vmem:[%s1 + $0x1c8] sm:$0xff]
      %v312 = vld [vmem:[%s1 + $0x1d0] sm:$0xff]
      %v313 = vld [vmem:[%s1 + $0x1d8] sm:$0xff]
      %v314 = vld [vmem:[%s1 + $0x1e0] sm:$0xff]
      %v315 = vld [vmem:[%s1 + $0x1e8] sm:$0xff]
      %v316 = vld [vmem:[%s1 + $0x1f0] sm:$0xff]
      %v317 = vld [vmem:[%s1 + $0x1f8] sm:$0xff]
      %v318 = vld [vmem:[%s1 + $0x200] sm:$0xff]
      %v319 = vld [vmem:[%s1 + $0x208] sm:$0xff]
      %v320 = vld [vmem:[%s1 + $0x210] sm:$0xff]
      %v321 = vld [vmem:[%s1 + $0x218] sm:$0xff]
      %v322 = vld [vmem:[%s1 + $0x220] sm:$0xff]
      %v323 = vld [vmem:[%s1 + $0x228] sm:$0xff]
      %v324 = vld [vmem:[%s1 + $0x230] sm:$0xff]
      %v325 = vld [vmem:[%s1 + $0x238] sm:$0xff]
      %v326 = vld [vmem:[%s1 + $0x240] sm:$0xff]
      %v327 = vld [vmem:[%s1 + $0x248] sm:$0xff]
      %v328 = vld [vmem:[%s1 + $0x250] sm:$0xff]
      %v329 = vld [vmem:[%s1 + $0x258] sm:$0xff]
      %v330 = vld [vmem:[%s1 + $0x260] sm:$0xff]
      %v331 = vld [vmem:[%s1 + $0x268] sm:$0xff]
      %v332 = vld [vmem:[%s1 + $0x270] sm:$0xff]
      %v333 = vld [vmem:[%s1 + $0x278] sm:$0xff]
      %v334 = vld [vmem:[%s1 + $0x280] sm:$0xff]
      %v335 = vld [vmem:[%s1 + $0x288] sm:$0xff]
      %v336 = vld [vmem:[%s1 + $0x290] sm:$0xff]
      %v337 = vld [vmem:[%s1 + $0x298] sm:$0xff]
      %v338 = vld [vmem:[%s1 + $0x2a0] sm:$0xff]
      %v339 = vld [vmem:[%s1 + $0x2a8] sm:$0xff]
      %v340 = vld [vmem:[%s1 + $0x2b0] sm:$0xff]
      %v341 = vld [vmem:[%s1 + $0x2b8] sm:$0xff]
      %v342 = vld [vmem:[%s1 + $0x2c0] sm:$0xff]
      %v343 = vld [vmem:[%s1 + $0x2c8] sm:$0xff]
      %v344 = vld [vmem:[%s1 + $0x2d0] sm:$0xff]
      %v345 = vld [vmem:[%s1 + $0x2d8] sm:$0xff]
      %v346 = vld [vmem:[%s1 + $0x2e0] sm:$0xff]
      %v347 = vld [vmem:[%s1 + $0x2e8] sm:$0xff]
      %v348 = vld [vmem:[%s1 + $0x2f0] sm:$0xff]
      %v349 = vld [vmem:[%s1 + $0x2f8] sm:$0xff]
      %v350 = vld [vmem:[%s2] sm:$0x3]
      %v352 = vlaneseq
      %v353 = vshrl.u32 %v352, 7
      %v354 = vsub.s32 0, %v353
      %v355 = vrot.slane %v350, %v354
      %v356 = vlaneseq
      %v357 = vshrl.u32 %v356, 7
      %v358 = vsub.s32 1, %v357
      %v359 = vrot.slane %v350, %v358
      %v364 = vcombine.high %v252, %v252
      %v366 = vunpack.c.l.s4 1983009808
      %v367 = vunpack.c.0.s8 %v366
      %v368 = vlaneseq
      %v369 = vshrl.u32 %v368, 7
      %v370 = vsub.s32 %v367, %v369
      %v371 = vrot.slane %v252, %v370
      %v373 = vunpack.c.l.s4 1983009808
      %v374 = vunpack.c.0.s8 %v373
      %v375 = vlaneseq
      %v376 = vshrl.u32 %v375, 7
      %v377 = vsub.s32 %v374, %v376
      %v378 = vrot.slane %v364, %v377
      %v379 = vcombine.high %v371, %v371
      %v380 = vcombine.high %v378, %v378
      %v382 = vunpack.c.l.s4 1983009808
      %v383 = vunpack.c.0.s8 %v382
      %v384 = vlaneseq
      %v385 = vshrl.u32 %v384, 7
      %v386 = vsub.s32 %v383, %v385
      %v387 = vrot.slane %v253, %v386
      %v388 = vcombine.high %v387, %v387
      %v491 = vunpack.c.l.b16 %v254
      %v492 = vunpack.c.h.b16 %v254
      %v493 = vunpack.c.l.b16 %v255
      %v494 = vunpack.c.h.b16 %v255
      %v495 = vunpack.c.l.b16 %v256
      %v496 = vunpack.c.h.b16 %v256
      %v497 = vunpack.c.l.b16 %v257
      %v498 = vunpack.c.h.b16 %v257
      %v499 = vunpack.c.l.b16 %v258
      %v500 = vunpack.c.h.b16 %v258
      %v501 = vunpack.c.l.b16 %v259
      %v502 = vunpack.c.h.b16 %v259
      %v503 = vunpack.c.l.b16 %v260
      %v504 = vunpack.c.h.b16 %v260
      %v505 = vunpack.c.l.b16 %v261
      %v506 = vunpack.c.h.b16 %v261
      %v507 = vunpack.c.l.b16 %v262
      %v508 = vunpack.c.h.b16 %v262
      %v509 = vunpack.c.l.b16 %v263
      %v510 = vunpack.c.h.b16 %v263
      %v511 = vunpack.c.l.b16 %v264
      %v512 = vunpack.c.h.b16 %v264
      %v513 = vunpack.c.l.b16 %v265
      %v514 = vunpack.c.h.b16 %v265
      %v515 = vunpack.c.l.b16 %v266
      %v516 = vunpack.c.h.b16 %v266
      %v517 = vunpack.c.l.b16 %v267
      %v518 = vunpack.c.h.b16 %v267
      %v519 = vunpack.c.l.b16 %v268
      %v520 = vunpack.c.h.b16 %v268
      %v521 = vunpack.c.l.b16 %v269
      %v522 = vunpack.c.h.b16 %v269
      %v523 = vunpack.c.l.b16 %v270
      %v524 = vunpack.c.h.b16 %v270
      %v525 = vunpack.c.l.b16 %v271
      %v526 = vunpack.c.h.b16 %v271
      %v527 = vunpack.c.l.b16 %v272
      %v528 = vunpack.c.h.b16 %v272
      %v529 = vunpack.c.l.b16 %v273
      %v530 = vunpack.c.h.b16 %v273
      %v531 = vunpack.c.l.b16 %v274
      %v532 = vunpack.c.h.b16 %v274
      %v533 = vunpack.c.l.b16 %v275
      %v534 = vunpack.c.h.b16 %v275
      %v535 = vunpack.c.l.b16 %v276
      %v536 = vunpack.c.h.b16 %v276
      %v537 = vunpack.c.l.b16 %v277
      %v538 = vunpack.c.h.b16 %v277
      %v539 = vunpack.c.l.b16 %v278
      %v540 = vunpack.c.h.b16 %v278
      %v541 = vunpack.c.l.b16 %v279
      %v542 = vunpack.c.h.b16 %v279
      %v543 = vunpack.c.l.b16 %v280
      %v544 = vunpack.c.h.b16 %v280
      %v545 = vunpack.c.l.b16 %v281
      %v546 = vunpack.c.h.b16 %v281
      %v547 = vunpack.c.l.b16 %v282
      %v548 = vunpack.c.h.b16 %v282
      %v549 = vunpack.c.l.b16 %v283
      %v550 = vunpack.c.h.b16 %v283
      %v551 = vunpack.c.l.b16 %v284
      %v552 = vunpack.c.h.b16 %v284
      %v553 = vunpack.c.l.b16 %v285
      %v554 = vunpack.c.h.b16 %v285
      %v555 = vunpack.c.l.b16 %v286
      %v556 = vunpack.c.h.b16 %v286
      %v557 = vunpack.c.l.b16 %v287
      %v558 = vunpack.c.h.b16 %v287
      %v559 = vunpack.c.l.b16 %v288
      %v560 = vunpack.c.h.b16 %v288
      %v561 = vunpack.c.l.b16 %v289
      %v562 = vunpack.c.h.b16 %v289
      %v563 = vunpack.c.l.b16 %v290
      %v564 = vunpack.c.h.b16 %v290
      %v565 = vunpack.c.l.b16 %v291
      %v566 = vunpack.c.h.b16 %v291
      %v567 = vunpack.c.l.b16 %v292
      %v568 = vunpack.c.h.b16 %v292
      %v569 = vunpack.c.l.b16 %v293
      %v570 = vunpack.c.h.b16 %v293
      %v571 = vunpack.c.l.b16 %v294
      %v572 = vunpack.c.h.b16 %v294
      %v573 = vunpack.c.l.b16 %v295
      %v574 = vunpack.c.h.b16 %v295
      %v575 = vunpack.c.l.b16 %v296
      %v576 = vunpack.c.h.b16 %v296
      %v577 = vunpack.c.l.b16 %v297
      %v578 = vunpack.c.h.b16 %v297
      %v579 = vunpack.c.l.b16 %v298
      %v580 = vunpack.c.h.b16 %v298
      %v581 = vunpack.c.l.b16 %v299
      %v582 = vunpack.c.h.b16 %v299
      %v583 = vunpack.c.l.b16 %v300
      %v584 = vunpack.c.h.b16 %v300
      %v585 = vunpack.c.l.b16 %v301
      %v586 = vunpack.c.h.b16 %v301
      %v587 = vunpack.c.l.b16 %v302
      %v588 = vunpack.c.h.b16 %v302
      %v589 = vunpack.c.l.b16 %v303
      %v590 = vunpack.c.h.b16 %v303
      %v591 = vunpack.c.l.b16 %v304
      %v592 = vunpack.c.h.b16 %v304
      %v593 = vunpack.c.l.b16 %v305
      %v594 = vunpack.c.h.b16 %v305
      %v595 = vunpack.c.l.b16 %v306
      %v596 = vunpack.c.h.b16 %v306
      %v597 = vunpack.c.l.b16 %v307
      %v598 = vunpack.c.h.b16 %v307
      %v599 = vunpack.c.l.b16 %v308
      %v600 = vunpack.c.h.b16 %v308
      %v601 = vunpack.c.l.b16 %v309
      %v602 = vunpack.c.h.b16 %v309
      %v603 = vunpack.c.l.b16 %v310
      %v604 = vunpack.c.h.b16 %v310
      %v605 = vunpack.c.l.b16 %v311
      %v606 = vunpack.c.h.b16 %v311
      %v607 = vunpack.c.l.b16 %v312
      %v608 = vunpack.c.h.b16 %v312
      %v609 = vunpack.c.l.b16 %v313
      %v610 = vunpack.c.h.b16 %v313
      %v611 = vunpack.c.l.b16 %v314
      %v612 = vunpack.c.h.b16 %v314
      %v613 = vunpack.c.l.b16 %v315
      %v614 = vunpack.c.h.b16 %v315
      %v615 = vunpack.c.l.b16 %v316
      %v616 = vunpack.c.h.b16 %v316
      %v617 = vunpack.c.l.b16 %v317
      %v618 = vunpack.c.h.b16 %v317
      %v619 = vunpack.c.l.b16 %v318
      %v620 = vunpack.c.h.b16 %v318
      %v621 = vunpack.c.l.b16 %v319
      %v622 = vunpack.c.h.b16 %v319
      %v623 = vunpack.c.l.b16 %v320
      %v624 = vunpack.c.h.b16 %v320
      %v625 = vunpack.c.l.b16 %v321
      %v626 = vunpack.c.h.b16 %v321
      %v627 = vunpack.c.l.b16 %v322
      %v628 = vunpack.c.h.b16 %v322
      %v629 = vunpack.c.l.b16 %v323
      %v630 = vunpack.c.h.b16 %v323
      %v631 = vunpack.c.l.b16 %v324
      %v632 = vunpack.c.h.b16 %v324
      %v633 = vunpack.c.l.b16 %v325
      %v634 = vunpack.c.h.b16 %v325
      %v635 = vunpack.c.l.b16 %v326
      %v636 = vunpack.c.h.b16 %v326
      %v637 = vunpack.c.l.b16 %v327
      %v638 = vunpack.c.h.b16 %v327
      %v639 = vunpack.c.l.b16 %v328
      %v640 = vunpack.c.h.b16 %v328
      %v641 = vunpack.c.l.b16 %v329
      %v642 = vunpack.c.h.b16 %v329
      %v643 = vunpack.c.l.b16 %v330
      %v644 = vunpack.c.h.b16 %v330
      %v645 = vunpack.c.l.b16 %v331
      %v646 = vunpack.c.h.b16 %v331
      %v647 = vunpack.c.l.b16 %v332
      %v648 = vunpack.c.h.b16 %v332
      %v649 = vunpack.c.l.b16 %v333
      %v650 = vunpack.c.h.b16 %v333
      %v651 = vunpack.c.l.b16 %v334
      %v652 = vunpack.c.h.b16 %v334
      %v653 = vunpack.c.l.b16 %v335
      %v654 = vunpack.c.h.b16 %v335
      %v655 = vunpack.c.l.b16 %v336
      %v656 = vunpack.c.h.b16 %v336
      %v657 = vunpack.c.l.b16 %v337
      %v658 = vunpack.c.h.b16 %v337
      %v659 = vunpack.c.l.b16 %v338
      %v660 = vunpack.c.h.b16 %v338
      %v661 = vunpack.c.l.b16 %v339
      %v662 = vunpack.c.h.b16 %v339
      %v663 = vunpack.c.l.b16 %v340
      %v664 = vunpack.c.h.b16 %v340
      %v665 = vunpack.c.l.b16 %v341
      %v666 = vunpack.c.h.b16 %v341
      %v667 = vunpack.c.l.b16 %v342
      %v668 = vunpack.c.h.b16 %v342
      %v669 = vunpack.c.l.b16 %v343
      %v670 = vunpack.c.h.b16 %v343
      %v671 = vunpack.c.l.b16 %v344
      %v672 = vunpack.c.h.b16 %v344
      %v673 = vunpack.c.l.b16 %v345
      %v674 = vunpack.c.h.b16 %v345
      %v675 = vunpack.c.l.b16 %v346
      %v676 = vunpack.c.h.b16 %v346
      %v677 = vunpack.c.l.b16 %v347
      %v678 = vunpack.c.h.b16 %v347
      %v679 = vunpack.c.l.b16 %v348
      %v680 = vunpack.c.h.b16 %v348
      %v681 = vunpack.c.l.b16 %v349
      %v682 = vunpack.c.h.b16 %v349
      %v683 = vpack.c.b16 %v493, %v491
      %v684 = vpack.c.b16 %v494, %v492
      %v685 = vpack.c.b16 %v497, %v495
      %v686 = vpack.c.b16 %v498, %v496
      %v687 = vpack.c.b16 %v501, %v499
      %v688 = vpack.c.b16 %v502, %v500
      %v689 = vpack.c.b16 %v505, %v503
      %v690 = vpack.c.b16 %v506, %v504
      %v691 = vpack.c.b16 %v509, %v507
      %v692 = vpack.c.b16 %v510, %v508
      %v693 = vpack.c.b16 %v513, %v511
      %v694 = vpack.c.b16 %v514, %v512
      %v695 = vpack.c.b16 %v517, %v515
      %v696 = vpack.c.b16 %v518, %v516
      %v697 = vpack.c.b16 %v521, %v519
      %v698 = vpack.c.b16 %v522, %v520
      %v699 = vpack.c.b16 %v525, %v523
      %v700 = vpack.c.b16 %v526, %v524
      %v701 = vpack.c.b16 %v529, %v527
      %v702 = vpack.c.b16 %v530, %v528
      %v703 = vpack.c.b16 %v533, %v531
      %v704 = vpack.c.b16 %v534, %v532
      %v705 = vpack.c.b16 %v537, %v535
      %v706 = vpack.c.b16 %v538, %v536
      %v707 = vpack.c.b16 %v541, %v539
      %v708 = vpack.c.b16 %v542, %v540
      %v709 = vpack.c.b16 %v545, %v543
      %v710 = vpack.c.b16 %v546, %v544
      %v711 = vpack.c.b16 %v549, %v547
      %v712 = vpack.c.b16 %v550, %v548
      %v713 = vpack.c.b16 %v553, %v551
      %v714 = vpack.c.b16 %v554, %v552
      %v715 = vpack.c.b16 %v557, %v555
      %v716 = vpack.c.b16 %v558, %v556
      %v717 = vpack.c.b16 %v561, %v559
      %v718 = vpack.c.b16 %v562, %v560
      %v719 = vpack.c.b16 %v565, %v563
      %v720 = vpack.c.b16 %v566, %v564
      %v721 = vpack.c.b16 %v569, %v567
      %v722 = vpack.c.b16 %v570, %v568
      %v723 = vpack.c.b16 %v573, %v571
      %v724 = vpack.c.b16 %v574, %v572
      %v725 = vpack.c.b16 %v577, %v575
      %v726 = vpack.c.b16 %v578, %v576
      %v727 = vpack.c.b16 %v581, %v579
      %v728 = vpack.c.b16 %v582, %v580
      %v729 = vpack.c.b16 %v585, %v583
      %v730 = vpack.c.b16 %v586, %v584
      %v731 = vpack.c.b16 %v589, %v587
      %v732 = vpack.c.b16 %v590, %v588
      %v733 = vpack.c.b16 %v593, %v591
      %v734 = vpack.c.b16 %v594, %v592
      %v735 = vpack.c.b16 %v597, %v595
      %v736 = vpack.c.b16 %v598, %v596
      %v737 = vpack.c.b16 %v601, %v599
      %v738 = vpack.c.b16 %v602, %v600
      %v739 = vpack.c.b16 %v605, %v603
      %v740 = vpack.c.b16 %v606, %v604
      %v741 = vpack.c.b16 %v609, %v607
      %v742 = vpack.c.b16 %v610, %v608
      %v743 = vpack.c.b16 %v613, %v611
      %v744 = vpack.c.b16 %v614, %v612
      %v745 = vpack.c.b16 %v617, %v615
      %v746 = vpack.c.b16 %v618, %v616
      %v747 = vpack.c.b16 %v621, %v619
      %v748 = vpack.c.b16 %v622, %v620
      %v749 = vpack.c.b16 %v625, %v623
      %v750 = vpack.c.b16 %v626, %v624
      %v751 = vpack.c.b16 %v629, %v627
      %v752 = vpack.c.b16 %v630, %v628
      %v753 = vpack.c.b16 %v633, %v631
      %v754 = vpack.c.b16 %v634, %v632
      %v755 = vpack.c.b16 %v637, %v635
      %v756 = vpack.c.b16 %v638, %v636
      %v757 = vpack.c.b16 %v641, %v639
      %v758 = vpack.c.b16 %v642, %v640
      %v759 = vpack.c.b16 %v645, %v643
      %v760 = vpack.c.b16 %v646, %v644
      %v761 = vpack.c.b16 %v649, %v647
      %v762 = vpack.c.b16 %v650, %v648
      %v763 = vpack.c.b16 %v653, %v651
      %v764 = vpack.c.b16 %v654, %v652
      %v765 = vpack.c.b16 %v657, %v655
      %v766 = vpack.c.b16 %v658, %v656
      %v767 = vpack.c.b16 %v661, %v659
      %v768 = vpack.c.b16 %v662, %v660
      %v769 = vpack.c.b16 %v665, %v663
      %v770 = vpack.c.b16 %v666, %v664
      %v771 = vpack.c.b16 %v669, %v667
      %v772 = vpack.c.b16 %v670, %v668
      %v773 = vpack.c.b16 %v673, %v671
      %v774 = vpack.c.b16 %v674, %v672
      %v775 = vpack.c.b16 %v677, %v675
      %v776 = vpack.c.b16 %v678, %v676
      %v777 = vpack.c.b16 %v681, %v679
      %v778 = vpack.c.b16 %v682, %v680
      %875 = vmatprep.subr.bf16.mxu0 %v684
      %876 = vmatpush1.bf16.msra.mxu0 %v683
      %877 = vmatprep.subr.bf16.mxu0 %v686
      %878 = vmatpush1.bf16.msra.mxu0 %v685
      %879 = vmatprep.subr.bf16.mxu0 %v688
      %880 = vmatpush1.bf16.msra.mxu0 %v687
      %881 = vmatprep.subr.bf16.mxu0 %v690
      %882 = vmatpush1.bf16.msra.mxu0 %v689
      %883 = vmatprep.subr.bf16.mxu0 %v692
      %884 = vmatpush1.bf16.msra.mxu0 %v691
      %885 = vmatprep.subr.bf16.mxu0 %v694
      %886 = vmatpush1.bf16.msra.mxu0 %v693
      %887 = vmatprep.subr.bf16.mxu0 %v696
      %888 = vmatpush1.bf16.msra.mxu0 %v695
      %889 = vmatprep.subr.bf16.mxu0 %v698
      %890 = vmatpush1.bf16.msra.mxu0 %v697
      %891 = vmatprep.subr.bf16.mxu0 %v700
      %892 = vmatpush1.bf16.msra.mxu0 %v699
      %893 = vmatprep.subr.bf16.mxu0 %v702
      %894 = vmatpush1.bf16.msra.mxu0 %v701
      %895 = vmatprep.subr.bf16.mxu0 %v704
      %896 = vmatpush1.bf16.msra.mxu0 %v703
      %897 = vmatprep.subr.bf16.mxu0 %v706
      %898 = vmatpush1.bf16.msra.mxu0 %v705
      %899 = vmatprep.subr.bf16.mxu0 %v708
      %900 = vmatpush1.bf16.msra.mxu0 %v707
      %901 = vmatprep.subr.bf16.mxu0 %v710
      %902 = vmatpush1.bf16.msra.mxu0 %v709
      %903 = vmatprep.subr.bf16.mxu0 %v712
      %904 = vmatpush1.bf16.msra.mxu0 %v711
      %905 = vmatprep.subr.bf16.mxu0 %v714
      %906 = vmatpush1.bf16.msra.mxu0 %v713
      %907 = vmatprep.mubr.bf16.mxu0 %v379
      %908 = vmatmul.mubr.bf16.gmra.mrb[0].mxu0 %v371
      %v909 = vpop.f32.mrb[0].mxu0
      %v910 = vadd.f32 %v355, %v909
      %v911 = vpop.f32.mrb[0].mxu0
      %v912 = vadd.f32 %v359, %v911
      %v913 = vpop.f32.mrb[0].mxu0
      %v914 = vpop.f32.mrb[0].mxu0
      %915 = vdwg.mxu0
      %916 = vmatprep.subr.bf16.mxu0 %v716
      %917 = vmatpush1.bf16.msra.mxu0 %v715
      %918 = vmatprep.subr.bf16.mxu0 %v718
      %919 = vmatpush1.bf16.msra.mxu0 %v717
      %920 = vmatprep.subr.bf16.mxu0 %v720
      %921 = vmatpush1.bf16.msra.mxu0 %v719
      %922 = vmatprep.subr.bf16.mxu0 %v722
      %923 = vmatpush1.bf16.msra.mxu0 %v721
      %924 = vmatprep.subr.bf16.mxu0 %v724
      %925 = vmatpush1.bf16.msra.mxu0 %v723
      %926 = vmatprep.subr.bf16.mxu0 %v726
      %927 = vmatpush1.bf16.msra.mxu0 %v725
      %928 = vmatprep.subr.bf16.mxu0 %v728
      %929 = vmatpush1.bf16.msra.mxu0 %v727
      %930 = vmatprep.subr.bf16.mxu0 %v730
      %931 = vmatpush1.bf16.msra.mxu0 %v729
      %932 = vmatprep.subr.bf16.mxu0 %v732
      %933 = vmatpush1.bf16.msra.mxu0 %v731
      %934 = vmatprep.subr.bf16.mxu0 %v734
      %935 = vmatpush1.bf16.msra.mxu0 %v733
      %936 = vmatprep.subr.bf16.mxu0 %v736
      %937 = vmatpush1.bf16.msra.mxu0 %v735
      %938 = vmatprep.subr.bf16.mxu0 %v738
      %939 = vmatpush1.bf16.msra.mxu0 %v737
      %940 = vmatprep.subr.bf16.mxu0 %v740
      %941 = vmatpush1.bf16.msra.mxu0 %v739
      %942 = vmatprep.subr.bf16.mxu0 %v742
      %943 = vmatpush1.bf16.msra.mxu0 %v741
      %944 = vmatprep.subr.bf16.mxu0 %v744
      %945 = vmatpush1.bf16.msra.mxu0 %v743
      %946 = vmatprep.subr.bf16.mxu0 %v746
      %947 = vmatpush1.bf16.msra.mxu0 %v745
      %948 = vmatprep.mubr.bf16.mxu0 %v380
      %949 = vmatmul.mubr.bf16.gmra.mrb[0].mxu0 %v378
      %v950 = vpop.f32.mrb[0].mxu0
      %v951 = vadd.f32 %v910, %v950
      %v952 = vpop.f32.mrb[0].mxu0
      %v953 = vadd.f32 %v912, %v952
      %v954 = vpop.f32.mrb[0].mxu0
      %v955 = vpop.f32.mrb[0].mxu0
      %956 = vdwg.mxu0
      %957 = vmatprep.subr.bf16.mxu0 %v748
      %958 = vmatpush1.bf16.msra.mxu0 %v747
      %959 = vmatprep.subr.bf16.mxu0 %v750
      %960 = vmatpush1.bf16.msra.mxu0 %v749
      %961 = vmatprep.subr.bf16.mxu0 %v752
      %962 = vmatpush1.bf16.msra.mxu0 %v751
      %963 = vmatprep.subr.bf16.mxu0 %v754
      %964 = vmatpush1.bf16.msra.mxu0 %v753
      %965 = vmatprep.subr.bf16.mxu0 %v756
      %966 = vmatpush1.bf16.msra.mxu0 %v755
      %967 = vmatprep.subr.bf16.mxu0 %v758
      %968 = vmatpush1.bf16.msra.mxu0 %v757
      %969 = vmatprep.subr.bf16.mxu0 %v760
      %970 = vmatpush1.bf16.msra.mxu0 %v759
      %971 = vmatprep.subr.bf16.mxu0 %v762
      %972 = vmatpush1.bf16.msra.mxu0 %v761
      %973 = vmatprep.subr.bf16.mxu0 %v764
      %974 = vmatpush1.bf16.msra.mxu0 %v763
      %975 = vmatprep.subr.bf16.mxu0 %v766
      %976 = vmatpush1.bf16.msra.mxu0 %v765
      %977 = vmatprep.subr.bf16.mxu0 %v768
      %978 = vmatpush1.bf16.msra.mxu0 %v767
      %979 = vmatprep.subr.bf16.mxu0 %v770
      %980 = vmatpush1.bf16.msra.mxu0 %v769
      %981 = vmatprep.subr.bf16.mxu0 %v772
      %982 = vmatpush1.bf16.msra.mxu0 %v771
      %983 = vmatprep.subr.bf16.mxu0 %v774
      %984 = vmatpush1.bf16.msra.mxu0 %v773
      %985 = vmatprep.subr.bf16.mxu0 %v776
      %986 = vmatpush1.bf16.msra.mxu0 %v775
      %987 = vmatprep.subr.bf16.mxu0 %v778
      %988 = vmatpush1.bf16.msra.mxu0 %v777
      %989 = vmatprep.mubr.bf16.mxu0 %v388
      %990 = vmatmul.mubr.bf16.gmra.mrb[0].mxu0 %v387
      %v991 = vpop.f32.mrb[0].mxu0
      %v992 = vadd.f32 %v951, %v991
      %v993 = vpop.f32.mrb[0].mxu0
      %v994 = vadd.f32 %v953, %v993
      %v995 = vpop.f32.mrb[0].mxu0
      %v996 = vpop.f32.mrb[0].mxu0
      %997 = vdwg.mxu0
      %v998 = vld [vmem:[%s3] sm:$0xff]
      %v1000 = vcombine.high %v998, %v998
      %v1002 = vadd.f32 %v992, %v998
      %v1003 = vadd.f32 %v994, %v1000
      %v1004 = vld [vmem:[%s4] sm:$0x3]
      %v1005 = vld [vmem:[%s5] sm:$0x3]
      %vm1006 = vcmask 1043456
      %v1007 = vsel %vm1006, %v1002, 0.0
      %v1008 = vsel %vm1006, %v1003, 0.0
      %v1009 = vadd.f32 %v1007, %v1008
      %1010 = vadd.xlane.f32.xlu0 %v1009
      %v1011 = vpop.xlane.xlu0 %1010
      %v1012 = vrcp.pop 256.0
      %v1013 = vmul.f32 %v1011, %v1012
      %v1014 = vsub.f32 %v1002, %v1013
      %v1015 = vsub.f32 %v1003, %v1013
      %v1016 = vmul.f32 %v1014, %v1014
      %v1017 = vmul.f32 %v1015, %v1015
      %v1018 = vsel %vm1006, %v1016, 0.0
      %v1019 = vsel %vm1006, %v1017, 0.0
      %v1020 = vadd.f32 %v1018, %v1019
      %1021 = vadd.xlane.f32.xlu0 %v1020
      %v1022 = vpop.xlane.xlu0 %1021
      %v1023 = vmul.f32 %v1022, %v1012
      %v1024 = vadd.f32 %v1023, 1e-05
      %v1025 = vrsqrt.pop %v1024
      %v1026 = vmul.f32 %v1014, %v1025
      %v1027 = vmul.f32 %v1015, %v1025
      %v1029 = vlaneseq
      %v1030 = vshrl.u32 %v1029, 7
      %v1031 = vsub.s32 0, %v1030
      %v1032 = vrot.slane %v1004, %v1031
      %v1033 = vlaneseq
      %v1034 = vshrl.u32 %v1033, 7
      %v1035 = vsub.s32 1, %v1034
      %v1036 = vrot.slane %v1004, %v1035
      %v1039 = vmul.f32 %v1026, %v1032
      %v1040 = vmul.f32 %v1027, %v1036
      %v1042 = vlaneseq
      %v1043 = vshrl.u32 %v1042, 7
      %v1044 = vsub.s32 0, %v1043
      %v1045 = vrot.slane %v1005, %v1044
      %v1046 = vlaneseq
      %v1047 = vshrl.u32 %v1046, 7
      %v1048 = vsub.s32 1, %v1047
      %v1049 = vrot.slane %v1005, %v1048
      %v1052 = vadd.f32 %v1039, %v1045
      %v1053 = vadd.f32 %v1040, %v1049
      %v1056 = vcombine.low %v1052, %v1053
      %1058 = vst [vmem:[%s251] sm:$0xff] %v1056
      %p1059 = scmp.lt.s32.totalorder %s17, 3
      %s1060 = scalar_select %p1059, %s17, 3
      %s1061 = smul.addr %s1060, 2
      %s1062 = smul.addr %s1061, 4
      %s1063 = scalar_lea.vmem %s6, %s1062
      // Predicated region
      $region45: #{unified_bert_encoder.3} parent=43 // pred_check
        %p1064 = pneg %p166
      $region46: #{unified_bert_encoder.3} parent=43 // pred_check_branch
        %1066 = sbr.rel (%p1064) target = $region48
      $region47: #{unified_bert_encoder.3} parent=43 // pred_region
        _
      $region48: #{unified_bert_encoder.3} parent=43 // pred_fallthru
        _
    $region44: #{unified_bert_encoder.3} parent=5 // pred_fallthru
      _
    %p1067 = scmp.le.s32.totalorder 2, %s12
    // Predicated region
    $region49: #{unified_bert_encoder.3} parent=5 // pred_check
      %p1068 = pneg %p1067
    $region50: #{unified_bert_encoder.3} parent=5 // pred_check_branch
      %1070 = sbr.rel (%p1068) target = $region52
    $region51: #{unified_bert_encoder.3} parent=5 // pred_region
      %s1071 = ssub.s32 %s12, 2
      // Predicated region
      $region53: #{unified_bert_encoder.3} parent=51 // pred_check
        %p1072 = pneg %p172
      $region54: #{unified_bert_encoder.3} parent=51 // pred_check_branch
        %1074 = sbr.rel (%p1072) target = $region56
      $region55: #{unified_bert_encoder.3} parent=51 // pred_region
        %p1075 = scmp.lt.s32.totalorder %s18, 3
        %s1076 = scalar_select %p1075, %s18, 3
        %s1077 = smul.addr %s1076, 2
        %s1078 = smul.addr %s1077, 4
        %s1079 = scalar_lea.vmem %s6, %s1078
      $region56: #{unified_bert_encoder.3} parent=51 // pred_fallthru
        _
    $region52: #{unified_bert_encoder.3} parent=5 // pred_fallthru
      _
  $region6: #{unified_bert_encoder.3} parent=0 // loop_footer
    %s16 = sadd.s32 1, %s12
  $region7: #{unified_bert_encoder.3} parent=0 // loop_footer_branch
    %11 = sbr.rel target = $region3
  $region8: #{unified_bert_encoder.3} parent=0 // loop_exit
    _

// kernel: unified_bert_encoder.5
$region0: #{unified_bert_encoder.5}
  #allocation0 [shape = 'u32[]', space=smem, size = 0x4, offset = 0x4, fixed_abs, tag = 'smem constant byte address 0x4 - core index']
  #allocation1 [shape = 'u32[144,128]{1,0:T(1,128)}', space=vmem, size = 0x12000, scoped, tag = 'internal scratch']
  %s0 = inlined_call_operand.vmem [shape: f32[4,16,256], index: 0, kind: input, shape index: {}]
  %s1 = inlined_call_operand.vmem [shape: bf16[2,256,768], index: 1, kind: input, shape index: {}]
  %s2 = inlined_call_operand.vmem [shape: f32[2,1,768], index: 2, kind: input, shape index: {}]
  %s3 = inlined_call_operand.vmem [shape: bf16[2,256,256], index: 3, kind: input, shape index: {}]
  %s4 = inlined_call_operand.vmem [shape: f32[2,1,256], index: 4, kind: input, shape index: {}]
  %s5 = inlined_call_operand.vmem [shape: bf16[2,256,1024], index: 5, kind: input, shape index: {}]
  %s6 = inlined_call_operand.vmem [shape: f32[2,1,1024], index: 6, kind: input, shape index: {}]
  %s7 = inlined_call_operand.vmem [shape: bf16[2,1024,256], index: 7, kind: input, shape index: {}]
  %s8 = inlined_call_operand.vmem [shape: f32[2,1,256], index: 8, kind: input, shape index: {}]
  %s9 = inlined_call_operand.vmem [shape: f32[2,6,256], index: 9, kind: input, shape index: {}]
  %s10 = inlined_call_operand.vmem [shape: f32[4,16,256], index: 10, kind: output, shape index: {}]
  %s11 = sld [smem:[#allocation0]]
  $region77: #{unified_bert_encoder.5} parent=0
    _
  %s13 = ssub.s32 1, %s11
  %s14 = scalar_select 0, %s13, %s11
  loop: start=0, step=1, limit=6
  $region2: #{unified_bert_encoder.5} parent=0 // loop_pre_header
    _
  $region3: #{unified_bert_encoder.5} parent=0 // loop_header
    %s16 = sphi 0, %s20
    %p17 = scmp.ge.s32.totalorder %s16, 6
    %s23 = sphi 0, %s35
    %s24 = sphi 0, %s31
    %s25 = sphi 0, %s23
    %s26 = sphi 0, %s24
    %s27 = sphi 0, %s25
    %s28 = sphi 0, %s26
    %s38 = sphi 0, %s40
    %s41 = sphi 0, %s38
    %s42 = sphi 0, %s41
    %s58 = sphi 0, %s42
    %s64 = sphi 0, %s66
    %s67 = sphi 0, %s64
    %s68 = sphi 0, %s67
    %s84 = sphi 0, %s68
    %s90 = sphi 0, %s92
    %s93 = sphi 0, %s90
    %s94 = sphi 0, %s93
    %s110 = sphi 0, %s94
    %s116 = sphi 0, %s118
    %s119 = sphi 0, %s116
    %s120 = sphi 0, %s119
    %s136 = sphi 0, %s120
    %s142 = sphi 0, %s144
    %s145 = sphi 0, %s142
    %s146 = sphi 0, %s145
    %s162 = sphi 0, %s146
    %s168 = sphi 0, %s170
    %s171 = sphi 0, %s168
    %s172 = sphi 0, %s171
    %s188 = sphi 0, %s172
    %s194 = sphi 0, %s196
    %s197 = sphi 0, %s194
    %s198 = sphi 0, %s197
    %s214 = sphi 0, %s198
    %s220 = sphi 0, %s222
    %s223 = sphi 0, %s220
    %s224 = sphi 0, %s223
    %s240 = sphi 0, %s224
    %s246 = sphi 0, %s248
    %s249 = sphi 0, %s246
    %s250 = sphi 0, %s249
    %s266 = sphi 0, %s250
    %s272 = sphi 0, %s274
    %s275 = sphi 0, %s272
    %s276 = sphi 0, %s275
    %s292 = sphi 0, %s276
    %s298 = sphi 0, %s300
    %s301 = sphi 0, %s298
    %s302 = sphi 0, %s301
    %s318 = sphi 0, %s302
  $region4: #{unified_bert_encoder.5} parent=0 // loop_header_branch
    %19 = sbr.rel (%p17) target = $region8
  $region5: #{unified_bert_encoder.5} parent=0 // loop_body
    %s21 = ssub.s32 %s16, 1
    %s22 = ssub.s32 %s16, 2
    %s29 = sadd.s32 1, %s24
    %p30 = scmp.ge.s32.totalorder %s29, 2
    %s31 = scalar_select %p30, 0, %s29
    %s32 = sadd.s32 1, %s23
    %s33 = scalar_select %p30, %s32, %s23
    %p34 = scmp.ge.s32.totalorder %s33, 2
    %s35 = scalar_select %p34, 0, %s33
    %s36 = ssub.s32 %s23, %s35
    %p37 = scmp.eq.s32.totalorder %s36, 0
    %s39 = sadd.s32 %s38, 1
    %s40 = scalar_select %p37, %s38, %s39
    %p43 = pneg %p37
    %p44 = scmp.eq.s32.totalorder %s16, 3
    %p45 = por %p43, %p44
    %p46 = scmp.ne.s32.totalorder %s38, %s41
    %p47 = scmp.eq.s32.totalorder %s16, 0
    %p48 = por %p46, %p47
    %p49 = scmp.ne.s32.totalorder %s38, %s41
    %p50 = scmp.eq.s32.totalorder %s21, 3
    %p51 = por %p49, %p50
    %p52 = scmp.ne.s32.totalorder %s41, %s42
    %p53 = scmp.eq.s32.totalorder %s21, 0
    %p54 = por %p52, %p53
    %p55 = scmp.ne.s32.totalorder %s41, %s42
    %p56 = scmp.eq.s32.totalorder %s22, 3
    %p57 = por %p55, %p56
    %p59 = scmp.ne.s32.totalorder %s42, %s58
    %p60 = scmp.eq.s32.totalorder %s22, 0
    %p61 = por %p59, %p60
    %s62 = ssub.s32 %s24, %s31
    %p63 = scmp.eq.s32.totalorder %s62, 0
    %s65 = sadd.s32 %s64, 1
    %s66 = scalar_select %p63, %s64, %s65
    %p69 = pneg %p63
    %p70 = scmp.eq.s32.totalorder %s16, 3
    %p71 = por %p69, %p70
    %p72 = scmp.ne.s32.totalorder %s64, %s67
    %p73 = scmp.eq.s32.totalorder %s16, 0
    %p74 = por %p72, %p73
    %p75 = scmp.ne.s32.totalorder %s64, %s67
    %p76 = scmp.eq.s32.totalorder %s21, 3
    %p77 = por %p75, %p76
    %p78 = scmp.ne.s32.totalorder %s67, %s68
    %p79 = scmp.eq.s32.totalorder %s21, 0
    %p80 = por %p78, %p79
    %p81 = scmp.ne.s32.totalorder %s67, %s68
    %p82 = scmp.eq.s32.totalorder %s22, 3
    %p83 = por %p81, %p82
    %p85 = scmp.ne.s32.totalorder %s68, %s84
    %p86 = scmp.eq.s32.totalorder %s22, 0
    %p87 = por %p85, %p86
    %s88 = ssub.s32 %s24, %s31
    %p89 = scmp.eq.s32.totalorder %s88, 0
    %s91 = sadd.s32 %s90, 1
    %s92 = scalar_select %p89, %s90, %s91
    %p95 = pneg %p89
    %p96 = scmp.eq.s32.totalorder %s16, 3
    %p97 = por %p95, %p96
    %p98 = scmp.ne.s32.totalorder %s90, %s93
    %p99 = scmp.eq.s32.totalorder %s16, 0
    %p100 = por %p98, %p99
    %p101 = scmp.ne.s32.totalorder %s90, %s93
    %p102 = scmp.eq.s32.totalorder %s21, 3
    %p103 = por %p101, %p102
    %p104 = scmp.ne.s32.totalorder %s93, %s94
    %p105 = scmp.eq.s32.totalorder %s21, 0
    %p106 = por %p104, %p105
    %p107 = scmp.ne.s32.totalorder %s93, %s94
    %p108 = scmp.eq.s32.totalorder %s22, 3
    %p109 = por %p107, %p108
    %p111 = scmp.ne.s32.totalorder %s94, %s110
    %p112 = scmp.eq.s32.totalorder %s22, 0
    %p113 = por %p111, %p112
    %s114 = ssub.s32 %s24, %s31
    %p115 = scmp.eq.s32.totalorder %s114, 0
    %s117 = sadd.s32 %s116, 1
    %s118 = scalar_select %p115, %s116, %s117
    %p121 = pneg %p115
    %p122 = scmp.eq.s32.totalorder %s16, 3
    %p123 = por %p121, %p122
    %p124 = scmp.ne.s32.totalorder %s116, %s119
    %p125 = scmp.eq.s32.totalorder %s16, 0
    %p126 = por %p124, %p125
    %p127 = scmp.ne.s32.totalorder %s116, %s119
    %p128 = scmp.eq.s32.totalorder %s21, 3
    %p129 = por %p127, %p128
    %p130 = scmp.ne.s32.totalorder %s119, %s120
    %p131 = scmp.eq.s32.totalorder %s21, 0
    %p132 = por %p130, %p131
    %p133 = scmp.ne.s32.totalorder %s119, %s120
    %p134 = scmp.eq.s32.totalorder %s22, 3
    %p135 = por %p133, %p134
    %p137 = scmp.ne.s32.totalorder %s120, %s136
    %p138 = scmp.eq.s32.totalorder %s22, 0
    %p139 = por %p137, %p138
    %s140 = ssub.s32 %s24, %s31
    %p141 = scmp.eq.s32.totalorder %s140, 0
    %s143 = sadd.s32 %s142, 1
    %s144 = scalar_select %p141, %s142, %s143
    %p147 = pneg %p141
    %p148 = scmp.eq.s32.totalorder %s16, 3
    %p149 = por %p147, %p148
    %p150 = scmp.ne.s32.totalorder %s142, %s145
    %p151 = scmp.eq.s32.totalorder %s16, 0
    %p152 = por %p150, %p151
    %p153 = scmp.ne.s32.totalorder %s142, %s145
    %p154 = scmp.eq.s32.totalorder %s21, 3
    %p155 = por %p153, %p154
    %p156 = scmp.ne.s32.totalorder %s145, %s146
    %p157 = scmp.eq.s32.totalorder %s21, 0
    %p158 = por %p156, %p157
    %p159 = scmp.ne.s32.totalorder %s145, %s146
    %p160 = scmp.eq.s32.totalorder %s22, 3
    %p161 = por %p159, %p160
    %p163 = scmp.ne.s32.totalorder %s146, %s162
    %p164 = scmp.eq.s32.totalorder %s22, 0
    %p165 = por %p163, %p164
    %s166 = ssub.s32 %s24, %s31
    %p167 = scmp.eq.s32.totalorder %s166, 0
    %s169 = sadd.s32 %s168, 1
    %s170 = scalar_select %p167, %s168, %s169
    %p173 = pneg %p167
    %p174 = scmp.eq.s32.totalorder %s16, 3
    %p175 = por %p173, %p174
    %p176 = scmp.ne.s32.totalorder %s168, %s171
    %p177 = scmp.eq.s32.totalorder %s16, 0
    %p178 = por %p176, %p177
    %p179 = scmp.ne.s32.totalorder %s168, %s171
    %p180 = scmp.eq.s32.totalorder %s21, 3
    %p181 = por %p179, %p180
    %p182 = scmp.ne.s32.totalorder %s171, %s172
    %p183 = scmp.eq.s32.totalorder %s21, 0
    %p184 = por %p182, %p183
    %p185 = scmp.ne.s32.totalorder %s171, %s172
    %p186 = scmp.eq.s32.totalorder %s22, 3
    %p187 = por %p185, %p186
    %p189 = scmp.ne.s32.totalorder %s172, %s188
    %p190 = scmp.eq.s32.totalorder %s22, 0
    %p191 = por %p189, %p190
    %s192 = ssub.s32 %s24, %s31
    %p193 = scmp.eq.s32.totalorder %s192, 0
    %s195 = sadd.s32 %s194, 1
    %s196 = scalar_select %p193, %s194, %s195
    %p199 = pneg %p193
    %p200 = scmp.eq.s32.totalorder %s16, 3
    %p201 = por %p199, %p200
    %p202 = scmp.ne.s32.totalorder %s194, %s197
    %p203 = scmp.eq.s32.totalorder %s16, 0
    %p204 = por %p202, %p203
    %p205 = scmp.ne.s32.totalorder %s194, %s197
    %p206 = scmp.eq.s32.totalorder %s21, 3
    %p207 = por %p205, %p206
    %p208 = scmp.ne.s32.totalorder %s197, %s198
    %p209 = scmp.eq.s32.totalorder %s21, 0
    %p210 = por %p208, %p209
    %p211 = scmp.ne.s32.totalorder %s197, %s198
    %p212 = scmp.eq.s32.totalorder %s22, 3
    %p213 = por %p211, %p212
    %p215 = scmp.ne.s32.totalorder %s198, %s214
    %p216 = scmp.eq.s32.totalorder %s22, 0
    %p217 = por %p215, %p216
    %s218 = ssub.s32 %s24, %s31
    %p219 = scmp.eq.s32.totalorder %s218, 0
    %s221 = sadd.s32 %s220, 1
    %s222 = scalar_select %p219, %s220, %s221
    %p225 = pneg %p219
    %p226 = scmp.eq.s32.totalorder %s16, 3
    %p227 = por %p225, %p226
    %p228 = scmp.ne.s32.totalorder %s220, %s223
    %p229 = scmp.eq.s32.totalorder %s16, 0
    %p230 = por %p228, %p229
    %p231 = scmp.ne.s32.totalorder %s220, %s223
    %p232 = scmp.eq.s32.totalorder %s21, 3
    %p233 = por %p231, %p232
    %p234 = scmp.ne.s32.totalorder %s223, %s224
    %p235 = scmp.eq.s32.totalorder %s21, 0
    %p236 = por %p234, %p235
    %p237 = scmp.ne.s32.totalorder %s223, %s224
    %p238 = scmp.eq.s32.totalorder %s22, 3
    %p239 = por %p237, %p238
    %p241 = scmp.ne.s32.totalorder %s224, %s240
    %p242 = scmp.eq.s32.totalorder %s22, 0
    %p243 = por %p241, %p242
    %s244 = ssub.s32 %s24, %s31
    %p245 = scmp.eq.s32.totalorder %s244, 0
    %s247 = sadd.s32 %s246, 1
    %s248 = scalar_select %p245, %s246, %s247
    %p251 = pneg %p245
    %p252 = scmp.eq.s32.totalorder %s16, 3
    %p253 = por %p251, %p252
    %p254 = scmp.ne.s32.totalorder %s246, %s249
    %p255 = scmp.eq.s32.totalorder %s16, 0
    %p256 = por %p254, %p255
    %p257 = scmp.ne.s32.totalorder %s246, %s249
    %p258 = scmp.eq.s32.totalorder %s21, 3
    %p259 = por %p257, %p258
    %p260 = scmp.ne.s32.totalorder %s249, %s250
    %p261 = scmp.eq.s32.totalorder %s21, 0
    %p262 = por %p260, %p261
    %p263 = scmp.ne.s32.totalorder %s249, %s250
    %p264 = scmp.eq.s32.totalorder %s22, 3
    %p265 = por %p263, %p264
    %p267 = scmp.ne.s32.totalorder %s250, %s266
    %p268 = scmp.eq.s32.totalorder %s22, 0
    %p269 = por %p267, %p268
    %s270 = ssub.s32 %s24, %s31
    %p271 = scmp.eq.s32.totalorder %s270, 0
    %s273 = sadd.s32 %s272, 1
    %s274 = scalar_select %p271, %s272, %s273
    %p277 = pneg %p271
    %p278 = scmp.eq.s32.totalorder %s16, 3
    %p279 = por %p277, %p278
    %p280 = scmp.ne.s32.totalorder %s272, %s275
    %p281 = scmp.eq.s32.totalorder %s16, 0
    %p282 = por %p280, %p281
    %p283 = scmp.ne.s32.totalorder %s272, %s275
    %p284 = scmp.eq.s32.totalorder %s21, 3
    %p285 = por %p283, %p284
    %p286 = scmp.ne.s32.totalorder %s275, %s276
    %p287 = scmp.eq.s32.totalorder %s21, 0
    %p288 = por %p286, %p287
    %p289 = scmp.ne.s32.totalorder %s275, %s276
    %p290 = scmp.eq.s32.totalorder %s22, 3
    %p291 = por %p289, %p290
    %p293 = scmp.ne.s32.totalorder %s276, %s292
    %p294 = scmp.eq.s32.totalorder %s22, 0
    %p295 = por %p293, %p294
    %s296 = ssub.s32 %s23, %s35
    %p297 = scmp.eq.s32.totalorder %s296, 0
    %s299 = sadd.s32 %s298, 1
    %s300 = scalar_select %p297, %s298, %s299
    %p303 = pneg %p297
    %p304 = scmp.eq.s32.totalorder %s16, 3
    %p305 = por %p303, %p304
    %p306 = scmp.ne.s32.totalorder %s298, %s301
    %p307 = scmp.eq.s32.totalorder %s16, 0
    %p308 = por %p306, %p307
    %p309 = scmp.ne.s32.totalorder %s298, %s301
    %p310 = scmp.eq.s32.totalorder %s21, 3
    %p311 = por %p309, %p310
    %p312 = scmp.ne.s32.totalorder %s301, %s302
    %p313 = scmp.eq.s32.totalorder %s21, 0
    %p314 = por %p312, %p313
    %p315 = scmp.ne.s32.totalorder %s301, %s302
    %p316 = scmp.eq.s32.totalorder %s22, 3
    %p317 = por %p315, %p316
    %p319 = scmp.ne.s32.totalorder %s302, %s318
    %p320 = scmp.eq.s32.totalorder %s22, 0
    %p321 = por %p319, %p320
    %p322 = scmp.le.s32.totalorder 1, %s16
    %p323 = scmp.lt.s32.totalorder %s16, 5
    %p324 = pnand %p322, %p323
    %p325 = pneg %p324
    // Predicated region
    $region9: #{unified_bert_encoder.5} parent=5 // pred_check
      _
    $region10: #{unified_bert_encoder.5} parent=5 // pred_check_branch
      %327 = sbr.rel (%p324) target = $region12
    $region11: #{unified_bert_encoder.5} parent=5 // pred_region
      %s328 = ssub.s32 %s16, 1
    $region12: #{unified_bert_encoder.5} parent=5 // pred_fallthru
      _
    %p329 = scmp.lt.s32.totalorder %s16, 4
    // Predicated region
    $region13: #{unified_bert_encoder.5} parent=5 // pred_check
      %p330 = pneg %p329
    $region14: #{unified_bert_encoder.5} parent=5 // pred_check_branch
      %332 = sbr.rel (%p330) target = $region16
    $region15: #{unified_bert_encoder.5} parent=5 // pred_region
      // Predicated region
      $region17: #{unified_bert_encoder.5} parent=15 // pred_check
        %p333 = pneg %p48
      $region18: #{unified_bert_encoder.5} parent=15 // pred_check_branch
        %335 = sbr.rel (%p333) target = $region20
      $region19: #{unified_bert_encoder.5} parent=15 // pred_region
        %s336 = smul.u32 2, %s23
        %p337 = scmp.lt.s32.totalorder %s336, 3
        %s338 = scalar_select %p337, %s336, 3
        %s339 = smul.addr %s338, 4
        %s340 = smul.addr %s339, 8
        %s341 = scalar_lea.vmem %s0, %s340
        %s342 = smul.u32 2, %s23
      $region20: #{unified_bert_encoder.5} parent=15 // pred_fallthru
        _
      // Predicated region
      $region21: #{unified_bert_encoder.5} parent=15 // pred_check
        %p343 = pneg %p74
      $region22: #{unified_bert_encoder.5} parent=15 // pred_check_branch
        %345 = sbr.rel (%p343) target = $region24
      $region23: #{unified_bert_encoder.5} parent=15 // pred_region
        %p346 = scmp.lt.s32.totalorder %s24, 1
        %s347 = scalar_select %p346, %s24, 1
        %s348 = smul.addr %s347, 192
        %s349 = smul.addr %s348, 4
        %s350 = scalar_lea.vmem %s1, %s349
      $region24: #{unified_bert_encoder.5} parent=15 // pred_fallthru
        _
      // Predicated region
      $region25: #{unified_bert_encoder.5} parent=15 // pred_check
        %p351 = pneg %p100
      $region26: #{unified_bert_encoder.5} parent=15 // pred_check_branch
        %353 = sbr.rel (%p351) target = $region28
      $region27: #{unified_bert_encoder.5} parent=15 // pred_region
        %p354 = scmp.lt.s32.totalorder %s24, 1
        %s355 = scalar_select %p354, %s24, 1
        %s356 = smul.addr %s355, 6
        %s357 = scalar_lea.vmem %s2, %s356
      $region28: #{unified_bert_encoder.5} parent=15 // pred_fallthru
        _
      // Predicated region
      $region29: #{unified_bert_encoder.5} parent=15 // pred_check
        %p358 = pneg %p126
      $region30: #{unified_bert_encoder.5} parent=15 // pred_check_branch
        %360 = sbr.rel (%p358) target = $region32
      $region31: #{unified_bert_encoder.5} parent=15 // pred_region
        %p361 = scmp.lt.s32.totalorder %s24, 1
        %s362 = scalar_select %p361, %s24, 1
        %s363 = smul.addr %s362, 64
        %s364 = smul.addr %s363, 4
        %s365 = scalar_lea.vmem %s3, %s364
      $region32: #{unified_bert_encoder.5} parent=15 // pred_fallthru
        _
      // Predicated region
      $region33: #{unified_bert_encoder.5} parent=15 // pred_check
        %p366 = pneg %p152
      $region34: #{unified_bert_encoder.5} parent=15 // pred_check_branch
        %368 = sbr.rel (%p366) target = $region36
      $region35: #{unified_bert_encoder.5} parent=15 // pred_region
        %p369 = scmp.lt.s32.totalorder %s24, 1
        %s370 = scalar_select %p369, %s24, 1
        %s371 = smul.addr %s370, 2
        %s372 = scalar_lea.vmem %s4, %s371
      $region36: #{unified_bert_encoder.5} parent=15 // pred_fallthru
        _
      // Predicated region
      $region37: #{unified_bert_encoder.5} parent=15 // pred_check
        %p373 = pneg %p178
      $region38: #{unified_bert_encoder.5} parent=15 // pred_check_branch
        %375 = sbr.rel (%p373) target = $region40
      $region39: #{unified_bert_encoder.5} parent=15 // pred_region
        %p376 = scmp.lt.s32.totalorder %s24, 1
        %s377 = scalar_select %p376, %s24, 1
        %s378 = smul.addr %s377, 256
        %s379 = smul.addr %s378, 4
        %s380 = scalar_lea.vmem %s5, %s379
      $region40: #{unified_bert_encoder.5} parent=15 // pred_fallthru
        _
      // Predicated region
      $region41: #{unified_bert_encoder.5} parent=15 // pred_check
        %p381 = pneg %p204
      $region42: #{unified_bert_encoder.5} parent=15 // pred_check_branch
        %383 = sbr.rel (%p381) target = $region44
      $region43: #{unified_bert_encoder.5} parent=15 // pred_region
        %p384 = scmp.lt.s32.totalorder %s24, 1
        %s385 = scalar_select %p384, %s24, 1
        %s386 = smul.addr %s385, 8
        %s387 = scalar_lea.vmem %s6, %s386
      $region44: #{unified_bert_encoder.5} parent=15 // pred_fallthru
        _
      // Predicated region
      $region45: #{unified_bert_encoder.5} parent=15 // pred_check
        %p388 = pneg %p230
      $region46: #{unified_bert_encoder.5} parent=15 // pred_check_branch
        %390 = sbr.rel (%p388) target = $region48
      $region47: #{unified_bert_encoder.5} parent=15 // pred_region
        %p391 = scmp.lt.s32.totalorder %s24, 1
        %s392 = scalar_select %p391, %s24, 1
        %s393 = smul.addr %s392, 256
        %s394 = smul.addr %s393, 4
        %s395 = scalar_lea.vmem %s7, %s394
      $region48: #{unified_bert_encoder.5} parent=15 // pred_fallthru
        _
      // Predicated region
      $region49: #{unified_bert_encoder.5} parent=15 // pred_check
        %p396 = pneg %p256
      $region50: #{unified_bert_encoder.5} parent=15 // pred_check_branch
        %398 = sbr.rel (%p396) target = $region52
      $region51: #{unified_bert_encoder.5} parent=15 // pred_region
        %p399 = scmp.lt.s32.totalorder %s24, 1
        %s400 = scalar_select %p399, %s24, 1
        %s401 = smul.addr %s400, 2
        %s402 = scalar_lea.vmem %s8, %s401
      $region52: #{unified_bert_encoder.5} parent=15 // pred_fallthru
        _
      // Predicated region
      $region53: #{unified_bert_encoder.5} parent=15 // pred_check
        %p403 = pneg %p282
      $region54: #{unified_bert_encoder.5} parent=15 // pred_check_branch
        %405 = sbr.rel (%p403) target = $region56
      $region55: #{unified_bert_encoder.5} parent=15 // pred_region
        %p406 = scmp.lt.s32.totalorder %s24, 1
        %s407 = scalar_select %p406, %s24, 1
        %s408 = smul.addr %s407, 2
        %s409 = smul.addr %s408, 8
        %s410 = scalar_lea.vmem %s9, %s409
      $region56: #{unified_bert_encoder.5} parent=15 // pred_fallthru
        _
    $region16: #{unified_bert_encoder.5} parent=5 // pred_fallthru
      _
    %p411 = scmp.le.s32.totalorder 1, %s16
    %p412 = scmp.lt.s32.totalorder %s16, 5
    %p413 = pnand %p411, %p412
    %p414 = pneg %p413
    // Predicated region
    $region57: #{unified_bert_encoder.5} parent=5 // pred_check
      _
    $region58: #{unified_bert_encoder.5} parent=5 // pred_check_branch
      %416 = sbr.rel (%p413) target = $region60
    $region59: #{unified_bert_encoder.5} parent=5 // pred_region
      %s417 = ssub.s32 %s16, 1
      %s418 = smul.u32 2, %s25
      %p419 = scmp.lt.s32.totalorder %s418, 3
      %s420 = scalar_select %p419, %s418, 3
      %s421 = smul.addr %s420, 4
      %s422 = smul.addr %s421, 8
      %s423 = scalar_lea.vmem %s0, %s422
      %p424 = pneg %p54
      %p425 = pneg %p51
      %p426 = scmp.lt.s32.totalorder %s26, 1
      %s427 = scalar_select %p426, %s26, 1
      %s428 = smul.addr %s427, 192
      %s429 = smul.addr %s428, 4
      %s430 = scalar_lea.vmem %s1, %s429
      %p431 = pneg %p80
      %p432 = pneg %p77
      %p433 = scmp.lt.s32.totalorder %s26, 1
      %s434 = scalar_select %p433, %s26, 1
      %s435 = smul.addr %s434, 6
      %s436 = scalar_lea.vmem %s2, %s435
      %p437 = pneg %p106
      %p438 = pneg %p103
      %p439 = scmp.lt.s32.totalorder %s26, 1
      %s440 = scalar_select %p439, %s26, 1
      %s441 = smul.addr %s440, 64
      %s442 = smul.addr %s441, 4
      %s443 = scalar_lea.vmem %s3, %s442
      %p444 = pneg %p132
      %p445 = pneg %p129
      %p446 = scmp.lt.s32.totalorder %s26, 1
      %s447 = scalar_select %p446, %s26, 1
      %s448 = smul.addr %s447, 2
      %s449 = scalar_lea.vmem %s4, %s448
      %p450 = pneg %p158
      %p451 = pneg %p155
      %p452 = scmp.lt.s32.totalorder %s26, 1
      %s453 = scalar_select %p452, %s26, 1
      %s454 = smul.addr %s453, 256
      %s455 = smul.addr %s454, 4
      %s456 = scalar_lea.vmem %s5, %s455
      %p457 = pneg %p184
      %p458 = pneg %p181
      %p459 = scmp.lt.s32.totalorder %s26, 1
      %s460 = scalar_select %p459, %s26, 1
      %s461 = smul.addr %s460, 8
      %s462 = scalar_lea.vmem %s6, %s461
      %p463 = pneg %p210
      %p464 = pneg %p207
      %p465 = scmp.lt.s32.totalorder %s26, 1
      %s466 = scalar_select %p465, %s26, 1
      %s467 = smul.addr %s466, 256
      %s468 = smul.addr %s467, 4
      %s469 = scalar_lea.vmem %s7, %s468
      %p470 = pneg %p236
      %p471 = pneg %p233
      %p472 = scmp.lt.s32.totalorder %s26, 1
      %s473 = scalar_select %p472, %s26, 1
      %s474 = smul.addr %s473, 2
      %s475 = scalar_lea.vmem %s8, %s474
      %p476 = pneg %p262
      %p477 = pneg %p259
      %p478 = scmp.lt.s32.totalorder %s26, 1
      %s479 = scalar_select %p478, %s26, 1
      %s480 = smul.addr %s479, 2
      %s481 = smul.addr %s480, 8
      %s482 = scalar_lea.vmem %s9, %s481
      %p483 = pneg %p288
      %p484 = pneg %p285
      %p485 = pneg %p314
      %p486 = pneg %p311
      %s487 = smul.u32 2, %s25
      %p488 = scmp.lt.s32.totalorder %s487, 3
      %s489 = scalar_select %p488, %s487, 3
      %s490 = smul.addr %s489, 4
      %s491 = smul.addr %s490, 8
      %s492 = scalar_lea.vmem %s10, %s491
      %s493 = smul.u32 2, %s25
      %p494 = scmp.lt.s32.totalorder %s493, 3
      %s495 = scalar_select %p494, %s493, 3
      %s496 = smul.addr %s495, 4
      %s497 = smul.addr %s496, 8
      %s498 = scalar_lea.vmem %s0, %s497
      %s499 = smul.u32 2, %s25
      %p500 = scmp.lt.s32.totalorder %s26, 1
      %s501 = scalar_select %p500, %s26, 1
      %s502 = smul.addr %s501, 192
      %s503 = smul.addr %s502, 4
      %s504 = scalar_lea.vmem %s1, %s503
      %p505 = scmp.lt.s32.totalorder %s26, 1
      %s506 = scalar_select %p505, %s26, 1
      %s507 = smul.addr %s506, 6
      %s508 = scalar_lea.vmem %s2, %s507
      %p509 = scmp.lt.s32.totalorder %s26, 1
      %s510 = scalar_select %p509, %s26, 1
      %s511 = smul.addr %s510, 64
      %s512 = smul.addr %s511, 4
      %s513 = scalar_lea.vmem %s3, %s512
      %p514 = scmp.lt.s32.totalorder %s26, 1
      %s515 = scalar_select %p514, %s26, 1
      %s516 = smul.addr %s515, 2
      %s517 = scalar_lea.vmem %s4, %s516
      %p518 = scmp.lt.s32.totalorder %s26, 1
      %s519 = scalar_select %p518, %s26, 1
      %s520 = smul.addr %s519, 256
      %s521 = smul.addr %s520, 4
      %s522 = scalar_lea.vmem %s5, %s521
      %p523 = scmp.lt.s32.totalorder %s26, 1
      %s524 = scalar_select %p523, %s26, 1
      %s525 = smul.addr %s524, 8
      %s526 = scalar_lea.vmem %s6, %s525
      %p527 = scmp.lt.s32.totalorder %s26, 1
      %s528 = scalar_select %p527, %s26, 1
      %s529 = smul.addr %s528, 256
      %s530 = smul.addr %s529, 4
      %s531 = scalar_lea.vmem %s7, %s530
      %p532 = scmp.lt.s32.totalorder %s26, 1
      %s533 = scalar_select %p532, %s26, 1
      %s534 = smul.addr %s533, 2
      %s535 = scalar_lea.vmem %s8, %s534
      %p536 = scmp.lt.s32.totalorder %s26, 1
      %s537 = scalar_select %p536, %s26, 1
      %s538 = smul.addr %s537, 2
      %s539 = smul.addr %s538, 8
      %s540 = scalar_lea.vmem %s9, %s539
      %s541 = smul.u32 2, %s25
      %p542 = scmp.lt.s32.totalorder %s541, 3
      %s543 = scalar_select %p542, %s541, 3
      %s544 = smul.addr %s543, 4
      %s545 = smul.addr %s544, 8
      %s546 = scalar_lea.vmem %s10, %s545
      %s547 = smul.u32 2, %s25
      %p549 = scmp.eq.s32.totalorder %s26, 0
      // Predicated region
      $region61: #{unified_bert_encoder.5} parent=59 // pred_check
        %p550 = pneg %p549
      $region62: #{unified_bert_encoder.5} parent=59 // pred_check_branch
        %552 = sbr.rel (%p550) target = $region64
      $region63: #{unified_bert_encoder.5} parent=59 // pred_region
        %v553 = vld [vmem:[%s498] sm:$0xff]
        %v554 = vld [vmem:[%s498 + $0x8] sm:$0xff]
        %v555 = vld [vmem:[%s498 + $0x10] sm:$0xff]
        %v556 = vld [vmem:[%s498 + $0x18] sm:$0xff]
        %v557 = vld [vmem:[%s498 + $0x20] sm:$0xff]
        %v558 = vld [vmem:[%s498 + $0x28] sm:$0xff]
        %v559 = vld [vmem:[%s498 + $0x30] sm:$0xff]
        %v560 = vld [vmem:[%s498 + $0x38] sm:$0xff]
        %561 = vst [vmem:[%s546] sm:$0xff] %v553
        %562 = vst [vmem:[%s546 + $0x8] sm:$0xff] %v554
        %563 = vst [vmem:[%s546 + $0x10] sm:$0xff] %v555
        %564 = vst [vmem:[%s546 + $0x18] sm:$0xff] %v556
        %565 = vst [vmem:[%s546 + $0x20] sm:$0xff] %v557
        %566 = vst [vmem:[%s546 + $0x28] sm:$0xff] %v558
        %567 = vst [vmem:[%s546 + $0x30] sm:$0xff] %v559
        %568 = vst [vmem:[%s546 + $0x38] sm:$0xff] %v560
      $region64: #{unified_bert_encoder.5} parent=59 // pred_fallthru
        _
      %v569 = vld [vmem:[%s540] sm:$0x3f]
      %v570 = vld [vmem:[%s540 + $0x8] sm:$0x3f]
      %v571 = vld [vmem:[%s546] sm:$0xff]
      %v572 = vld [vmem:[%s546 + $0x8] sm:$0xff]
      %v573 = vld [vmem:[%s546 + $0x10] sm:$0xff]
      %v574 = vld [vmem:[%s546 + $0x18] sm:$0xff]
      %v575 = vld [vmem:[%s546 + $0x20] sm:$0xff]
      %v576 = vld [vmem:[%s546 + $0x28] sm:$0xff]
      %v577 = vld [vmem:[%s546 + $0x30] sm:$0xff]
      %v578 = vld [vmem:[%s546 + $0x38] sm:$0xff]
      %v579 = vadd.f32 %v571, %v572
      %580 = vadd.xlane.f32.xlu0 %v579
      %v581 = vpop.xlane.xlu0 %580
      %v582 = vadd.f32 %v573, %v574
      %583 = vadd.xlane.f32.xlu0 %v582
      %v584 = vpop.xlane.xlu0 %583
      %v585 = vadd.f32 %v575, %v576
      %586 = vadd.xlane.f32.xlu0 %v585
      %v587 = vpop.xlane.xlu0 %586
      %v588 = vadd.f32 %v577, %v578
      %589 = vadd.xlane.f32.xlu0 %v588
      %v590 = vpop.xlane.xlu0 %589
      %v591 = vrcp.pop 256.0
      %v592 = vmul.f32 %v581, %v591
      %v593 = vmul.f32 %v584, %v591
      %v594 = vmul.f32 %v587, %v591
      %v595 = vmul.f32 %v590, %v591
      %v596 = vsub.f32 %v571, %v592
      %v597 = vsub.f32 %v572, %v592
      %v598 = vsub.f32 %v573, %v593
      %v599 = vsub.f32 %v574, %v593
      %v600 = vsub.f32 %v575, %v594
      %v601 = vsub.f32 %v576, %v594
      %v602 = vsub.f32 %v577, %v595
      %v603 = vsub.f32 %v578, %v595
      %v604 = vmul.f32 %v596, %v596
      %v605 = vmul.f32 %v597, %v597
      %v606 = vmul.f32 %v598, %v598
      %v607 = vmul.f32 %v599, %v599
      %v608 = vmul.f32 %v600, %v600
      %v609 = vmul.f32 %v601, %v601
      %v610 = vmul.f32 %v602, %v602
      %v611 = vmul.f32 %v603, %v603
      %v612 = vadd.f32 %v604, %v605
      %613 = vadd.xlane.f32.xlu0 %v612
      %v614 = vpop.xlane.xlu0 %613
      %v615 = vadd.f32 %v606, %v607
      %616 = vadd.xlane.f32.xlu0 %v615
      %v617 = vpop.xlane.xlu0 %616
      %v618 = vadd.f32 %v608, %v609
      %619 = vadd.xlane.f32.xlu0 %v618
      %v620 = vpop.xlane.xlu0 %619
      %v621 = vadd.f32 %v610, %v611
      %622 = vadd.xlane.f32.xlu0 %v621
      %v623 = vpop.xlane.xlu0 %622
      %v624 = vmul.f32 %v614, %v591
      %v625 = vmul.f32 %v617, %v591
      %v626 = vmul.f32 %v620, %v591
      %v627 = vmul.f32 %v623, %v591
      %v628 = vadd.f32 %v624, 1e-05
      %v629 = vadd.f32 %v625, 1e-05
      %v630 = vadd.f32 %v626, 1e-05
      %v631 = vadd.f32 %v627, 1e-05
      %v632 = vrsqrt.pop %v628
      %v633 = vrsqrt.pop %v629
      %v634 = vrsqrt.pop %v630
      %v635 = vrsqrt.pop %v631
      %v636 = vmul.f32 %v596, %v632
      %v637 = vmul.f32 %v597, %v632
      %v638 = vmul.f32 %v598, %v633
      %v639 = vmul.f32 %v599, %v633
      %v640 = vmul.f32 %v600, %v634
      %v641 = vmul.f32 %v601, %v634
      %v642 = vmul.f32 %v602, %v635
      %v643 = vmul.f32 %v603, %v635
      %v644 = vlaneseq
      %v645 = vshrl.u32 %v644, 7
      %v646 = vsub.s32 0, %v645
      %v647 = vrot.slane %v569, %v646
      %v648 = vlaneseq
      %v649 = vshrl.u32 %v648, 7
      %v650 = vsub.s32 0, %v649
      %v651 = vrot.slane %v570, %v650
      %v652 = vmul.f32 %v636, %v647
      %v653 = vmul.f32 %v637, %v651
      %v654 = vmul.f32 %v638, %v647
      %v655 = vmul.f32 %v639, %v651
      %v656 = vmul.f32 %v640, %v647
      %v657 = vmul.f32 %v641, %v651
      %v658 = vmul.f32 %v642, %v647
      %v659 = vmul.f32 %v643, %v651
      %v660 = vlaneseq
      %v661 = vshrl.u32 %v660, 7
      %v662 = vsub.s32 1, %v661
      %v663 = vrot.slane %v569, %v662
      %v664 = vlaneseq
      %v665 = vshrl.u32 %v664, 7
      %v666 = vsub.s32 1, %v665
      %v667 = vrot.slane %v570, %v666
      %v668 = vadd.f32 %v652, %v663
      %v669 = vadd.f32 %v653, %v667
      %v670 = vadd.f32 %v654, %v663
      %v671 = vadd.f32 %v655, %v667
      %v672 = vadd.f32 %v656, %v663
      %v673 = vadd.f32 %v657, %v667
      %v674 = vadd.f32 %v658, %v663
      %v675 = vadd.f32 %v659, %v667
      %v676 = vpack.c.bf16 %v670, %v668
      %v677 = vpack.c.bf16 %v671, %v669
      %v678 = vpack.c.bf16 %v674, %v672
      %v679 = vpack.c.bf16 %v675, %v673
      %v680 = vld [vmem:[%s504] sm:$0xff]
      %v681 = vld [vmem:[%s504 + $0x8] sm:$0xff]
      %v682 = vld [vmem:[%s504 + $0x10] sm:$0xff]
      %v683 = vld [vmem:[%s504 + $0x18] sm:$0xff]
      %v684 = vld [vmem:[%s504 + $0x20] sm:$0xff]
      %v685 = vld [vmem:[%s504 + $0x28] sm:$0xff]
      %v686 = vld [vmem:[%s504 + $0x30] sm:$0xff]
      %v687 = vld [vmem:[%s504 + $0x38] sm:$0xff]
      %v688 = vld [vmem:[%s504 + $0x40] sm:$0xff]
      %v689 = vld [vmem:[%s504 + $0x48] sm:$0xff]
      %v690 = vld [vmem:[%s504 + $0x50] sm:$0xff]
      %v691 = vld [vmem:[%s504 + $0x58] sm:$0xff]
      %v692 = vld [vmem:[%s504 + $0x60] sm:$0xff]
      %v693 = vld [vmem:[%s504 + $0x68] sm:$0xff]
      %v694 = vld [vmem:[%s504 + $0x70] sm:$0xff]
      %v695 = vld [vmem:[%s504 + $0x78] sm:$0xff]
      %v696 = vld [vmem:[%s504 + $0x80] sm:$0xff]
      %v697 = vld [vmem:[%s504 + $0x88] sm:$0xff]
      %v698 = vld [vmem:[%s504 + $0x90] sm:$0xff]
      %v699 = vld [vmem:[%s504 + $0x98] sm:$0xff]
      %v700 = vld [vmem:[%s504 + $0xa0] sm:$0xff]
      %v701 = vld [vmem:[%s504 + $0xa8] sm:$0xff]
      %v702 = vld [vmem:[%s504 + $0xb0] sm:$0xff]
      %v703 = vld [vmem:[%s504 + $0xb8] sm:$0xff]
      %v704 = vld [vmem:[%s504 + $0xc0] sm:$0xff]
      %v705 = vld [vmem:[%s504 + $0xc8] sm:$0xff]
      %v706 = vld [vmem:[%s504 + $0xd0] sm:$0xff]
      %v707 = vld [vmem:[%s504 + $0xd8] sm:$0xff]
      %v708 = vld [vmem:[%s504 + $0xe0] sm:$0xff]
      %v709 = vld [vmem:[%s504 + $0xe8] sm:$0xff]
      %v710 = vld [vmem:[%s504 + $0xf0] sm:$0xff]
      %v711 = vld [vmem:[%s504 + $0xf8] sm:$0xff]
      %v712 = vld [vmem:[%s504 + $0x100] sm:$0xff]
      %v713 = vld [vmem:[%s504 + $0x108] sm:$0xff]
      %v714 = vld [vmem:[%s504 + $0x110] sm:$0xff]
      %v715 = vld [vmem:[%s504 + $0x118] sm:$0xff]
      %v716 = vld [vmem:[%s504 + $0x120] sm:$0xff]
      %v717 = vld [vmem:[%s504 + $0x128] sm:$0xff]
      %v718 = vld [vmem:[%s504 + $0x130] sm:$0xff]
      %v719 = vld [vmem:[%s504 + $0x138] sm:$0xff]
      %v720 = vld [vmem:[%s504 + $0x140] sm:$0xff]
      %v721 = vld [vmem:[%s504 + $0x148] sm:$0xff]
      %v722 = vld [vmem:[%s504 + $0x150] sm:$0xff]
      %v723 = vld [vmem:[%s504 + $0x158] sm:$0xff]
      %v724 = vld [vmem:[%s504 + $0x160] sm:$0xff]
      %v725 = vld [vmem:[%s504 + $0x168] sm:$0xff]
      %v726 = vld [vmem:[%s504 + $0x170] sm:$0xff]
      %v727 = vld [vmem:[%s504 + $0x178] sm:$0xff]
      %v728 = vld [vmem:[%s504 + $0x180] sm:$0xff]
      %v729 = vld [vmem:[%s504 + $0x188] sm:$0xff]
      %v730 = vld [vmem:[%s504 + $0x190] sm:$0xff]
      %v731 = vld [vmem:[%s504 + $0x198] sm:$0xff]
      %v732 = vld [vmem:[%s504 + $0x1a0] sm:$0xff]
      %v733 = vld [vmem:[%s504 + $0x1a8] sm:$0xff]
      %v734 = vld [vmem:[%s504 + $0x1b0] sm:$0xff]
      %v735 = vld [vmem:[%s504 + $0x1b8] sm:$0xff]
      %v736 = vld [vmem:[%s504 + $0x1c0] sm:$0xff]
      %v737 = vld [vmem:[%s504 + $0x1c8] sm:$0xff]
      %v738 = vld [vmem:[%s504 + $0x1d0] sm:$0xff]
      %v739 = vld [vmem:[%s504 + $0x1d8] sm:$0xff]
      %v740 = vld [vmem:[%s504 + $0x1e0] sm:$0xff]
      %v741 = vld [vmem:[%s504 + $0x1e8] sm:$0xff]
      %v742 = vld [vmem:[%s504 + $0x1f0] sm:$0xff]
      %v743 = vld [vmem:[%s504 + $0x1f8] sm:$0xff]
      %v744 = vld [vmem:[%s504 + $0x200] sm:$0xff]
      %v745 = vld [vmem:[%s504 + $0x208] sm:$0xff]
      %v746 = vld [vmem:[%s504 + $0x210] sm:$0xff]
      %v747 = vld [vmem:[%s504 + $0x218] sm:$0xff]
      %v748 = vld [vmem:[%s504 + $0x220] sm:$0xff]
      %v749 = vld [vmem:[%s504 + $0x228] sm:$0xff]
      %v750 = vld [vmem:[%s504 + $0x230] sm:$0xff]
      %v751 = vld [vmem:[%s504 + $0x238] sm:$0xff]
      %v752 = vld [vmem:[%s504 + $0x240] sm:$0xff]
      %v753 = vld [vmem:[%s504 + $0x248] sm:$0xff]
      %v754 = vld [vmem:[%s504 + $0x250] sm:$0xff]
      %v755 = vld [vmem:[%s504 + $0x258] sm:$0xff]
      %v756 = vld [vmem:[%s504 + $0x260] sm:$0xff]
      %v757 = vld [vmem:[%s504 + $0x268] sm:$0xff]
      %v758 = vld [vmem:[%s504 + $0x270] sm:$0xff]
      %v759 = vld [vmem:[%s504 + $0x278] sm:$0xff]
      %v760 = vld [vmem:[%s504 + $0x280] sm:$0xff]
      %v761 = vld [vmem:[%s504 + $0x288] sm:$0xff]
      %v762 = vld [vmem:[%s504 + $0x290] sm:$0xff]
      %v763 = vld [vmem:[%s504 + $0x298] sm:$0xff]
      %v764 = vld [vmem:[%s504 + $0x2a0] sm:$0xff]
      %v765 = vld [vmem:[%s504 + $0x2a8] sm:$0xff]
      %v766 = vld [vmem:[%s504 + $0x2b0] sm:$0xff]
      %v767 = vld [vmem:[%s504 + $0x2b8] sm:$0xff]
      %v768 = vld [vmem:[%s504 + $0x2c0] sm:$0xff]
      %v769 = vld [vmem:[%s504 + $0x2c8] sm:$0xff]
      %v770 = vld [vmem:[%s504 + $0x2d0] sm:$0xff]
      %v771 = vld [vmem:[%s504 + $0x2d8] sm:$0xff]
      %v772 = vld [vmem:[%s504 + $0x2e0] sm:$0xff]
      %v773 = vld [vmem:[%s504 + $0x2e8] sm:$0xff]
      %v774 = vld [vmem:[%s504 + $0x2f0] sm:$0xff]
      %v775 = vld [vmem:[%s504 + $0x2f8] sm:$0xff]
      %v776 = vld [vmem:[%s508] sm:$0x3f]
      %v778 = vlaneseq
      %v779 = vshrl.u32 %v778, 7
      %v780 = vsub.s32 0, %v779
      %v781 = vrot.slane %v776, %v780
      %v782 = vlaneseq
      %v783 = vshrl.u32 %v782, 7
      %v784 = vsub.s32 1, %v783
      %v785 = vrot.slane %v776, %v784
      %v786 = vlaneseq
      %v787 = vshrl.u32 %v786, 7
      %v788 = vsub.s32 2, %v787
      %v789 = vrot.slane %v776, %v788
      %v790 = vlaneseq
      %v791 = vshrl.u32 %v790, 7
      %v792 = vsub.s32 3, %v791
      %v793 = vrot.slane %v776, %v792
      %v794 = vlaneseq
      %v795 = vshrl.u32 %v794, 7
      %v796 = vsub.s32 4, %v795
      %v797 = vrot.slane %v776, %v796
      %v798 = vlaneseq
      %v799 = vshrl.u32 %v798, 7
      %v800 = vsub.s32 5, %v799
      %v801 = vrot.slane %v776, %v800
      %v904 = vunpack.c.l.b16 %v680
      %v905 = vunpack.c.h.b16 %v680
      %v906 = vunpack.c.l.b16 %v681
      %v907 = vunpack.c.h.b16 %v681
      %v908 = vunpack.c.l.b16 %v682
      %v909 = vunpack.c.h.b16 %v682
      %v910 = vunpack.c.l.b16 %v683
      %v911 = vunpack.c.h.b16 %v683
      %v912 = vunpack.c.l.b16 %v684
      %v913 = vunpack.c.h.b16 %v684
      %v914 = vunpack.c.l.b16 %v685
      %v915 = vunpack.c.h.b16 %v685
      %v916 = vunpack.c.l.b16 %v686
      %v917 = vunpack.c.h.b16 %v686
      %v918 = vunpack.c.l.b16 %v687
      %v919 = vunpack.c.h.b16 %v687
      %v920 = vunpack.c.l.b16 %v688
      %v921 = vunpack.c.h.b16 %v688
      %v922 = vunpack.c.l.b16 %v689
      %v923 = vunpack.c.h.b16 %v689
      %v924 = vunpack.c.l.b16 %v690
      %v925 = vunpack.c.h.b16 %v690
      %v926 = vunpack.c.l.b16 %v691
      %v927 = vunpack.c.h.b16 %v691
      %v928 = vunpack.c.l.b16 %v692
      %v929 = vunpack.c.h.b16 %v692
      %v930 = vunpack.c.l.b16 %v693
      %v931 = vunpack.c.h.b16 %v693
      %v932 = vunpack.c.l.b16 %v694
      %v933 = vunpack.c.h.b16 %v694
      %v934 = vunpack.c.l.b16 %v695
      %v935 = vunpack.c.h.b16 %v695
      %v936 = vunpack.c.l.b16 %v696
      %v937 = vunpack.c.h.b16 %v696
      %v938 = vunpack.c.l.b16 %v697
      %v939 = vunpack.c.h.b16 %v697
      %v940 = vunpack.c.l.b16 %v698
      %v941 = vunpack.c.h.b16 %v698
      %v942 = vunpack.c.l.b16 %v699
      %v943 = vunpack.c.h.b16 %v699
      %v944 = vunpack.c.l.b16 %v700
      %v945 = vunpack.c.h.b16 %v700
      %v946 = vunpack.c.l.b16 %v701
      %v947 = vunpack.c.h.b16 %v701
      %v948 = vunpack.c.l.b16 %v702
      %v949 = vunpack.c.h.b16 %v702
      %v950 = vunpack.c.l.b16 %v703
      %v951 = vunpack.c.h.b16 %v703
      %v952 = vunpack.c.l.b16 %v704
      %v953 = vunpack.c.h.b16 %v704
      %v954 = vunpack.c.l.b16 %v705
      %v955 = vunpack.c.h.b16 %v705
      %v956 = vunpack.c.l.b16 %v706
      %v957 = vunpack.c.h.b16 %v706
      %v958 = vunpack.c.l.b16 %v707
      %v959 = vunpack.c.h.b16 %v707
      %v960 = vunpack.c.l.b16 %v708
      %v961 = vunpack.c.h.b16 %v708
      %v962 = vunpack.c.l.b16 %v709
      %v963 = vunpack.c.h.b16 %v709
      %v964 = vunpack.c.l.b16 %v710
      %v965 = vunpack.c.h.b16 %v710
      %v966 = vunpack.c.l.b16 %v711
      %v967 = vunpack.c.h.b16 %v711
      %v968 = vunpack.c.l.b16 %v712
      %v969 = vunpack.c.h.b16 %v712
      %v970 = vunpack.c.l.b16 %v713
      %v971 = vunpack.c.h.b16 %v713
      %v972 = vunpack.c.l.b16 %v714
      %v973 = vunpack.c.h.b16 %v714
      %v974 = vunpack.c.l.b16 %v715
      %v975 = vunpack.c.h.b16 %v715
      %v976 = vunpack.c.l.b16 %v716
      %v977 = vunpack.c.h.b16 %v716
      %v978 = vunpack.c.l.b16 %v717
      %v979 = vunpack.c.h.b16 %v717
      %v980 = vunpack.c.l.b16 %v718
      %v981 = vunpack.c.h.b16 %v718
      %v982 = vunpack.c.l.b16 %v719
      %v983 = vunpack.c.h.b16 %v719
      %v984 = vunpack.c.l.b16 %v720
      %v985 = vunpack.c.h.b16 %v720
      %v986 = vunpack.c.l.b16 %v721
      %v987 = vunpack.c.h.b16 %v721
      %v988 = vunpack.c.l.b16 %v722
      %v989 = vunpack.c.h.b16 %v722
      %v990 = vunpack.c.l.b16 %v723
      %v991 = vunpack.c.h.b16 %v723
      %v992 = vunpack.c.l.b16 %v724
      %v993 = vunpack.c.h.b16 %v724
      %v994 = vunpack.c.l.b16 %v725
      %v995 = vunpack.c.h.b16 %v725
      %v996 = vunpack.c.l.b16 %v726
      %v997 = vunpack.c.h.b16 %v726
      %v998 = vunpack.c.l.b16 %v727
      %v999 = vunpack.c.h.b16 %v727
      %v1000 = vunpack.c.l.b16 %v728
      %v1001 = vunpack.c.h.b16 %v728
      %v1002 = vunpack.c.l.b16 %v729
      %v1003 = vunpack.c.h.b16 %v729
      %v1004 = vunpack.c.l.b16 %v730
      %v1005 = vunpack.c.h.b16 %v730
      %v1006 = vunpack.c.l.b16 %v731
      %v1007 = vunpack.c.h.b16 %v731
      %v1008 = vunpack.c.l.b16 %v732
      %v1009 = vunpack.c.h.b16 %v732
      %v1010 = vunpack.c.l.b16 %v733
      %v1011 = vunpack.c.h.b16 %v733
      %v1012 = vunpack.c.l.b16 %v734
      %v1013 = vunpack.c.h.b16 %v734
      %v1014 = vunpack.c.l.b16 %v735
      %v1015 = vunpack.c.h.b16 %v735
      %v1016 = vunpack.c.l.b16 %v736
      %v1017 = vunpack.c.h.b16 %v736
      %v1018 = vunpack.c.l.b16 %v737
      %v1019 = vunpack.c.h.b16 %v737
      %v1020 = vunpack.c.l.b16 %v738
      %v1021 = vunpack.c.h.b16 %v738
      %v1022 = vunpack.c.l.b16 %v739
      %v1023 = vunpack.c.h.b16 %v739
      %v1024 = vunpack.c.l.b16 %v740
      %v1025 = vunpack.c.h.b16 %v740
      %v1026 = vunpack.c.l.b16 %v741
      %v1027 = vunpack.c.h.b16 %v741
      %v1028 = vunpack.c.l.b16 %v742
      %v1029 = vunpack.c.h.b16 %v742
      %v1030 = vunpack.c.l.b16 %v743
      %v1031 = vunpack.c.h.b16 %v743
      %v1032 = vunpack.c.l.b16 %v744
      %v1033 = vunpack.c.h.b16 %v744
      %v1034 = vunpack.c.l.b16 %v745
      %v1035 = vunpack.c.h.b16 %v745
      %v1036 = vunpack.c.l.b16 %v746
      %v1037 = vunpack.c.h.b16 %v746
      %v1038 = vunpack.c.l.b16 %v747
      %v1039 = vunpack.c.h.b16 %v747
      %v1040 = vunpack.c.l.b16 %v748
      %v1041 = vunpack.c.h.b16 %v748
      %v1042 = vunpack.c.l.b16 %v749
      %v1043 = vunpack.c.h.b16 %v749
      %v1044 = vunpack.c.l.b16 %v750
      %v1045 = vunpack.c.h.b16 %v750
      %v1046 = vunpack.c.l.b16 %v751
      %v1047 = vunpack.c.h.b16 %v751
      %v1048 = vunpack.c.l.b16 %v752
      %v1049 = vunpack.c.h.b16 %v752
      %v1050 = vunpack.c.l.b16 %v753
      %v1051 = vunpack.c.h.b16 %v753
      %v1052 = vunpack.c.l.b16 %v754
      %v1053 = vunpack.c.h.b16 %v754
      %v1054 = vunpack.c.l.b16 %v755
      %v1055 = vunpack.c.h.b16 %v755
      %v1056 = vunpack.c.l.b16 %v756
      %v1057 = vunpack.c.h.b16 %v756
      %v1058 = vunpack.c.l.b16 %v757
      %v1059 = vunpack.c.h.b16 %v757
      %v1060 = vunpack.c.l.b16 %v758
      %v1061 = vunpack.c.h.b16 %v758
      %v1062 = vunpack.c.l.b16 %v759
      %v1063 = vunpack.c.h.b16 %v759
      %v1064 = vunpack.c.l.b16 %v760
      %v1065 = vunpack.c.h.b16 %v760
      %v1066 = vunpack.c.l.b16 %v761
      %v1067 = vunpack.c.h.b16 %v761
      %v1068 = vunpack.c.l.b16 %v762
      %v1069 = vunpack.c.h.b16 %v762
      %v1070 = vunpack.c.l.b16 %v763
      %v1071 = vunpack.c.h.b16 %v763
      %v1072 = vunpack.c.l.b16 %v764
      %v1073 = vunpack.c.h.b16 %v764
      %v1074 = vunpack.c.l.b16 %v765
      %v1075 = vunpack.c.h.b16 %v765
      %v1076 = vunpack.c.l.b16 %v766
      %v1077 = vunpack.c.h.b16 %v766
      %v1078 = vunpack.c.l.b16 %v767
      %v1079 = vunpack.c.h.b16 %v767
      %v1080 = vunpack.c.l.b16 %v768
      %v1081 = vunpack.c.h.b16 %v768
      %v1082 = vunpack.c.l.b16 %v769
      %v1083 = vunpack.c.h.b16 %v769
      %v1084 = vunpack.c.l.b16 %v770
      %v1085 = vunpack.c.h.b16 %v770
      %v1086 = vunpack.c.l.b16 %v771
      %v1087 = vunpack.c.h.b16 %v771
      %v1088 = vunpack.c.l.b16 %v772
      %v1089 = vunpack.c.h.b16 %v772
      %v1090 = vunpack.c.l.b16 %v773
      %v1091 = vunpack.c.h.b16 %v773
      %v1092 = vunpack.c.l.b16 %v774
      %v1093 = vunpack.c.h.b16 %v774
      %v1094 = vunpack.c.l.b16 %v775
      %v1095 = vunpack.c.h.b16 %v775
      %v1096 = vpack.c.b16 %v910, %v904
      %v1097 = vpack.c.b16 %v911, %v905
      %v1098 = vpack.c.b16 %v912, %v906
      %v1099 = vpack.c.b16 %v913, %v907
      %v1100 = vpack.c.b16 %v914, %v908
      %v1101 = vpack.c.b16 %v915, %v909
      %v1102 = vpack.c.b16 %v922, %v916
      %v1103 = vpack.c.b16 %v923, %v917
      %v1104 = vpack.c.b16 %v924, %v918
      %v1105 = vpack.c.b16 %v925, %v919
      %v1106 = vpack.c.b16 %v926, %v920
      %v1107 = vpack.c.b16 %v927, %v921
      %v1108 = vpack.c.b16 %v934, %v928
      %v1109 = vpack.c.b16 %v935, %v929
      %v1110 = vpack.c.b16 %v936, %v930
      %v1111 = vpack.c.b16 %v937, %v931
      %v1112 = vpack.c.b16 %v938, %v932
      %v1113 = vpack.c.b16 %v939, %v933
      %v1114 = vpack.c.b16 %v946, %v940
      %v1115 = vpack.c.b16 %v947, %v941
      %v1116 = vpack.c.b16 %v948, %v942
      %v1117 = vpack.c.b16 %v949, %v943
      %v1118 = vpack.c.b16 %v950, %v944
      %v1119 = vpack.c.b16 %v951, %v945
      %v1120 = vpack.c.b16 %v958, %v952
      %v1121 = vpack.c.b16 %v959, %v953
      %v1122 = vpack.c.b16 %v960, %v954
      %v1123 = vpack.c.b16 %v961, %v955
      %v1124 = vpack.c.b16 %v962, %v956
      %v1125 = vpack.c.b16 %v963, %v957
      %v1126 = vpack.c.b16 %v970, %v964
      %v1127 = vpack.c.b16 %v971, %v965
      %v1128 = vpack.c.b16 %v972, %v966
      %v1129 = vpack.c.b16 %v973, %v967
      %v1130 = vpack.c.b16 %v974, %v968
      %v1131 = vpack.c.b16 %v975, %v969
      %v1132 = vpack.c.b16 %v982, %v976
      %v1133 = vpack.c.b16 %v983, %v977
      %v1134 = vpack.c.b16 %v984, %v978
      %v1135 = vpack.c.b16 %v985, %v979
      %v1136 = vpack.c.b16 %v986, %v980
      %v1137 = vpack.c.b16 %v987, %v981
      %v1138 = vpack.c.b16 %v994, %v988
      %v1139 = vpack.c.b16 %v995, %v989
      %v1140 = vpack.c.b16 %v996, %v990
      %v1141 = vpack.c.b16 %v997, %v991
      %v1142 = vpack.c.b16 %v998, %v992
      %v1143 = vpack.c.b16 %v999, %v993
      %v1144 = vpack.c.b16 %v1006, %v1000
      %v1145 = vpack.c.b16 %v1007, %v1001
      %v1146 = vpack.c.b16 %v1008, %v1002
      %v1147 = vpack.c.b16 %v1009, %v1003
      %v1148 = vpack.c.b16 %v1010, %v1004
      %v1149 = vpack.c.b16 %v1011, %v1005
      %v1150 = vpack.c.b16 %v1018, %v1012
      %v1151 = vpack.c.b16 %v1019, %v1013
      %v1152 = vpack.c.b16 %v1020, %v1014
      %v1153 = vpack.c.b16 %v1021, %v1015
      %v1154 = vpack.c.b16 %v1022, %v1016
      %v1155 = vpack.c.b16 %v1023, %v1017
      %v1156 = vpack.c.b16 %v1030, %v1024
      %v1157 = vpack.c.b16 %v1031, %v1025
      %v1158 = vpack.c.b16 %v1032, %v1026
      %v1159 = vpack.c.b16 %v1033, %v1027
      %v1160 = vpack.c.b16 %v1034, %v1028
      %v1161 = vpack.c.b16 %v1035, %v1029
      %v1162 = vpack.c.b16 %v1042, %v1036
      %v1163 = vpack.c.b16 %v1043, %v1037
      %v1164 = vpack.c.b16 %v1044, %v1038
      %v1165 = vpack.c.b16 %v1045, %v1039
      %v1166 = vpack.c.b16 %v1046, %v1040
      %v1167 = vpack.c.b16 %v1047, %v1041
      %v1168 = vpack.c.b16 %v1054, %v1048
      %v1169 = vpack.c.b16 %v1055, %v1049
      %v1170 = vpack.c.b16 %v1056, %v1050
      %v1171 = vpack.c.b16 %v1057, %v1051
      %v1172 = vpack.c.b16 %v1058, %v1052
      %v1173 = vpack.c.b16 %v1059, %v1053
      %v1174 = vpack.c.b16 %v1066, %v1060
      %v1175 = vpack.c.b16 %v1067, %v1061
      %v1176 = vpack.c.b16 %v1068, %v1062
      %v1177 = vpack.c.b16 %v1069, %v1063
      %v1178 = vpack.c.b16 %v1070, %v1064
      %v1179 = vpack.c.b16 %v1071, %v1065
      %v1180 = vpack.c.b16 %v1078, %v1072
      %v1181 = vpack.c.b16 %v1079, %v1073
      %v1182 = vpack.c.b16 %v1080, %v1074
      %v1183 = vpack.c.b16 %v1081, %v1075
      %v1184 = vpack.c.b16 %v1082, %v1076
      %v1185 = vpack.c.b16 %v1083, %v1077
      %v1186 = vpack.c.b16 %v1090, %v1084
      %v1187 = vpack.c.b16 %v1091, %v1085
      %v1188 = vpack.c.b16 %v1092, %v1086
      %v1189 = vpack.c.b16 %v1093, %v1087
      %v1190 = vpack.c.b16 %v1094, %v1088
      %v1191 = vpack.c.b16 %v1095, %v1089
      %1288 = vmatprep.subr.bf16.mxu0 %v1097
      %1289 = vmatpush1.bf16.msra.mxu0 %v1096
      %1290 = vmatprep.subr.bf16.mxu0 %v1103
      %1291 = vmatpush1.bf16.msra.mxu0 %v1102
      %1292 = vmatprep.subr.bf16.mxu0 %v1109
      %1293 = vmatpush1.bf16.msra.mxu0 %v1108
      %1294 = vmatprep.subr.bf16.mxu0 %v1115
      %1295 = vmatpush1.bf16.msra.mxu0 %v1114
      %1296 = vmatprep.subr.bf16.mxu0 %v1121
      %1297 = vmatpush1.bf16.msra.mxu0 %v1120
      %1298 = vmatprep.subr.bf16.mxu0 %v1127
      %1299 = vmatpush1.bf16.msra.mxu0 %v1126
      %1300 = vmatprep.subr.bf16.mxu0 %v1133
      %1301 = vmatpush1.bf16.msra.mxu0 %v1132
      %1302 = vmatprep.subr.bf16.mxu0 %v1139
      %1303 = vmatpush1.bf16.msra.mxu0 %v1138
      %1304 = vmatprep.subr.bf16.mxu0 %v1145
      %1305 = vmatpush1.bf16.msra.mxu0 %v1144
      %1306 = vmatprep.subr.bf16.mxu0 %v1151
      %1307 = vmatpush1.bf16.msra.mxu0 %v1150
      %1308 = vmatprep.subr.bf16.mxu0 %v1157
      %1309 = vmatpush1.bf16.msra.mxu0 %v1156
      %1310 = vmatprep.subr.bf16.mxu0 %v1163
      %1311 = vmatpush1.bf16.msra.mxu0 %v1162
      %1312 = vmatprep.subr.bf16.mxu0 %v1169
      %1313 = vmatpush1.bf16.msra.mxu0 %v1168
      %1314 = vmatprep.subr.bf16.mxu0 %v1175
      %1315 = vmatpush1.bf16.msra.mxu0 %v1174
      %1316 = vmatprep.subr.bf16.mxu0 %v1181
      %1317 = vmatpush1.bf16.msra.mxu0 %v1180
      %1318 = vmatprep.subr.bf16.mxu0 %v1187
      %1319 = vmatpush1.bf16.msra.mxu0 %v1186
      %1320 = vmatprep.mubr.bf16.mxu0 %v677
      %1321 = vmatmul.mubr.bf16.gmra.mrb[0].mxu0 %v676
      %v1322 = vpop.f32.mrb[0].mxu0
      %v1323 = vadd.f32 %v781, %v1322
      %v1324 = vpop.f32.mrb[0].mxu0
      %v1325 = vadd.f32 %v785, %v1324
      %v1326 = vpop.f32.mrb[0].mxu0
      %v1327 = vadd.f32 %v781, %v1326
      %v1328 = vpop.f32.mrb[0].mxu0
      %v1329 = vadd.f32 %v785, %v1328
      %1330 = vmatprep.mubr.bf16.mxu0 %v679
      %1331 = vmatmul.mubr.bf16.gmra.mrb[0].mxu0 %v678
      %v1332 = vpop.f32.mrb[0].mxu0
      %v1333 = vadd.f32 %v781, %v1332
      %v1334 = vpop.f32.mrb[0].mxu0
      %v1335 = vadd.f32 %v785, %v1334
      %v1336 = vpop.f32.mrb[0].mxu0
      %v1337 = vadd.f32 %v781, %v1336
      %v1338 = vpop.f32.mrb[0].mxu0
      %v1339 = vadd.f32 %v785, %v1338
      %1340 = vdwg.mxu0
      %1341 = vmatprep.subr.bf16.mxu0 %v1099
      %1342 = vmatpush1.bf16.msra.mxu0 %v1098
      %1343 = vmatprep.subr.bf16.mxu0 %v1105
      %1344 = vmatpush1.bf16.msra.mxu0 %v1104
      %1345 = vmatprep.subr.bf16.mxu0 %v1111
      %1346 = vmatpush1.bf16.msra.mxu0 %v1110
      %1347 = vmatprep.subr.bf16.mxu0 %v1117
      %1348 = vmatpush1.bf16.msra.mxu0 %v1116
      %1349 = vmatprep.subr.bf16.mxu0 %v1123
      %1350 = vmatpush1.bf16.msra.mxu0 %v1122
      %1351 = vmatprep.subr.bf16.mxu0 %v1129
      %1352 = vmatpush1.bf16.msra.mxu0 %v1128
      %1353 = vmatprep.subr.bf16.mxu0 %v1135
      %1354 = vmatpush1.bf16.msra.mxu0 %v1134
      %1355 = vmatprep.subr.bf16.mxu0 %v1141
      %1356 = vmatpush1.bf16.msra.mxu0 %v1140
      %1357 = vmatprep.subr.bf16.mxu0 %v1147
      %1358 = vmatpush1.bf16.msra.mxu0 %v1146
      %1359 = vmatprep.subr.bf16.mxu0 %v1153
      %1360 = vmatpush1.bf16.msra.mxu0 %v1152
      %1361 = vmatprep.subr.bf16.mxu0 %v1159
      %1362 = vmatpush1.bf16.msra.mxu0 %v1158
      %1363 = vmatprep.subr.bf16.mxu0 %v1165
      %1364 = vmatpush1.bf16.msra.mxu0 %v1164
      %1365 = vmatprep.subr.bf16.mxu0 %v1171
      %1366 = vmatpush1.bf16.msra.mxu0 %v1170
      %1367 = vmatprep.subr.bf16.mxu0 %v1177
      %1368 = vmatpush1.bf16.msra.mxu0 %v1176
      %1369 = vmatprep.subr.bf16.mxu0 %v1183
      %1370 = vmatpush1.bf16.msra.mxu0 %v1182
      %1371 = vmatprep.subr.bf16.mxu0 %v1189
      %1372 = vmatpush1.bf16.msra.mxu0 %v1188
      %1373 = vmatprep.mubr.bf16.mxu0 %v677
      %1374 = vmatmul.mubr.bf16.gmra.mrb[0].mxu0 %v676
      %v1375 = vpop.f32.mrb[0].mxu0
      %v1376 = vadd.f32 %v789, %v1375
      %v1377 = vpop.f32.mrb[0].mxu0
      %v1378 = vadd.f32 %v793, %v1377
      %v1379 = vpop.f32.mrb[0].mxu0
      %v1380 = vadd.f32 %v789, %v1379
      %v1381 = vpop.f32.mrb[0].mxu0
      %v1382 = vadd.f32 %v793, %v1381
      %1383 = vmatprep.mubr.bf16.mxu0 %v679
      %1384 = vmatmul.mubr.bf16.gmra.mrb[0].mxu0 %v678
      %v1385 = vpop.f32.mrb[0].mxu0
      %v1386 = vadd.f32 %v789, %v1385
      %v1387 = vpop.f32.mrb[0].mxu0
      %v1388 = vadd.f32 %v793, %v1387
      %v1389 = vpop.f32.mrb[0].mxu0
      %v1390 = vadd.f32 %v789, %v1389
      %v1391 = vpop.f32.mrb[0].mxu0
      %v1392 = vadd.f32 %v793, %v1391
      %1393 = vdwg.mxu0
      %1394 = vmatprep.subr.bf16.mxu0 %v1101
      %1395 = vmatpush1.bf16.msra.mxu0 %v1100
      %1396 = vmatprep.subr.bf16.mxu0 %v1107
      %1397 = vmatpush1.bf16.msra.mxu0 %v1106
      %1398 = vmatprep.subr.bf16.mxu0 %v1113
      %1399 = vmatpush1.bf16.msra.mxu0 %v1112
      %1400 = vmatprep.subr.bf16.mxu0 %v1119
      %1401 = vmatpush1.bf16.msra.mxu0 %v1118
      %1402 = vmatprep.subr.bf16.mxu0 %v1125
      %1403 = vmatpush1.bf16.msra.mxu0 %v1124
      %1404 = vmatprep.subr.bf16.mxu0 %v1131
      %1405 = vmatpush1.bf16.msra.mxu0 %v1130
      %1406 = vmatprep.subr.bf16.mxu0 %v1137
      %1407 = vmatpush1.bf16.msra.mxu0 %v1136
      %1408 = vmatprep.subr.bf16.mxu0 %v1143
      %1409 = vmatpush1.bf16.msra.mxu0 %v1142
      %1410 = vmatprep.subr.bf16.mxu0 %v1149
      %1411 = vmatpush1.bf16.msra.mxu0 %v1148
      %1412 = vmatprep.subr.bf16.mxu0 %v1155
      %1413 = vmatpush1.bf16.msra.mxu0 %v1154
      %1414 = vmatprep.subr.bf16.mxu0 %v1161
      %1415 = vmatpush1.bf16.msra.mxu0 %v1160
      %1416 = vmatprep.subr.bf16.mxu0 %v1167
      %1417 = vmatpush1.bf16.msra.mxu0 %v1166
      %1418 = vmatprep.subr.bf16.mxu0 %v1173
      %1419 = vmatpush1.bf16.msra.mxu0 %v1172
      %1420 = vmatprep.subr.bf16.mxu0 %v1179
      %1421 = vmatpush1.bf16.msra.mxu0 %v1178
      %1422 = vmatprep.subr.bf16.mxu0 %v1185
      %1423 = vmatpush1.bf16.msra.mxu0 %v1184
      %1424 = vmatprep.subr.bf16.mxu0 %v1191
      %1425 = vmatpush1.bf16.msra.mxu0 %v1190
      %1426 = vmatprep.mubr.bf16.mxu0 %v677
      %1427 = vmatmul.mubr.bf16.gmra.mrb[0].mxu0 %v676
      %v1428 = vpop.f32.mrb[0].mxu0
      %v1429 = vadd.f32 %v797, %v1428
      %v1430 = vpop.f32.mrb[0].mxu0
      %v1431 = vadd.f32 %v801, %v1430
      %v1432 = vpop.f32.mrb[0].mxu0
      %v1433 = vadd.f32 %v797, %v1432
      %v1434 = vpop.f32.mrb[0].mxu0
      %v1435 = vadd.f32 %v801, %v1434
      %1436 = vmatprep.mubr.bf16.mxu0 %v679
      %1437 = vmatmul.mubr.bf16.gmra.mrb[0].mxu0 %v678
      %v1438 = vpop.f32.mrb[0].mxu0
      %v1439 = vadd.f32 %v797, %v1438
      %v1440 = vpop.f32.mrb[0].mxu0
      %v1441 = vadd.f32 %v801, %v1440
      %v1442 = vpop.f32.mrb[0].mxu0
      %v1443 = vadd.f32 %v797, %v1442
      %v1444 = vpop.f32.mrb[0].mxu0
      %v1445 = vadd.f32 %v801, %v1444
      %1446 = vdwg.mxu0
      %v1447 = vpack.c.bf16 %v1327, %v1323
      %v1448 = vpack.c.bf16 %v1329, %v1325
      %v1449 = vpack.c.bf16 %v1337, %v1333
      %v1450 = vpack.c.bf16 %v1339, %v1335
      %v1453 = vpack.i.b16 %v1448, %v1447
      %v1455 = vshrl.u32 %v1447, 16
      %v1456 = vshrl.u32 %v1448, 16
      %v1457 = vpack.i.b16 %v1456, %v1455
      %v1460 = vpack.i.b16 0, 0
      %v1462 = vshrl.u32 0, 16
      %v1463 = vpack.i.b16 %v1462, %v1462
      %v1467 = vpack.i.b16 %v1450, %v1449
      %v1469 = vshrl.u32 %v1449, 16
      %v1470 = vshrl.u32 %v1450, 16
      %v1471 = vpack.i.b16 %v1470, %v1469
      %v1473 = vcombine.high %v1453, %v1460
      %v1475 = vunpack.c.l.s4 1983009808
      %v1476 = vunpack.c.0.s8 %v1475
      %v1477 = vlaneseq
      %v1478 = vshrl.u32 %v1477, 7
      %v1479 = vsub.s32 %v1476, %v1478
      %v1480 = vrot.slane %v1453, %v1479
      %v1482 = vunpack.c.l.s4 1983009808
      %v1483 = vunpack.c.0.s8 %v1482
      %v1484 = vlaneseq
      %v1485 = vshrl.u32 %v1484, 7
      %v1486 = vsub.s32 %v1483, %v1485
      %v1487 = vrot.slane %v1473, %v1486
      %v1488 = vcombine.high %v1480, 0
      %v1490 = vunpack.c.l.s4 1934713408
      %v1491 = vunpack.c.0.s8 %v1490
      %v1492 = vlaneseq
      %v1493 = vshrl.u32 %v1492, 7
      %v1494 = vsub.s32 %v1491, %v1493
      %v1495 = vrot.slane %v1480, %v1494
      %v1497 = vunpack.c.l.s4 1934713408
      %v1498 = vunpack.c.0.s8 %v1497
      %v1499 = vlaneseq
      %v1500 = vshrl.u32 %v1499, 7
      %v1501 = vsub.s32 %v1498, %v1500
      %v1502 = vrot.slane %v1488, %v1501
      %v1503 = vcombine.high %v1487, 0
      %v1505 = vunpack.c.l.s4 1934713408
      %v1506 = vunpack.c.0.s8 %v1505
      %v1507 = vlaneseq
      %v1508 = vshrl.u32 %v1507, 7
      %v1509 = vsub.s32 %v1506, %v1508
      %v1510 = vrot.slane %v1487, %v1509
      %v1512 = vunpack.c.l.s4 1934713408
      %v1513 = vunpack.c.0.s8 %v1512
      %v1514 = vlaneseq
      %v1515 = vshrl.u32 %v1514, 7
      %v1516 = vsub.s32 %v1513, %v1515
      %v1517 = vrot.slane %v1503, %v1516
      %v1518 = vcombine.high %v1495, 0
      %v1519 = vcombine.high %v1502, 0
      %v1520 = vcombine.high %v1510, 0
      %v1521 = vcombine.high %v1517, 0
      %v1522 = vcombine.high %v1457, %v1463
      %v1524 = vunpack.c.l.s4 1983009808
      %v1525 = vunpack.c.0.s8 %v1524
      %v1526 = vlaneseq
      %v1527 = vshrl.u32 %v1526, 7
      %v1528 = vsub.s32 %v1525, %v1527
      %v1529 = vrot.slane %v1457, %v1528
      %v1531 = vunpack.c.l.s4 1983009808
      %v1532 = vunpack.c.0.s8 %v1531
      %v1533 = vlaneseq
      %v1534 = vshrl.u32 %v1533, 7
      %v1535 = vsub.s32 %v1532, %v1534
      %v1536 = vrot.slane %v1522, %v1535
      %v1537 = vcombine.high %v1529, 0
      %v1539 = vunpack.c.l.s4 1934713408
      %v1540 = vunpack.c.0.s8 %v1539
      %v1541 = vlaneseq
      %v1542 = vshrl.u32 %v1541, 7
      %v1543 = vsub.s32 %v1540, %v1542
      %v1544 = vrot.slane %v1529, %v1543
      %v1546 = vunpack.c.l.s4 1934713408
      %v1547 = vunpack.c.0.s8 %v1546
      %v1548 = vlaneseq
      %v1549 = vshrl.u32 %v1548, 7
      %v1550 = vsub.s32 %v1547, %v1549
      %v1551 = vrot.slane %v1537, %v1550
      %v1552 = vcombine.high %v1536, 0
      %v1554 = vunpack.c.l.s4 1934713408
      %v1555 = vunpack.c.0.s8 %v1554
      %v1556 = vlaneseq
      %v1557 = vshrl.u32 %v1556, 7
      %v1558 = vsub.s32 %v1555, %v1557
      %v1559 = vrot.slane %v1536, %v1558
      %v1561 = vunpack.c.l.s4 1934713408
      %v1562 = vunpack.c.0.s8 %v1561
      %v1563 = vlaneseq
      %v1564 = vshrl.u32 %v1563, 7
      %v1565 = vsub.s32 %v1562, %v1564
      %v1566 = vrot.slane %v1552, %v1565
      %v1567 = vcombine.high %v1544, 0
      %v1568 = vcombine.high %v1551, 0
      %v1569 = vcombine.high %v1559, 0
      %v1570 = vcombine.high %v1566, 0
      %v1571 = vcombine.high %v1467, %v1460
      %v1573 = vunpack.c.l.s4 1983009808
      %v1574 = vunpack.c.0.s8 %v1573
      %v1575 = vlaneseq
      %v1576 = vshrl.u32 %v1575, 7
      %v1577 = vsub.s32 %v1574, %v1576
      %v1578 = vrot.slane %v1467, %v1577
      %v1580 = vunpack.c.l.s4 1983009808
      %v1581 = vunpack.c.0.s8 %v1580
      %v1582 = vlaneseq
      %v1583 = vshrl.u32 %v1582, 7
      %v1584 = vsub.s32 %v1581, %v1583
      %v1585 = vrot.slane %v1571, %v1584
      %v1586 = vcombine.high %v1578, 0
      %v1588 = vunpack.c.l.s4 1934713408
      %v1589 = vunpack.c.0.s8 %v1588
      %v1590 = vlaneseq
      %v1591 = vshrl.u32 %v1590, 7
      %v1592 = vsub.s32 %v1589, %v1591
      %v1593 = vrot.slane %v1578, %v1592
      %v1595 = vunpack.c.l.s4 1934713408
      %v1596 = vunpack.c.0.s8 %v1595
      %v1597 = vlaneseq
      %v1598 = vshrl.u32 %v1597, 7
      %v1599 = vsub.s32 %v1596, %v1598
      %v1600 = vrot.slane %v1586, %v1599
      %v1601 = vcombine.high %v1585, 0
      %v1603 = vunpack.c.l.s4 1934713408
      %v1604 = vunpack.c.0.s8 %v1603
      %v1605 = vlaneseq
      %v1606 = vshrl.u32 %v1605, 7
      %v1607 = vsub.s32 %v1604, %v1606
      %v1608 = vrot.slane %v1585, %v1607
      %v1610 = vunpack.c.l.s4 1934713408
      %v1611 = vunpack.c.0.s8 %v1610
      %v1612 = vlaneseq
      %v1613 = vshrl.u32 %v1612, 7
      %v1614 = vsub.s32 %v1611, %v1613
      %v1615 = vrot.slane %v1601, %v1614
      %v1616 = vcombine.high %v1593, 0
      %v1617 = vcombine.high %v1600, 0
      %v1618 = vcombine.high %v1608, 0
      %v1619 = vcombine.high %v1615, 0
      %v1620 = vcombine.high %v1471, %v1463
      %v1622 = vunpack.c.l.s4 1983009808
      %v1623 = vunpack.c.0.s8 %v1622
      %v1624 = vlaneseq
      %v1625 = vshrl.u32 %v1624, 7
      %v1626 = vsub.s32 %v1623, %v1625
      %v1627 = vrot.slane %v1471, %v1626
      %v1629 = vunpack.c.l.s4 1983009808
      %v1630 = vunpack.c.0.s8 %v1629
      %v1631 = vlaneseq
      %v1632 = vshrl.u32 %v1631, 7
      %v1633 = vsub.s32 %v1630, %v1632
      %v1634 = vrot.slane %v1620, %v1633
      %v1635 = vcombine.high %v1627, 0
      %v1637 = vunpack.c.l.s4 1934713408
      %v1638 = vunpack.c.0.s8 %v1637
      %v1639 = vlaneseq
      %v1640 = vshrl.u32 %v1639, 7
      %v1641 = vsub.s32 %v1638, %v1640
      %v1642 = vrot.slane %v1627, %v1641
      %v1644 = vunpack.c.l.s4 1934713408
      %v1645 = vunpack.c.0.s8 %v1644
      %v1646 = vlaneseq
      %v1647 = vshrl.u32 %v1646, 7
      %v1648 = vsub.s32 %v1645, %v1647
      %v1649 = vrot.slane %v1635, %v1648
      %v1650 = vcombine.high %v1634, 0
      %v1652 = vunpack.c.l.s4 1934713408
      %v1653 = vunpack.c.0.s8 %v1652
      %v1654 = vlaneseq
      %v1655 = vshrl.u32 %v1654, 7
      %v1656 = vsub.s32 %v1653, %v1655
      %v1657 = vrot.slane %v1634, %v1656
      %v1659 = vunpack.c.l.s4 1934713408
      %v1660 = vunpack.c.0.s8 %v1659
      %v1661 = vlaneseq
      %v1662 = vshrl.u32 %v1661, 7
      %v1663 = vsub.s32 %v1660, %v1662
      %v1664 = vrot.slane %v1650, %v1663
      %v1665 = vcombine.high %v1642, 0
      %v1666 = vcombine.high %v1649, 0
      %v1667 = vcombine.high %v1657, 0
      %v1668 = vcombine.high %v1664, 0
      %v1669 = vcombine.low %v1495, %v1502
      %v1671 = vunpack.c.l.s4 1983009808
      %v1672 = vunpack.c.0.s8 %v1671
      %v1673 = vlaneseq
      %v1674 = vshrl.u32 %v1673, 7
      %v1675 = vsub.s32 %v1672, %v1674
      %v1676 = vrot.slane %v1669, %v1675
      %v1677 = vcombine.low %v1518, %v1519
      %v1679 = vunpack.c.l.s4 1983009808
      %v1680 = vunpack.c.0.s8 %v1679
      %v1681 = vlaneseq
      %v1682 = vshrl.u32 %v1681, 7
      %v1683 = vsub.s32 %v1680, %v1682
      %v1684 = vrot.slane %v1677, %v1683
      %v1685 = vcombine.low %v1510, %v1517
      %v1687 = vunpack.c.l.s4 1983009808
      %v1688 = vunpack.c.0.s8 %v1687
      %v1689 = vlaneseq
      %v1690 = vshrl.u32 %v1689, 7
      %v1691 = vsub.s32 %v1688, %v1690
      %v1692 = vrot.slane %v1685, %v1691
      %v1693 = vcombine.low %v1520, %v1521
      %v1695 = vunpack.c.l.s4 1983009808
      %v1696 = vunpack.c.0.s8 %v1695
      %v1697 = vlaneseq
      %v1698 = vshrl.u32 %v1697, 7
      %v1699 = vsub.s32 %v1696, %v1698
      %v1700 = vrot.slane %v1693, %v1699
      %v1701 = vcombine.low %v1676, %v1684
      %v1703 = vunpack.c.l.s4 1934713408
      %v1704 = vunpack.c.0.s8 %v1703
      %v1705 = vlaneseq
      %v1706 = vshrl.u32 %v1705, 7
      %v1707 = vsub.s32 %v1704, %v1706
      %v1708 = vrot.slane %v1701, %v1707
      %v1709 = vcombine.low %v1692, %v1700
      %v1711 = vunpack.c.l.s4 1934713408
      %v1712 = vunpack.c.0.s8 %v1711
      %v1713 = vlaneseq
      %v1714 = vshrl.u32 %v1713, 7
      %v1715 = vsub.s32 %v1712, %v1714
      %v1716 = vrot.slane %v1709, %v1715
      %v1717 = vcombine.low %v1708, %v1716
      %v1718 = vcombine.low %v1544, %v1551
      %v1720 = vunpack.c.l.s4 1983009808
      %v1721 = vunpack.c.0.s8 %v1720
      %v1722 = vlaneseq
      %v1723 = vshrl.u32 %v1722, 7
      %v1724 = vsub.s32 %v1721, %v1723
      %v1725 = vrot.slane %v1718, %v1724
      %v1726 = vcombine.low %v1567, %v1568
      %v1728 = vunpack.c.l.s4 1983009808
      %v1729 = vunpack.c.0.s8 %v1728
      %v1730 = vlaneseq
      %v1731 = vshrl.u32 %v1730, 7
      %v1732 = vsub.s32 %v1729, %v1731
      %v1733 = vrot.slane %v1726, %v1732
      %v1734 = vcombine.low %v1559, %v1566
      %v1736 = vunpack.c.l.s4 1983009808
      %v1737 = vunpack.c.0.s8 %v1736
      %v1738 = vlaneseq
      %v1739 = vshrl.u32 %v1738, 7
      %v1740 = vsub.s32 %v1737, %v1739
      %v1741 = vrot.slane %v1734, %v1740
      %v1742 = vcombine.low %v1569, %v1570
      %v1744 = vunpack.c.l.s4 1983009808
      %v1745 = vunpack.c.0.s8 %v1744
      %v1746 = vlaneseq
      %v1747 = vshrl.u32 %v1746, 7
      %v1748 = vsub.s32 %v1745, %v1747
      %v1749 = vrot.slane %v1742, %v1748
      %v1750 = vcombine.low %v1725, %v1733
      %v1752 = vunpack.c.l.s4 1934713408
      %v1753 = vunpack.c.0.s8 %v1752
      %v1754 = vlaneseq
      %v1755 = vshrl.u32 %v1754, 7
      %v1756 = vsub.s32 %v1753, %v1755
      %v1757 = vrot.slane %v1750, %v1756
      %v1758 = vcombine.low %v1741, %v1749
      %v1760 = vunpack.c.l.s4 1934713408
      %v1761 = vunpack.c.0.s8 %v1760
      %v1762 = vlaneseq
      %v1763 = vshrl.u32 %v1762, 7
      %v1764 = vsub.s32 %v1761, %v1763
      %v1765 = vrot.slane %v1758, %v1764
      %v1766 = vcombine.low %v1757, %v1765
      %v1767 = vcombine.low %v1593, %v1600
      %v1769 = vunpack.c.l.s4 1983009808
      %v1770 = vunpack.c.0.s8 %v1769
      %v1771 = vlaneseq
      %v1772 = vshrl.u32 %v1771, 7
      %v1773 = vsub.s32 %v1770, %v1772
      %v1774 = vrot.slane %v1767, %v1773
      %v1775 = vcombine.low %v1616, %v1617
      %v1777 = vunpack.c.l.s4 1983009808
      %v1778 = vunpack.c.0.s8 %v1777
      %v1779 = vlaneseq
      %v1780 = vshrl.u32 %v1779, 7
      %v1781 = vsub.s32 %v1778, %v1780
      %v1782 = vrot.slane %v1775, %v1781
      %v1783 = vcombine.low %v1608, %v1615
      %v1785 = vunpack.c.l.s4 1983009808
      %v1786 = vunpack.c.0.s8 %v1785
      %v1787 = vlaneseq
      %v1788 = vshrl.u32 %v1787, 7
      %v1789 = vsub.s32 %v1786, %v1788
      %v1790 = vrot.slane %v1783, %v1789
      %v1791 = vcombine.low %v1618, %v1619
      %v1793 = vunpack.c.l.s4 1983009808
      %v1794 = vunpack.c.0.s8 %v1793
      %v1795 = vlaneseq
      %v1796 = vshrl.u32 %v1795, 7
      %v1797 = vsub.s32 %v1794, %v1796
      %v1798 = vrot.slane %v1791, %v1797
      %v1799 = vcombine.low %v1774, %v1782
      %v1801 = vunpack.c.l.s4 1934713408
      %v1802 = vunpack.c.0.s8 %v1801
      %v1803 = vlaneseq
      %v1804 = vshrl.u32 %v1803, 7
      %v1805 = vsub.s32 %v1802, %v1804
      %v1806 = vrot.slane %v1799, %v1805
      %v1807 = vcombine.low %v1790, %v1798
      %v1809 = vunpack.c.l.s4 1934713408
      %v1810 = vunpack.c.0.s8 %v1809
      %v1811 = vlaneseq
      %v1812 = vshrl.u32 %v1811, 7
      %v1813 = vsub.s32 %v1810, %v1812
      %v1814 = vrot.slane %v1807, %v1813
      %v1815 = vcombine.low %v1806, %v1814
      %v1816 = vcombine.low %v1642, %v1649
      %v1818 = vunpack.c.l.s4 1983009808
      %v1819 = vunpack.c.0.s8 %v1818
      %v1820 = vlaneseq
      %v1821 = vshrl.u32 %v1820, 7
      %v1822 = vsub.s32 %v1819, %v1821
      %v1823 = vrot.slane %v1816, %v1822
      %v1824 = vcombine.low %v1665, %v1666
      %v1826 = vunpack.c.l.s4 1983009808
      %v1827 = vunpack.c.0.s8 %v1826
      %v1828 = vlaneseq
      %v1829 = vshrl.u32 %v1828, 7
      %v1830 = vsub.s32 %v1827, %v1829
      %v1831 = vrot.slane %v1824, %v1830
      %v1832 = vcombine.low %v1657, %v1664
      %v1834 = vunpack.c.l.s4 1983009808
      %v1835 = vunpack.c.0.s8 %v1834
      %v1836 = vlaneseq
      %v1837 = vshrl.u32 %v1836, 7
      %v1838 = vsub.s32 %v1835, %v1837
      %v1839 = vrot.slane %v1832, %v1838
      %v1840 = vcombine.low %v1667, %v1668
      %v1842 = vunpack.c.l.s4 1983009808
      %v1843 = vunpack.c.0.s8 %v1842
      %v1844 = vlaneseq
      %v1845 = vshrl.u32 %v1844, 7
      %v1846 = vsub.s32 %v1843, %v1845
      %v1847 = vrot.slane %v1840, %v1846
      %v1848 = vcombine.low %v1823, %v1831
      %v1850 = vunpack.c.l.s4 1934713408
      %v1851 = vunpack.c.0.s8 %v1850
      %v1852 = vlaneseq
      %v1853 = vshrl.u32 %v1852, 7
      %v1854 = vsub.s32 %v1851, %v1853
      %v1855 = vrot.slane %v1848, %v1854
      %v1856 = vcombine.low %v1839, %v1847
      %v1858 = vunpack.c.l.s4 1934713408
      %v1859 = vunpack.c.0.s8 %v1858
      %v1860 = vlaneseq
      %v1861 = vshrl.u32 %v1860, 7
      %v1862 = vsub.s32 %v1859, %v1861
      %v1863 = vrot.slane %v1856, %v1862
      %v1864 = vcombine.low %v1855, %v1863
      %v1867 = vpack.i.b16 %v1766, %v1717
      %v1869 = vshrl.u32 %v1717, 16
      %v1870 = vshrl.u32 %v1766, 16
      %v1871 = vpack.i.b16 %v1870, %v1869
      %v1875 = vpack.i.b16 %v1864, %v1815
      %v1877 = vshrl.u32 %v1815, 16
      %v1878 = vshrl.u32 %v1864, 16
      %v1879 = vpack.i.b16 %v1878, %v1877
      %v1881 = vpack.c.bf16 %v1380, %v1376
      %v1882 = vpack.c.bf16 %v1382, %v1378
      %v1883 = vpack.c.bf16 %v1390, %v1386
      %v1884 = vpack.c.bf16 %v1392, %v1388
      %v1887 = vpack.i.b16 %v1882, %v1881
      %v1889 = vshrl.u32 %v1881, 16
      %v1890 = vshrl.u32 %v1882, 16
      %v1891 = vpack.i.b16 %v1890, %v1889
      %v1895 = vpack.i.b16 %v1884, %v1883
      %v1897 = vshrl.u32 %v1883, 16
      %v1898 = vshrl.u32 %v1884, 16
      %v1899 = vpack.i.b16 %v1898, %v1897
      %v1901 = vcombine.high %v1887, %v1460
      %v1903 = vunpack.c.l.s4 1983009808
      %v1904 = vunpack.c.0.s8 %v1903
      %v1905 = vlaneseq
      %v1906 = vshrl.u32 %v1905, 7
      %v1907 = vsub.s32 %v1904, %v1906
      %v1908 = vrot.slane %v1887, %v1907
      %v1910 = vunpack.c.l.s4 1983009808
      %v1911 = vunpack.c.0.s8 %v1910
      %v1912 = vlaneseq
      %v1913 = vshrl.u32 %v1912, 7
      %v1914 = vsub.s32 %v1911, %v1913
      %v1915 = vrot.slane %v1901, %v1914
      %v1916 = vcombine.high %v1908, 0
      %v1918 = vunpack.c.l.s4 1934713408
      %v1919 = vunpack.c.0.s8 %v1918
      %v1920 = vlaneseq
      %v1921 = vshrl.u32 %v1920, 7
      %v1922 = vsub.s32 %v1919, %v1921
      %v1923 = vrot.slane %v1908, %v1922
      %v1925 = vunpack.c.l.s4 1934713408
      %v1926 = vunpack.c.0.s8 %v1925
      %v1927 = vlaneseq
      %v1928 = vshrl.u32 %v1927, 7
      %v1929 = vsub.s32 %v1926, %v1928
      %v1930 = vrot.slane %v1916, %v1929
      %v1931 = vcombine.high %v1915, 0
      %v1933 = vunpack.c.l.s4 1934713408
      %v1934 = vunpack.c.0.s8 %v1933
      %v1935 = vlaneseq
      %v1936 = vshrl.u32 %v1935, 7
      %v1937 = vsub.s32 %v1934, %v1936
      %v1938 = vrot.slane %v1915, %v1937
      %v1940 = vunpack.c.l.s4 1934713408
      %v1941 = vunpack.c.0.s8 %v1940
      %v1942 = vlaneseq
      %v1943 = vshrl.u32 %v1942, 7
      %v1944 = vsub.s32 %v1941, %v1943
      %v1945 = vrot.slane %v1931, %v1944
      %v1946 = vcombine.high %v1923, 0
      %v1947 = vcombine.high %v1930, 0
      %v1948 = vcombine.high %v1938, 0
      %v1949 = vcombine.high %v1945, 0
      %v1950 = vcombine.high %v1891, %v1463
      %v1952 = vunpack.c.l.s4 1983009808
      %v1953 = vunpack.c.0.s8 %v1952
      %v1954 = vlaneseq
      %v1955 = vshrl.u32 %v1954, 7
      %v1956 = vsub.s32 %v1953, %v1955
      %v1957 = vrot.slane %v1891, %v1956
      %v1959 = vunpack.c.l.s4 1983009808
      %v1960 = vunpack.c.0.s8 %v1959
      %v1961 = vlaneseq
      %v1962 = vshrl.u32 %v1961, 7
      %v1963 = vsub.s32 %v1960, %v1962
      %v1964 = vrot.slane %v1950, %v1963
      %v1965 = vcombine.high %v1957, 0
      %v1967 = vunpack.c.l.s4 1934713408
      %v1968 = vunpack.c.0.s8 %v1967
      %v1969 = vlaneseq
      %v1970 = vshrl.u32 %v1969, 7
      %v1971 = vsub.s32 %v1968, %v1970
      %v1972 = vrot.slane %v1957, %v1971
      %v1974 = vunpack.c.l.s4 1934713408
      %v1975 = vunpack.c.0.s8 %v1974
      %v1976 = vlaneseq
      %v1977 = vshrl.u32 %v1976, 7
      %v1978 = vsub.s32 %v1975, %v1977
      %v1979 = vrot.slane %v1965, %v1978
      %v1980 = vcombine.high %v1964, 0
      %v1982 = vunpack.c.l.s4 1934713408
      %v1983 = vunpack.c.0.s8 %v1982
      %v1984 = vlaneseq
      %v1985 = vshrl.u32 %v1984, 7
      %v1986 = vsub.s32 %v1983, %v1985
      %v1987 = vrot.slane %v1964, %v1986
      %v1989 = vunpack.c.l.s4 1934713408
      %v1990 = vunpack.c.0.s8 %v1989
      %v1991 = vlaneseq
      %v1992 = vshrl.u32 %v1991, 7
      %v1993 = vsub.s32 %v1990, %v1992
      %v1994 = vrot.slane %v1980, %v1993
      %v1995 = vcombine.high %v1972, 0
      %v1996 = vcombine.high %v1979, 0
      %v1997 = vcombine.high %v1987, 0
      %v1998 = vcombine.high %v1994, 0
      %v1999 = vcombine.high %v1895, %v1460
      %v2001 = vunpack.c.l.s4 1983009808
      %v2002 = vunpack.c.0.s8 %v2001
      %v2003 = vlaneseq
      %v2004 = vshrl.u32 %v2003, 7
      %v2005 = vsub.s32 %v2002, %v2004
      %v2006 = vrot.slane %v1895, %v2005
      %v2008 = vunpack.c.l.s4 1983009808
      %v2009 = vunpack.c.0.s8 %v2008
      %v2010 = vlaneseq
      %v2011 = vshrl.u32 %v2010, 7
      %v2012 = vsub.s32 %v2009, %v2011
      %v2013 = vrot.slane %v1999, %v2012
      %v2014 = vcombine.high %v2006, 0
      %v2016 = vunpack.c.l.s4 1934713408
      %v2017 = vunpack.c.0.s8 %v2016
      %v2018 = vlaneseq
      %v2019 = vshrl.u32 %v2018, 7
      %v2020 = vsub.s32 %v2017, %v2019
      %v2021 = vrot.slane %v2006, %v2020
      %v2023 = vunpack.c.l.s4 1934713408
      %v2024 = vunpack.c.0.s8 %v2023
      %v2025 = vlaneseq
      %v2026 = vshrl.u32 %v2025, 7
      %v2027 = vsub.s32 %v2024, %v2026
      %v2028 = vrot.slane %v2014, %v2027
      %v2029 = vcombine.high %v2013, 0
      %v2031 = vunpack.c.l.s4 1934713408
      %v2032 = vunpack.c.0.s8 %v2031
      %v2033 = vlaneseq
      %v2034 = vshrl.u32 %v2033, 7
      %v2035 = vsub.s32 %v2032, %v2034
      %v2036 = vrot.slane %v2013, %v2035
      %v2038 = vunpack.c.l.s4 1934713408
      %v2039 = vunpack.c.0.s8 %v2038
      %v2040 = vlaneseq
      %v2041 = vshrl.u32 %v2040, 7
      %v2042 = vsub.s32 %v2039, %v2041
      %v2043 = vrot.slane %v2029, %v2042
      %v2044 = vcombine.high %v2021, 0
      %v2045 = vcombine.high %v2028, 0
      %v2046 = vcombine.high %v2036, 0
      %v2047 = vcombine.high %v2043, 0
      %v2048 = vcombine.high %v1899, %v1463
      %v2050 = vunpack.c.l.s4 1983009808
      %v2051 = vunpack.c.0.s8 %v2050
      %v2052 = vlaneseq
      %v2053 = vshrl.u32 %v2052, 7
      %v2054 = vsub.s32 %v2051, %v2053
      %v2055 = vrot.slane %v1899, %v2054
      %v2057 = vunpack.c.l.s4 1983009808
      %v2058 = vunpack.c.0.s8 %v2057
      %v2059 = vlaneseq
      %v2060 = vshrl.u32 %v2059, 7
      %v2061 = vsub.s32 %v2058, %v2060
      %v2062 = vrot.slane %v2048, %v2061
      %v2063 = vcombine.high %v2055, 0
      %v2065 = vunpack.c.l.s4 1934713408
      %v2066 = vunpack.c.0.s8 %v2065
      %v2067 = vlaneseq
      %v2068 = vshrl.u32 %v2067, 7
      %v2069 = vsub.s32 %v2066, %v2068
      %v2070 = vrot.slane %v2055, %v2069
      %v2072 = vunpack.c.l.s4 1934713408
      %v2073 = vunpack.c.0.s8 %v2072
      %v2074 = vlaneseq
      %v2075 = vshrl.u32 %v2074, 7
      %v2076 = vsub.s32 %v2073, %v2075
      %v2077 = vrot.slane %v2063, %v2076
      %v2078 = vcombine.high %v2062, 0
      %v2080 = vunpack.c.l.s4 1934713408
      %v2081 = vunpack.c.0.s8 %v2080
      %v2082 = vlaneseq
      %v2083 = vshrl.u32 %v2082, 7
      %v2084 = vsub.s32 %v2081, %v2083
      %v2085 = vrot.slane %v2062, %v2084
      %v2087 = vunpack.c.l.s4 1934713408
      %v2088 = vunpack.c.0.s8 %v2087
      %v2089 = vlaneseq
      %v2090 = vshrl.u32 %v2089, 7
      %v2091 = vsub.s32 %v2088, %v2090
      %v2092 = vrot.slane %v2078, %v2091
      %v2093 = vcombine.high %v2070, 0
      %v2094 = vcombine.high %v2077, 0
      %v2095 = vcombine.high %v2085, 0
      %v2096 = vcombine.high %v2092, 0
      %v2097 = vcombine.low %v1923, %v1930
      %v2099 = vunpack.c.l.s4 1983009808
      %v2100 = vunpack.c.0.s8 %v2099
      %v2101 = vlaneseq
      %v2102 = vshrl.u32 %v2101, 7
      %v2103 = vsub.s32 %v2100, %v2102
      %v2104 = vrot.slane %v2097, %v2103
      %v2105 = vcombine.low %v1946, %v1947
      %v2107 = vunpack.c.l.s4 1983009808
      %v2108 = vunpack.c.0.s8 %v2107
      %v2109 = vlaneseq
      %v2110 = vshrl.u32 %v2109, 7
      %v2111 = vsub.s32 %v2108, %v2110
      %v2112 = vrot.slane %v2105, %v2111
      %v2113 = vcombine.low %v1938, %v1945
      %v2115 = vunpack.c.l.s4 1983009808
      %v2116 = vunpack.c.0.s8 %v2115
      %v2117 = vlaneseq
      %v2118 = vshrl.u32 %v2117, 7
      %v2119 = vsub.s32 %v2116, %v2118
      %v2120 = vrot.slane %v2113, %v2119
      %v2121 = vcombine.low %v1948, %v1949
      %v2123 = vunpack.c.l.s4 1983009808
      %v2124 = vunpack.c.0.s8 %v2123
      %v2125 = vlaneseq
      %v2126 = vshrl.u32 %v2125, 7
      %v2127 = vsub.s32 %v2124, %v2126
      %v2128 = vrot.slane %v2121, %v2127
      %v2129 = vcombine.low %v2104, %v2112
      %v2131 = vunpack.c.l.s4 1934713408
      %v2132 = vunpack.c.0.s8 %v2131
      %v2133 = vlaneseq
      %v2134 = vshrl.u32 %v2133, 7
      %v2135 = vsub.s32 %v2132, %v2134
      %v2136 = vrot.slane %v2129, %v2135
      %v2137 = vcombine.low %v2120, %v2128
      %v2139 = vunpack.c.l.s4 1934713408
      %v2140 = vunpack.c.0.s8 %v2139
      %v2141 = vlaneseq
      %v2142 = vshrl.u32 %v2141, 7
      %v2143 = vsub.s32 %v2140, %v2142
      %v2144 = vrot.slane %v2137, %v2143
      %v2145 = vcombine.low %v2136, %v2144
      %v2146 = vcombine.low %v1972, %v1979
      %v2148 = vunpack.c.l.s4 1983009808
      %v2149 = vunpack.c.0.s8 %v2148
      %v2150 = vlaneseq
      %v2151 = vshrl.u32 %v2150, 7
      %v2152 = vsub.s32 %v2149, %v2151
      %v2153 = vrot.slane %v2146, %v2152
      %v2154 = vcombine.low %v1995, %v1996
      %v2156 = vunpack.c.l.s4 1983009808
      %v2157 = vunpack.c.0.s8 %v2156
      %v2158 = vlaneseq
      %v2159 = vshrl.u32 %v2158, 7
      %v2160 = vsub.s32 %v2157, %v2159
      %v2161 = vrot.slane %v2154, %v2160
      %v2162 = vcombine.low %v1987, %v1994
      %v2164 = vunpack.c.l.s4 1983009808
      %v2165 = vunpack.c.0.s8 %v2164
      %v2166 = vlaneseq
      %v2167 = vshrl.u32 %v2166, 7
      %v2168 = vsub.s32 %v2165, %v2167
      %v2169 = vrot.slane %v2162, %v2168
      %v2170 = vcombine.low %v1997, %v1998
      %v2172 = vunpack.c.l.s4 1983009808
      %v2173 = vunpack.c.0.s8 %v2172
      %v2174 = vlaneseq
      %v2175 = vshrl.u32 %v2174, 7
      %v2176 = vsub.s32 %v2173, %v2175
      %v2177 = vrot.slane %v2170, %v2176
      %v2178 = vcombine.low %v2153, %v2161
      %v2180 = vunpack.c.l.s4 1934713408
      %v2181 = vunpack.c.0.s8 %v2180
      %v2182 = vlaneseq
      %v2183 = vshrl.u32 %v2182, 7
      %v2184 = vsub.s32 %v2181, %v2183
      %v2185 = vrot.slane %v2178, %v2184
      %v2186 = vcombine.low %v2169, %v2177
      %v2188 = vunpack.c.l.s4 1934713408
      %v2189 = vunpack.c.0.s8 %v2188
      %v2190 = vlaneseq
      %v2191 = vshrl.u32 %v2190, 7
      %v2192 = vsub.s32 %v2189, %v2191
      %v2193 = vrot.slane %v2186, %v2192
      %v2194 = vcombine.low %v2185, %v2193
      %v2195 = vcombine.low %v2021, %v2028
      %v2197 = vunpack.c.l.s4 1983009808
      %v2198 = vunpack.c.0.s8 %v2197
      %v2199 = vlaneseq
      %v2200 = vshrl.u32 %v2199, 7
      %v2201 = vsub.s32 %v2198, %v2200
      %v2202 = vrot.slane %v2195, %v2201
      %v2203 = vcombine.low %v2044, %v2045
      %v2205 = vunpack.c.l.s4 1983009808
      %v2206 = vunpack.c.0.s8 %v2205
      %v2207 = vlaneseq
      %v2208 = vshrl.u32 %v2207, 7
      %v2209 = vsub.s32 %v2206, %v2208
      %v2210 = vrot.slane %v2203, %v2209
      %v2211 = vcombine.low %v2036, %v2043
      %v2213 = vunpack.c.l.s4 1983009808
      %v2214 = vunpack.c.0.s8 %v2213
      %v2215 = vlaneseq
      %v2216 = vshrl.u32 %v2215, 7
      %v2217 = vsub.s32 %v2214, %v2216
      %v2218 = vrot.slane %v2211, %v2217
      %v2219 = vcombine.low %v2046, %v2047
      %v2221 = vunpack.c.l.s4 1983009808
      %v2222 = vunpack.c.0.s8 %v2221
      %v2223 = vlaneseq
      %v2224 = vshrl.u32 %v2223, 7
      %v2225 = vsub.s32 %v2222, %v2224
      %v2226 = vrot.slane %v2219, %v2225
      %v2227 = vcombine.low %v2202, %v2210
      %v2229 = vunpack.c.l.s4 1934713408
      %v2230 = vunpack.c.0.s8 %v2229
      %v2231 = vlaneseq
      %v2232 = vshrl.u32 %v2231, 7
      %v2233 = vsub.s32 %v2230, %v2232
      %v2234 = vrot.slane %v2227, %v2233
      %v2235 = vcombine.low %v2218, %v2226
      %v2237 = vunpack.c.l.s4 1934713408
      %v2238 = vunpack.c.0.s8 %v2237
      %v2239 = vlaneseq
      %v2240 = vshrl.u32 %v2239, 7
      %v2241 = vsub.s32 %v2238, %v2240
      %v2242 = vrot.slane %v2235, %v2241
      %v2243 = vcombine.low %v2234, %v2242
      %v2244 = vcombine.low %v2070, %v2077
      %v2246 = vunpack.c.l.s4 1983009808
      %v2247 = vunpack.c.0.s8 %v2246
      %v2248 = vlaneseq
      %v2249 = vshrl.u32 %v2248, 7
      %v2250 = vsub.s32 %v2247, %v2249
      %v2251 = vrot.slane %v2244, %v2250
      %v2252 = vcombine.low %v2093, %v2094
      %v2254 = vunpack.c.l.s4 1983009808
      %v2255 = vunpack.c.0.s8 %v2254
      %v2256 = vlaneseq
      %v2257 = vshrl.u32 %v2256, 7
      %v2258 = vsub.s32 %v2255, %v2257
      %v2259 = vrot.slane %v2252, %v2258
      %v2260 = vcombine.low %v2085, %v2092
      %v2262 = vunpack.c.l.s4 1983009808
      %v2263 = vunpack.c.0.s8 %v2262
      %v2264 = vlaneseq
      %v2265 = vshrl.u32 %v2264, 7
      %v2266 = vsub.s32 %v2263, %v2265
      %v2267 = vrot.slane %v2260, %v2266
      %v2268 = vcombine.low %v2095, %v2096
      %v2270 = vunpack.c.l.s4 1983009808
      %v2271 = vunpack.c.0.s8 %v2270
      %v2272 = vlaneseq
      %v2273 = vshrl.u32 %v2272, 7
      %v2274 = vsub.s32 %v2271, %v2273
      %v2275 = vrot.slane %v2268, %v2274
      %v2276 = vcombine.low %v2251, %v2259
      %v2278 = vunpack.c.l.s4 1934713408
      %v2279 = vunpack.c.0.s8 %v2278
      %v2280 = vlaneseq
      %v2281 = vshrl.u32 %v2280, 7
      %v2282 = vsub.s32 %v2279, %v2281
      %v2283 = vrot.slane %v2276, %v2282
      %v2284 = vcombine.low %v2267, %v2275
      %v2286 = vunpack.c.l.s4 1934713408
      %v2287 = vunpack.c.0.s8 %v2286
      %v2288 = vlaneseq
      %v2289 = vshrl.u32 %v2288, 7
      %v2290 = vsub.s32 %v2287, %v2289
      %v2291 = vrot.slane %v2284, %v2290
      %v2292 = vcombine.low %v2283, %v2291
      %v2295 = vpack.i.b16 %v2194, %v2145
      %v2297 = vshrl.u32 %v2145, 16
      %v2298 = vshrl.u32 %v2194, 16
      %v2299 = vpack.i.b16 %v2298, %v2297
      %v2303 = vpack.i.b16 %v2292, %v2243
      %v2305 = vshrl.u32 %v2243, 16
      %v2306 = vshrl.u32 %v2292, 16
      %v2307 = vpack.i.b16 %v2306, %v2305
      %v2309 = vpack.c.bf16 %v1433, %v1429
      %v2310 = vpack.c.bf16 %v1435, %v1431
      %v2311 = vpack.c.bf16 %v1443, %v1439
      %v2312 = vpack.c.bf16 %v1445, %v1441
      %v2315 = vpack.i.b16 %v2310, %v2309
      %v2317 = vshrl.u32 %v2309, 16
      %v2318 = vshrl.u32 %v2310, 16
      %v2319 = vpack.i.b16 %v2318, %v2317
      %v2323 = vpack.i.b16 %v2312, %v2311
      %v2325 = vshrl.u32 %v2311, 16
      %v2326 = vshrl.u32 %v2312, 16
      %v2327 = vpack.i.b16 %v2326, %v2325
      %v2329 = vcombine.high %v2315, %v1460
      %v2331 = vunpack.c.l.s4 1983009808
      %v2332 = vunpack.c.0.s8 %v2331
      %v2333 = vlaneseq
      %v2334 = vshrl.u32 %v2333, 7
      %v2335 = vsub.s32 %v2332, %v2334
      %v2336 = vrot.slane %v2315, %v2335
      %v2338 = vunpack.c.l.s4 1983009808
      %v2339 = vunpack.c.0.s8 %v2338
      %v2340 = vlaneseq
      %v2341 = vshrl.u32 %v2340, 7
      %v2342 = vsub.s32 %v2339, %v2341
      %v2343 = vrot.slane %v2329, %v2342
      %v2344 = vcombine.high %v2336, 0
      %v2346 = vunpack.c.l.s4 1934713408
      %v2347 = vunpack.c.0.s8 %v2346
      %v2348 = vlaneseq
      %v2349 = vshrl.u32 %v2348, 7
      %v2350 = vsub.s32 %v2347, %v2349
      %v2351 = vrot.slane %v2336, %v2350
      %v2353 = vunpack.c.l.s4 1934713408
      %v2354 = vunpack.c.0.s8 %v2353
      %v2355 = vlaneseq
      %v2356 = vshrl.u32 %v2355, 7
      %v2357 = vsub.s32 %v2354, %v2356
      %v2358 = vrot.slane %v2344, %v2357
      %v2359 = vcombine.high %v2343, 0
      %v2361 = vunpack.c.l.s4 1934713408
      %v2362 = vunpack.c.0.s8 %v2361
      %v2363 = vlaneseq
      %v2364 = vshrl.u32 %v2363, 7
      %v2365 = vsub.s32 %v2362, %v2364
      %v2366 = vrot.slane %v2343, %v2365
      %v2368 = vunpack.c.l.s4 1934713408
      %v2369 = vunpack.c.0.s8 %v2368
      %v2370 = vlaneseq
      %v2371 = vshrl.u32 %v2370, 7
      %v2372 = vsub.s32 %v2369, %v2371
      %v2373 = vrot.slane %v2359, %v2372
      %v2374 = vcombine.high %v2351, 0
      %v2375 = vcombine.high %v2358, 0
      %v2376 = vcombine.high %v2366, 0
      %v2377 = vcombine.high %v2373, 0
      %v2378 = vcombine.high %v2319, %v1463
      %v2380 = vunpack.c.l.s4 1983009808
      %v2381 = vunpack.c.0.s8 %v2380
      %v2382 = vlaneseq
      %v2383 = vshrl.u32 %v2382, 7
      %v2384 = vsub.s32 %v2381, %v2383
      %v2385 = vrot.slane %v2319, %v2384
      %v2387 = vunpack.c.l.s4 1983009808
      %v2388 = vunpack.c.0.s8 %v2387
      %v2389 = vlaneseq
      %v2390 = vshrl.u32 %v2389, 7
      %v2391 = vsub.s32 %v2388, %v2390
      %v2392 = vrot.slane %v2378, %v2391
      %v2393 = vcombine.high %v2385, 0
      %v2395 = vunpack.c.l.s4 1934713408
      %v2396 = vunpack.c.0.s8 %v2395
      %v2397 = vlaneseq
      %v2398 = vshrl.u32 %v2397, 7
      %v2399 = vsub.s32 %v2396, %v2398
      %v2400 = vrot.slane %v2385, %v2399
      %v2402 = vunpack.c.l.s4 1934713408
      %v2403 = vunpack.c.0.s8 %v2402
      %v2404 = vlaneseq
      %v2405 = vshrl.u32 %v2404, 7
      %v2406 = vsub.s32 %v2403, %v2405
      %v2407 = vrot.slane %v2393, %v2406
      %v2408 = vcombine.high %v2392, 0
      %v2410 = vunpack.c.l.s4 1934713408
      %v2411 = vunpack.c.0.s8 %v2410
      %v2412 = vlaneseq
      %v2413 = vshrl.u32 %v2412, 7
      %v2414 = vsub.s32 %v2411, %v2413
      %v2415 = vrot.slane %v2392, %v2414
      %v2417 = vunpack.c.l.s4 1934713408
      %v2418 = vunpack.c.0.s8 %v2417
      %v2419 = vlaneseq
      %v2420 = vshrl.u32 %v2419, 7
      %v2421 = vsub.s32 %v2418, %v2420
      %v2422 = vrot.slane %v2408, %v2421
      %v2423 = vcombine.high %v2400, 0
      %v2424 = vcombine.high %v2407, 0
      %v2425 = vcombine.high %v2415, 0
      %v2426 = vcombine.high %v2422, 0
      %v2427 = vcombine.high %v2323, %v1460
      %v2429 = vunpack.c.l.s4 1983009808
      %v2430 = vunpack.c.0.s8 %v2429
      %v2431 = vlaneseq
      %v2432 = vshrl.u32 %v2431, 7
      %v2433 = vsub.s32 %v2430, %v2432
      %v2434 = vrot.slane %v2323, %v2433
      %v2436 = vunpack.c.l.s4 1983009808
      %v2437 = vunpack.c.0.s8 %v2436
      %v2438 = vlaneseq
      %v2439 = vshrl.u32 %v2438, 7
      %v2440 = vsub.s32 %v2437, %v2439
      %v2441 = vrot.slane %v2427, %v2440
      %v2442 = vcombine.high %v2434, 0
      %v2444 = vunpack.c.l.s4 1934713408
      %v2445 = vunpack.c.0.s8 %v2444
      %v2446 = vlaneseq
      %v2447 = vshrl.u32 %v2446, 7
      %v2448 = vsub.s32 %v2445, %v2447
      %v2449 = vrot.slane %v2434, %v2448
      %v2451 = vunpack.c.l.s4 1934713408
      %v2452 = vunpack.c.0.s8 %v2451
      %v2453 = vlaneseq
      %v2454 = vshrl.u32 %v2453, 7
      %v2455 = vsub.s32 %v2452, %v2454
      %v2456 = vrot.slane %v2442, %v2455
      %v2457 = vcombine.high %v2441, 0
      %v2459 = vunpack.c.l.s4 1934713408
      %v2460 = vunpack.c.0.s8 %v2459
      %v2461 = vlaneseq
      %v2462 = vshrl.u32 %v2461, 7
      %v2463 = vsub.s32 %v2460, %v2462
      %v2464 = vrot.slane %v2441, %v2463
      %v2466 = vunpack.c.l.s4 1934713408
      %v2467 = vunpack.c.0.s8 %v2466
      %v2468 = vlaneseq
      %v2469 = vshrl.u32 %v2468, 7
      %v2470 = vsub.s32 %v2467, %v2469
      %v2471 = vrot.slane %v2457, %v2470
      %v2472 = vcombine.high %v2449, 0
      %v2473 = vcombine.high %v2456, 0
      %v2474 = vcombine.high %v2464, 0
      %v2475 = vcombine.high %v2471, 0
      %v2476 = vcombine.high %v2327, %v1463
      %v2478 = vunpack.c.l.s4 1983009808
      %v2479 = vunpack.c.0.s8 %v2478
      %v2480 = vlaneseq
      %v2481 = vshrl.u32 %v2480, 7
      %v2482 = vsub.s32 %v2479, %v2481
      %v2483 = vrot.slane %v2327, %v2482
      %v2485 = vunpack.c.l.s4 1983009808
      %v2486 = vunpack.c.0.s8 %v2485
      %v2487 = vlaneseq
      %v2488 = vshrl.u32 %v2487, 7
      %v2489 = vsub.s32 %v2486, %v2488
      %v2490 = vrot.slane %v2476, %v2489
      %v2491 = vcombine.high %v2483, 0
      %v2493 = vunpack.c.l.s4 1934713408
      %v2494 = vunpack.c.0.s8 %v2493
      %v2495 = vlaneseq
      %v2496 = vshrl.u32 %v2495, 7
      %v2497 = vsub.s32 %v2494, %v2496
      %v2498 = vrot.slane %v2483, %v2497
      %v2500 = vunpack.c.l.s4 1934713408
      %v2501 = vunpack.c.0.s8 %v2500
      %v2502 = vlaneseq
      %v2503 = vshrl.u32 %v2502, 7
      %v2504 = vsub.s32 %v2501, %v2503
      %v2505 = vrot.slane %v2491, %v2504
      %v2506 = vcombine.high %v2490, 0
      %v2508 = vunpack.c.l.s4 1934713408
      %v2509 = vunpack.c.0.s8 %v2508
      %v2510 = vlaneseq
      %v2511 = vshrl.u32 %v2510, 7
      %v2512 = vsub.s32 %v2509, %v2511
      %v2513 = vrot.slane %v2490, %v2512
      %v2515 = vunpack.c.l.s4 1934713408
      %v2516 = vunpack.c.0.s8 %v2515
      %v2517 = vlaneseq
      %v2518 = vshrl.u32 %v2517, 7
      %v2519 = vsub.s32 %v2516, %v2518
      %v2520 = vrot.slane %v2506, %v2519
      %v2521 = vcombine.high %v2498, 0
      %v2522 = vcombine.high %v2505, 0
      %v2523 = vcombine.high %v2513, 0
      %v2524 = vcombine.high %v2520, 0
      %v2525 = vcombine.low %v2351, %v2358
      %v2527 = vunpack.c.l.s4 1983009808
      %v2528 = vunpack.c.0.s8 %v2527
      %v2529 = vlaneseq
      %v2530 = vshrl.u32 %v2529, 7
      %v2531 = vsub.s32 %v2528, %v2530
      %v2532 = vrot.slane %v2525, %v2531
      %v2533 = vcombine.low %v2374, %v2375
      %v2535 = vunpack.c.l.s4 1983009808
      %v2536 = vunpack.c.0.s8 %v2535
      %v2537 = vlaneseq
      %v2538 = vshrl.u32 %v2537, 7
      %v2539 = vsub.s32 %v2536, %v2538
      %v2540 = vrot.slane %v2533, %v2539
      %v2541 = vcombine.low %v2366, %v2373
      %v2543 = vunpack.c.l.s4 1983009808
      %v2544 = vunpack.c.0.s8 %v2543
      %v2545 = vlaneseq
      %v2546 = vshrl.u32 %v2545, 7
      %v2547 = vsub.s32 %v2544, %v2546
      %v2548 = vrot.slane %v2541, %v2547
      %v2549 = vcombine.low %v2376, %v2377
      %v2551 = vunpack.c.l.s4 1983009808
      %v2552 = vunpack.c.0.s8 %v2551
      %v2553 = vlaneseq
      %v2554 = vshrl.u32 %v2553, 7
      %v2555 = vsub.s32 %v2552, %v2554
      %v2556 = vrot.slane %v2549, %v2555
      %v2557 = vcombine.low %v2532, %v2540
      %v2559 = vunpack.c.l.s4 1934713408
      %v2560 = vunpack.c.0.s8 %v2559
      %v2561 = vlaneseq
      %v2562 = vshrl.u32 %v2561, 7
      %v2563 = vsub.s32 %v2560, %v2562
      %v2564 = vrot.slane %v2557, %v2563
      %v2565 = vcombine.low %v2548, %v2556
      %v2567 = vunpack.c.l.s4 1934713408
      %v2568 = vunpack.c.0.s8 %v2567
      %v2569 = vlaneseq
      %v2570 = vshrl.u32 %v2569, 7
      %v2571 = vsub.s32 %v2568, %v2570
      %v2572 = vrot.slane %v2565, %v2571
      %v2573 = vcombine.low %v2564, %v2572
      %v2574 = vcombine.low %v2400, %v2407
      %v2576 = vunpack.c.l.s4 1983009808
      %v2577 = vunpack.c.0.s8 %v2576
      %v2578 = vlaneseq
      %v2579 = vshrl.u32 %v2578, 7
      %v2580 = vsub.s32 %v2577, %v2579
      %v2581 = vrot.slane %v2574, %v2580
      %v2582 = vcombine.low %v2423, %v2424
      %v2584 = vunpack.c.l.s4 1983009808
      %v2585 = vunpack.c.0.s8 %v2584
      %v2586 = vlaneseq
      %v2587 = vshrl.u32 %v2586, 7
      %v2588 = vsub.s32 %v2585, %v2587
      %v2589 = vrot.slane %v2582, %v2588
      %v2590 = vcombine.low %v2415, %v2422
      %v2592 = vunpack.c.l.s4 1983009808
      %v2593 = vunpack.c.0.s8 %v2592
      %v2594 = vlaneseq
      %v2595 = vshrl.u32 %v2594, 7
      %v2596 = vsub.s32 %v2593, %v2595
      %v2597 = vrot.slane %v2590, %v2596
      %v2598 = vcombine.low %v2425, %v2426
      %v2600 = vunpack.c.l.s4 1983009808
      %v2601 = vunpack.c.0.s8 %v2600
      %v2602 = vlaneseq
      %v2603 = vshrl.u32 %v2602, 7
      %v2604 = vsub.s32 %v2601, %v2603
      %v2605 = vrot.slane %v2598, %v2604
      %v2606 = vcombine.low %v2581, %v2589
      %v2608 = vunpack.c.l.s4 1934713408
      %v2609 = vunpack.c.0.s8 %v2608
      %v2610 = vlaneseq
      %v2611 = vshrl.u32 %v2610, 7
      %v2612 = vsub.s32 %v2609, %v2611
      %v2613 = vrot.slane %v2606, %v2612
      %v2614 = vcombine.low %v2597, %v2605
      %v2616 = vunpack.c.l.s4 1934713408
      %v2617 = vunpack.c.0.s8 %v2616
      %v2618 = vlaneseq
      %v2619 = vshrl.u32 %v2618, 7
      %v2620 = vsub.s32 %v2617, %v2619
      %v2621 = vrot.slane %v2614, %v2620
      %v2622 = vcombine.low %v2613, %v2621
      %v2623 = vcombine.low %v2449, %v2456
      %v2625 = vunpack.c.l.s4 1983009808
      %v2626 = vunpack.c.0.s8 %v2625
      %v2627 = vlaneseq
      %v2628 = vshrl.u32 %v2627, 7
      %v2629 = vsub.s32 %v2626, %v2628
      %v2630 = vrot.slane %v2623, %v2629
      %v2631 = vcombine.low %v2472, %v2473
      %v2633 = vunpack.c.l.s4 1983009808
      %v2634 = vunpack.c.0.s8 %v2633
      %v2635 = vlaneseq
      %v2636 = vshrl.u32 %v2635, 7
      %v2637 = vsub.s32 %v2634, %v2636
      %v2638 = vrot.slane %v2631, %v2637
      %v2639 = vcombine.low %v2464, %v2471
      %v2641 = vunpack.c.l.s4 1983009808
      %v2642 = vunpack.c.0.s8 %v2641
      %v2643 = vlaneseq
      %v2644 = vshrl.u32 %v2643, 7
      %v2645 = vsub.s32 %v2642, %v2644
      %v2646 = vrot.slane %v2639, %v2645
      %v2647 = vcombine.low %v2474, %v2475
      %v2649 = vunpack.c.l.s4 1983009808
      %v2650 = vunpack.c.0.s8 %v2649
      %v2651 = vlaneseq
      %v2652 = vshrl.u32 %v2651, 7
      %v2653 = vsub.s32 %v2650, %v2652
      %v2654 = vrot.slane %v2647, %v2653
      %v2655 = vcombine.low %v2630, %v2638
      %v2657 = vunpack.c.l.s4 1934713408
      %v2658 = vunpack.c.0.s8 %v2657
      %v2659 = vlaneseq
      %v2660 = vshrl.u32 %v2659, 7
      %v2661 = vsub.s32 %v2658, %v2660
      %v2662 = vrot.slane %v2655, %v2661
      %v2663 = vcombine.low %v2646, %v2654
      %v2665 = vunpack.c.l.s4 1934713408
      %v2666 = vunpack.c.0.s8 %v2665
      %v2667 = vlaneseq
      %v2668 = vshrl.u32 %v2667, 7
      %v2669 = vsub.s32 %v2666, %v2668
      %v2670 = vrot.slane %v2663, %v2669
      %v2671 = vcombine.low %v2662, %v2670
      %v2672 = vcombine.low %v2498, %v2505
      %v2674 = vunpack.c.l.s4 1983009808
      %v2675 = vunpack.c.0.s8 %v2674
      %v2676 = vlaneseq
      %v2677 = vshrl.u32 %v2676, 7
      %v2678 = vsub.s32 %v2675, %v2677
      %v2679 = vrot.slane %v2672, %v2678
      %v2680 = vcombine.low %v2521, %v2522
      %v2682 = vunpack.c.l.s4 1983009808
      %v2683 = vunpack.c.0.s8 %v2682
      %v2684 = vlaneseq
      %v2685 = vshrl.u32 %v2684, 7
      %v2686 = vsub.s32 %v2683, %v2685
      %v2687 = vrot.slane %v2680, %v2686
      %v2688 = vcombine.low %v2513, %v2520
      %v2690 = vunpack.c.l.s4 1983009808
      %v2691 = vunpack.c.0.s8 %v2690
      %v2692 = vlaneseq
      %v2693 = vshrl.u32 %v2692, 7
      %v2694 = vsub.s32 %v2691, %v2693
      %v2695 = vrot.slane %v2688, %v2694
      %v2696 = vcombine.low %v2523, %v2524
      %v2698 = vunpack.c.l.s4 1983009808
      %v2699 = vunpack.c.0.s8 %v2698
      %v2700 = vlaneseq
      %v2701 = vshrl.u32 %v2700, 7
      %v2702 = vsub.s32 %v2699, %v2701
      %v2703 = vrot.slane %v2696, %v2702
      %v2704 = vcombine.low %v2679, %v2687
      %v2706 = vunpack.c.l.s4 1934713408
      %v2707 = vunpack.c.0.s8 %v2706
      %v2708 = vlaneseq
      %v2709 = vshrl.u32 %v2708, 7
      %v2710 = vsub.s32 %v2707, %v2709
      %v2711 = vrot.slane %v2704, %v2710
      %v2712 = vcombine.low %v2695, %v2703
      %v2714 = vunpack.c.l.s4 1934713408
      %v2715 = vunpack.c.0.s8 %v2714
      %v2716 = vlaneseq
      %v2717 = vshrl.u32 %v2716, 7
      %v2718 = vsub.s32 %v2715, %v2717
      %v2719 = vrot.slane %v2712, %v2718
      %v2720 = vcombine.low %v2711, %v2719
      %v2723 = vpack.i.b16 %v2622, %v2573
      %v2725 = vshrl.u32 %v2573, 16
      %v2726 = vshrl.u32 %v2622, 16
      %v2727 = vpack.i.b16 %v2726, %v2725
      %v2731 = vpack.i.b16 %v2720, %v2671
      %v2733 = vshrl.u32 %v2671, 16
      %v2734 = vshrl.u32 %v2720, 16
      %v2735 = vpack.i.b16 %v2734, %v2733
      %2737 = vmatprep.subr.bf16.mxu0 0
      %2738 = vmatpush1.bf16.xpose.msra.mxu0 %v2295
      %2739 = vmatprep.subr.bf16.mxu0 0
      %2740 = vmatpush1.bf16.xpose.msra.mxu0 0
      %2741 = vmatprep.subr.bf16.mxu0 0
      %2742 = vmatpush1.bf16.xpose.msra.mxu0 0
      %2743 = vmatprep.subr.bf16.mxu0 0
      %2744 = vmatpush1.bf16.xpose.msra.mxu0 0
      %2745 = vmatprep.subr.bf16.mxu0 0
      %2746 = vmatpush1.bf16.xpose.msra.mxu0 0
      %2747 = vmatprep.subr.bf16.mxu0 0
      %2748 = vmatpush1.bf16.xpose.msra.mxu0 0
      %2749 = vmatprep.subr.bf16.mxu0 0
      %2750 = vmatpush1.bf16.xpose.msra.mxu0 0
      %2751 = vmatprep.subr.bf16.mxu0 0
      %2752 = vmatpush1.bf16.xpose.msra.mxu0 0
      %2753 = vmatprep.subr.bf16.mxu0 0
      %2754 = vmatpush1.bf16.xpose.msra.mxu0 0
      %2755 = vmatprep.subr.bf16.mxu0 0
      %2756 = vmatpush1.bf16.xpose.msra.mxu0 0
      %2757 = vmatprep.subr.bf16.mxu0 0
      %2758 = vmatpush1.bf16.xpose.msra.mxu0 0
      %2759 = vmatprep.subr.bf16.mxu0 0
      %2760 = vmatpush1.bf16.xpose.msra.mxu0 0
      %2761 = vmatprep.subr.bf16.mxu0 0
      %2762 = vmatpush1.bf16.xpose.msra.mxu0 0
      %2763 = vmatprep.subr.bf16.mxu0 0
      %2764 = vmatpush1.bf16.xpose.msra.mxu0 0
      %2765 = vmatprep.subr.bf16.mxu0 0
      %2766 = vmatpush1.bf16.xpose.msra.mxu0 0
      %2767 = vmatprep.subr.bf16.mxu0 0
      %2768 = vmatpush1.bf16.xpose.msra.mxu0 0
      %2769 = vmatprep.mubr.bf16.mxu0 0
      %2770 = vmatmul.mubr.bf16.gmra.mrb[0].mxu0 %v1867
      %v2771 = vpop.f32.mrb[0].mxu0
      %v2772 = vadd.f32 0.0, %v2771
      %v2773 = vpop.f32.mrb[0].mxu0
      %v2774 = vpop.f32.mrb[0].mxu0
      %v2775 = vadd.f32 0.0, %v2774
      %v2776 = vpop.f32.mrb[0].mxu0
      %2777 = vdwg.mxu0
      %2778 = vmatprep.subr.bf16.mxu0 0
      %2779 = vmatpush1.bf16.xpose.msra.mxu0 %v2303
      %2780 = vmatprep.subr.bf16.mxu0 0
      %2781 = vmatpush1.bf16.xpose.msra.mxu0 0
      %2782 = vmatprep.subr.bf16.mxu0 0
      %2783 = vmatpush1.bf16.xpose.msra.mxu0 0
      %2784 = vmatprep.subr.bf16.mxu0 0
      %2785 = vmatpush1.bf16.xpose.msra.mxu0 0
      %2786 = vmatprep.subr.bf16.mxu0 0
      %2787 = vmatpush1.bf16.xpose.msra.mxu0 0
      %2788 = vmatprep.subr.bf16.mxu0 0
      %2789 = vmatpush1.bf16.xpose.msra.mxu0 0
      %2790 = vmatprep.subr.bf16.mxu0 0
      %2791 = vmatpush1.bf16.xpose.msra.mxu0 0
      %2792 = vmatprep.subr.bf16.mxu0 0
      %2793 = vmatpush1.bf16.xpose.msra.mxu0 0
      %2794 = vmatprep.subr.bf16.mxu0 0
      %2795 = vmatpush1.bf16.xpose.msra.mxu0 0
      %2796 = vmatprep.subr.bf16.mxu0 0
      %2797 = vmatpush1.bf16.xpose.msra.mxu0 0
      %2798 = vmatprep.subr.bf16.mxu0 0
      %2799 = vmatpush1.bf16.xpose.msra.mxu0 0
      %2800 = vmatprep.subr.bf16.mxu0 0
      %2801 = vmatpush1.bf16.xpose.msra.mxu0 0
      %2802 = vmatprep.subr.bf16.mxu0 0
      %2803 = vmatpush1.bf16.xpose.msra.mxu0 0
      %2804 = vmatprep.subr.bf16.mxu0 0
      %2805 = vmatpush1.bf16.xpose.msra.mxu0 0
      %2806 = vmatprep.subr.bf16.mxu0 0
      %2807 = vmatpush1.bf16.xpose.msra.mxu0 0
      %2808 = vmatprep.subr.bf16.mxu0 0
      %2809 = vmatpush1.bf16.xpose.msra.mxu0 0
      %2810 = vmatprep.mubr.bf16.mxu0 0
      %2811 = vmatmul.mubr.bf16.gmra.mrb[0].mxu0 %v1875
      %v2812 = vpop.f32.mrb[0].mxu0
      %v2813 = vadd.f32 0.0, %v2812
      %v2814 = vpop.f32.mrb[0].mxu0
      %v2815 = vpop.f32.mrb[0].mxu0
      %v2816 = vadd.f32 0.0, %v2815
      %v2817 = vpop.f32.mrb[0].mxu0
      %2818 = vdwg.mxu0
      %2819 = vmatprep.subr.bf16.mxu0 0
      %2820 = vmatpush1.bf16.xpose.msra.mxu0 %v2299
      %2821 = vmatprep.subr.bf16.mxu0 0
      %2822 = vmatpush1.bf16.xpose.msra.mxu0 0
      %2823 = vmatprep.subr.bf16.mxu0 0
      %2824 = vmatpush1.bf16.xpose.msra.mxu0 0
      %2825 = vmatprep.subr.bf16.mxu0 0
      %2826 = vmatpush1.bf16.xpose.msra.mxu0 0
      %2827 = vmatprep.subr.bf16.mxu0 0
      %2828 = vmatpush1.bf16.xpose.msra.mxu0 0
      %2829 = vmatprep.subr.bf16.mxu0 0
      %2830 = vmatpush1.bf16.xpose.msra.mxu0 0
      %2831 = vmatprep.subr.bf16.mxu0 0
      %2832 = vmatpush1.bf16.xpose.msra.mxu0 0
      %2833 = vmatprep.subr.bf16.mxu0 0
      %2834 = vmatpush1.bf16.xpose.msra.mxu0 0
      %2835 = vmatprep.subr.bf16.mxu0 0
      %2836 = vmatpush1.bf16.xpose.msra.mxu0 0
      %2837 = vmatprep.subr.bf16.mxu0 0
      %2838 = vmatpush1.bf16.xpose.msra.mxu0 0
      %2839 = vmatprep.subr.bf16.mxu0 0
      %2840 = vmatpush1.bf16.xpose.msra.mxu0 0
      %2841 = vmatprep.subr.bf16.mxu0 0
      %2842 = vmatpush1.bf16.xpose.msra.mxu0 0
      %2843 = vmatprep.subr.bf16.mxu0 0
      %2844 = vmatpush1.bf16.xpose.msra.mxu0 0
      %2845 = vmatprep.subr.bf16.mxu0 0
      %2846 = vmatpush1.bf16.xpose.msra.mxu0 0
      %2847 = vmatprep.subr.bf16.mxu0 0
      %2848 = vmatpush1.bf16.xpose.msra.mxu0 0
      %2849 = vmatprep.subr.bf16.mxu0 0
      %2850 = vmatpush1.bf16.xpose.msra.mxu0 0
      %2851 = vmatprep.mubr.bf16.mxu0 0
      %2852 = vmatmul.mubr.bf16.gmra.mrb[0].mxu0 %v1871
      %v2853 = vpop.f32.mrb[0].mxu0
      %v2854 = vadd.f32 0.0, %v2853
      %v2855 = vpop.f32.mrb[0].mxu0
      %v2856 = vpop.f32.mrb[0].mxu0
      %v2857 = vadd.f32 0.0, %v2856
      %v2858 = vpop.f32.mrb[0].mxu0
      %2859 = vdwg.mxu0
      %2860 = vmatprep.subr.bf16.mxu0 0
      %2861 = vmatpush1.bf16.xpose.msra.mxu0 %v2307
      %2862 = vmatprep.subr.bf16.mxu0 0
      %2863 = vmatpush1.bf16.xpose.msra.mxu0 0
      %2864 = vmatprep.subr.bf16.mxu0 0
      %2865 = vmatpush1.bf16.xpose.msra.mxu0 0
      %2866 = vmatprep.subr.bf16.mxu0 0
      %2867 = vmatpush1.bf16.xpose.msra.mxu0 0
      %2868 = vmatprep.subr.bf16.mxu0 0
      %2869 = vmatpush1.bf16.xpose.msra.mxu0 0
      %2870 = vmatprep.subr.bf16.mxu0 0
      %2871 = vmatpush1.bf16.xpose.msra.mxu0 0
      %2872 = vmatprep.subr.bf16.mxu0 0
      %2873 = vmatpush1.bf16.xpose.msra.mxu0 0
      %2874 = vmatprep.subr.bf16.mxu0 0
      %2875 = vmatpush1.bf16.xpose.msra.mxu0 0
      %2876 = vmatprep.subr.bf16.mxu0 0
      %2877 = vmatpush1.bf16.xpose.msra.mxu0 0
      %2878 = vmatprep.subr.bf16.mxu0 0
      %2879 = vmatpush1.bf16.xpose.msra.mxu0 0
      %2880 = vmatprep.subr.bf16.mxu0 0
      %2881 = vmatpush1.bf16.xpose.msra.mxu0 0
      %2882 = vmatprep.subr.bf16.mxu0 0
      %2883 = vmatpush1.bf16.xpose.msra.mxu0 0
      %2884 = vmatprep.subr.bf16.mxu0 0
      %2885 = vmatpush1.bf16.xpose.msra.mxu0 0
      %2886 = vmatprep.subr.bf16.mxu0 0
      %2887 = vmatpush1.bf16.xpose.msra.mxu0 0
      %2888 = vmatprep.subr.bf16.mxu0 0
      %2889 = vmatpush1.bf16.xpose.msra.mxu0 0
      %2890 = vmatprep.subr.bf16.mxu0 0
      %2891 = vmatpush1.bf16.xpose.msra.mxu0 0
      %2892 = vmatprep.mubr.bf16.mxu0 0
      %2893 = vmatmul.mubr.bf16.gmra.mrb[0].mxu0 %v1879
      %v2894 = vpop.f32.mrb[0].mxu0
      %v2895 = vadd.f32 0.0, %v2894
      %v2896 = vpop.f32.mrb[0].mxu0
      %v2897 = vpop.f32.mrb[0].mxu0
      %v2898 = vadd.f32 0.0, %v2897
      %v2899 = vpop.f32.mrb[0].mxu0
      %2900 = vdwg.mxu0
      %v2901 = vlaneseq
      %v2902 = vand.u32 %v2901, 127
      %vm2903 = vcmp.lt.s32.totalorder %v2902, 12
      %v2904 = vsel %vm2903, 1, 0
      %vm2905 = vcmp.eq.s32.totalorder %v2904, 1
      %v2906 = vsel %vm2905, %v2772, -1e+30
      %v2907 = vsel %vm2905, %v2775, -1e+30
      %v2908 = vsel %vm2905, %v2813, -1e+30
      %v2909 = vsel %vm2905, %v2816, -1e+30
      %v2910 = vsel %vm2905, %v2854, -1e+30
      %v2911 = vsel %vm2905, %v2857, -1e+30
      %v2912 = vsel %vm2905, %v2895, -1e+30
      %v2913 = vsel %vm2905, %v2898, -1e+30
      %vm2914 = vcmask 130048
      %v2915 = vsel %vm2914, %v2906, -inf
      %2916 = vmax.xlane.f32.xlu0 %v2915
      %v2917 = vpop.xlane.xlu0 %2916
      %v2918 = vsel %vm2914, %v2907, -inf
      %2919 = vmax.xlane.f32.xlu0 %v2918
      %v2920 = vpop.xlane.xlu0 %2919
      %v2921 = vsel %vm2914, %v2908, -inf
      %2922 = vmax.xlane.f32.xlu0 %v2921
      %v2923 = vpop.xlane.xlu0 %2922
      %v2924 = vsel %vm2914, %v2909, -inf
      %2925 = vmax.xlane.f32.xlu0 %v2924
      %v2926 = vpop.xlane.xlu0 %2925
      %v2927 = vsel %vm2914, %v2910, -inf
      %2928 = vmax.xlane.f32.xlu0 %v2927
      %v2929 = vpop.xlane.xlu0 %2928
      %v2930 = vsel %vm2914, %v2911, -inf
      %2931 = vmax.xlane.f32.xlu0 %v2930
      %v2932 = vpop.xlane.xlu0 %2931
      %v2933 = vsel %vm2914, %v2912, -inf
      %2934 = vmax.xlane.f32.xlu0 %v2933
      %v2935 = vpop.xlane.xlu0 %2934
      %v2936 = vsel %vm2914, %v2913, -inf
      %2937 = vmax.xlane.f32.xlu0 %v2936
      %v2938 = vpop.xlane.xlu0 %2937
      %v2939 = vsub.f32 %v2906, %v2917
      %v2940 = vsub.f32 %v2907, %v2920
      %v2941 = vsub.f32 %v2908, %v2923
      %v2942 = vsub.f32 %v2909, %v2926
      %v2943 = vsub.f32 %v2910, %v2929
      %v2944 = vsub.f32 %v2911, %v2932
      %v2945 = vsub.f32 %v2912, %v2935
      %v2946 = vsub.f32 %v2913, %v2938
      %v2947 = vmul.f32 %v2939, 1.442695
      %v2948 = vpow.pop %v2947
      %v2949 = vmul.f32 %v2940, 1.442695
      %v2950 = vpow.pop %v2949
      %v2951 = vmul.f32 %v2941, 1.442695
      %v2952 = vpow.pop %v2951
      %v2953 = vmul.f32 %v2942, 1.442695
      %v2954 = vpow.pop %v2953
      %v2955 = vmul.f32 %v2943, 1.442695
      %v2956 = vpow.pop %v2955
      %v2957 = vmul.f32 %v2944, 1.442695
      %v2958 = vpow.pop %v2957
      %v2959 = vmul.f32 %v2945, 1.442695
      %v2960 = vpow.pop %v2959
      %v2961 = vmul.f32 %v2946, 1.442695
      %v2962 = vpow.pop %v2961
      %v2963 = vsel %vm2914, %v2948, 0.0
      %2964 = vadd.xlane.f32.xlu0 %v2963
      %v2965 = vpop.xlane.xlu0 %2964
      %v2966 = vsel %vm2914, %v2950, 0.0
      %2967 = vadd.xlane.f32.xlu0 %v2966
      %v2968 = vpop.xlane.xlu0 %2967
      %v2969 = vsel %vm2914, %v2952, 0.0
      %2970 = vadd.xlane.f32.xlu0 %v2969
      %v2971 = vpop.xlane.xlu0 %2970
      %v2972 = vsel %vm2914, %v2954, 0.0
      %2973 = vadd.xlane.f32.xlu0 %v2972
      %v2974 = vpop.xlane.xlu0 %2973
      %v2975 = vsel %vm2914, %v2956, 0.0
      %2976 = vadd.xlane.f32.xlu0 %v2975
      %v2977 = vpop.xlane.xlu0 %2976
      %v2978 = vsel %vm2914, %v2958, 0.0
      %2979 = vadd.xlane.f32.xlu0 %v2978
      %v2980 = vpop.xlane.xlu0 %2979
      %v2981 = vsel %vm2914, %v2960, 0.0
      %2982 = vadd.xlane.f32.xlu0 %v2981
      %v2983 = vpop.xlane.xlu0 %2982
      %v2984 = vsel %vm2914, %v2962, 0.0
      %2985 = vadd.xlane.f32.xlu0 %v2984
      %v2986 = vpop.xlane.xlu0 %2985
      %v2987 = vrcp.pop %v2965
      %v2988 = vrcp.pop %v2968
      %v2989 = vrcp.pop %v2971
      %v2990 = vrcp.pop %v2974
      %v2991 = vrcp.pop %v2977
      %v2992 = vrcp.pop %v2980
      %v2993 = vrcp.pop %v2983
      %v2994 = vrcp.pop %v2986
      %v2995 = vmul.f32 %v2948, %v2987
      %v2996 = vmul.f32 %v2950, %v2988
      %v2997 = vmul.f32 %v2952, %v2989
      %v2998 = vmul.f32 %v2954, %v2990
      %v2999 = vmul.f32 %v2956, %v2991
      %v3000 = vmul.f32 %v2958, %v2992
      %v3001 = vmul.f32 %v2960, %v2993
      %v3002 = vmul.f32 %v2962, %v2994
      %v3003 = vpack.c.bf16 %v2996, %v2995
      %v3004 = vpack.c.bf16 %v2998, %v2997
      %v3005 = vpack.c.bf16 %v3000, %v2999
      %v3006 = vpack.c.bf16 %v3002, %v3001
      %v3008 = vsel %vm2914, %v3003, 0
      %3010 = vmatprep.subr.bf16.mxu0 0
      %3011 = vmatpush1.bf16.msra.mxu0 %v2723
      %3012 = vmatprep.subr.bf16.mxu0 0
      %3013 = vmatpush1.bf16.msra.mxu0 0
      %3014 = vmatprep.subr.bf16.mxu0 0
      %3015 = vmatpush1.bf16.msra.mxu0 0
      %3016 = vmatprep.subr.bf16.mxu0 0
      %3017 = vmatpush1.bf16.msra.mxu0 0
      %3018 = vmatprep.subr.bf16.mxu0 0
      %3019 = vmatpush1.bf16.msra.mxu0 0
      %3020 = vmatprep.subr.bf16.mxu0 0
      %3021 = vmatpush1.bf16.msra.mxu0 0
      %3022 = vmatprep.subr.bf16.mxu0 0
      %3023 = vmatpush1.bf16.msra.mxu0 0
      %3024 = vmatprep.subr.bf16.mxu0 0
      %3025 = vmatpush1.bf16.msra.mxu0 0
      %3026 = vmatprep.subr.bf16.mxu0 0
      %3027 = vmatpush1.bf16.msra.mxu0 0
      %3028 = vmatprep.subr.bf16.mxu0 0
      %3029 = vmatpush1.bf16.msra.mxu0 0
      %3030 = vmatprep.subr.bf16.mxu0 0
      %3031 = vmatpush1.bf16.msra.mxu0 0
      %3032 = vmatprep.subr.bf16.mxu0 0
      %3033 = vmatpush1.bf16.msra.mxu0 0
      %3034 = vmatprep.subr.bf16.mxu0 0
      %3035 = vmatpush1.bf16.msra.mxu0 0
      %3036 = vmatprep.subr.bf16.mxu0 0
      %3037 = vmatpush1.bf16.msra.mxu0 0
      %3038 = vmatprep.subr.bf16.mxu0 0
      %3039 = vmatpush1.bf16.msra.mxu0 0
      %3040 = vmatprep.subr.bf16.mxu0 0
      %3041 = vmatpush1.bf16.msra.mxu0 0
      %3042 = vmatprep.mubr.bf16.mxu0 0
      %3043 = vmatmul.mubr.bf16.gmra.mrb[0].mxu0 %v3008
      %v3044 = vpop.f32.mrb[0].mxu0
      %v3045 = vadd.f32 0.0, %v3044
      %v3046 = vpop.f32.mrb[0].mxu0
      %v3047 = vpop.f32.mrb[0].mxu0
      %v3048 = vadd.f32 0.0, %v3047
      %v3049 = vpop.f32.mrb[0].mxu0
      %3050 = vdwg.mxu0
      %v3052 = vsel %vm2914, %v3004, 0
      %3054 = vmatprep.subr.bf16.mxu0 0
      %3055 = vmatpush1.bf16.msra.mxu0 %v2731
      %3056 = vmatprep.subr.bf16.mxu0 0
      %3057 = vmatpush1.bf16.msra.mxu0 0
      %3058 = vmatprep.subr.bf16.mxu0 0
      %3059 = vmatpush1.bf16.msra.mxu0 0
      %3060 = vmatprep.subr.bf16.mxu0 0
      %3061 = vmatpush1.bf16.msra.mxu0 0
      %3062 = vmatprep.subr.bf16.mxu0 0
      %3063 = vmatpush1.bf16.msra.mxu0 0
      %3064 = vmatprep.subr.bf16.mxu0 0
      %3065 = vmatpush1.bf16.msra.mxu0 0
      %3066 = vmatprep.subr.bf16.mxu0 0
      %3067 = vmatpush1.bf16.msra.mxu0 0
      %3068 = vmatprep.subr.bf16.mxu0 0
      %3069 = vmatpush1.bf16.msra.mxu0 0
      %3070 = vmatprep.subr.bf16.mxu0 0
      %3071 = vmatpush1.bf16.msra.mxu0 0
      %3072 = vmatprep.subr.bf16.mxu0 0
      %3073 = vmatpush1.bf16.msra.mxu0 0
      %3074 = vmatprep.subr.bf16.mxu0 0
      %3075 = vmatpush1.bf16.msra.mxu0 0
      %3076 = vmatprep.subr.bf16.mxu0 0
      %3077 = vmatpush1.bf16.msra.mxu0 0
      %3078 = vmatprep.subr.bf16.mxu0 0
      %3079 = vmatpush1.bf16.msra.mxu0 0
      %3080 = vmatprep.subr.bf16.mxu0 0
      %3081 = vmatpush1.bf16.msra.mxu0 0
      %3082 = vmatprep.subr.bf16.mxu0 0
      %3083 = vmatpush1.bf16.msra.mxu0 0
      %3084 = vmatprep.subr.bf16.mxu0 0
      %3085 = vmatpush1.bf16.msra.mxu0 0
      %3086 = vmatprep.mubr.bf16.mxu0 0
      %3087 = vmatmul.mubr.bf16.gmra.mrb[0].mxu0 %v3052
      %v3088 = vpop.f32.mrb[0].mxu0
      %v3089 = vadd.f32 0.0, %v3088
      %v3090 = vpop.f32.mrb[0].mxu0
      %v3091 = vpop.f32.mrb[0].mxu0
      %v3092 = vadd.f32 0.0, %v3091
      %v3093 = vpop.f32.mrb[0].mxu0
      %3094 = vdwg.mxu0
      %v3096 = vsel %vm2914, %v3005, 0
      %3098 = vmatprep.subr.bf16.mxu0 0
      %3099 = vmatpush1.bf16.msra.mxu0 %v2727
      %3100 = vmatprep.subr.bf16.mxu0 0
      %3101 = vmatpush1.bf16.msra.mxu0 0
      %3102 = vmatprep.subr.bf16.mxu0 0
      %3103 = vmatpush1.bf16.msra.mxu0 0
      %3104 = vmatprep.subr.bf16.mxu0 0
      %3105 = vmatpush1.bf16.msra.mxu0 0
      %3106 = vmatprep.subr.bf16.mxu0 0
      %3107 = vmatpush1.bf16.msra.mxu0 0
      %3108 = vmatprep.subr.bf16.mxu0 0
      %3109 = vmatpush1.bf16.msra.mxu0 0
      %3110 = vmatprep.subr.bf16.mxu0 0
      %3111 = vmatpush1.bf16.msra.mxu0 0
      %3112 = vmatprep.subr.bf16.mxu0 0
      %3113 = vmatpush1.bf16.msra.mxu0 0
      %3114 = vmatprep.subr.bf16.mxu0 0
      %3115 = vmatpush1.bf16.msra.mxu0 0
      %3116 = vmatprep.subr.bf16.mxu0 0
      %3117 = vmatpush1.bf16.msra.mxu0 0
      %3118 = vmatprep.subr.bf16.mxu0 0
      %3119 = vmatpush1.bf16.msra.mxu0 0
      %3120 = vmatprep.subr.bf16.mxu0 0
      %3121 = vmatpush1.bf16.msra.mxu0 0
      %3122 = vmatprep.subr.bf16.mxu0 0
      %3123 = vmatpush1.bf16.msra.mxu0 0
      %3124 = vmatprep.subr.bf16.mxu0 0
      %3125 = vmatpush1.bf16.msra.mxu0 0
      %3126 = vmatprep.subr.bf16.mxu0 0
      %3127 = vmatpush1.bf16.msra.mxu0 0
      %3128 = vmatprep.subr.bf16.mxu0 0
      %3129 = vmatpush1.bf16.msra.mxu0 0
      %3130 = vmatprep.mubr.bf16.mxu0 0
      %3131 = vmatmul.mubr.bf16.gmra.mrb[0].mxu0 %v3096
      %v3132 = vpop.f32.mrb[0].mxu0
      %v3133 = vadd.f32 0.0, %v3132
      %v3134 = vpop.f32.mrb[0].mxu0
      %v3135 = vpop.f32.mrb[0].mxu0
      %v3136 = vadd.f32 0.0, %v3135
      %v3137 = vpop.f32.mrb[0].mxu0
      %3138 = vdwg.mxu0
      %v3140 = vsel %vm2914, %v3006, 0
      %3142 = vmatprep.subr.bf16.mxu0 0
      %3143 = vmatpush1.bf16.msra.mxu0 %v2735
      %3144 = vmatprep.subr.bf16.mxu0 0
      %3145 = vmatpush1.bf16.msra.mxu0 0
      %3146 = vmatprep.subr.bf16.mxu0 0
      %3147 = vmatpush1.bf16.msra.mxu0 0
      %3148 = vmatprep.subr.bf16.mxu0 0
      %3149 = vmatpush1.bf16.msra.mxu0 0
      %3150 = vmatprep.subr.bf16.mxu0 0
      %3151 = vmatpush1.bf16.msra.mxu0 0
      %3152 = vmatprep.subr.bf16.mxu0 0
      %3153 = vmatpush1.bf16.msra.mxu0 0
      %3154 = vmatprep.subr.bf16.mxu0 0
      %3155 = vmatpush1.bf16.msra.mxu0 0
      %3156 = vmatprep.subr.bf16.mxu0 0
      %3157 = vmatpush1.bf16.msra.mxu0 0
      %3158 = vmatprep.subr.bf16.mxu0 0
      %3159 = vmatpush1.bf16.msra.mxu0 0
      %3160 = vmatprep.subr.bf16.mxu0 0
      %3161 = vmatpush1.bf16.msra.mxu0 0
      %3162 = vmatprep.subr.bf16.mxu0 0
      %3163 = vmatpush1.bf16.msra.mxu0 0
      %3164 = vmatprep.subr.bf16.mxu0 0
      %3165 = vmatpush1.bf16.msra.mxu0 0
      %3166 = vmatprep.subr.bf16.mxu0 0
      %3167 = vmatpush1.bf16.msra.mxu0 0
      %3168 = vmatprep.subr.bf16.mxu0 0
      %3169 = vmatpush1.bf16.msra.mxu0 0
      %3170 = vmatprep.subr.bf16.mxu0 0
      %3171 = vmatpush1.bf16.msra.mxu0 0
      %3172 = vmatprep.subr.bf16.mxu0 0
      %3173 = vmatpush1.bf16.msra.mxu0 0
      %3174 = vmatprep.mubr.bf16.mxu0 0
      %3175 = vmatmul.mubr.bf16.gmra.mrb[0].mxu0 %v3140
      %v3176 = vpop.f32.mrb[0].mxu0
      %v3177 = vadd.f32 0.0, %v3176
      %v3178 = vpop.f32.mrb[0].mxu0
      %v3179 = vpop.f32.mrb[0].mxu0
      %v3180 = vadd.f32 0.0, %v3179
      %v3181 = vpop.f32.mrb[0].mxu0
      %3182 = vdwg.mxu0
      %v3183 = vcombine.high %v3045, 0.0
      %v3185 = vunpack.c.l.s4 1983009808
      %v3186 = vunpack.c.0.s8 %v3185
      %v3187 = vlaneseq
      %v3188 = vshrl.u32 %v3187, 7
      %v3189 = vsub.s32 %v3186, %v3188
      %v3190 = vrot.slane %v3045, %v3189
      %v3192 = vunpack.c.l.s4 1983009808
      %v3193 = vunpack.c.0.s8 %v3192
      %v3194 = vlaneseq
      %v3195 = vshrl.u32 %v3194, 7
      %v3196 = vsub.s32 %v3193, %v3195
      %v3197 = vrot.slane %v3183, %v3196
      %v3198 = vcombine.high %v3133, 0.0
      %v3200 = vunpack.c.l.s4 1983009808
      %v3201 = vunpack.c.0.s8 %v3200
      %v3202 = vlaneseq
      %v3203 = vshrl.u32 %v3202, 7
      %v3204 = vsub.s32 %v3201, %v3203
      %v3205 = vrot.slane %v3133, %v3204
      %v3207 = vunpack.c.l.s4 1983009808
      %v3208 = vunpack.c.0.s8 %v3207
      %v3209 = vlaneseq
      %v3210 = vshrl.u32 %v3209, 7
      %v3211 = vsub.s32 %v3208, %v3210
      %v3212 = vrot.slane %v3198, %v3211
      %v3213 = vcombine.low %v3190, %v3205
      %v3214 = vcombine.high %v3190, %v3205
      %v3216 = vunpack.c.l.s4 1934713408
      %v3217 = vunpack.c.0.s8 %v3216
      %v3218 = vlaneseq
      %v3219 = vshrl.u32 %v3218, 7
      %v3220 = vsub.s32 %v3217, %v3219
      %v3221 = vrot.slane %v3213, %v3220
      %v3223 = vunpack.c.l.s4 1934713408
      %v3224 = vunpack.c.0.s8 %v3223
      %v3225 = vlaneseq
      %v3226 = vshrl.u32 %v3225, 7
      %v3227 = vsub.s32 %v3224, %v3226
      %v3228 = vrot.slane %v3214, %v3227
      %v3229 = vcombine.low %v3197, %v3212
      %v3230 = vcombine.high %v3197, %v3212
      %v3232 = vunpack.c.l.s4 1934713408
      %v3233 = vunpack.c.0.s8 %v3232
      %v3234 = vlaneseq
      %v3235 = vshrl.u32 %v3234, 7
      %v3236 = vsub.s32 %v3233, %v3235
      %v3237 = vrot.slane %v3229, %v3236
      %v3239 = vunpack.c.l.s4 1934713408
      %v3240 = vunpack.c.0.s8 %v3239
      %v3241 = vlaneseq
      %v3242 = vshrl.u32 %v3241, 7
      %v3243 = vsub.s32 %v3240, %v3242
      %v3244 = vrot.slane %v3230, %v3243
      %v3245 = vcombine.high %v3221, 0.0
      %v3246 = vcombine.high %v3228, 0.0
      %v3247 = vcombine.high %v3237, 0.0
      %v3248 = vcombine.high %v3244, 0.0
      %v3249 = vcombine.high %v3048, 0.0
      %v3251 = vunpack.c.l.s4 1983009808
      %v3252 = vunpack.c.0.s8 %v3251
      %v3253 = vlaneseq
      %v3254 = vshrl.u32 %v3253, 7
      %v3255 = vsub.s32 %v3252, %v3254
      %v3256 = vrot.slane %v3048, %v3255
      %v3258 = vunpack.c.l.s4 1983009808
      %v3259 = vunpack.c.0.s8 %v3258
      %v3260 = vlaneseq
      %v3261 = vshrl.u32 %v3260, 7
      %v3262 = vsub.s32 %v3259, %v3261
      %v3263 = vrot.slane %v3249, %v3262
      %v3264 = vcombine.high %v3136, 0.0
      %v3266 = vunpack.c.l.s4 1983009808
      %v3267 = vunpack.c.0.s8 %v3266
      %v3268 = vlaneseq
      %v3269 = vshrl.u32 %v3268, 7
      %v3270 = vsub.s32 %v3267, %v3269
      %v3271 = vrot.slane %v3136, %v3270
      %v3273 = vunpack.c.l.s4 1983009808
      %v3274 = vunpack.c.0.s8 %v3273
      %v3275 = vlaneseq
      %v3276 = vshrl.u32 %v3275, 7
      %v3277 = vsub.s32 %v3274, %v3276
      %v3278 = vrot.slane %v3264, %v3277
      %v3279 = vcombine.low %v3256, %v3271
      %v3280 = vcombine.high %v3256, %v3271
      %v3282 = vunpack.c.l.s4 1934713408
      %v3283 = vunpack.c.0.s8 %v3282
      %v3284 = vlaneseq
      %v3285 = vshrl.u32 %v3284, 7
      %v3286 = vsub.s32 %v3283, %v3285
      %v3287 = vrot.slane %v3279, %v3286
      %v3289 = vunpack.c.l.s4 1934713408
      %v3290 = vunpack.c.0.s8 %v3289
      %v3291 = vlaneseq
      %v3292 = vshrl.u32 %v3291, 7
      %v3293 = vsub.s32 %v3290, %v3292
      %v3294 = vrot.slane %v3280, %v3293
      %v3295 = vcombine.low %v3263, %v3278
      %v3296 = vcombine.high %v3263, %v3278
      %v3298 = vunpack.c.l.s4 1934713408
      %v3299 = vunpack.c.0.s8 %v3298
      %v3300 = vlaneseq
      %v3301 = vshrl.u32 %v3300, 7
      %v3302 = vsub.s32 %v3299, %v3301
      %v3303 = vrot.slane %v3295, %v3302
      %v3305 = vunpack.c.l.s4 1934713408
      %v3306 = vunpack.c.0.s8 %v3305
      %v3307 = vlaneseq
      %v3308 = vshrl.u32 %v3307, 7
      %v3309 = vsub.s32 %v3306, %v3308
      %v3310 = vrot.slane %v3296, %v3309
      %v3311 = vcombine.high %v3287, 0.0
      %v3312 = vcombine.high %v3294, 0.0
      %v3313 = vcombine.high %v3303, 0.0
      %v3314 = vcombine.high %v3310, 0.0
      %v3315 = vcombine.high %v3089, 0.0
      %v3317 = vunpack.c.l.s4 1983009808
      %v3318 = vunpack.c.0.s8 %v3317
      %v3319 = vlaneseq
      %v3320 = vshrl.u32 %v3319, 7
      %v3321 = vsub.s32 %v3318, %v3320
      %v3322 = vrot.slane %v3089, %v3321
      %v3324 = vunpack.c.l.s4 1983009808
      %v3325 = vunpack.c.0.s8 %v3324
      %v3326 = vlaneseq
      %v3327 = vshrl.u32 %v3326, 7
      %v3328 = vsub.s32 %v3325, %v3327
      %v3329 = vrot.slane %v3315, %v3328
      %v3330 = vcombine.high %v3177, 0.0
      %v3332 = vunpack.c.l.s4 1983009808
      %v3333 = vunpack.c.0.s8 %v3332
      %v3334 = vlaneseq
      %v3335 = vshrl.u32 %v3334, 7
      %v3336 = vsub.s32 %v3333, %v3335
      %v3337 = vrot.slane %v3177, %v3336
      %v3339 = vunpack.c.l.s4 1983009808
      %v3340 = vunpack.c.0.s8 %v3339
      %v3341 = vlaneseq
      %v3342 = vshrl.u32 %v3341, 7
      %v3343 = vsub.s32 %v3340, %v3342
      %v3344 = vrot.slane %v3330, %v3343
      %v3345 = vcombine.low %v3322, %v3337
      %v3346 = vcombine.high %v3322, %v3337
      %v3348 = vunpack.c.l.s4 1934713408
      %v3349 = vunpack.c.0.s8 %v3348
      %v3350 = vlaneseq
      %v3351 = vshrl.u32 %v3350, 7
      %v3352 = vsub.s32 %v3349, %v3351
      %v3353 = vrot.slane %v3345, %v3352
      %v3355 = vunpack.c.l.s4 1934713408
      %v3356 = vunpack.c.0.s8 %v3355
      %v3357 = vlaneseq
      %v3358 = vshrl.u32 %v3357, 7
      %v3359 = vsub.s32 %v3356, %v3358
      %v3360 = vrot.slane %v3346, %v3359
      %v3361 = vcombine.low %v3329, %v3344
      %v3362 = vcombine.high %v3329, %v3344
      %v3364 = vunpack.c.l.s4 1934713408
      %v3365 = vunpack.c.0.s8 %v3364
      %v3366 = vlaneseq
      %v3367 = vshrl.u32 %v3366, 7
      %v3368 = vsub.s32 %v3365, %v3367
      %v3369 = vrot.slane %v3361, %v3368
      %v3371 = vunpack.c.l.s4 1934713408
      %v3372 = vunpack.c.0.s8 %v3371
      %v3373 = vlaneseq
      %v3374 = vshrl.u32 %v3373, 7
      %v3375 = vsub.s32 %v3372, %v3374
      %v3376 = vrot.slane %v3362, %v3375
      %v3377 = vcombine.high %v3353, 0.0
      %v3378 = vcombine.high %v3360, 0.0
      %v3379 = vcombine.high %v3369, 0.0
      %v3380 = vcombine.high %v3376, 0.0
      %v3381 = vcombine.high %v3092, 0.0
      %v3383 = vunpack.c.l.s4 1983009808
      %v3384 = vunpack.c.0.s8 %v3383
      %v3385 = vlaneseq
      %v3386 = vshrl.u32 %v3385, 7
      %v3387 = vsub.s32 %v3384, %v3386
      %v3388 = vrot.slane %v3092, %v3387
      %v3390 = vunpack.c.l.s4 1983009808
      %v3391 = vunpack.c.0.s8 %v3390
      %v3392 = vlaneseq
      %v3393 = vshrl.u32 %v3392, 7
      %v3394 = vsub.s32 %v3391, %v3393
      %v3395 = vrot.slane %v3381, %v3394
      %v3396 = vcombine.high %v3180, 0.0
      %v3398 = vunpack.c.l.s4 1983009808
      %v3399 = vunpack.c.0.s8 %v3398
      %v3400 = vlaneseq
      %v3401 = vshrl.u32 %v3400, 7
      %v3402 = vsub.s32 %v3399, %v3401
      %v3403 = vrot.slane %v3180, %v3402
      %v3405 = vunpack.c.l.s4 1983009808
      %v3406 = vunpack.c.0.s8 %v3405
      %v3407 = vlaneseq
      %v3408 = vshrl.u32 %v3407, 7
      %v3409 = vsub.s32 %v3406, %v3408
      %v3410 = vrot.slane %v3396, %v3409
      %v3411 = vcombine.low %v3388, %v3403
      %v3412 = vcombine.high %v3388, %v3403
      %v3414 = vunpack.c.l.s4 1934713408
      %v3415 = vunpack.c.0.s8 %v3414
      %v3416 = vlaneseq
      %v3417 = vshrl.u32 %v3416, 7
      %v3418 = vsub.s32 %v3415, %v3417
      %v3419 = vrot.slane %v3411, %v3418
      %v3421 = vunpack.c.l.s4 1934713408
      %v3422 = vunpack.c.0.s8 %v3421
      %v3423 = vlaneseq
      %v3424 = vshrl.u32 %v3423, 7
      %v3425 = vsub.s32 %v3422, %v3424
      %v3426 = vrot.slane %v3412, %v3425
      %v3427 = vcombine.low %v3395, %v3410
      %v3428 = vcombine.high %v3395, %v3410
      %v3430 = vunpack.c.l.s4 1934713408
      %v3431 = vunpack.c.0.s8 %v3430
      %v3432 = vlaneseq
      %v3433 = vshrl.u32 %v3432, 7
      %v3434 = vsub.s32 %v3431, %v3433
      %v3435 = vrot.slane %v3427, %v3434
      %v3437 = vunpack.c.l.s4 1934713408
      %v3438 = vunpack.c.0.s8 %v3437
      %v3439 = vlaneseq
      %v3440 = vshrl.u32 %v3439, 7
      %v3441 = vsub.s32 %v3438, %v3440
      %v3442 = vrot.slane %v3428, %v3441
      %v3443 = vcombine.high %v3419, 0.0
      %v3444 = vcombine.high %v3426, 0.0
      %v3445 = vcombine.high %v3435, 0.0
      %v3446 = vcombine.high %v3442, 0.0
      %v3447 = vcombine.low %v3221, %v3228
      %v3449 = vunpack.c.l.s4 1983009808
      %v3450 = vunpack.c.0.s8 %v3449
      %v3451 = vlaneseq
      %v3452 = vshrl.u32 %v3451, 7
      %v3453 = vsub.s32 %v3450, %v3452
      %v3454 = vrot.slane %v3447, %v3453
      %v3455 = vcombine.low %v3245, %v3246
      %v3457 = vunpack.c.l.s4 1983009808
      %v3458 = vunpack.c.0.s8 %v3457
      %v3459 = vlaneseq
      %v3460 = vshrl.u32 %v3459, 7
      %v3461 = vsub.s32 %v3458, %v3460
      %v3462 = vrot.slane %v3455, %v3461
      %v3463 = vcombine.low %v3237, %v3244
      %v3465 = vunpack.c.l.s4 1983009808
      %v3466 = vunpack.c.0.s8 %v3465
      %v3467 = vlaneseq
      %v3468 = vshrl.u32 %v3467, 7
      %v3469 = vsub.s32 %v3466, %v3468
      %v3470 = vrot.slane %v3463, %v3469
      %v3471 = vcombine.low %v3247, %v3248
      %v3473 = vunpack.c.l.s4 1983009808
      %v3474 = vunpack.c.0.s8 %v3473
      %v3475 = vlaneseq
      %v3476 = vshrl.u32 %v3475, 7
      %v3477 = vsub.s32 %v3474, %v3476
      %v3478 = vrot.slane %v3471, %v3477
      %v3479 = vcombine.low %v3454, %v3462
      %v3481 = vunpack.c.l.s4 1934713408
      %v3482 = vunpack.c.0.s8 %v3481
      %v3483 = vlaneseq
      %v3484 = vshrl.u32 %v3483, 7
      %v3485 = vsub.s32 %v3482, %v3484
      %v3486 = vrot.slane %v3479, %v3485
      %v3487 = vcombine.low %v3470, %v3478
      %v3489 = vunpack.c.l.s4 1934713408
      %v3490 = vunpack.c.0.s8 %v3489
      %v3491 = vlaneseq
      %v3492 = vshrl.u32 %v3491, 7
      %v3493 = vsub.s32 %v3490, %v3492
      %v3494 = vrot.slane %v3487, %v3493
      %v3495 = vcombine.low %v3486, %v3494
      %v3496 = vcombine.high %v3486, %v3494
      %v3497 = vcombine.low %v3287, %v3294
      %v3499 = vunpack.c.l.s4 1983009808
      %v3500 = vunpack.c.0.s8 %v3499
      %v3501 = vlaneseq
      %v3502 = vshrl.u32 %v3501, 7
      %v3503 = vsub.s32 %v3500, %v3502
      %v3504 = vrot.slane %v3497, %v3503
      %v3505 = vcombine.low %v3311, %v3312
      %v3507 = vunpack.c.l.s4 1983009808
      %v3508 = vunpack.c.0.s8 %v3507
      %v3509 = vlaneseq
      %v3510 = vshrl.u32 %v3509, 7
      %v3511 = vsub.s32 %v3508, %v3510
      %v3512 = vrot.slane %v3505, %v3511
      %v3513 = vcombine.low %v3303, %v3310
      %v3515 = vunpack.c.l.s4 1983009808
      %v3516 = vunpack.c.0.s8 %v3515
      %v3517 = vlaneseq
      %v3518 = vshrl.u32 %v3517, 7
      %v3519 = vsub.s32 %v3516, %v3518
      %v3520 = vrot.slane %v3513, %v3519
      %v3521 = vcombine.low %v3313, %v3314
      %v3523 = vunpack.c.l.s4 1983009808
      %v3524 = vunpack.c.0.s8 %v3523
      %v3525 = vlaneseq
      %v3526 = vshrl.u32 %v3525, 7
      %v3527 = vsub.s32 %v3524, %v3526
      %v3528 = vrot.slane %v3521, %v3527
      %v3529 = vcombine.low %v3504, %v3512
      %v3531 = vunpack.c.l.s4 1934713408
      %v3532 = vunpack.c.0.s8 %v3531
      %v3533 = vlaneseq
      %v3534 = vshrl.u32 %v3533, 7
      %v3535 = vsub.s32 %v3532, %v3534
      %v3536 = vrot.slane %v3529, %v3535
      %v3537 = vcombine.low %v3520, %v3528
      %v3539 = vunpack.c.l.s4 1934713408
      %v3540 = vunpack.c.0.s8 %v3539
      %v3541 = vlaneseq
      %v3542 = vshrl.u32 %v3541, 7
      %v3543 = vsub.s32 %v3540, %v3542
      %v3544 = vrot.slane %v3537, %v3543
      %v3545 = vcombine.low %v3536, %v3544
      %v3546 = vcombine.high %v3536, %v3544
      %v3547 = vcombine.low %v3353, %v3360
      %v3549 = vunpack.c.l.s4 1983009808
      %v3550 = vunpack.c.0.s8 %v3549
      %v3551 = vlaneseq
      %v3552 = vshrl.u32 %v3551, 7
      %v3553 = vsub.s32 %v3550, %v3552
      %v3554 = vrot.slane %v3547, %v3553
      %v3555 = vcombine.low %v3377, %v3378
      %v3557 = vunpack.c.l.s4 1983009808
      %v3558 = vunpack.c.0.s8 %v3557
      %v3559 = vlaneseq
      %v3560 = vshrl.u32 %v3559, 7
      %v3561 = vsub.s32 %v3558, %v3560
      %v3562 = vrot.slane %v3555, %v3561
      %v3563 = vcombine.low %v3369, %v3376
      %v3565 = vunpack.c.l.s4 1983009808
      %v3566 = vunpack.c.0.s8 %v3565
      %v3567 = vlaneseq
      %v3568 = vshrl.u32 %v3567, 7
      %v3569 = vsub.s32 %v3566, %v3568
      %v3570 = vrot.slane %v3563, %v3569
      %v3571 = vcombine.low %v3379, %v3380
      %v3573 = vunpack.c.l.s4 1983009808
      %v3574 = vunpack.c.0.s8 %v3573
      %v3575 = vlaneseq
      %v3576 = vshrl.u32 %v3575, 7
      %v3577 = vsub.s32 %v3574, %v3576
      %v3578 = vrot.slane %v3571, %v3577
      %v3579 = vcombine.low %v3554, %v3562
      %v3581 = vunpack.c.l.s4 1934713408
      %v3582 = vunpack.c.0.s8 %v3581
      %v3583 = vlaneseq
      %v3584 = vshrl.u32 %v3583, 7
      %v3585 = vsub.s32 %v3582, %v3584
      %v3586 = vrot.slane %v3579, %v3585
      %v3587 = vcombine.low %v3570, %v3578
      %v3589 = vunpack.c.l.s4 1934713408
      %v3590 = vunpack.c.0.s8 %v3589
      %v3591 = vlaneseq
      %v3592 = vshrl.u32 %v3591, 7
      %v3593 = vsub.s32 %v3590, %v3592
      %v3594 = vrot.slane %v3587, %v3593
      %v3595 = vcombine.low %v3586, %v3594
      %v3596 = vcombine.high %v3586, %v3594
      %v3597 = vcombine.low %v3419, %v3426
      %v3599 = vunpack.c.l.s4 1983009808
      %v3600 = vunpack.c.0.s8 %v3599
      %v3601 = vlaneseq
      %v3602 = vshrl.u32 %v3601, 7
      %v3603 = vsub.s32 %v3600, %v3602
      %v3604 = vrot.slane %v3597, %v3603
      %v3605 = vcombine.low %v3443, %v3444
      %v3607 = vunpack.c.l.s4 1983009808
      %v3608 = vunpack.c.0.s8 %v3607
      %v3609 = vlaneseq
      %v3610 = vshrl.u32 %v3609, 7
      %v3611 = vsub.s32 %v3608, %v3610
      %v3612 = vrot.slane %v3605, %v3611
      %v3613 = vcombine.low %v3435, %v3442
      %v3615 = vunpack.c.l.s4 1983009808
      %v3616 = vunpack.c.0.s8 %v3615
      %v3617 = vlaneseq
      %v3618 = vshrl.u32 %v3617, 7
      %v3619 = vsub.s32 %v3616, %v3618
      %v3620 = vrot.slane %v3613, %v3619
      %v3621 = vcombine.low %v3445, %v3446
      %v3623 = vunpack.c.l.s4 1983009808
      %v3624 = vunpack.c.0.s8 %v3623
      %v3625 = vlaneseq
      %v3626 = vshrl.u32 %v3625, 7
      %v3627 = vsub.s32 %v3624, %v3626
      %v3628 = vrot.slane %v3621, %v3627
      %v3629 = vcombine.low %v3604, %v3612
      %v3631 = vunpack.c.l.s4 1934713408
      %v3632 = vunpack.c.0.s8 %v3631
      %v3633 = vlaneseq
      %v3634 = vshrl.u32 %v3633, 7
      %v3635 = vsub.s32 %v3632, %v3634
      %v3636 = vrot.slane %v3629, %v3635
      %v3637 = vcombine.low %v3620, %v3628
      %v3639 = vunpack.c.l.s4 1934713408
      %v3640 = vunpack.c.0.s8 %v3639
      %v3641 = vlaneseq
      %v3642 = vshrl.u32 %v3641, 7
      %v3643 = vsub.s32 %v3640, %v3642
      %v3644 = vrot.slane %v3637, %v3643
      %v3645 = vcombine.low %v3636, %v3644
      %v3646 = vcombine.high %v3636, %v3644
      %v3647 = vpack.c.bf16 %v3545, %v3495
      %v3648 = vpack.c.bf16 %v3546, %v3496
      %v3649 = vpack.c.bf16 %v3645, %v3595
      %v3650 = vpack.c.bf16 %v3646, %v3596
      %v3651 = vld [vmem:[%s513] sm:$0xff]
      %v3652 = vld [vmem:[%s513 + $0x8] sm:$0xff]
      %v3653 = vld [vmem:[%s513 + $0x10] sm:$0xff]
      %v3654 = vld [vmem:[%s513 + $0x18] sm:$0xff]
      %v3655 = vld [vmem:[%s513 + $0x20] sm:$0xff]
      %v3656 = vld [vmem:[%s513 + $0x28] sm:$0xff]
      %v3657 = vld [vmem:[%s513 + $0x30] sm:$0xff]
      %v3658 = vld [vmem:[%s513 + $0x38] sm:$0xff]
      %v3659 = vld [vmem:[%s513 + $0x40] sm:$0xff]
      %v3660 = vld [vmem:[%s513 + $0x48] sm:$0xff]
      %v3661 = vld [vmem:[%s513 + $0x50] sm:$0xff]
      %v3662 = vld [vmem:[%s513 + $0x58] sm:$0xff]
      %v3663 = vld [vmem:[%s513 + $0x60] sm:$0xff]
      %v3664 = vld [vmem:[%s513 + $0x68] sm:$0xff]
      %v3665 = vld [vmem:[%s513 + $0x70] sm:$0xff]
      %v3666 = vld [vmem:[%s513 + $0x78] sm:$0xff]
      %v3667 = vld [vmem:[%s513 + $0x80] sm:$0xff]
      %v3668 = vld [vmem:[%s513 + $0x88] sm:$0xff]
      %v3669 = vld [vmem:[%s513 + $0x90] sm:$0xff]
      %v3670 = vld [vmem:[%s513 + $0x98] sm:$0xff]
      %v3671 = vld [vmem:[%s513 + $0xa0] sm:$0xff]
      %v3672 = vld [vmem:[%s513 + $0xa8] sm:$0xff]
      %v3673 = vld [vmem:[%s513 + $0xb0] sm:$0xff]
      %v3674 = vld [vmem:[%s513 + $0xb8] sm:$0xff]
      %v3675 = vld [vmem:[%s513 + $0xc0] sm:$0xff]
      %v3676 = vld [vmem:[%s513 + $0xc8] sm:$0xff]
      %v3677 = vld [vmem:[%s513 + $0xd0] sm:$0xff]
      %v3678 = vld [vmem:[%s513 + $0xd8] sm:$0xff]
      %v3679 = vld [vmem:[%s513 + $0xe0] sm:$0xff]
      %v3680 = vld [vmem:[%s513 + $0xe8] sm:$0xff]
      %v3681 = vld [vmem:[%s513 + $0xf0] sm:$0xff]
      %v3682 = vld [vmem:[%s513 + $0xf8] sm:$0xff]
      %v3683 = vld [vmem:[%s517] sm:$0x3]
      %v3685 = vlaneseq
      %v3686 = vshrl.u32 %v3685, 7
      %v3687 = vsub.s32 0, %v3686
      %v3688 = vrot.slane %v3683, %v3687
      %v3689 = vlaneseq
      %v3690 = vshrl.u32 %v3689, 7
      %v3691 = vsub.s32 1, %v3690
      %v3692 = vrot.slane %v3683, %v3691
      %v3727 = vunpack.c.l.b16 %v3651
      %v3728 = vunpack.c.h.b16 %v3651
      %v3729 = vunpack.c.l.b16 %v3652
      %v3730 = vunpack.c.h.b16 %v3652
      %v3731 = vunpack.c.l.b16 %v3653
      %v3732 = vunpack.c.h.b16 %v3653
      %v3733 = vunpack.c.l.b16 %v3654
      %v3734 = vunpack.c.h.b16 %v3654
      %v3735 = vunpack.c.l.b16 %v3655
      %v3736 = vunpack.c.h.b16 %v3655
      %v3737 = vunpack.c.l.b16 %v3656
      %v3738 = vunpack.c.h.b16 %v3656
      %v3739 = vunpack.c.l.b16 %v3657
      %v3740 = vunpack.c.h.b16 %v3657
      %v3741 = vunpack.c.l.b16 %v3658
      %v3742 = vunpack.c.h.b16 %v3658
      %v3743 = vunpack.c.l.b16 %v3659
      %v3744 = vunpack.c.h.b16 %v3659
      %v3745 = vunpack.c.l.b16 %v3660
      %v3746 = vunpack.c.h.b16 %v3660
      %v3747 = vunpack.c.l.b16 %v3661
      %v3748 = vunpack.c.h.b16 %v3661
      %v3749 = vunpack.c.l.b16 %v3662
      %v3750 = vunpack.c.h.b16 %v3662
      %v3751 = vunpack.c.l.b16 %v3663
      %v3752 = vunpack.c.h.b16 %v3663
      %v3753 = vunpack.c.l.b16 %v3664
      %v3754 = vunpack.c.h.b16 %v3664
      %v3755 = vunpack.c.l.b16 %v3665
      %v3756 = vunpack.c.h.b16 %v3665
      %v3757 = vunpack.c.l.b16 %v3666
      %v3758 = vunpack.c.h.b16 %v3666
      %v3759 = vunpack.c.l.b16 %v3667
      %v3760 = vunpack.c.h.b16 %v3667
      %v3761 = vunpack.c.l.b16 %v3668
      %v3762 = vunpack.c.h.b16 %v3668
      %v3763 = vunpack.c.l.b16 %v3669
      %v3764 = vunpack.c.h.b16 %v3669
      %v3765 = vunpack.c.l.b16 %v3670
      %v3766 = vunpack.c.h.b16 %v3670
      %v3767 = vunpack.c.l.b16 %v3671
      %v3768 = vunpack.c.h.b16 %v3671
      %v3769 = vunpack.c.l.b16 %v3672
      %v3770 = vunpack.c.h.b16 %v3672
      %v3771 = vunpack.c.l.b16 %v3673
      %v3772 = vunpack.c.h.b16 %v3673
      %v3773 = vunpack.c.l.b16 %v3674
      %v3774 = vunpack.c.h.b16 %v3674
      %v3775 = vunpack.c.l.b16 %v3675
      %v3776 = vunpack.c.h.b16 %v3675
      %v3777 = vunpack.c.l.b16 %v3676
      %v3778 = vunpack.c.h.b16 %v3676
      %v3779 = vunpack.c.l.b16 %v3677
      %v3780 = vunpack.c.h.b16 %v3677
      %v3781 = vunpack.c.l.b16 %v3678
      %v3782 = vunpack.c.h.b16 %v3678
      %v3783 = vunpack.c.l.b16 %v3679
      %v3784 = vunpack.c.h.b16 %v3679
      %v3785 = vunpack.c.l.b16 %v3680
      %v3786 = vunpack.c.h.b16 %v3680
      %v3787 = vunpack.c.l.b16 %v3681
      %v3788 = vunpack.c.h.b16 %v3681
      %v3789 = vunpack.c.l.b16 %v3682
      %v3790 = vunpack.c.h.b16 %v3682
      %v3791 = vpack.c.b16 %v3729, %v3727
      %v3792 = vpack.c.b16 %v3730, %v3728
      %v3793 = vpack.c.b16 %v3733, %v3731
      %v3794 = vpack.c.b16 %v3734, %v3732
      %v3795 = vpack.c.b16 %v3737, %v3735
      %v3796 = vpack.c.b16 %v3738, %v3736
      %v3797 = vpack.c.b16 %v3741, %v3739
      %v3798 = vpack.c.b16 %v3742, %v3740
      %v3799 = vpack.c.b16 %v3745, %v3743
      %v3800 = vpack.c.b16 %v3746, %v3744
      %v3801 = vpack.c.b16 %v3749, %v3747
      %v3802 = vpack.c.b16 %v3750, %v3748
      %v3803 = vpack.c.b16 %v3753, %v3751
      %v3804 = vpack.c.b16 %v3754, %v3752
      %v3805 = vpack.c.b16 %v3757, %v3755
      %v3806 = vpack.c.b16 %v3758, %v3756
      %v3807 = vpack.c.b16 %v3761, %v3759
      %v3808 = vpack.c.b16 %v3762, %v3760
      %v3809 = vpack.c.b16 %v3765, %v3763
      %v3810 = vpack.c.b16 %v3766, %v3764
      %v3811 = vpack.c.b16 %v3769, %v3767
      %v3812 = vpack.c.b16 %v3770, %v3768
      %v3813 = vpack.c.b16 %v3773, %v3771
      %v3814 = vpack.c.b16 %v3774, %v3772
      %v3815 = vpack.c.b16 %v3777, %v3775
      %v3816 = vpack.c.b16 %v3778, %v3776
      %v3817 = vpack.c.b16 %v3781, %v3779
      %v3818 = vpack.c.b16 %v3782, %v3780
      %v3819 = vpack.c.b16 %v3785, %v3783
      %v3820 = vpack.c.b16 %v3786, %v3784
      %v3821 = vpack.c.b16 %v3789, %v3787
      %v3822 = vpack.c.b16 %v3790, %v3788
      %3855 = vmatprep.subr.bf16.mxu0 %v3792
      %3856 = vmatpush1.bf16.msra.mxu0 %v3791
      %3857 = vmatprep.subr.bf16.mxu0 %v3794
      %3858 = vmatpush1.bf16.msra.mxu0 %v3793
      %3859 = vmatprep.subr.bf16.mxu0 %v3796
      %3860 = vmatpush1.bf16.msra.mxu0 %v3795
      %3861 = vmatprep.subr.bf16.mxu0 %v3798
      %3862 = vmatpush1.bf16.msra.mxu0 %v3797
      %3863 = vmatprep.subr.bf16.mxu0 %v3800
      %3864 = vmatpush1.bf16.msra.mxu0 %v3799
      %3865 = vmatprep.subr.bf16.mxu0 %v3802
      %3866 = vmatpush1.bf16.msra.mxu0 %v3801
      %3867 = vmatprep.subr.bf16.mxu0 %v3804
      %3868 = vmatpush1.bf16.msra.mxu0 %v3803
      %3869 = vmatprep.subr.bf16.mxu0 %v3806
      %3870 = vmatpush1.bf16.msra.mxu0 %v3805
      %3871 = vmatprep.subr.bf16.mxu0 %v3808
      %3872 = vmatpush1.bf16.msra.mxu0 %v3807
      %3873 = vmatprep.subr.bf16.mxu0 %v3810
      %3874 = vmatpush1.bf16.msra.mxu0 %v3809
      %3875 = vmatprep.subr.bf16.mxu0 %v3812
      %3876 = vmatpush1.bf16.msra.mxu0 %v3811
      %3877 = vmatprep.subr.bf16.mxu0 %v3814
      %3878 = vmatpush1.bf16.msra.mxu0 %v3813
      %3879 = vmatprep.subr.bf16.mxu0 %v3816
      %3880 = vmatpush1.bf16.msra.mxu0 %v3815
      %3881 = vmatprep.subr.bf16.mxu0 %v3818
      %3882 = vmatpush1.bf16.msra.mxu0 %v3817
      %3883 = vmatprep.subr.bf16.mxu0 %v3820
      %3884 = vmatpush1.bf16.msra.mxu0 %v3819
      %3885 = vmatprep.subr.bf16.mxu0 %v3822
      %3886 = vmatpush1.bf16.msra.mxu0 %v3821
      %3887 = vmatprep.mubr.bf16.mxu0 %v3648
      %3888 = vmatmul.mubr.bf16.gmra.mrb[0].mxu0 %v3647
      %v3889 = vpop.f32.mrb[0].mxu0
      %v3890 = vadd.f32 %v3688, %v3889
      %v3891 = vpop.f32.mrb[0].mxu0
      %v3892 = vadd.f32 %v3692, %v3891
      %v3893 = vpop.f32.mrb[0].mxu0
      %v3894 = vadd.f32 %v3688, %v3893
      %v3895 = vpop.f32.mrb[0].mxu0
      %v3896 = vadd.f32 %v3692, %v3895
      %3897 = vmatprep.mubr.bf16.mxu0 %v3650
      %3898 = vmatmul.mubr.bf16.gmra.mrb[0].mxu0 %v3649
      %v3899 = vpop.f32.mrb[0].mxu0
      %v3900 = vadd.f32 %v3688, %v3899
      %v3901 = vpop.f32.mrb[0].mxu0
      %v3902 = vadd.f32 %v3692, %v3901
      %v3903 = vpop.f32.mrb[0].mxu0
      %v3904 = vadd.f32 %v3688, %v3903
      %v3905 = vpop.f32.mrb[0].mxu0
      %v3906 = vadd.f32 %v3692, %v3905
      %3907 = vdwg.mxu0
      %v3908 = vlaneseq
      %v3909 = vshrl.u32 %v3908, 7
      %v3910 = vsub.s32 4, %v3909
      %v3911 = vrot.slane %v569, %v3910
      %v3912 = vlaneseq
      %v3913 = vshrl.u32 %v3912, 7
      %v3914 = vsub.s32 4, %v3913
      %v3915 = vrot.slane %v570, %v3914
      %v3916 = vmul.f32 %v3911, %v3890
      %v3917 = vmul.f32 %v3915, %v3892
      %v3918 = vmul.f32 %v3911, %v3894
      %v3919 = vmul.f32 %v3915, %v3896
      %v3920 = vmul.f32 %v3911, %v3900
      %v3921 = vmul.f32 %v3915, %v3902
      %v3922 = vmul.f32 %v3911, %v3904
      %v3923 = vmul.f32 %v3915, %v3906
      %v3924 = vadd.f32 %v571, %v3916
      %v3925 = vadd.f32 %v572, %v3917
      %v3926 = vadd.f32 %v573, %v3918
      %v3927 = vadd.f32 %v574, %v3919
      %v3928 = vadd.f32 %v575, %v3920
      %v3929 = vadd.f32 %v576, %v3921
      %v3930 = vadd.f32 %v577, %v3922
      %v3931 = vadd.f32 %v578, %v3923
      %v3932 = vadd.f32 %v3924, %v3925
      %3933 = vadd.xlane.f32.xlu0 %v3932
      %v3934 = vpop.xlane.xlu0 %3933
      %v3935 = vadd.f32 %v3926, %v3927
      %3936 = vadd.xlane.f32.xlu0 %v3935
      %v3937 = vpop.xlane.xlu0 %3936
      %v3938 = vadd.f32 %v3928, %v3929
      %3939 = vadd.xlane.f32.xlu0 %v3938
      %v3940 = vpop.xlane.xlu0 %3939
      %v3941 = vadd.f32 %v3930, %v3931
      %3942 = vadd.xlane.f32.xlu0 %v3941
      %v3943 = vpop.xlane.xlu0 %3942
      %v3944 = vmul.f32 %v3934, %v591
      %v3945 = vmul.f32 %v3937, %v591
      %v3946 = vmul.f32 %v3940, %v591
      %v3947 = vmul.f32 %v3943, %v591
      %v3948 = vsub.f32 %v3924, %v3944
      %v3949 = vsub.f32 %v3925, %v3944
      %v3950 = vsub.f32 %v3926, %v3945
      %v3951 = vsub.f32 %v3927, %v3945
      %v3952 = vsub.f32 %v3928, %v3946
      %v3953 = vsub.f32 %v3929, %v3946
      %v3954 = vsub.f32 %v3930, %v3947
      %v3955 = vsub.f32 %v3931, %v3947
      %v3956 = vmul.f32 %v3948, %v3948
      %v3957 = vmul.f32 %v3949, %v3949
      %v3958 = vmul.f32 %v3950, %v3950
      %v3959 = vmul.f32 %v3951, %v3951
      %v3960 = vmul.f32 %v3952, %v3952
      %v3961 = vmul.f32 %v3953, %v3953
      %v3962 = vmul.f32 %v3954, %v3954
      %v3963 = vmul.f32 %v3955, %v3955
      %v3964 = vadd.f32 %v3956, %v3957
      %3965 = vadd.xlane.f32.xlu0 %v3964
      %v3966 = vpop.xlane.xlu0 %3965
      %v3967 = vadd.f32 %v3958, %v3959
      %3968 = vadd.xlane.f32.xlu0 %v3967
      %v3969 = vpop.xlane.xlu0 %3968
      %v3970 = vadd.f32 %v3960, %v3961
      %3971 = vadd.xlane.f32.xlu0 %v3970
      %v3972 = vpop.xlane.xlu0 %3971
      %v3973 = vadd.f32 %v3962, %v3963
      %3974 = vadd.xlane.f32.xlu0 %v3973
      %v3975 = vpop.xlane.xlu0 %3974
      %v3976 = vmul.f32 %v3966, %v591
      %v3977 = vmul.f32 %v3969, %v591
      %v3978 = vmul.f32 %v3972, %v591
      %v3979 = vmul.f32 %v3975, %v591
      %v3980 = vadd.f32 %v3976, 1e-05
      %v3981 = vadd.f32 %v3977, 1e-05
      %v3982 = vadd.f32 %v3978, 1e-05
      %v3983 = vadd.f32 %v3979, 1e-05
      %v3984 = vrsqrt.pop %v3980
      %v3985 = vrsqrt.pop %v3981
      %v3986 = vrsqrt.pop %v3982
      %v3987 = vrsqrt.pop %v3983
      %v3988 = vmul.f32 %v3948, %v3984
      %v3989 = vmul.f32 %v3949, %v3984
      %v3990 = vmul.f32 %v3950, %v3985
      %v3991 = vmul.f32 %v3951, %v3985
      %v3992 = vmul.f32 %v3952, %v3986
      %v3993 = vmul.f32 %v3953, %v3986
      %v3994 = vmul.f32 %v3954, %v3987
      %v3995 = vmul.f32 %v3955, %v3987
      %v3996 = vlaneseq
      %v3997 = vshrl.u32 %v3996, 7
      %v3998 = vsub.s32 2, %v3997
      %v3999 = vrot.slane %v569, %v3998
      %v4000 = vlaneseq
      %v4001 = vshrl.u32 %v4000, 7
      %v4002 = vsub.s32 2, %v4001
      %v4003 = vrot.slane %v570, %v4002
      %v4004 = vmul.f32 %v3988, %v3999
      %v4005 = vmul.f32 %v3989, %v4003
      %v4006 = vmul.f32 %v3990, %v3999
      %v4007 = vmul.f32 %v3991, %v4003
      %v4008 = vmul.f32 %v3992, %v3999
      %v4009 = vmul.f32 %v3993, %v4003
      %v4010 = vmul.f32 %v3994, %v3999
      %v4011 = vmul.f32 %v3995, %v4003
      %v4012 = vlaneseq
      %v4013 = vshrl.u32 %v4012, 7
      %v4014 = vsub.s32 3, %v4013
      %v4015 = vrot.slane %v569, %v4014
      %v4016 = vlaneseq
      %v4017 = vshrl.u32 %v4016, 7
      %v4018 = vsub.s32 3, %v4017
      %v4019 = vrot.slane %v570, %v4018
      %v4020 = vadd.f32 %v4004, %v4015
      %v4021 = vadd.f32 %v4005, %v4019
      %v4022 = vadd.f32 %v4006, %v4015
      %v4023 = vadd.f32 %v4007, %v4019
      %v4024 = vadd.f32 %v4008, %v4015
      %v4025 = vadd.f32 %v4009, %v4019
      %v4026 = vadd.f32 %v4010, %v4015
      %v4027 = vadd.f32 %v4011, %v4019
      %v4028 = vpack.c.bf16 %v4022, %v4020
      %v4029 = vpack.c.bf16 %v4023, %v4021
      %v4030 = vpack.c.bf16 %v4026, %v4024
      %v4031 = vpack.c.bf16 %v4027, %v4025
      %v4032 = vld [vmem:[%s522] sm:$0xff]
      %v4033 = vld [vmem:[%s522 + $0x8] sm:$0xff]
      %v4034 = vld [vmem:[%s522 + $0x10] sm:$0xff]
      %v4035 = vld [vmem:[%s522 + $0x18] sm:$0xff]
      %v4036 = vld [vmem:[%s522 + $0x20] sm:$0xff]
      %v4037 = vld [vmem:[%s522 + $0x28] sm:$0xff]
      %v4038 = vld [vmem:[%s522 + $0x30] sm:$0xff]
      %v4039 = vld [vmem:[%s522 + $0x38] sm:$0xff]
      %v4040 = vld [vmem:[%s522 + $0x40] sm:$0xff]
      %v4041 = vld [vmem:[%s522 + $0x48] sm:$0xff]
      %v4042 = vld [vmem:[%s522 + $0x50] sm:$0xff]
      %v4043 = vld [vmem:[%s522 + $0x58] sm:$0xff]
      %v4044 = vld [vmem:[%s522 + $0x60] sm:$0xff]
      %v4045 = vld [vmem:[%s522 + $0x68] sm:$0xff]
      %v4046 = vld [vmem:[%s522 + $0x70] sm:$0xff]
      %v4047 = vld [vmem:[%s522 + $0x78] sm:$0xff]
      %v4048 = vld [vmem:[%s522 + $0x80] sm:$0xff]
      %v4049 = vld [vmem:[%s522 + $0x88] sm:$0xff]
      %v4050 = vld [vmem:[%s522 + $0x90] sm:$0xff]
      %v4051 = vld [vmem:[%s522 + $0x98] sm:$0xff]
      %v4052 = vld [vmem:[%s522 + $0xa0] sm:$0xff]
      %v4053 = vld [vmem:[%s522 + $0xa8] sm:$0xff]
      %v4054 = vld [vmem:[%s522 + $0xb0] sm:$0xff]
      %v4055 = vld [vmem:[%s522 + $0xb8] sm:$0xff]
      %v4056 = vld [vmem:[%s522 + $0xc0] sm:$0xff]
      %v4057 = vld [vmem:[%s522 + $0xc8] sm:$0xff]
      %v4058 = vld [vmem:[%s522 + $0xd0] sm:$0xff]
      %v4059 = vld [vmem:[%s522 + $0xd8] sm:$0xff]
      %v4060 = vld [vmem:[%s522 + $0xe0] sm:$0xff]
      %v4061 = vld [vmem:[%s522 + $0xe8] sm:$0xff]
      %v4062 = vld [vmem:[%s522 + $0xf0] sm:$0xff]
      %v4063 = vld [vmem:[%s522 + $0xf8] sm:$0xff]
      %v4064 = vld [vmem:[%s522 + $0x100] sm:$0xff]
      %v4065 = vld [vmem:[%s522 + $0x108] sm:$0xff]
      %v4066 = vld [vmem:[%s522 + $0x110] sm:$0xff]
      %v4067 = vld [vmem:[%s522 + $0x118] sm:$0xff]
      %v4068 = vld [vmem:[%s522 + $0x120] sm:$0xff]
      %v4069 = vld [vmem:[%s522 + $0x128] sm:$0xff]
      %v4070 = vld [vmem:[%s522 + $0x130] sm:$0xff]
      %v4071 = vld [vmem:[%s522 + $0x138] sm:$0xff]
      %v4072 = vld [vmem:[%s522 + $0x140] sm:$0xff]
      %v4073 = vld [vmem:[%s522 + $0x148] sm:$0xff]
      %v4074 = vld [vmem:[%s522 + $0x150] sm:$0xff]
      %v4075 = vld [vmem:[%s522 + $0x158] sm:$0xff]
      %v4076 = vld [vmem:[%s522 + $0x160] sm:$0xff]
      %v4077 = vld [vmem:[%s522 + $0x168] sm:$0xff]
      %v4078 = vld [vmem:[%s522 + $0x170] sm:$0xff]
      %v4079 = vld [vmem:[%s522 + $0x178] sm:$0xff]
      %v4080 = vld [vmem:[%s522 + $0x180] sm:$0xff]
      %v4081 = vld [vmem:[%s522 + $0x188] sm:$0xff]
      %v4082 = vld [vmem:[%s522 + $0x190] sm:$0xff]
      %v4083 = vld [vmem:[%s522 + $0x198] sm:$0xff]
      %v4084 = vld [vmem:[%s522 + $0x1a0] sm:$0xff]
      %v4085 = vld [vmem:[%s522 + $0x1a8] sm:$0xff]
      %v4086 = vld [vmem:[%s522 + $0x1b0] sm:$0xff]
      %v4087 = vld [vmem:[%s522 + $0x1b8] sm:$0xff]
      %v4088 = vld [vmem:[%s522 + $0x1c0] sm:$0xff]
      %v4089 = vld [vmem:[%s522 + $0x1c8] sm:$0xff]
      %v4090 = vld [vmem:[%s522 + $0x1d0] sm:$0xff]
      %v4091 = vld [vmem:[%s522 + $0x1d8] sm:$0xff]
      %v4092 = vld [vmem:[%s522 + $0x1e0] sm:$0xff]
      %v4093 = vld [vmem:[%s522 + $0x1e8] sm:$0xff]
      %v4094 = vld [vmem:[%s522 + $0x1f0] sm:$0xff]
      %v4095 = vld [vmem:[%s522 + $0x1f8] sm:$0xff]
      %v4096 = vld [vmem:[%s522 + $0x200] sm:$0xff]
      %v4097 = vld [vmem:[%s522 + $0x208] sm:$0xff]
      %v4098 = vld [vmem:[%s522 + $0x210] sm:$0xff]
      %v4099 = vld [vmem:[%s522 + $0x218] sm:$0xff]
      %v4100 = vld [vmem:[%s522 + $0x220] sm:$0xff]
      %v4101 = vld [vmem:[%s522 + $0x228] sm:$0xff]
      %v4102 = vld [vmem:[%s522 + $0x230] sm:$0xff]
      %v4103 = vld [vmem:[%s522 + $0x238] sm:$0xff]
      %v4104 = vld [vmem:[%s522 + $0x240] sm:$0xff]
      %v4105 = vld [vmem:[%s522 + $0x248] sm:$0xff]
      %v4106 = vld [vmem:[%s522 + $0x250] sm:$0xff]
      %v4107 = vld [vmem:[%s522 + $0x258] sm:$0xff]
      %v4108 = vld [vmem:[%s522 + $0x260] sm:$0xff]
      %v4109 = vld [vmem:[%s522 + $0x268] sm:$0xff]
      %v4110 = vld [vmem:[%s522 + $0x270] sm:$0xff]
      %v4111 = vld [vmem:[%s522 + $0x278] sm:$0xff]
      %v4112 = vld [vmem:[%s522 + $0x280] sm:$0xff]
      %v4113 = vld [vmem:[%s522 + $0x288] sm:$0xff]
      %v4114 = vld [vmem:[%s522 + $0x290] sm:$0xff]
      %v4115 = vld [vmem:[%s522 + $0x298] sm:$0xff]
      %v4116 = vld [vmem:[%s522 + $0x2a0] sm:$0xff]
      %v4117 = vld [vmem:[%s522 + $0x2a8] sm:$0xff]
      %v4118 = vld [vmem:[%s522 + $0x2b0] sm:$0xff]
      %v4119 = vld [vmem:[%s522 + $0x2b8] sm:$0xff]
      %v4120 = vld [vmem:[%s522 + $0x2c0] sm:$0xff]
      %v4121 = vld [vmem:[%s522 + $0x2c8] sm:$0xff]
      %v4122 = vld [vmem:[%s522 + $0x2d0] sm:$0xff]
      %v4123 = vld [vmem:[%s522 + $0x2d8] sm:$0xff]
      %v4124 = vld [vmem:[%s522 + $0x2e0] sm:$0xff]
      %v4125 = vld [vmem:[%s522 + $0x2e8] sm:$0xff]
      %v4126 = vld [vmem:[%s522 + $0x2f0] sm:$0xff]
      %v4127 = vld [vmem:[%s522 + $0x2f8] sm:$0xff]
      %v4128 = vld [vmem:[%s522 + $0x300] sm:$0xff]
      %v4129 = vld [vmem:[%s522 + $0x308] sm:$0xff]
      %v4130 = vld [vmem:[%s522 + $0x310] sm:$0xff]
      %v4131 = vld [vmem:[%s522 + $0x318] sm:$0xff]
      %v4132 = vld [vmem:[%s522 + $0x320] sm:$0xff]
      %v4133 = vld [vmem:[%s522 + $0x328] sm:$0xff]
      %v4134 = vld [vmem:[%s522 + $0x330] sm:$0xff]
      %v4135 = vld [vmem:[%s522 + $0x338] sm:$0xff]
      %v4136 = vld [vmem:[%s522 + $0x340] sm:$0xff]
      %v4137 = vld [vmem:[%s522 + $0x348] sm:$0xff]
      %v4138 = vld [vmem:[%s522 + $0x350] sm:$0xff]
      %v4139 = vld [vmem:[%s522 + $0x358] sm:$0xff]
      %v4140 = vld [vmem:[%s522 + $0x360] sm:$0xff]
      %v4141 = vld [vmem:[%s522 + $0x368] sm:$0xff]
      %v4142 = vld [vmem:[%s522 + $0x370] sm:$0xff]
      %v4143 = vld [vmem:[%s522 + $0x378] sm:$0xff]
      %v4144 = vld [vmem:[%s522 + $0x380] sm:$0xff]
      %v4145 = vld [vmem:[%s522 + $0x388] sm:$0xff]
      %v4146 = vld [vmem:[%s522 + $0x390] sm:$0xff]
      %v4147 = vld [vmem:[%s522 + $0x398] sm:$0xff]
      %v4148 = vld [vmem:[%s522 + $0x3a0] sm:$0xff]
      %v4149 = vld [vmem:[%s522 + $0x3a8] sm:$0xff]
      %v4150 = vld [vmem:[%s522 + $0x3b0] sm:$0xff]
      %v4151 = vld [vmem:[%s522 + $0x3b8] sm:$0xff]
      %v4152 = vld [vmem:[%s522 + $0x3c0] sm:$0xff]
      %v4153 = vld [vmem:[%s522 + $0x3c8] sm:$0xff]
      %v4154 = vld [vmem:[%s522 + $0x3d0] sm:$0xff]
      %v4155 = vld [vmem:[%s522 + $0x3d8] sm:$0xff]
      %v4156 = vld [vmem:[%s522 + $0x3e0] sm:$0xff]
      %v4157 = vld [vmem:[%s522 + $0x3e8] sm:$0xff]
      %v4158 = vld [vmem:[%s522 + $0x3f0] sm:$0xff]
      %v4159 = vld [vmem:[%s522 + $0x3f8] sm:$0xff]
      %v4160 = vld [vmem:[%s526] sm:$0xff]
      %v4162 = vlaneseq
      %v4163 = vshrl.u32 %v4162, 7
      %v4164 = vsub.s32 0, %v4163
      %v4165 = vrot.slane %v4160, %v4164
      %v4166 = vlaneseq
      %v4167 = vshrl.u32 %v4166, 7
      %v4168 = vsub.s32 1, %v4167
      %v4169 = vrot.slane %v4160, %v4168
      %v4170 = vlaneseq
      %v4171 = vshrl.u32 %v4170, 7
      %v4172 = vsub.s32 2, %v4171
      %v4173 = vrot.slane %v4160, %v4172
      %v4174 = vlaneseq
      %v4175 = vshrl.u32 %v4174, 7
      %v4176 = vsub.s32 3, %v4175
      %v4177 = vrot.slane %v4160, %v4176
      %v4178 = vlaneseq
      %v4179 = vshrl.u32 %v4178, 7
      %v4180 = vsub.s32 4, %v4179
      %v4181 = vrot.slane %v4160, %v4180
      %v4182 = vlaneseq
      %v4183 = vshrl.u32 %v4182, 7
      %v4184 = vsub.s32 5, %v4183
      %v4185 = vrot.slane %v4160, %v4184
      %v4186 = vlaneseq
      %v4187 = vshrl.u32 %v4186, 7
      %v4188 = vsub.s32 6, %v4187
      %v4189 = vrot.slane %v4160, %v4188
      %v4190 = vlaneseq
      %v4191 = vshrl.u32 %v4190, 7
      %v4192 = vsub.s32 7, %v4191
      %v4193 = vrot.slane %v4160, %v4192
      %v4330 = vunpack.c.l.b16 %v4032
      %v4331 = vunpack.c.h.b16 %v4032
      %v4332 = vunpack.c.l.b16 %v4033
      %v4333 = vunpack.c.h.b16 %v4033
      %v4334 = vunpack.c.l.b16 %v4034
      %v4335 = vunpack.c.h.b16 %v4034
      %v4336 = vunpack.c.l.b16 %v4035
      %v4337 = vunpack.c.h.b16 %v4035
      %v4338 = vunpack.c.l.b16 %v4036
      %v4339 = vunpack.c.h.b16 %v4036
      %v4340 = vunpack.c.l.b16 %v4037
      %v4341 = vunpack.c.h.b16 %v4037
      %v4342 = vunpack.c.l.b16 %v4038
      %v4343 = vunpack.c.h.b16 %v4038
      %v4344 = vunpack.c.l.b16 %v4039
      %v4345 = vunpack.c.h.b16 %v4039
      %v4346 = vunpack.c.l.b16 %v4040
      %v4347 = vunpack.c.h.b16 %v4040
      %v4348 = vunpack.c.l.b16 %v4041
      %v4349 = vunpack.c.h.b16 %v4041
      %v4350 = vunpack.c.l.b16 %v4042
      %v4351 = vunpack.c.h.b16 %v4042
      %v4352 = vunpack.c.l.b16 %v4043
      %v4353 = vunpack.c.h.b16 %v4043
      %v4354 = vunpack.c.l.b16 %v4044
      %v4355 = vunpack.c.h.b16 %v4044
      %v4356 = vunpack.c.l.b16 %v4045
      %v4357 = vunpack.c.h.b16 %v4045
      %v4358 = vunpack.c.l.b16 %v4046
      %v4359 = vunpack.c.h.b16 %v4046
      %v4360 = vunpack.c.l.b16 %v4047
      %v4361 = vunpack.c.h.b16 %v4047
      %v4362 = vunpack.c.l.b16 %v4048
      %v4363 = vunpack.c.h.b16 %v4048
      %v4364 = vunpack.c.l.b16 %v4049
      %v4365 = vunpack.c.h.b16 %v4049
      %v4366 = vunpack.c.l.b16 %v4050
      %v4367 = vunpack.c.h.b16 %v4050
      %v4368 = vunpack.c.l.b16 %v4051
      %v4369 = vunpack.c.h.b16 %v4051
      %v4370 = vunpack.c.l.b16 %v4052
      %v4371 = vunpack.c.h.b16 %v4052
      %v4372 = vunpack.c.l.b16 %v4053
      %v4373 = vunpack.c.h.b16 %v4053
      %v4374 = vunpack.c.l.b16 %v4054
      %v4375 = vunpack.c.h.b16 %v4054
      %v4376 = vunpack.c.l.b16 %v4055
      %v4377 = vunpack.c.h.b16 %v4055
      %v4378 = vunpack.c.l.b16 %v4056
      %v4379 = vunpack.c.h.b16 %v4056
      %v4380 = vunpack.c.l.b16 %v4057
      %v4381 = vunpack.c.h.b16 %v4057
      %v4382 = vunpack.c.l.b16 %v4058
      %v4383 = vunpack.c.h.b16 %v4058
      %v4384 = vunpack.c.l.b16 %v4059
      %v4385 = vunpack.c.h.b16 %v4059
      %v4386 = vunpack.c.l.b16 %v4060
      %v4387 = vunpack.c.h.b16 %v4060
      %v4388 = vunpack.c.l.b16 %v4061
      %v4389 = vunpack.c.h.b16 %v4061
      %v4390 = vunpack.c.l.b16 %v4062
      %v4391 = vunpack.c.h.b16 %v4062
      %v4392 = vunpack.c.l.b16 %v4063
      %v4393 = vunpack.c.h.b16 %v4063
      %v4394 = vunpack.c.l.b16 %v4064
      %v4395 = vunpack.c.h.b16 %v4064
      %v4396 = vunpack.c.l.b16 %v4065
      %v4397 = vunpack.c.h.b16 %v4065
      %v4398 = vunpack.c.l.b16 %v4066
      %v4399 = vunpack.c.h.b16 %v4066
      %v4400 = vunpack.c.l.b16 %v4067
      %v4401 = vunpack.c.h.b16 %v4067
      %v4402 = vunpack.c.l.b16 %v4068
      %v4403 = vunpack.c.h.b16 %v4068
      %v4404 = vunpack.c.l.b16 %v4069
      %v4405 = vunpack.c.h.b16 %v4069
      %v4406 = vunpack.c.l.b16 %v4070
      %v4407 = vunpack.c.h.b16 %v4070
      %v4408 = vunpack.c.l.b16 %v4071
      %v4409 = vunpack.c.h.b16 %v4071
      %v4410 = vunpack.c.l.b16 %v4072
      %v4411 = vunpack.c.h.b16 %v4072
      %v4412 = vunpack.c.l.b16 %v4073
      %v4413 = vunpack.c.h.b16 %v4073
      %v4414 = vunpack.c.l.b16 %v4074
      %v4415 = vunpack.c.h.b16 %v4074
      %v4416 = vunpack.c.l.b16 %v4075
      %v4417 = vunpack.c.h.b16 %v4075
      %v4418 = vunpack.c.l.b16 %v4076
      %v4419 = vunpack.c.h.b16 %v4076
      %v4420 = vunpack.c.l.b16 %v4077
      %v4421 = vunpack.c.h.b16 %v4077
      %v4422 = vunpack.c.l.b16 %v4078
      %v4423 = vunpack.c.h.b16 %v4078
      %v4424 = vunpack.c.l.b16 %v4079
      %v4425 = vunpack.c.h.b16 %v4079
      %v4426 = vunpack.c.l.b16 %v4080
      %v4427 = vunpack.c.h.b16 %v4080
      %v4428 = vunpack.c.l.b16 %v4081
      %v4429 = vunpack.c.h.b16 %v4081
      %v4430 = vunpack.c.l.b16 %v4082
      %v4431 = vunpack.c.h.b16 %v4082
      %v4432 = vunpack.c.l.b16 %v4083
      %v4433 = vunpack.c.h.b16 %v4083
      %v4434 = vunpack.c.l.b16 %v4084
      %v4435 = vunpack.c.h.b16 %v4084
      %v4436 = vunpack.c.l.b16 %v4085
      %v4437 = vunpack.c.h.b16 %v4085
      %v4438 = vunpack.c.l.b16 %v4086
      %v4439 = vunpack.c.h.b16 %v4086
      %v4440 = vunpack.c.l.b16 %v4087
      %v4441 = vunpack.c.h.b16 %v4087
      %v4442 = vunpack.c.l.b16 %v4088
      %v4443 = vunpack.c.h.b16 %v4088
      %v4444 = vunpack.c.l.b16 %v4089
      %v4445 = vunpack.c.h.b16 %v4089
      %v4446 = vunpack.c.l.b16 %v4090
      %v4447 = vunpack.c.h.b16 %v4090
      %v4448 = vunpack.c.l.b16 %v4091
      %v4449 = vunpack.c.h.b16 %v4091
      %v4450 = vunpack.c.l.b16 %v4092
      %v4451 = vunpack.c.h.b16 %v4092
      %v4452 = vunpack.c.l.b16 %v4093
      %v4453 = vunpack.c.h.b16 %v4093
      %v4454 = vunpack.c.l.b16 %v4094
      %v4455 = vunpack.c.h.b16 %v4094
      %v4456 = vunpack.c.l.b16 %v4095
      %v4457 = vunpack.c.h.b16 %v4095
      %v4458 = vunpack.c.l.b16 %v4096
      %v4459 = vunpack.c.h.b16 %v4096
      %v4460 = vunpack.c.l.b16 %v4097
      %v4461 = vunpack.c.h.b16 %v4097
      %v4462 = vunpack.c.l.b16 %v4098
      %v4463 = vunpack.c.h.b16 %v4098
      %v4464 = vunpack.c.l.b16 %v4099
      %v4465 = vunpack.c.h.b16 %v4099
      %v4466 = vunpack.c.l.b16 %v4100
      %v4467 = vunpack.c.h.b16 %v4100
      %v4468 = vunpack.c.l.b16 %v4101
      %v4469 = vunpack.c.h.b16 %v4101
      %v4470 = vunpack.c.l.b16 %v4102
      %v4471 = vunpack.c.h.b16 %v4102
      %v4472 = vunpack.c.l.b16 %v4103
      %v4473 = vunpack.c.h.b16 %v4103
      %v4474 = vunpack.c.l.b16 %v4104
      %v4475 = vunpack.c.h.b16 %v4104
      %v4476 = vunpack.c.l.b16 %v4105
      %v4477 = vunpack.c.h.b16 %v4105
      %v4478 = vunpack.c.l.b16 %v4106
      %v4479 = vunpack.c.h.b16 %v4106
      %v4480 = vunpack.c.l.b16 %v4107
      %v4481 = vunpack.c.h.b16 %v4107
      %v4482 = vunpack.c.l.b16 %v4108
      %v4483 = vunpack.c.h.b16 %v4108
      %v4484 = vunpack.c.l.b16 %v4109
      %v4485 = vunpack.c.h.b16 %v4109
      %v4486 = vunpack.c.l.b16 %v4110
      %v4487 = vunpack.c.h.b16 %v4110
      %v4488 = vunpack.c.l.b16 %v4111
      %v4489 = vunpack.c.h.b16 %v4111
      %v4490 = vunpack.c.l.b16 %v4112
      %v4491 = vunpack.c.h.b16 %v4112
      %v4492 = vunpack.c.l.b16 %v4113
      %v4493 = vunpack.c.h.b16 %v4113
      %v4494 = vunpack.c.l.b16 %v4114
      %v4495 = vunpack.c.h.b16 %v4114
      %v4496 = vunpack.c.l.b16 %v4115
      %v4497 = vunpack.c.h.b16 %v4115
      %v4498 = vunpack.c.l.b16 %v4116
      %v4499 = vunpack.c.h.b16 %v4116
      %v4500 = vunpack.c.l.b16 %v4117
      %v4501 = vunpack.c.h.b16 %v4117
      %v4502 = vunpack.c.l.b16 %v4118
      %v4503 = vunpack.c.h.b16 %v4118
      %v4504 = vunpack.c.l.b16 %v4119
      %v4505 = vunpack.c.h.b16 %v4119
      %v4506 = vunpack.c.l.b16 %v4120
      %v4507 = vunpack.c.h.b16 %v4120
      %v4508 = vunpack.c.l.b16 %v4121
      %v4509 = vunpack.c.h.b16 %v4121
      %v4510 = vunpack.c.l.b16 %v4122
      %v4511 = vunpack.c.h.b16 %v4122
      %v4512 = vunpack.c.l.b16 %v4123
      %v4513 = vunpack.c.h.b16 %v4123
      %v4514 = vunpack.c.l.b16 %v4124
      %v4515 = vunpack.c.h.b16 %v4124
      %v4516 = vunpack.c.l.b16 %v4125
      %v4517 = vunpack.c.h.b16 %v4125
      %v4518 = vunpack.c.l.b16 %v4126
      %v4519 = vunpack.c.h.b16 %v4126
      %v4520 = vunpack.c.l.b16 %v4127
      %v4521 = vunpack.c.h.b16 %v4127
      %v4522 = vunpack.c.l.b16 %v4128
      %v4523 = vunpack.c.h.b16 %v4128
      %v4524 = vunpack.c.l.b16 %v4129
      %v4525 = vunpack.c.h.b16 %v4129
      %v4526 = vunpack.c.l.b16 %v4130
      %v4527 = vunpack.c.h.b16 %v4130
      %v4528 = vunpack.c.l.b16 %v4131
      %v4529 = vunpack.c.h.b16 %v4131
      %v4530 = vunpack.c.l.b16 %v4132
      %v4531 = vunpack.c.h.b16 %v4132
      %v4532 = vunpack.c.l.b16 %v4133
      %v4533 = vunpack.c.h.b16 %v4133
      %v4534 = vunpack.c.l.b16 %v4134
      %v4535 = vunpack.c.h.b16 %v4134
      %v4536 = vunpack.c.l.b16 %v4135
      %v4537 = vunpack.c.h.b16 %v4135
      %v4538 = vunpack.c.l.b16 %v4136
      %v4539 = vunpack.c.h.b16 %v4136
      %v4540 = vunpack.c.l.b16 %v4137
      %v4541 = vunpack.c.h.b16 %v4137
      %v4542 = vunpack.c.l.b16 %v4138
      %v4543 = vunpack.c.h.b16 %v4138
      %v4544 = vunpack.c.l.b16 %v4139
      %v4545 = vunpack.c.h.b16 %v4139
      %v4546 = vunpack.c.l.b16 %v4140
      %v4547 = vunpack.c.h.b16 %v4140
      %v4548 = vunpack.c.l.b16 %v4141
      %v4549 = vunpack.c.h.b16 %v4141
      %v4550 = vunpack.c.l.b16 %v4142
      %v4551 = vunpack.c.h.b16 %v4142
      %v4552 = vunpack.c.l.b16 %v4143
      %v4553 = vunpack.c.h.b16 %v4143
      %v4554 = vunpack.c.l.b16 %v4144
      %v4555 = vunpack.c.h.b16 %v4144
      %v4556 = vunpack.c.l.b16 %v4145
      %v4557 = vunpack.c.h.b16 %v4145
      %v4558 = vunpack.c.l.b16 %v4146
      %v4559 = vunpack.c.h.b16 %v4146
      %v4560 = vunpack.c.l.b16 %v4147
      %v4561 = vunpack.c.h.b16 %v4147
      %v4562 = vunpack.c.l.b16 %v4148
      %v4563 = vunpack.c.h.b16 %v4148
      %v4564 = vunpack.c.l.b16 %v4149
      %v4565 = vunpack.c.h.b16 %v4149
      %v4566 = vunpack.c.l.b16 %v4150
      %v4567 = vunpack.c.h.b16 %v4150
      %v4568 = vunpack.c.l.b16 %v4151
      %v4569 = vunpack.c.h.b16 %v4151
      %v4570 = vunpack.c.l.b16 %v4152
      %v4571 = vunpack.c.h.b16 %v4152
      %v4572 = vunpack.c.l.b16 %v4153
      %v4573 = vunpack.c.h.b16 %v4153
      %v4574 = vunpack.c.l.b16 %v4154
      %v4575 = vunpack.c.h.b16 %v4154
      %v4576 = vunpack.c.l.b16 %v4155
      %v4577 = vunpack.c.h.b16 %v4155
      %v4578 = vunpack.c.l.b16 %v4156
      %v4579 = vunpack.c.h.b16 %v4156
      %v4580 = vunpack.c.l.b16 %v4157
      %v4581 = vunpack.c.h.b16 %v4157
      %v4582 = vunpack.c.l.b16 %v4158
      %v4583 = vunpack.c.h.b16 %v4158
      %v4584 = vunpack.c.l.b16 %v4159
      %v4585 = vunpack.c.h.b16 %v4159
      %v4586 = vpack.c.b16 %v4338, %v4330
      %v4587 = vpack.c.b16 %v4339, %v4331
      %v4588 = vpack.c.b16 %v4340, %v4332
      %v4589 = vpack.c.b16 %v4341, %v4333
      %v4590 = vpack.c.b16 %v4342, %v4334
      %v4591 = vpack.c.b16 %v4343, %v4335
      %v4592 = vpack.c.b16 %v4344, %v4336
      %v4593 = vpack.c.b16 %v4345, %v4337
      %v4594 = vpack.c.b16 %v4354, %v4346
      %v4595 = vpack.c.b16 %v4355, %v4347
      %v4596 = vpack.c.b16 %v4356, %v4348
      %v4597 = vpack.c.b16 %v4357, %v4349
      %v4598 = vpack.c.b16 %v4358, %v4350
      %v4599 = vpack.c.b16 %v4359, %v4351
      %v4600 = vpack.c.b16 %v4360, %v4352
      %v4601 = vpack.c.b16 %v4361, %v4353
      %v4602 = vpack.c.b16 %v4370, %v4362
      %v4603 = vpack.c.b16 %v4371, %v4363
      %v4604 = vpack.c.b16 %v4372, %v4364
      %v4605 = vpack.c.b16 %v4373, %v4365
      %v4606 = vpack.c.b16 %v4374, %v4366
      %v4607 = vpack.c.b16 %v4375, %v4367
      %v4608 = vpack.c.b16 %v4376, %v4368
      %v4609 = vpack.c.b16 %v4377, %v4369
      %v4610 = vpack.c.b16 %v4386, %v4378
      %v4611 = vpack.c.b16 %v4387, %v4379
      %v4612 = vpack.c.b16 %v4388, %v4380
      %v4613 = vpack.c.b16 %v4389, %v4381
      %v4614 = vpack.c.b16 %v4390, %v4382
      %v4615 = vpack.c.b16 %v4391, %v4383
      %v4616 = vpack.c.b16 %v4392, %v4384
      %v4617 = vpack.c.b16 %v4393, %v4385
      %v4618 = vpack.c.b16 %v4402, %v4394
      %v4619 = vpack.c.b16 %v4403, %v4395
      %v4620 = vpack.c.b16 %v4404, %v4396
      %v4621 = vpack.c.b16 %v4405, %v4397
      %v4622 = vpack.c.b16 %v4406, %v4398
      %v4623 = vpack.c.b16 %v4407, %v4399
      %v4624 = vpack.c.b16 %v4408, %v4400
      %v4625 = vpack.c.b16 %v4409, %v4401
      %v4626 = vpack.c.b16 %v4418, %v4410
      %v4627 = vpack.c.b16 %v4419, %v4411
      %v4628 = vpack.c.b16 %v4420, %v4412
      %v4629 = vpack.c.b16 %v4421, %v4413
      %v4630 = vpack.c.b16 %v4422, %v4414
      %v4631 = vpack.c.b16 %v4423, %v4415
      %v4632 = vpack.c.b16 %v4424, %v4416
      %v4633 = vpack.c.b16 %v4425, %v4417
      %v4634 = vpack.c.b16 %v4434, %v4426
      %v4635 = vpack.c.b16 %v4435, %v4427
      %v4636 = vpack.c.b16 %v4436, %v4428
      %v4637 = vpack.c.b16 %v4437, %v4429
      %v4638 = vpack.c.b16 %v4438, %v4430
      %v4639 = vpack.c.b16 %v4439, %v4431
      %v4640 = vpack.c.b16 %v4440, %v4432
      %v4641 = vpack.c.b16 %v4441, %v4433
      %v4642 = vpack.c.b16 %v4450, %v4442
      %v4643 = vpack.c.b16 %v4451, %v4443
      %v4644 = vpack.c.b16 %v4452, %v4444
      %v4645 = vpack.c.b16 %v4453, %v4445
      %v4646 = vpack.c.b16 %v4454, %v4446
      %v4647 = vpack.c.b16 %v4455, %v4447
      %v4648 = vpack.c.b16 %v4456, %v4448
      %v4649 = vpack.c.b16 %v4457, %v4449
      %v4650 = vpack.c.b16 %v4466, %v4458
      %v4651 = vpack.c.b16 %v4467, %v4459
      %v4652 = vpack.c.b16 %v4468, %v4460
      %v4653 = vpack.c.b16 %v4469, %v4461
      %v4654 = vpack.c.b16 %v4470, %v4462
      %v4655 = vpack.c.b16 %v4471, %v4463
      %v4656 = vpack.c.b16 %v4472, %v4464
      %v4657 = vpack.c.b16 %v4473, %v4465
      %v4658 = vpack.c.b16 %v4482, %v4474
      %v4659 = vpack.c.b16 %v4483, %v4475
      %v4660 = vpack.c.b16 %v4484, %v4476
      %v4661 = vpack.c.b16 %v4485, %v4477
      %v4662 = vpack.c.b16 %v4486, %v4478
      %v4663 = vpack.c.b16 %v4487, %v4479
      %v4664 = vpack.c.b16 %v4488, %v4480
      %v4665 = vpack.c.b16 %v4489, %v4481
      %v4666 = vpack.c.b16 %v4498, %v4490
      %v4667 = vpack.c.b16 %v4499, %v4491
      %v4668 = vpack.c.b16 %v4500, %v4492
      %v4669 = vpack.c.b16 %v4501, %v4493
      %v4670 = vpack.c.b16 %v4502, %v4494
      %v4671 = vpack.c.b16 %v4503, %v4495
      %v4672 = vpack.c.b16 %v4504, %v4496
      %v4673 = vpack.c.b16 %v4505, %v4497
      %v4674 = vpack.c.b16 %v4514, %v4506
      %v4675 = vpack.c.b16 %v4515, %v4507
      %v4676 = vpack.c.b16 %v4516, %v4508
      %v4677 = vpack.c.b16 %v4517, %v4509
      %v4678 = vpack.c.b16 %v4518, %v4510
      %v4679 = vpack.c.b16 %v4519, %v4511
      %v4680 = vpack.c.b16 %v4520, %v4512
      %v4681 = vpack.c.b16 %v4521, %v4513
      %v4682 = vpack.c.b16 %v4530, %v4522
      %v4683 = vpack.c.b16 %v4531, %v4523
      %v4684 = vpack.c.b16 %v4532, %v4524
      %v4685 = vpack.c.b16 %v4533, %v4525
      %v4686 = vpack.c.b16 %v4534, %v4526
      %v4687 = vpack.c.b16 %v4535, %v4527
      %v4688 = vpack.c.b16 %v4536, %v4528
      %v4689 = vpack.c.b16 %v4537, %v4529
      %v4690 = vpack.c.b16 %v4546, %v4538
      %v4691 = vpack.c.b16 %v4547, %v4539
      %v4692 = vpack.c.b16 %v4548, %v4540
      %v4693 = vpack.c.b16 %v4549, %v4541
      %v4694 = vpack.c.b16 %v4550, %v4542
      %v4695 = vpack.c.b16 %v4551, %v4543
      %v4696 = vpack.c.b16 %v4552, %v4544
      %v4697 = vpack.c.b16 %v4553, %v4545
      %v4698 = vpack.c.b16 %v4562, %v4554
      %v4699 = vpack.c.b16 %v4563, %v4555
      %v4700 = vpack.c.b16 %v4564, %v4556
      %v4701 = vpack.c.b16 %v4565, %v4557
      %v4702 = vpack.c.b16 %v4566, %v4558
      %v4703 = vpack.c.b16 %v4567, %v4559
      %v4704 = vpack.c.b16 %v4568, %v4560
      %v4705 = vpack.c.b16 %v4569, %v4561
      %v4706 = vpack.c.b16 %v4578, %v4570
      %v4707 = vpack.c.b16 %v4579, %v4571
      %v4708 = vpack.c.b16 %v4580, %v4572
      %v4709 = vpack.c.b16 %v4581, %v4573
      %v4710 = vpack.c.b16 %v4582, %v4574
      %v4711 = vpack.c.b16 %v4583, %v4575
      %v4712 = vpack.c.b16 %v4584, %v4576
      %v4713 = vpack.c.b16 %v4585, %v4577
      %4842 = vmatprep.subr.bf16.mxu0 %v4587
      %4843 = vmatpush1.bf16.msra.mxu0 %v4586
      %4844 = vmatprep.subr.bf16.mxu0 %v4595
      %4845 = vmatpush1.bf16.msra.mxu0 %v4594
      %4846 = vmatprep.subr.bf16.mxu0 %v4603
      %4847 = vmatpush1.bf16.msra.mxu0 %v4602
      %4848 = vmatprep.subr.bf16.mxu0 %v4611
      %4849 = vmatpush1.bf16.msra.mxu0 %v4610
      %4850 = vmatprep.subr.bf16.mxu0 %v4619
      %4851 = vmatpush1.bf16.msra.mxu0 %v4618
      %4852 = vmatprep.subr.bf16.mxu0 %v4627
      %4853 = vmatpush1.bf16.msra.mxu0 %v4626
      %4854 = vmatprep.subr.bf16.mxu0 %v4635
      %4855 = vmatpush1.bf16.msra.mxu0 %v4634
      %4856 = vmatprep.subr.bf16.mxu0 %v4643
      %4857 = vmatpush1.bf16.msra.mxu0 %v4642
      %4858 = vmatprep.subr.bf16.mxu0 %v4651
      %4859 = vmatpush1.bf16.msra.mxu0 %v4650
      %4860 = vmatprep.subr.bf16.mxu0 %v4659
      %4861 = vmatpush1.bf16.msra.mxu0 %v4658
      %4862 = vmatprep.subr.bf16.mxu0 %v4667
      %4863 = vmatpush1.bf16.msra.mxu0 %v4666
      %4864 = vmatprep.subr.bf16.mxu0 %v4675
      %4865 = vmatpush1.bf16.msra.mxu0 %v4674
      %4866 = vmatprep.subr.bf16.mxu0 %v4683
      %4867 = vmatpush1.bf16.msra.mxu0 %v4682
      %4868 = vmatprep.subr.bf16.mxu0 %v4691
      %4869 = vmatpush1.bf16.msra.mxu0 %v4690
      %4870 = vmatprep.subr.bf16.mxu0 %v4699
      %4871 = vmatpush1.bf16.msra.mxu0 %v4698
      %4872 = vmatprep.subr.bf16.mxu0 %v4707
      %4873 = vmatpush1.bf16.msra.mxu0 %v4706
      %4874 = vmatprep.mubr.bf16.mxu0 %v4029
      %4875 = vmatmul.mubr.bf16.gmra.mrb[0].mxu0 %v4028
      %v4876 = vpop.f32.mrb[0].mxu0
      %v4877 = vadd.f32 %v4165, %v4876
      %v4878 = vpop.f32.mrb[0].mxu0
      %v4879 = vadd.f32 %v4169, %v4878
      %v4880 = vpop.f32.mrb[0].mxu0
      %v4881 = vadd.f32 %v4165, %v4880
      %v4882 = vpop.f32.mrb[0].mxu0
      %v4883 = vadd.f32 %v4169, %v4882
      %4884 = vmatprep.mubr.bf16.mxu0 %v4031
      %4885 = vmatmul.mubr.bf16.gmra.mrb[0].mxu0 %v4030
      %v4886 = vpop.f32.mrb[0].mxu0
      %v4887 = vadd.f32 %v4165, %v4886
      %v4888 = vpop.f32.mrb[0].mxu0
      %v4889 = vadd.f32 %v4169, %v4888
      %v4890 = vpop.f32.mrb[0].mxu0
      %v4891 = vadd.f32 %v4165, %v4890
      %v4892 = vpop.f32.mrb[0].mxu0
      %v4893 = vadd.f32 %v4169, %v4892
      %4894 = vdwg.mxu0
      %4895 = vmatprep.subr.bf16.mxu0 %v4589
      %4896 = vmatpush1.bf16.msra.mxu0 %v4588
      %4897 = vmatprep.subr.bf16.mxu0 %v4597
      %4898 = vmatpush1.bf16.msra.mxu0 %v4596
      %4899 = vmatprep.subr.bf16.mxu0 %v4605
      %4900 = vmatpush1.bf16.msra.mxu0 %v4604
      %4901 = vmatprep.subr.bf16.mxu0 %v4613
      %4902 = vmatpush1.bf16.msra.mxu0 %v4612
      %4903 = vmatprep.subr.bf16.mxu0 %v4621
      %4904 = vmatpush1.bf16.msra.mxu0 %v4620
      %4905 = vmatprep.subr.bf16.mxu0 %v4629
      %4906 = vmatpush1.bf16.msra.mxu0 %v4628
      %4907 = vmatprep.subr.bf16.mxu0 %v4637
      %4908 = vmatpush1.bf16.msra.mxu0 %v4636
      %4909 = vmatprep.subr.bf16.mxu0 %v4645
      %4910 = vmatpush1.bf16.msra.mxu0 %v4644
      %4911 = vmatprep.subr.bf16.mxu0 %v4653
      %4912 = vmatpush1.bf16.msra.mxu0 %v4652
      %4913 = vmatprep.subr.bf16.mxu0 %v4661
      %4914 = vmatpush1.bf16.msra.mxu0 %v4660
      %4915 = vmatprep.subr.bf16.mxu0 %v4669
      %4916 = vmatpush1.bf16.msra.mxu0 %v4668
      %4917 = vmatprep.subr.bf16.mxu0 %v4677
      %4918 = vmatpush1.bf16.msra.mxu0 %v4676
      %4919 = vmatprep.subr.bf16.mxu0 %v4685
      %4920 = vmatpush1.bf16.msra.mxu0 %v4684
      %4921 = vmatprep.subr.bf16.mxu0 %v4693
      %4922 = vmatpush1.bf16.msra.mxu0 %v4692
      %4923 = vmatprep.subr.bf16.mxu0 %v4701
      %4924 = vmatpush1.bf16.msra.mxu0 %v4700
      %4925 = vmatprep.subr.bf16.mxu0 %v4709
      %4926 = vmatpush1.bf16.msra.mxu0 %v4708
      %4927 = vmatprep.mubr.bf16.mxu0 %v4029
      %4928 = vmatmul.mubr.bf16.gmra.mrb[0].mxu0 %v4028
      %v4929 = vpop.f32.mrb[0].mxu0
      %v4930 = vadd.f32 %v4173, %v4929
      %v4931 = vpop.f32.mrb[0].mxu0
      %v4932 = vadd.f32 %v4177, %v4931
      %v4933 = vpop.f32.mrb[0].mxu0
      %v4934 = vadd.f32 %v4173, %v4933
      %v4935 = vpop.f32.mrb[0].mxu0
      %v4936 = vadd.f32 %v4177, %v4935
      %4937 = vmatprep.mubr.bf16.mxu0 %v4031
      %4938 = vmatmul.mubr.bf16.gmra.mrb[0].mxu0 %v4030
      %v4939 = vpop.f32.mrb[0].mxu0
      %v4940 = vadd.f32 %v4173, %v4939
      %v4941 = vpop.f32.mrb[0].mxu0
      %v4942 = vadd.f32 %v4177, %v4941
      %v4943 = vpop.f32.mrb[0].mxu0
      %v4944 = vadd.f32 %v4173, %v4943
      %v4945 = vpop.f32.mrb[0].mxu0
      %v4946 = vadd.f32 %v4177, %v4945
      %4947 = vdwg.mxu0
      %4948 = vmatprep.subr.bf16.mxu0 %v4591
      %4949 = vmatpush1.bf16.msra.mxu0 %v4590
      %4950 = vmatprep.subr.bf16.mxu0 %v4599
      %4951 = vmatpush1.bf16.msra.mxu0 %v4598
      %4952 = vmatprep.subr.bf16.mxu0 %v4607
      %4953 = vmatpush1.bf16.msra.mxu0 %v4606
      %4954 = vmatprep.subr.bf16.mxu0 %v4615
      %4955 = vmatpush1.bf16.msra.mxu0 %v4614
      %4956 = vmatprep.subr.bf16.mxu0 %v4623
      %4957 = vmatpush1.bf16.msra.mxu0 %v4622
      %4958 = vmatprep.subr.bf16.mxu0 %v4631
      %4959 = vmatpush1.bf16.msra.mxu0 %v4630
      %4960 = vmatprep.subr.bf16.mxu0 %v4639
      %4961 = vmatpush1.bf16.msra.mxu0 %v4638
      %4962 = vmatprep.subr.bf16.mxu0 %v4647
      %4963 = vmatpush1.bf16.msra.mxu0 %v4646
      %4964 = vmatprep.subr.bf16.mxu0 %v4655
      %4965 = vmatpush1.bf16.msra.mxu0 %v4654
      %4966 = vmatprep.subr.bf16.mxu0 %v4663
      %4967 = vmatpush1.bf16.msra.mxu0 %v4662
      %4968 = vmatprep.subr.bf16.mxu0 %v4671
      %4969 = vmatpush1.bf16.msra.mxu0 %v4670
      %4970 = vmatprep.subr.bf16.mxu0 %v4679
      %4971 = vmatpush1.bf16.msra.mxu0 %v4678
      %4972 = vmatprep.subr.bf16.mxu0 %v4687
      %4973 = vmatpush1.bf16.msra.mxu0 %v4686
      %4974 = vmatprep.subr.bf16.mxu0 %v4695
      %4975 = vmatpush1.bf16.msra.mxu0 %v4694
      %4976 = vmatprep.subr.bf16.mxu0 %v4703
      %4977 = vmatpush1.bf16.msra.mxu0 %v4702
      %4978 = vmatprep.subr.bf16.mxu0 %v4711
      %4979 = vmatpush1.bf16.msra.mxu0 %v4710
      %4980 = vmatprep.mubr.bf16.mxu0 %v4029
      %4981 = vmatmul.mubr.bf16.gmra.mrb[0].mxu0 %v4028
      %v4982 = vpop.f32.mrb[0].mxu0
      %v4983 = vadd.f32 %v4181, %v4982
      %v4984 = vpop.f32.mrb[0].mxu0
      %v4985 = vadd.f32 %v4185, %v4984
      %v4986 = vpop.f32.mrb[0].mxu0
      %v4987 = vadd.f32 %v4181, %v4986
      %v4988 = vpop.f32.mrb[0].mxu0
      %v4989 = vadd.f32 %v4185, %v4988
      %4990 = vmatprep.mubr.bf16.mxu0 %v4031
      %4991 = vmatmul.mubr.bf16.gmra.mrb[0].mxu0 %v4030
      %v4992 = vpop.f32.mrb[0].mxu0
      %v4993 = vadd.f32 %v4181, %v4992
      %v4994 = vpop.f32.mrb[0].mxu0
      %v4995 = vadd.f32 %v4185, %v4994
      %v4996 = vpop.f32.mrb[0].mxu0
      %v4997 = vadd.f32 %v4181, %v4996
      %v4998 = vpop.f32.mrb[0].mxu0
      %v4999 = vadd.f32 %v4185, %v4998
      %5000 = vdwg.mxu0
      %5001 = vmatprep.subr.bf16.mxu0 %v4593
      %5002 = vmatpush1.bf16.msra.mxu0 %v4592
      %5003 = vmatprep.subr.bf16.mxu0 %v4601
      %5004 = vmatpush1.bf16.msra.mxu0 %v4600
      %5005 = vmatprep.subr.bf16.mxu0 %v4609
      %5006 = vmatpush1.bf16.msra.mxu0 %v4608
      %5007 = vmatprep.subr.bf16.mxu0 %v4617
      %5008 = vmatpush1.bf16.msra.mxu0 %v4616
      %5009 = vmatprep.subr.bf16.mxu0 %v4625
      %5010 = vmatpush1.bf16.msra.mxu0 %v4624
      %5011 = vmatprep.subr.bf16.mxu0 %v4633
      %5012 = vmatpush1.bf16.msra.mxu0 %v4632
      %5013 = vmatprep.subr.bf16.mxu0 %v4641
      %5014 = vmatpush1.bf16.msra.mxu0 %v4640
      %5015 = vmatprep.subr.bf16.mxu0 %v4649
      %5016 = vmatpush1.bf16.msra.mxu0 %v4648
      %5017 = vmatprep.subr.bf16.mxu0 %v4657
      %5018 = vmatpush1.bf16.msra.mxu0 %v4656
      %5019 = vmatprep.subr.bf16.mxu0 %v4665
      %5020 = vmatpush1.bf16.msra.mxu0 %v4664
      %5021 = vmatprep.subr.bf16.mxu0 %v4673
      %5022 = vmatpush1.bf16.msra.mxu0 %v4672
      %5023 = vmatprep.subr.bf16.mxu0 %v4681
      %5024 = vmatpush1.bf16.msra.mxu0 %v4680
      %5025 = vmatprep.subr.bf16.mxu0 %v4689
      %5026 = vmatpush1.bf16.msra.mxu0 %v4688
      %5027 = vmatprep.subr.bf16.mxu0 %v4697
      %5028 = vmatpush1.bf16.msra.mxu0 %v4696
      %5029 = vmatprep.subr.bf16.mxu0 %v4705
      %5030 = vmatpush1.bf16.msra.mxu0 %v4704
      %5031 = vmatprep.subr.bf16.mxu0 %v4713
      %5032 = vmatpush1.bf16.msra.mxu0 %v4712
      %5033 = vmatprep.mubr.bf16.mxu0 %v4029
      %5034 = vmatmul.mubr.bf16.gmra.mrb[0].mxu0 %v4028
      %v5035 = vpop.f32.mrb[0].mxu0
      %v5036 = vadd.f32 %v4189, %v5035
      %v5037 = vpop.f32.mrb[0].mxu0
      %v5038 = vadd.f32 %v4193, %v5037
      %v5039 = vpop.f32.mrb[0].mxu0
      %v5040 = vadd.f32 %v4189, %v5039
      %v5041 = vpop.f32.mrb[0].mxu0
      %v5042 = vadd.f32 %v4193, %v5041
      %5043 = vmatprep.mubr.bf16.mxu0 %v4031
      %5044 = vmatmul.mubr.bf16.gmra.mrb[0].mxu0 %v4030
      %v5045 = vpop.f32.mrb[0].mxu0
      %v5046 = vadd.f32 %v4189, %v5045
      %v5047 = vpop.f32.mrb[0].mxu0
      %v5048 = vadd.f32 %v4193, %v5047
      %v5049 = vpop.f32.mrb[0].mxu0
      %v5050 = vadd.f32 %v4189, %v5049
      %v5051 = vpop.f32.mrb[0].mxu0
      %v5052 = vadd.f32 %v4193, %v5051
      %5053 = vdwg.mxu0
      %v5054 = vmul.f32 %v4877, 0.5
      %v5055 = vmul.f32 %v4879, 0.5
      %v5056 = vmul.f32 %v4930, 0.5
      %v5057 = vmul.f32 %v4932, 0.5
      %v5058 = vmul.f32 %v4983, 0.5
      %v5059 = vmul.f32 %v4985, 0.5
      %v5060 = vmul.f32 %v5036, 0.5
      %v5061 = vmul.f32 %v5038, 0.5
      %v5062 = vmul.f32 %v4881, 0.5
      %v5063 = vmul.f32 %v4883, 0.5
      %v5064 = vmul.f32 %v4934, 0.5
      %v5065 = vmul.f32 %v4936, 0.5
      %v5066 = vmul.f32 %v4987, 0.5
      %v5067 = vmul.f32 %v4989, 0.5
      %v5068 = vmul.f32 %v5040, 0.5
      %v5069 = vmul.f32 %v5042, 0.5
      %v5070 = vmul.f32 %v4887, 0.5
      %v5071 = vmul.f32 %v4889, 0.5
      %v5072 = vmul.f32 %v4940, 0.5
      %v5073 = vmul.f32 %v4942, 0.5
      %v5074 = vmul.f32 %v4993, 0.5
      %v5075 = vmul.f32 %v4995, 0.5
      %v5076 = vmul.f32 %v5046, 0.5
      %v5077 = vmul.f32 %v5048, 0.5
      %v5078 = vmul.f32 %v4891, 0.5
      %v5079 = vmul.f32 %v4893, 0.5
      %v5080 = vmul.f32 %v4944, 0.5
      %v5081 = vmul.f32 %v4946, 0.5
      %v5082 = vmul.f32 %v4997, 0.5
      %v5083 = vmul.f32 %v4999, 0.5
      %v5084 = vmul.f32 %v5050, 0.5
      %v5085 = vmul.f32 %v5052, 0.5
      %v5086 = vmul.f32 %v4877, 0.70710677
      %v5087 = vmul.f32 %v4879, 0.70710677
      %v5088 = vmul.f32 %v4930, 0.70710677
      %v5089 = vmul.f32 %v4932, 0.70710677
      %v5090 = vmul.f32 %v4983, 0.70710677
      %v5091 = vmul.f32 %v4985, 0.70710677
      %v5092 = vmul.f32 %v5036, 0.70710677
      %v5093 = vmul.f32 %v5038, 0.70710677
      %v5094 = vmul.f32 %v4881, 0.70710677
      %v5095 = vmul.f32 %v4883, 0.70710677
      %v5096 = vmul.f32 %v4934, 0.70710677
      %v5097 = vmul.f32 %v4936, 0.70710677
      %v5098 = vmul.f32 %v4987, 0.70710677
      %v5099 = vmul.f32 %v4989, 0.70710677
      %v5100 = vmul.f32 %v5040, 0.70710677
      %v5101 = vmul.f32 %v5042, 0.70710677
      %v5102 = vmul.f32 %v4887, 0.70710677
      %v5103 = vmul.f32 %v4889, 0.70710677
      %v5104 = vmul.f32 %v4940, 0.70710677
      %v5105 = vmul.f32 %v4942, 0.70710677
      %v5106 = vmul.f32 %v4993, 0.70710677
      %v5107 = vmul.f32 %v4995, 0.70710677
      %v5108 = vmul.f32 %v5046, 0.70710677
      %v5109 = vmul.f32 %v5048, 0.70710677
      %v5110 = vmul.f32 %v4891, 0.70710677
      %v5111 = vmul.f32 %v4893, 0.70710677
      %v5112 = vmul.f32 %v4944, 0.70710677
      %v5113 = vmul.f32 %v4946, 0.70710677
      %v5114 = vmul.f32 %v4997, 0.70710677
      %v5115 = vmul.f32 %v4999, 0.70710677
      %v5116 = vmul.f32 %v5050, 0.70710677
      %v5117 = vmul.f32 %v5052, 0.70710677
      %v5118 = vand.u32 2147483647, %v5086
      %v5119 = vand.u32 2147483647, %v5087
      %v5120 = vand.u32 2147483647, %v5088
      %v5121 = vand.u32 2147483647, %v5089
      %v5122 = vand.u32 2147483647, %v5090
      %v5123 = vand.u32 2147483647, %v5091
      %v5124 = vand.u32 2147483647, %v5092
      %v5125 = vand.u32 2147483647, %v5093
      %v5126 = vand.u32 2147483647, %v5094
      %v5127 = vand.u32 2147483647, %v5095
      %v5128 = vand.u32 2147483647, %v5096
      %v5129 = vand.u32 2147483647, %v5097
      %v5130 = vand.u32 2147483647, %v5098
      %v5131 = vand.u32 2147483647, %v5099
      %v5132 = vand.u32 2147483647, %v5100
      %v5133 = vand.u32 2147483647, %v5101
      %v5134 = vand.u32 2147483647, %v5102
      %v5135 = vand.u32 2147483647, %v5103
      %v5136 = vand.u32 2147483647, %v5104
      %v5137 = vand.u32 2147483647, %v5105
      %v5138 = vand.u32 2147483647, %v5106
      %v5139 = vand.u32 2147483647, %v5107
      %v5140 = vand.u32 2147483647, %v5108
      %v5141 = vand.u32 2147483647, %v5109
      %v5142 = vand.u32 2147483647, %v5110
      %v5143 = vand.u32 2147483647, %v5111
      %v5144 = vand.u32 2147483647, %v5112
      %v5145 = vand.u32 2147483647, %v5113
      %v5146 = vand.u32 2147483647, %v5114
      %v5147 = vand.u32 2147483647, %v5115
      %v5148 = vand.u32 2147483647, %v5116
      %v5149 = vand.u32 2147483647, %v5117
      %v5150 = vmul.f32 %v5118, 0.3275911
      %v5151 = vmul.f32 %v5119, 0.3275911
      %v5152 = vmul.f32 %v5120, 0.3275911
      %v5153 = vmul.f32 %v5121, 0.3275911
      %v5154 = vmul.f32 %v5122, 0.3275911
      %v5155 = vmul.f32 %v5123, 0.3275911
      %v5156 = vmul.f32 %v5124, 0.3275911
      %v5157 = vmul.f32 %v5125, 0.3275911
      %v5158 = vmul.f32 %v5126, 0.3275911
      %v5159 = vmul.f32 %v5127, 0.3275911
      %v5160 = vmul.f32 %v5128, 0.3275911
      %v5161 = vmul.f32 %v5129, 0.3275911
      %v5162 = vmul.f32 %v5130, 0.3275911
      %v5163 = vmul.f32 %v5131, 0.3275911
      %v5164 = vmul.f32 %v5132, 0.3275911
      %v5165 = vmul.f32 %v5133, 0.3275911
      %v5166 = vmul.f32 %v5134, 0.3275911
      %v5167 = vmul.f32 %v5135, 0.3275911
      %v5168 = vmul.f32 %v5136, 0.3275911
      %v5169 = vmul.f32 %v5137, 0.3275911
      %v5170 = vmul.f32 %v5138, 0.3275911
      %v5171 = vmul.f32 %v5139, 0.3275911
      %v5172 = vmul.f32 %v5140, 0.3275911
      %v5173 = vmul.f32 %v5141, 0.3275911
      %v5174 = vmul.f32 %v5142, 0.3275911
      %v5175 = vmul.f32 %v5143, 0.3275911
      %v5176 = vmul.f32 %v5144, 0.3275911
      %v5177 = vmul.f32 %v5145, 0.3275911
      %v5178 = vmul.f32 %v5146, 0.3275911
      %v5179 = vmul.f32 %v5147, 0.3275911
      %v5180 = vmul.f32 %v5148, 0.3275911
      %v5181 = vmul.f32 %v5149, 0.3275911
      %v5182 = vadd.f32 %v5150, 1.0
      %v5183 = vadd.f32 %v5151, 1.0
      %v5184 = vadd.f32 %v5152, 1.0
      %v5185 = vadd.f32 %v5153, 1.0
      %v5186 = vadd.f32 %v5154, 1.0
      %v5187 = vadd.f32 %v5155, 1.0
      %v5188 = vadd.f32 %v5156, 1.0
      %v5189 = vadd.f32 %v5157, 1.0
      %v5190 = vadd.f32 %v5158, 1.0
      %v5191 = vadd.f32 %v5159, 1.0
      %v5192 = vadd.f32 %v5160, 1.0
      %v5193 = vadd.f32 %v5161, 1.0
      %v5194 = vadd.f32 %v5162, 1.0
      %v5195 = vadd.f32 %v5163, 1.0
      %v5196 = vadd.f32 %v5164, 1.0
      %v5197 = vadd.f32 %v5165, 1.0
      %v5198 = vadd.f32 %v5166, 1.0
      %v5199 = vadd.f32 %v5167, 1.0
      %v5200 = vadd.f32 %v5168, 1.0
      %v5201 = vadd.f32 %v5169, 1.0
      %v5202 = vadd.f32 %v5170, 1.0
      %v5203 = vadd.f32 %v5171, 1.0
      %v5204 = vadd.f32 %v5172, 1.0
      %v5205 = vadd.f32 %v5173, 1.0
      %v5206 = vadd.f32 %v5174, 1.0
      %v5207 = vadd.f32 %v5175, 1.0
      %v5208 = vadd.f32 %v5176, 1.0
      %v5209 = vadd.f32 %v5177, 1.0
      %v5210 = vadd.f32 %v5178, 1.0
      %v5211 = vadd.f32 %v5179, 1.0
      %v5212 = vadd.f32 %v5180, 1.0
      %v5213 = vadd.f32 %v5181, 1.0
      %v5214 = vrcp.pop %v5182
      %v5215 = vmul.f32 1.0, %v5214
      %v5216 = vrcp.pop %v5183
      %v5217 = vmul.f32 1.0, %v5216
      %v5218 = vrcp.pop %v5184
      %v5219 = vmul.f32 1.0, %v5218
      %v5220 = vrcp.pop %v5185
      %v5221 = vmul.f32 1.0, %v5220
      %v5222 = vrcp.pop %v5186
      %v5223 = vmul.f32 1.0, %v5222
      %v5224 = vrcp.pop %v5187
      %v5225 = vmul.f32 1.0, %v5224
      %v5226 = vrcp.pop %v5188
      %v5227 = vmul.f32 1.0, %v5226
      %v5228 = vrcp.pop %v5189
      %v5229 = vmul.f32 1.0, %v5228
      %v5230 = vrcp.pop %v5190
      %v5231 = vmul.f32 1.0, %v5230
      %v5232 = vrcp.pop %v5191
      %v5233 = vmul.f32 1.0, %v5232
      %v5234 = vrcp.pop %v5192
      %v5235 = vmul.f32 1.0, %v5234
      %v5236 = vrcp.pop %v5193
      %v5237 = vmul.f32 1.0, %v5236
      %v5238 = vrcp.pop %v5194
      %v5239 = vmul.f32 1.0, %v5238
      %v5240 = vrcp.pop %v5195
      %v5241 = vmul.f32 1.0, %v5240
      %v5242 = vrcp.pop %v5196
      %v5243 = vmul.f32 1.0, %v5242
      %v5244 = vrcp.pop %v5197
      %v5245 = vmul.f32 1.0, %v5244
      %v5246 = vrcp.pop %v5198
      %v5247 = vmul.f32 1.0, %v5246
      %v5248 = vrcp.pop %v5199
      %v5249 = vmul.f32 1.0, %v5248
      %v5250 = vrcp.pop %v5200
      %v5251 = vmul.f32 1.0, %v5250
      %v5252 = vrcp.pop %v5201
      %v5253 = vmul.f32 1.0, %v5252
      %v5254 = vrcp.pop %v5202
      %v5255 = vmul.f32 1.0, %v5254
      %v5256 = vrcp.pop %v5203
      %v5257 = vmul.f32 1.0, %v5256
      %v5258 = vrcp.pop %v5204
      %v5259 = vmul.f32 1.0, %v5258
      %v5260 = vrcp.pop %v5205
      %v5261 = vmul.f32 1.0, %v5260
      %v5262 = vrcp.pop %v5206
      %v5263 = vmul.f32 1.0, %v5262
      %v5264 = vrcp.pop %v5207
      %v5265 = vmul.f32 1.0, %v5264
      %v5266 = vrcp.pop %v5208
      %v5267 = vmul.f32 1.0, %v5266
      %v5268 = vrcp.pop %v5209
      %v5269 = vmul.f32 1.0, %v5268
      %v5270 = vrcp.pop %v5210
      %v5271 = vmul.f32 1.0, %v5270
      %v5272 = vrcp.pop %v5211
      %v5273 = vmul.f32 1.0, %v5272
      %v5274 = vrcp.pop %v5212
      %v5275 = vmul.f32 1.0, %v5274
      %v5276 = vrcp.pop %v5213
      %v5277 = vmul.f32 1.0, %v5276
      %v5278 = vmul.f32 %v5215, 1.0614054
      %v5279 = vmul.f32 %v5217, 1.0614054
      %v5280 = vmul.f32 %v5219, 1.0614054
      %v5281 = vmul.f32 %v5221, 1.0614054
      %v5282 = vmul.f32 %v5223, 1.0614054
      %v5283 = vmul.f32 %v5225, 1.0614054
      %v5284 = vmul.f32 %v5227, 1.0614054
      %v5285 = vmul.f32 %v5229, 1.0614054
      %v5286 = vmul.f32 %v5231, 1.0614054
      %v5287 = vmul.f32 %v5233, 1.0614054
      %v5288 = vmul.f32 %v5235, 1.0614054
      %v5289 = vmul.f32 %v5237, 1.0614054
      %v5290 = vmul.f32 %v5239, 1.0614054
      %v5291 = vmul.f32 %v5241, 1.0614054
      %v5292 = vmul.f32 %v5243, 1.0614054
      %v5293 = vmul.f32 %v5245, 1.0614054
      %v5294 = vmul.f32 %v5247, 1.0614054
      %v5295 = vmul.f32 %v5249, 1.0614054
      %v5296 = vmul.f32 %v5251, 1.0614054
      %v5297 = vmul.f32 %v5253, 1.0614054
      %v5298 = vmul.f32 %v5255, 1.0614054
      %v5299 = vmul.f32 %v5257, 1.0614054
      %v5300 = vmul.f32 %v5259, 1.0614054
      %v5301 = vmul.f32 %v5261, 1.0614054
      %v5302 = vmul.f32 %v5263, 1.0614054
      %v5303 = vmul.f32 %v5265, 1.0614054
      %v5304 = vmul.f32 %v5267, 1.0614054
      %v5305 = vmul.f32 %v5269, 1.0614054
      %v5306 = vmul.f32 %v5271, 1.0614054
      %v5307 = vmul.f32 %v5273, 1.0614054
      %v5308 = vmul.f32 %v5275, 1.0614054
      %v5309 = vmul.f32 %v5277, 1.0614054
      %v5310 = vadd.f32 %v5278, -1.4531521
      %v5311 = vadd.f32 %v5279, -1.4531521
      %v5312 = vadd.f32 %v5280, -1.4531521
      %v5313 = vadd.f32 %v5281, -1.4531521
      %v5314 = vadd.f32 %v5282, -1.4531521
      %v5315 = vadd.f32 %v5283, -1.4531521
      %v5316 = vadd.f32 %v5284, -1.4531521
      %v5317 = vadd.f32 %v5285, -1.4531521
      %v5318 = vadd.f32 %v5286, -1.4531521
      %v5319 = vadd.f32 %v5287, -1.4531521
      %v5320 = vadd.f32 %v5288, -1.4531521
      %v5321 = vadd.f32 %v5289, -1.4531521
      %v5322 = vadd.f32 %v5290, -1.4531521
      %v5323 = vadd.f32 %v5291, -1.4531521
      %v5324 = vadd.f32 %v5292, -1.4531521
      %v5325 = vadd.f32 %v5293, -1.4531521
      %v5326 = vadd.f32 %v5294, -1.4531521
      %v5327 = vadd.f32 %v5295, -1.4531521
      %v5328 = vadd.f32 %v5296, -1.4531521
      %v5329 = vadd.f32 %v5297, -1.4531521
      %v5330 = vadd.f32 %v5298, -1.4531521
      %v5331 = vadd.f32 %v5299, -1.4531521
      %v5332 = vadd.f32 %v5300, -1.4531521
      %v5333 = vadd.f32 %v5301, -1.4531521
      %v5334 = vadd.f32 %v5302, -1.4531521
      %v5335 = vadd.f32 %v5303, -1.4531521
      %v5336 = vadd.f32 %v5304, -1.4531521
      %v5337 = vadd.f32 %v5305, -1.4531521
      %v5338 = vadd.f32 %v5306, -1.4531521
      %v5339 = vadd.f32 %v5307, -1.4531521
      %v5340 = vadd.f32 %v5308, -1.4531521
      %v5341 = vadd.f32 %v5309, -1.4531521
      %v5342 = vmul.f32 %v5310, %v5215
      %v5343 = vmul.f32 %v5311, %v5217
      %v5344 = vmul.f32 %v5312, %v5219
      %v5345 = vmul.f32 %v5313, %v5221
      %v5346 = vmul.f32 %v5314, %v5223
      %v5347 = vmul.f32 %v5315, %v5225
      %v5348 = vmul.f32 %v5316, %v5227
      %v5349 = vmul.f32 %v5317, %v5229
      %v5350 = vmul.f32 %v5318, %v5231
      %v5351 = vmul.f32 %v5319, %v5233
      %v5352 = vmul.f32 %v5320, %v5235
      %v5353 = vmul.f32 %v5321, %v5237
      %v5354 = vmul.f32 %v5322, %v5239
      %v5355 = vmul.f32 %v5323, %v5241
      %v5356 = vmul.f32 %v5324, %v5243
      %v5357 = vmul.f32 %v5325, %v5245
      %v5358 = vmul.f32 %v5326, %v5247
      %v5359 = vmul.f32 %v5327, %v5249
      %v5360 = vmul.f32 %v5328, %v5251
      %v5361 = vmul.f32 %v5329, %v5253
      %v5362 = vmul.f32 %v5330, %v5255
      %v5363 = vmul.f32 %v5331, %v5257
      %v5364 = vmul.f32 %v5332, %v5259
      %v5365 = vmul.f32 %v5333, %v5261
      %v5366 = vmul.f32 %v5334, %v5263
      %v5367 = vmul.f32 %v5335, %v5265
      %v5368 = vmul.f32 %v5336, %v5267
      %v5369 = vmul.f32 %v5337, %v5269
      %v5370 = vmul.f32 %v5338, %v5271
      %v5371 = vmul.f32 %v5339, %v5273
      %v5372 = vmul.f32 %v5340, %v5275
      %v5373 = vmul.f32 %v5341, %v5277
      %v5374 = vadd.f32 %v5342, 1.4214138
      %v5375 = vadd.f32 %v5343, 1.4214138
      %v5376 = vadd.f32 %v5344, 1.4214138
      %v5377 = vadd.f32 %v5345, 1.4214138
      %v5378 = vadd.f32 %v5346, 1.4214138
      %v5379 = vadd.f32 %v5347, 1.4214138
      %v5380 = vadd.f32 %v5348, 1.4214138
      %v5381 = vadd.f32 %v5349, 1.4214138
      %v5382 = vadd.f32 %v5350, 1.4214138
      %v5383 = vadd.f32 %v5351, 1.4214138
      %v5384 = vadd.f32 %v5352, 1.4214138
      %v5385 = vadd.f32 %v5353, 1.4214138
      %v5386 = vadd.f32 %v5354, 1.4214138
      %v5387 = vadd.f32 %v5355, 1.4214138
      %v5388 = vadd.f32 %v5356, 1.4214138
      %v5389 = vadd.f32 %v5357, 1.4214138
      %v5390 = vadd.f32 %v5358, 1.4214138
      %v5391 = vadd.f32 %v5359, 1.4214138
      %v5392 = vadd.f32 %v5360, 1.4214138
      %v5393 = vadd.f32 %v5361, 1.4214138
      %v5394 = vadd.f32 %v5362, 1.4214138
      %v5395 = vadd.f32 %v5363, 1.4214138
      %v5396 = vadd.f32 %v5364, 1.4214138
      %v5397 = vadd.f32 %v5365, 1.4214138
      %v5398 = vadd.f32 %v5366, 1.4214138
      %v5399 = vadd.f32 %v5367, 1.4214138
      %v5400 = vadd.f32 %v5368, 1.4214138
      %v5401 = vadd.f32 %v5369, 1.4214138
      %v5402 = vadd.f32 %v5370, 1.4214138
      %v5403 = vadd.f32 %v5371, 1.4214138
      %v5404 = vadd.f32 %v5372, 1.4214138
      %v5405 = vadd.f32 %v5373, 1.4214138
      %v5406 = vmul.f32 %v5374, %v5215
      %v5407 = vmul.f32 %v5375, %v5217
      %v5408 = vmul.f32 %v5376, %v5219
      %v5409 = vmul.f32 %v5377, %v5221
      %v5410 = vmul.f32 %v5378, %v5223
      %v5411 = vmul.f32 %v5379, %v5225
      %v5412 = vmul.f32 %v5380, %v5227
      %v5413 = vmul.f32 %v5381, %v5229
      %v5414 = vmul.f32 %v5382, %v5231
      %v5415 = vmul.f32 %v5383, %v5233
      %v5416 = vmul.f32 %v5384, %v5235
      %v5417 = vmul.f32 %v5385, %v5237
      %v5418 = vmul.f32 %v5386, %v5239
      %v5419 = vmul.f32 %v5387, %v5241
      %v5420 = vmul.f32 %v5388, %v5243
      %v5421 = vmul.f32 %v5389, %v5245
      %v5422 = vmul.f32 %v5390, %v5247
      %v5423 = vmul.f32 %v5391, %v5249
      %v5424 = vmul.f32 %v5392, %v5251
      %v5425 = vmul.f32 %v5393, %v5253
      %v5426 = vmul.f32 %v5394, %v5255
      %v5427 = vmul.f32 %v5395, %v5257
      %v5428 = vmul.f32 %v5396, %v5259
      %v5429 = vmul.f32 %v5397, %v5261
      %v5430 = vmul.f32 %v5398, %v5263
      %v5431 = vmul.f32 %v5399, %v5265
      %v5432 = vmul.f32 %v5400, %v5267
      %v5433 = vmul.f32 %v5401, %v5269
      %v5434 = vmul.f32 %v5402, %v5271
      %v5435 = vmul.f32 %v5403, %v5273
      %v5436 = vmul.f32 %v5404, %v5275
      %v5437 = vmul.f32 %v5405, %v5277
      %v5438 = vadd.f32 %v5406, -0.28449672
      %v5439 = vadd.f32 %v5407, -0.28449672
      %v5440 = vadd.f32 %v5408, -0.28449672
      %v5441 = vadd.f32 %v5409, -0.28449672
      %v5442 = vadd.f32 %v5410, -0.28449672
      %v5443 = vadd.f32 %v5411, -0.28449672
      %v5444 = vadd.f32 %v5412, -0.28449672
      %v5445 = vadd.f32 %v5413, -0.28449672
      %v5446 = vadd.f32 %v5414, -0.28449672
      %v5447 = vadd.f32 %v5415, -0.28449672
      %v5448 = vadd.f32 %v5416, -0.28449672
      %v5449 = vadd.f32 %v5417, -0.28449672
      %v5450 = vadd.f32 %v5418, -0.28449672
      %v5451 = vadd.f32 %v5419, -0.28449672
      %v5452 = vadd.f32 %v5420, -0.28449672
      %v5453 = vadd.f32 %v5421, -0.28449672
      %v5454 = vadd.f32 %v5422, -0.28449672
      %v5455 = vadd.f32 %v5423, -0.28449672
      %v5456 = vadd.f32 %v5424, -0.28449672
      %v5457 = vadd.f32 %v5425, -0.28449672
      %v5458 = vadd.f32 %v5426, -0.28449672
      %v5459 = vadd.f32 %v5427, -0.28449672
      %v5460 = vadd.f32 %v5428, -0.28449672
      %v5461 = vadd.f32 %v5429, -0.28449672
      %v5462 = vadd.f32 %v5430, -0.28449672
      %v5463 = vadd.f32 %v5431, -0.28449672
      %v5464 = vadd.f32 %v5432, -0.28449672
      %v5465 = vadd.f32 %v5433, -0.28449672
      %v5466 = vadd.f32 %v5434, -0.28449672
      %v5467 = vadd.f32 %v5435, -0.28449672
      %v5468 = vadd.f32 %v5436, -0.28449672
      %v5469 = vadd.f32 %v5437, -0.28449672
      %v5470 = vmul.f32 %v5438, %v5215
      %v5471 = vmul.f32 %v5439, %v5217
      %v5472 = vmul.f32 %v5440, %v5219
      %v5473 = vmul.f32 %v5441, %v5221
      %v5474 = vmul.f32 %v5442, %v5223
      %v5475 = vmul.f32 %v5443, %v5225
      %v5476 = vmul.f32 %v5444, %v5227
      %v5477 = vmul.f32 %v5445, %v5229
      %v5478 = vmul.f32 %v5446, %v5231
      %v5479 = vmul.f32 %v5447, %v5233
      %v5480 = vmul.f32 %v5448, %v5235
      %v5481 = vmul.f32 %v5449, %v5237
      %v5482 = vmul.f32 %v5450, %v5239
      %v5483 = vmul.f32 %v5451, %v5241
      %v5484 = vmul.f32 %v5452, %v5243
      %v5485 = vmul.f32 %v5453, %v5245
      %v5486 = vmul.f32 %v5454, %v5247
      %v5487 = vmul.f32 %v5455, %v5249
      %v5488 = vmul.f32 %v5456, %v5251
      %v5489 = vmul.f32 %v5457, %v5253
      %v5490 = vmul.f32 %v5458, %v5255
      %v5491 = vmul.f32 %v5459, %v5257
      %v5492 = vmul.f32 %v5460, %v5259
      %v5493 = vmul.f32 %v5461, %v5261
      %v5494 = vmul.f32 %v5462, %v5263
      %v5495 = vmul.f32 %v5463, %v5265
      %v5496 = vmul.f32 %v5464, %v5267
      %v5497 = vmul.f32 %v5465, %v5269
      %v5498 = vmul.f32 %v5466, %v5271
      %v5499 = vmul.f32 %v5467, %v5273
      %v5500 = vmul.f32 %v5468, %v5275
      %v5501 = vmul.f32 %v5469, %v5277
      %v5502 = vadd.f32 %v5470, 0.2548296
      %v5503 = vadd.f32 %v5471, 0.2548296
      %v5504 = vadd.f32 %v5472, 0.2548296
      %v5505 = vadd.f32 %v5473, 0.2548296
      %v5506 = vadd.f32 %v5474, 0.2548296
      %v5507 = vadd.f32 %v5475, 0.2548296
      %v5508 = vadd.f32 %v5476, 0.2548296
      %v5509 = vadd.f32 %v5477, 0.2548296
      %v5510 = vadd.f32 %v5478, 0.2548296
      %v5511 = vadd.f32 %v5479, 0.2548296
      %v5512 = vadd.f32 %v5480, 0.2548296
      %v5513 = vadd.f32 %v5481, 0.2548296
      %v5514 = vadd.f32 %v5482, 0.2548296
      %v5515 = vadd.f32 %v5483, 0.2548296
      %v5516 = vadd.f32 %v5484, 0.2548296
      %v5517 = vadd.f32 %v5485, 0.2548296
      %v5518 = vadd.f32 %v5486, 0.2548296
      %v5519 = vadd.f32 %v5487, 0.2548296
      %v5520 = vadd.f32 %v5488, 0.2548296
      %v5521 = vadd.f32 %v5489, 0.2548296
      %v5522 = vadd.f32 %v5490, 0.2548296
      %v5523 = vadd.f32 %v5491, 0.2548296
      %v5524 = vadd.f32 %v5492, 0.2548296
      %v5525 = vadd.f32 %v5493, 0.2548296
      %v5526 = vadd.f32 %v5494, 0.2548296
      %v5527 = vadd.f32 %v5495, 0.2548296
      %v5528 = vadd.f32 %v5496, 0.2548296
      %v5529 = vadd.f32 %v5497, 0.2548296
      %v5530 = vadd.f32 %v5498, 0.2548296
      %v5531 = vadd.f32 %v5499, 0.2548296
      %v5532 = vadd.f32 %v5500, 0.2548296
      %v5533 = vadd.f32 %v5501, 0.2548296
      %v5534 = vmul.f32 %v5502, %v5215
      %v5535 = vmul.f32 %v5503, %v5217
      %v5536 = vmul.f32 %v5504, %v5219
      %v5537 = vmul.f32 %v5505, %v5221
      %v5538 = vmul.f32 %v5506, %v5223
      %v5539 = vmul.f32 %v5507, %v5225
      %v5540 = vmul.f32 %v5508, %v5227
      %v5541 = vmul.f32 %v5509, %v5229
      %v5542 = vmul.f32 %v5510, %v5231
      %v5543 = vmul.f32 %v5511, %v5233
      %v5544 = vmul.f32 %v5512, %v5235
      %v5545 = vmul.f32 %v5513, %v5237
      %v5546 = vmul.f32 %v5514, %v5239
      %v5547 = vmul.f32 %v5515, %v5241
      %v5548 = vmul.f32 %v5516, %v5243
      %v5549 = vmul.f32 %v5517, %v5245
      %v5550 = vmul.f32 %v5518, %v5247
      %v5551 = vmul.f32 %v5519, %v5249
      %v5552 = vmul.f32 %v5520, %v5251
      %v5553 = vmul.f32 %v5521, %v5253
      %v5554 = vmul.f32 %v5522, %v5255
      %v5555 = vmul.f32 %v5523, %v5257
      %v5556 = vmul.f32 %v5524, %v5259
      %v5557 = vmul.f32 %v5525, %v5261
      %v5558 = vmul.f32 %v5526, %v5263
      %v5559 = vmul.f32 %v5527, %v5265
      %v5560 = vmul.f32 %v5528, %v5267
      %v5561 = vmul.f32 %v5529, %v5269
      %v5562 = vmul.f32 %v5530, %v5271
      %v5563 = vmul.f32 %v5531, %v5273
      %v5564 = vmul.f32 %v5532, %v5275
      %v5565 = vmul.f32 %v5533, %v5277
      %v5566 = vsub.f32 0.0, %v5118
      %v5567 = vsub.f32 0.0, %v5119
      %v5568 = vsub.f32 0.0, %v5120
      %v5569 = vsub.f32 0.0, %v5121
      %v5570 = vsub.f32 0.0, %v5122
      %v5571 = vsub.f32 0.0, %v5123
      %v5572 = vsub.f32 0.0, %v5124
      %v5573 = vsub.f32 0.0, %v5125
      %v5574 = vsub.f32 0.0, %v5126
      %v5575 = vsub.f32 0.0, %v5127
      %v5576 = vsub.f32 0.0, %v5128
      %v5577 = vsub.f32 0.0, %v5129
      %v5578 = vsub.f32 0.0, %v5130
      %v5579 = vsub.f32 0.0, %v5131
      %v5580 = vsub.f32 0.0, %v5132
      %v5581 = vsub.f32 0.0, %v5133
      %v5582 = vsub.f32 0.0, %v5134
      %v5583 = vsub.f32 0.0, %v5135
      %v5584 = vsub.f32 0.0, %v5136
      %v5585 = vsub.f32 0.0, %v5137
      %v5586 = vsub.f32 0.0, %v5138
      %v5587 = vsub.f32 0.0, %v5139
      %v5588 = vsub.f32 0.0, %v5140
      %v5589 = vsub.f32 0.0, %v5141
      %v5590 = vsub.f32 0.0, %v5142
      %v5591 = vsub.f32 0.0, %v5143
      %v5592 = vsub.f32 0.0, %v5144
      %v5593 = vsub.f32 0.0, %v5145
      %v5594 = vsub.f32 0.0, %v5146
      %v5595 = vsub.f32 0.0, %v5147
      %v5596 = vsub.f32 0.0, %v5148
      %v5597 = vsub.f32 0.0, %v5149
      %v5598 = vmul.f32 %v5566, %v5118
      %v5599 = vmul.f32 %v5567, %v5119
      %v5600 = vmul.f32 %v5568, %v5120
      %v5601 = vmul.f32 %v5569, %v5121
      %v5602 = vmul.f32 %v5570, %v5122
      %v5603 = vmul.f32 %v5571, %v5123
      %v5604 = vmul.f32 %v5572, %v5124
      %v5605 = vmul.f32 %v5573, %v5125
      %v5606 = vmul.f32 %v5574, %v5126
      %v5607 = vmul.f32 %v5575, %v5127
      %v5608 = vmul.f32 %v5576, %v5128
      %v5609 = vmul.f32 %v5577, %v5129
      %v5610 = vmul.f32 %v5578, %v5130
      %v5611 = vmul.f32 %v5579, %v5131
      %v5612 = vmul.f32 %v5580, %v5132
      %v5613 = vmul.f32 %v5581, %v5133
      %v5614 = vmul.f32 %v5582, %v5134
      %v5615 = vmul.f32 %v5583, %v5135
      %v5616 = vmul.f32 %v5584, %v5136
      %v5617 = vmul.f32 %v5585, %v5137
      %v5618 = vmul.f32 %v5586, %v5138
      %v5619 = vmul.f32 %v5587, %v5139
      %v5620 = vmul.f32 %v5588, %v5140
      %v5621 = vmul.f32 %v5589, %v5141
      %v5622 = vmul.f32 %v5590, %v5142
      %v5623 = vmul.f32 %v5591, %v5143
      %v5624 = vmul.f32 %v5592, %v5144
      %v5625 = vmul.f32 %v5593, %v5145
      %v5626 = vmul.f32 %v5594, %v5146
      %v5627 = vmul.f32 %v5595, %v5147
      %v5628 = vmul.f32 %v5596, %v5148
      %v5629 = vmul.f32 %v5597, %v5149
      %v5630 = vmul.f32 %v5598, 1.442695
      %v5631 = vpow.pop %v5630
      %v5632 = vmul.f32 %v5599, 1.442695
      %v5633 = vpow.pop %v5632
      %v5634 = vmul.f32 %v5600, 1.442695
      %v5635 = vpow.pop %v5634
      %v5636 = vmul.f32 %v5601, 1.442695
      %v5637 = vpow.pop %v5636
      %v5638 = vmul.f32 %v5602, 1.442695
      %v5639 = vpow.pop %v5638
      %v5640 = vmul.f32 %v5603, 1.442695
      %v5641 = vpow.pop %v5640
      %v5642 = vmul.f32 %v5604, 1.442695
      %v5643 = vpow.pop %v5642
      %v5644 = vmul.f32 %v5605, 1.442695
      %v5645 = vpow.pop %v5644
      %v5646 = vmul.f32 %v5606, 1.442695
      %v5647 = vpow.pop %v5646
      %v5648 = vmul.f32 %v5607, 1.442695
      %v5649 = vpow.pop %v5648
      %v5650 = vmul.f32 %v5608, 1.442695
      %v5651 = vpow.pop %v5650
      %v5652 = vmul.f32 %v5609, 1.442695
      %v5653 = vpow.pop %v5652
      %v5654 = vmul.f32 %v5610, 1.442695
      %v5655 = vpow.pop %v5654
      %v5656 = vmul.f32 %v5611, 1.442695
      %v5657 = vpow.pop %v5656
      %v5658 = vmul.f32 %v5612, 1.442695
      %v5659 = vpow.pop %v5658
      %v5660 = vmul.f32 %v5613, 1.442695
      %v5661 = vpow.pop %v5660
      %v5662 = vmul.f32 %v5614, 1.442695
      %v5663 = vpow.pop %v5662
      %v5664 = vmul.f32 %v5615, 1.442695
      %v5665 = vpow.pop %v5664
      %v5666 = vmul.f32 %v5616, 1.442695
      %v5667 = vpow.pop %v5666
      %v5668 = vmul.f32 %v5617, 1.442695
      %v5669 = vpow.pop %v5668
      %v5670 = vmul.f32 %v5618, 1.442695
      %v5671 = vpow.pop %v5670
      %v5672 = vmul.f32 %v5619, 1.442695
      %v5673 = vpow.pop %v5672
      %v5674 = vmul.f32 %v5620, 1.442695
      %v5675 = vpow.pop %v5674
      %v5676 = vmul.f32 %v5621, 1.442695
      %v5677 = vpow.pop %v5676
      %v5678 = vmul.f32 %v5622, 1.442695
      %v5679 = vpow.pop %v5678
      %v5680 = vmul.f32 %v5623, 1.442695
      %v5681 = vpow.pop %v5680
      %v5682 = vmul.f32 %v5624, 1.442695
      %v5683 = vpow.pop %v5682
      %v5684 = vmul.f32 %v5625, 1.442695
      %v5685 = vpow.pop %v5684
      %v5686 = vmul.f32 %v5626, 1.442695
      %v5687 = vpow.pop %v5686
      %v5688 = vmul.f32 %v5627, 1.442695
      %v5689 = vpow.pop %v5688
      %v5690 = vmul.f32 %v5628, 1.442695
      %v5691 = vpow.pop %v5690
      %v5692 = vmul.f32 %v5629, 1.442695
      %v5693 = vpow.pop %v5692
      %v5694 = vmul.f32 %v5534, %v5631
      %v5695 = vmul.f32 %v5535, %v5633
      %v5696 = vmul.f32 %v5536, %v5635
      %v5697 = vmul.f32 %v5537, %v5637
      %v5698 = vmul.f32 %v5538, %v5639
      %v5699 = vmul.f32 %v5539, %v5641
      %v5700 = vmul.f32 %v5540, %v5643
      %v5701 = vmul.f32 %v5541, %v5645
      %v5702 = vmul.f32 %v5542, %v5647
      %v5703 = vmul.f32 %v5543, %v5649
      %v5704 = vmul.f32 %v5544, %v5651
      %v5705 = vmul.f32 %v5545, %v5653
      %v5706 = vmul.f32 %v5546, %v5655
      %v5707 = vmul.f32 %v5547, %v5657
      %v5708 = vmul.f32 %v5548, %v5659
      %v5709 = vmul.f32 %v5549, %v5661
      %v5710 = vmul.f32 %v5550, %v5663
      %v5711 = vmul.f32 %v5551, %v5665
      %v5712 = vmul.f32 %v5552, %v5667
      %v5713 = vmul.f32 %v5553, %v5669
      %v5714 = vmul.f32 %v5554, %v5671
      %v5715 = vmul.f32 %v5555, %v5673
      %v5716 = vmul.f32 %v5556, %v5675
      %v5717 = vmul.f32 %v5557, %v5677
      %v5718 = vmul.f32 %v5558, %v5679
      %v5719 = vmul.f32 %v5559, %v5681
      %v5720 = vmul.f32 %v5560, %v5683
      %v5721 = vmul.f32 %v5561, %v5685
      %v5722 = vmul.f32 %v5562, %v5687
      %v5723 = vmul.f32 %v5563, %v5689
      %v5724 = vmul.f32 %v5564, %v5691
      %v5725 = vmul.f32 %v5565, %v5693
      %v5726 = vsub.f32 1.0, %v5694
      %v5727 = vsub.f32 1.0, %v5695
      %v5728 = vsub.f32 1.0, %v5696
      %v5729 = vsub.f32 1.0, %v5697
      %v5730 = vsub.f32 1.0, %v5698
      %v5731 = vsub.f32 1.0, %v5699
      %v5732 = vsub.f32 1.0, %v5700
      %v5733 = vsub.f32 1.0, %v5701
      %v5734 = vsub.f32 1.0, %v5702
      %v5735 = vsub.f32 1.0, %v5703
      %v5736 = vsub.f32 1.0, %v5704
      %v5737 = vsub.f32 1.0, %v5705
      %v5738 = vsub.f32 1.0, %v5706
      %v5739 = vsub.f32 1.0, %v5707
      %v5740 = vsub.f32 1.0, %v5708
      %v5741 = vsub.f32 1.0, %v5709
      %v5742 = vsub.f32 1.0, %v5710
      %v5743 = vsub.f32 1.0, %v5711
      %v5744 = vsub.f32 1.0, %v5712
      %v5745 = vsub.f32 1.0, %v5713
      %v5746 = vsub.f32 1.0, %v5714
      %v5747 = vsub.f32 1.0, %v5715
      %v5748 = vsub.f32 1.0, %v5716
      %v5749 = vsub.f32 1.0, %v5717
      %v5750 = vsub.f32 1.0, %v5718
      %v5751 = vsub.f32 1.0, %v5719
      %v5752 = vsub.f32 1.0, %v5720
      %v5753 = vsub.f32 1.0, %v5721
      %v5754 = vsub.f32 1.0, %v5722
      %v5755 = vsub.f32 1.0, %v5723
      %v5756 = vsub.f32 1.0, %v5724
      %v5757 = vsub.f32 1.0, %v5725
      %vm5758 = vcmp.lt.f32.partialorder %v5086, 0.0
      %vm5759 = vcmp.lt.f32.partialorder %v5087, 0.0
      %vm5760 = vcmp.lt.f32.partialorder %v5088, 0.0
      %vm5761 = vcmp.lt.f32.partialorder %v5089, 0.0
      %vm5762 = vcmp.lt.f32.partialorder %v5090, 0.0
      %vm5763 = vcmp.lt.f32.partialorder %v5091, 0.0
      %vm5764 = vcmp.lt.f32.partialorder %v5092, 0.0
      %vm5765 = vcmp.lt.f32.partialorder %v5093, 0.0
      %vm5766 = vcmp.lt.f32.partialorder %v5094, 0.0
      %vm5767 = vcmp.lt.f32.partialorder %v5095, 0.0
      %vm5768 = vcmp.lt.f32.partialorder %v5096, 0.0
      %vm5769 = vcmp.lt.f32.partialorder %v5097, 0.0
      %vm5770 = vcmp.lt.f32.partialorder %v5098, 0.0
      %vm5771 = vcmp.lt.f32.partialorder %v5099, 0.0
      %vm5772 = vcmp.lt.f32.partialorder %v5100, 0.0
      %vm5773 = vcmp.lt.f32.partialorder %v5101, 0.0
      %vm5774 = vcmp.lt.f32.partialorder %v5102, 0.0
      %vm5775 = vcmp.lt.f32.partialorder %v5103, 0.0
      %vm5776 = vcmp.lt.f32.partialorder %v5104, 0.0
      %vm5777 = vcmp.lt.f32.partialorder %v5105, 0.0
      %vm5778 = vcmp.lt.f32.partialorder %v5106, 0.0
      %vm5779 = vcmp.lt.f32.partialorder %v5107, 0.0
      %vm5780 = vcmp.lt.f32.partialorder %v5108, 0.0
      %vm5781 = vcmp.lt.f32.partialorder %v5109, 0.0
      %vm5782 = vcmp.lt.f32.partialorder %v5110, 0.0
      %vm5783 = vcmp.lt.f32.partialorder %v5111, 0.0
      %vm5784 = vcmp.lt.f32.partialorder %v5112, 0.0
      %vm5785 = vcmp.lt.f32.partialorder %v5113, 0.0
      %vm5786 = vcmp.lt.f32.partialorder %v5114, 0.0
      %vm5787 = vcmp.lt.f32.partialorder %v5115, 0.0
      %vm5788 = vcmp.lt.f32.partialorder %v5116, 0.0
      %vm5789 = vcmp.lt.f32.partialorder %v5117, 0.0
      %v5790 = vsub.f32 0.0, %v5726
      %v5791 = vsub.f32 0.0, %v5727
      %v5792 = vsub.f32 0.0, %v5728
      %v5793 = vsub.f32 0.0, %v5729
      %v5794 = vsub.f32 0.0, %v5730
      %v5795 = vsub.f32 0.0, %v5731
      %v5796 = vsub.f32 0.0, %v5732
      %v5797 = vsub.f32 0.0, %v5733
      %v5798 = vsub.f32 0.0, %v5734
      %v5799 = vsub.f32 0.0, %v5735
      %v5800 = vsub.f32 0.0, %v5736
      %v5801 = vsub.f32 0.0, %v5737
      %v5802 = vsub.f32 0.0, %v5738
      %v5803 = vsub.f32 0.0, %v5739
      %v5804 = vsub.f32 0.0, %v5740
      %v5805 = vsub.f32 0.0, %v5741
      %v5806 = vsub.f32 0.0, %v5742
      %v5807 = vsub.f32 0.0, %v5743
      %v5808 = vsub.f32 0.0, %v5744
      %v5809 = vsub.f32 0.0, %v5745
      %v5810 = vsub.f32 0.0, %v5746
      %v5811 = vsub.f32 0.0, %v5747
      %v5812 = vsub.f32 0.0, %v5748
      %v5813 = vsub.f32 0.0, %v5749
      %v5814 = vsub.f32 0.0, %v5750
      %v5815 = vsub.f32 0.0, %v5751
      %v5816 = vsub.f32 0.0, %v5752
      %v5817 = vsub.f32 0.0, %v5753
      %v5818 = vsub.f32 0.0, %v5754
      %v5819 = vsub.f32 0.0, %v5755
      %v5820 = vsub.f32 0.0, %v5756
      %v5821 = vsub.f32 0.0, %v5757
      %v5822 = vsel %vm5758, %v5790, %v5726
      %v5823 = vsel %vm5759, %v5791, %v5727
      %v5824 = vsel %vm5760, %v5792, %v5728
      %v5825 = vsel %vm5761, %v5793, %v5729
      %v5826 = vsel %vm5762, %v5794, %v5730
      %v5827 = vsel %vm5763, %v5795, %v5731
      %v5828 = vsel %vm5764, %v5796, %v5732
      %v5829 = vsel %vm5765, %v5797, %v5733
      %v5830 = vsel %vm5766, %v5798, %v5734
      %v5831 = vsel %vm5767, %v5799, %v5735
      %v5832 = vsel %vm5768, %v5800, %v5736
      %v5833 = vsel %vm5769, %v5801, %v5737
      %v5834 = vsel %vm5770, %v5802, %v5738
      %v5835 = vsel %vm5771, %v5803, %v5739
      %v5836 = vsel %vm5772, %v5804, %v5740
      %v5837 = vsel %vm5773, %v5805, %v5741
      %v5838 = vsel %vm5774, %v5806, %v5742
      %v5839 = vsel %vm5775, %v5807, %v5743
      %v5840 = vsel %vm5776, %v5808, %v5744
      %v5841 = vsel %vm5777, %v5809, %v5745
      %v5842 = vsel %vm5778, %v5810, %v5746
      %v5843 = vsel %vm5779, %v5811, %v5747
      %v5844 = vsel %vm5780, %v5812, %v5748
      %v5845 = vsel %vm5781, %v5813, %v5749
      %v5846 = vsel %vm5782, %v5814, %v5750
      %v5847 = vsel %vm5783, %v5815, %v5751
      %v5848 = vsel %vm5784, %v5816, %v5752
      %v5849 = vsel %vm5785, %v5817, %v5753
      %v5850 = vsel %vm5786, %v5818, %v5754
      %v5851 = vsel %vm5787, %v5819, %v5755
      %v5852 = vsel %vm5788, %v5820, %v5756
      %v5853 = vsel %vm5789, %v5821, %v5757
      %v5854 = vadd.f32 %v5822, 1.0
      %v5855 = vadd.f32 %v5823, 1.0
      %v5856 = vadd.f32 %v5824, 1.0
      %v5857 = vadd.f32 %v5825, 1.0
      %v5858 = vadd.f32 %v5826, 1.0
      %v5859 = vadd.f32 %v5827, 1.0
      %v5860 = vadd.f32 %v5828, 1.0
      %v5861 = vadd.f32 %v5829, 1.0
      %v5862 = vadd.f32 %v5830, 1.0
      %v5863 = vadd.f32 %v5831, 1.0
      %v5864 = vadd.f32 %v5832, 1.0
      %v5865 = vadd.f32 %v5833, 1.0
      %v5866 = vadd.f32 %v5834, 1.0
      %v5867 = vadd.f32 %v5835, 1.0
      %v5868 = vadd.f32 %v5836, 1.0
      %v5869 = vadd.f32 %v5837, 1.0
      %v5870 = vadd.f32 %v5838, 1.0
      %v5871 = vadd.f32 %v5839, 1.0
      %v5872 = vadd.f32 %v5840, 1.0
      %v5873 = vadd.f32 %v5841, 1.0
      %v5874 = vadd.f32 %v5842, 1.0
      %v5875 = vadd.f32 %v5843, 1.0
      %v5876 = vadd.f32 %v5844, 1.0
      %v5877 = vadd.f32 %v5845, 1.0
      %v5878 = vadd.f32 %v5846, 1.0
      %v5879 = vadd.f32 %v5847, 1.0
      %v5880 = vadd.f32 %v5848, 1.0
      %v5881 = vadd.f32 %v5849, 1.0
      %v5882 = vadd.f32 %v5850, 1.0
      %v5883 = vadd.f32 %v5851, 1.0
      %v5884 = vadd.f32 %v5852, 1.0
      %v5885 = vadd.f32 %v5853, 1.0
      %v5886 = vmul.f32 %v5054, %v5854
      %v5887 = vmul.f32 %v5055, %v5855
      %v5888 = vmul.f32 %v5056, %v5856
      %v5889 = vmul.f32 %v5057, %v5857
      %v5890 = vmul.f32 %v5058, %v5858
      %v5891 = vmul.f32 %v5059, %v5859
      %v5892 = vmul.f32 %v5060, %v5860
      %v5893 = vmul.f32 %v5061, %v5861
      %v5894 = vmul.f32 %v5062, %v5862
      %v5895 = vmul.f32 %v5063, %v5863
      %v5896 = vmul.f32 %v5064, %v5864
      %v5897 = vmul.f32 %v5065, %v5865
      %v5898 = vmul.f32 %v5066, %v5866
      %v5899 = vmul.f32 %v5067, %v5867
      %v5900 = vmul.f32 %v5068, %v5868
      %v5901 = vmul.f32 %v5069, %v5869
      %v5902 = vmul.f32 %v5070, %v5870
      %v5903 = vmul.f32 %v5071, %v5871
      %v5904 = vmul.f32 %v5072, %v5872
      %v5905 = vmul.f32 %v5073, %v5873
      %v5906 = vmul.f32 %v5074, %v5874
      %v5907 = vmul.f32 %v5075, %v5875
      %v5908 = vmul.f32 %v5076, %v5876
      %v5909 = vmul.f32 %v5077, %v5877
      %v5910 = vmul.f32 %v5078, %v5878
      %v5911 = vmul.f32 %v5079, %v5879
      %v5912 = vmul.f32 %v5080, %v5880
      %v5913 = vmul.f32 %v5081, %v5881
      %v5914 = vmul.f32 %v5082, %v5882
      %v5915 = vmul.f32 %v5083, %v5883
      %v5916 = vmul.f32 %v5084, %v5884
      %v5917 = vmul.f32 %v5085, %v5885
      %v5918 = vpack.c.bf16 %v5894, %v5886
      %v5919 = vpack.c.bf16 %v5895, %v5887
      %v5920 = vpack.c.bf16 %v5896, %v5888
      %v5921 = vpack.c.bf16 %v5897, %v5889
      %v5922 = vpack.c.bf16 %v5898, %v5890
      %v5923 = vpack.c.bf16 %v5899, %v5891
      %v5924 = vpack.c.bf16 %v5900, %v5892
      %v5925 = vpack.c.bf16 %v5901, %v5893
      %v5926 = vpack.c.bf16 %v5910, %v5902
      %v5927 = vpack.c.bf16 %v5911, %v5903
      %v5928 = vpack.c.bf16 %v5912, %v5904
      %v5929 = vpack.c.bf16 %v5913, %v5905
      %v5930 = vpack.c.bf16 %v5914, %v5906
      %v5931 = vpack.c.bf16 %v5915, %v5907
      %v5932 = vpack.c.bf16 %v5916, %v5908
      %v5933 = vpack.c.bf16 %v5917, %v5909
      %v5934 = vld [vmem:[%s531] sm:$0xff]
      %v5935 = vld [vmem:[%s531 + $0x8] sm:$0xff]
      %v5936 = vld [vmem:[%s531 + $0x10] sm:$0xff]
      %v5937 = vld [vmem:[%s531 + $0x18] sm:$0xff]
      %v5938 = vld [vmem:[%s531 + $0x20] sm:$0xff]
      %v5939 = vld [vmem:[%s531 + $0x28] sm:$0xff]
      %v5940 = vld [vmem:[%s531 + $0x30] sm:$0xff]
      %v5941 = vld [vmem:[%s531 + $0x38] sm:$0xff]
      %v5942 = vld [vmem:[%s531 + $0x40] sm:$0xff]
      %v5943 = vld [vmem:[%s531 + $0x48] sm:$0xff]
      %v5944 = vld [vmem:[%s531 + $0x50] sm:$0xff]
      %v5945 = vld [vmem:[%s531 + $0x58] sm:$0xff]
      %v5946 = vld [vmem:[%s531 + $0x60] sm:$0xff]
      %v5947 = vld [vmem:[%s531 + $0x68] sm:$0xff]
      %v5948 = vld [vmem:[%s531 + $0x70] sm:$0xff]
      %v5949 = vld [vmem:[%s531 + $0x78] sm:$0xff]
      %v5950 = vld [vmem:[%s531 + $0x80] sm:$0xff]
      %v5951 = vld [vmem:[%s531 + $0x88] sm:$0xff]
      %v5952 = vld [vmem:[%s531 + $0x90] sm:$0xff]
      %v5953 = vld [vmem:[%s531 + $0x98] sm:$0xff]
      %v5954 = vld [vmem:[%s531 + $0xa0] sm:$0xff]
      %v5955 = vld [vmem:[%s531 + $0xa8] sm:$0xff]
      %v5956 = vld [vmem:[%s531 + $0xb0] sm:$0xff]
      %v5957 = vld [vmem:[%s531 + $0xb8] sm:$0xff]
      %v5958 = vld [vmem:[%s531 + $0xc0] sm:$0xff]
      %v5959 = vld [vmem:[%s531 + $0xc8] sm:$0xff]
      %v5960 = vld [vmem:[%s531 + $0xd0] sm:$0xff]
      %v5961 = vld [vmem:[%s531 + $0xd8] sm:$0xff]
      %v5962 = vld [vmem:[%s531 + $0xe0] sm:$0xff]
      %v5963 = vld [vmem:[%s531 + $0xe8] sm:$0xff]
      %v5964 = vld [vmem:[%s531 + $0xf0] sm:$0xff]
      %v5965 = vld [vmem:[%s531 + $0xf8] sm:$0xff]
      %v5966 = vld [vmem:[%s531 + $0x100] sm:$0xff]
      %v5967 = vld [vmem:[%s531 + $0x108] sm:$0xff]
      %v5968 = vld [vmem:[%s531 + $0x110] sm:$0xff]
      %v5969 = vld [vmem:[%s531 + $0x118] sm:$0xff]
      %v5970 = vld [vmem:[%s531 + $0x120] sm:$0xff]
      %v5971 = vld [vmem:[%s531 + $0x128] sm:$0xff]
      %v5972 = vld [vmem:[%s531 + $0x130] sm:$0xff]
      %v5973 = vld [vmem:[%s531 + $0x138] sm:$0xff]
      %v5974 = vld [vmem:[%s531 + $0x140] sm:$0xff]
      %v5975 = vld [vmem:[%s531 + $0x148] sm:$0xff]
      %v5976 = vld [vmem:[%s531 + $0x150] sm:$0xff]
      %v5977 = vld [vmem:[%s531 + $0x158] sm:$0xff]
      %v5978 = vld [vmem:[%s531 + $0x160] sm:$0xff]
      %v5979 = vld [vmem:[%s531 + $0x168] sm:$0xff]
      %v5980 = vld [vmem:[%s531 + $0x170] sm:$0xff]
      %v5981 = vld [vmem:[%s531 + $0x178] sm:$0xff]
      %v5982 = vld [vmem:[%s531 + $0x180] sm:$0xff]
      %v5983 = vld [vmem:[%s531 + $0x188] sm:$0xff]
      %v5984 = vld [vmem:[%s531 + $0x190] sm:$0xff]
      %v5985 = vld [vmem:[%s531 + $0x198] sm:$0xff]
      %v5986 = vld [vmem:[%s531 + $0x1a0] sm:$0xff]
      %v5987 = vld [vmem:[%s531 + $0x1a8] sm:$0xff]
      %v5988 = vld [vmem:[%s531 + $0x1b0] sm:$0xff]
      %v5989 = vld [vmem:[%s531 + $0x1b8] sm:$0xff]
      %v5990 = vld [vmem:[%s531 + $0x1c0] sm:$0xff]
      %v5991 = vld [vmem:[%s531 + $0x1c8] sm:$0xff]
      %v5992 = vld [vmem:[%s531 + $0x1d0] sm:$0xff]
      %v5993 = vld [vmem:[%s531 + $0x1d8] sm:$0xff]
      %v5994 = vld [vmem:[%s531 + $0x1e0] sm:$0xff]
      %v5995 = vld [vmem:[%s531 + $0x1e8] sm:$0xff]
      %v5996 = vld [vmem:[%s531 + $0x1f0] sm:$0xff]
      %v5997 = vld [vmem:[%s531 + $0x1f8] sm:$0xff]
      %v5998 = vld [vmem:[%s531 + $0x200] sm:$0xff]
      %v5999 = vld [vmem:[%s531 + $0x208] sm:$0xff]
      %v6000 = vld [vmem:[%s531 + $0x210] sm:$0xff]
      %v6001 = vld [vmem:[%s531 + $0x218] sm:$0xff]
      %v6002 = vld [vmem:[%s531 + $0x220] sm:$0xff]
      %v6003 = vld [vmem:[%s531 + $0x228] sm:$0xff]
      %v6004 = vld [vmem:[%s531 + $0x230] sm:$0xff]
      %v6005 = vld [vmem:[%s531 + $0x238] sm:$0xff]
      %v6006 = vld [vmem:[%s531 + $0x240] sm:$0xff]
      %v6007 = vld [vmem:[%s531 + $0x248] sm:$0xff]
      %v6008 = vld [vmem:[%s531 + $0x250] sm:$0xff]
      %v6009 = vld [vmem:[%s531 + $0x258] sm:$0xff]
      %v6010 = vld [vmem:[%s531 + $0x260] sm:$0xff]
      %v6011 = vld [vmem:[%s531 + $0x268] sm:$0xff]
      %v6012 = vld [vmem:[%s531 + $0x270] sm:$0xff]
      %v6013 = vld [vmem:[%s531 + $0x278] sm:$0xff]
      %v6014 = vld [vmem:[%s531 + $0x280] sm:$0xff]
      %v6015 = vld [vmem:[%s531 + $0x288] sm:$0xff]
      %v6016 = vld [vmem:[%s531 + $0x290] sm:$0xff]
      %v6017 = vld [vmem:[%s531 + $0x298] sm:$0xff]
      %v6018 = vld [vmem:[%s531 + $0x2a0] sm:$0xff]
      %v6019 = vld [vmem:[%s531 + $0x2a8] sm:$0xff]
      %v6020 = vld [vmem:[%s531 + $0x2b0] sm:$0xff]
      %v6021 = vld [vmem:[%s531 + $0x2b8] sm:$0xff]
      %v6022 = vld [vmem:[%s531 + $0x2c0] sm:$0xff]
      %v6023 = vld [vmem:[%s531 + $0x2c8] sm:$0xff]
      %v6024 = vld [vmem:[%s531 + $0x2d0] sm:$0xff]
      %v6025 = vld [vmem:[%s531 + $0x2d8] sm:$0xff]
      %v6026 = vld [vmem:[%s531 + $0x2e0] sm:$0xff]
      %v6027 = vld [vmem:[%s531 + $0x2e8] sm:$0xff]
      %v6028 = vld [vmem:[%s531 + $0x2f0] sm:$0xff]
      %v6029 = vld [vmem:[%s531 + $0x2f8] sm:$0xff]
      %v6030 = vld [vmem:[%s531 + $0x300] sm:$0xff]
      %v6031 = vld [vmem:[%s531 + $0x308] sm:$0xff]
      %v6032 = vld [vmem:[%s531 + $0x310] sm:$0xff]
      %v6033 = vld [vmem:[%s531 + $0x318] sm:$0xff]
      %v6034 = vld [vmem:[%s531 + $0x320] sm:$0xff]
      %v6035 = vld [vmem:[%s531 + $0x328] sm:$0xff]
      %v6036 = vld [vmem:[%s531 + $0x330] sm:$0xff]
      %v6037 = vld [vmem:[%s531 + $0x338] sm:$0xff]
      %v6038 = vld [vmem:[%s531 + $0x340] sm:$0xff]
      %v6039 = vld [vmem:[%s531 + $0x348] sm:$0xff]
      %v6040 = vld [vmem:[%s531 + $0x350] sm:$0xff]
      %v6041 = vld [vmem:[%s531 + $0x358] sm:$0xff]
      %v6042 = vld [vmem:[%s531 + $0x360] sm:$0xff]
      %v6043 = vld [vmem:[%s531 + $0x368] sm:$0xff]
      %v6044 = vld [vmem:[%s531 + $0x370] sm:$0xff]
      %v6045 = vld [vmem:[%s531 + $0x378] sm:$0xff]
      %v6046 = vld [vmem:[%s531 + $0x380] sm:$0xff]
      %v6047 = vld [vmem:[%s531 + $0x388] sm:$0xff]
      %v6048 = vld [vmem:[%s531 + $0x390] sm:$0xff]
      %v6049 = vld [vmem:[%s531 + $0x398] sm:$0xff]
      %v6050 = vld [vmem:[%s531 + $0x3a0] sm:$0xff]
      %v6051 = vld [vmem:[%s531 + $0x3a8] sm:$0xff]
      %v6052 = vld [vmem:[%s531 + $0x3b0] sm:$0xff]
      %v6053 = vld [vmem:[%s531 + $0x3b8] sm:$0xff]
      %v6054 = vld [vmem:[%s531 + $0x3c0] sm:$0xff]
      %v6055 = vld [vmem:[%s531 + $0x3c8] sm:$0xff]
      %v6056 = vld [vmem:[%s531 + $0x3d0] sm:$0xff]
      %v6057 = vld [vmem:[%s531 + $0x3d8] sm:$0xff]
      %v6058 = vld [vmem:[%s531 + $0x3e0] sm:$0xff]
      %v6059 = vld [vmem:[%s531 + $0x3e8] sm:$0xff]
      %v6060 = vld [vmem:[%s531 + $0x3f0] sm:$0xff]
      %v6061 = vld [vmem:[%s531 + $0x3f8] sm:$0xff]
      %v6062 = vld [vmem:[%s535] sm:$0x3]
      %v6064 = vlaneseq
      %v6065 = vshrl.u32 %v6064, 7
      %v6066 = vsub.s32 0, %v6065
      %v6067 = vrot.slane %v6062, %v6066
      %v6068 = vlaneseq
      %v6069 = vshrl.u32 %v6068, 7
      %v6070 = vsub.s32 1, %v6069
      %v6071 = vrot.slane %v6062, %v6070
      %v6202 = vunpack.c.l.b16 %v5934
      %v6203 = vunpack.c.h.b16 %v5934
      %v6204 = vunpack.c.l.b16 %v5935
      %v6205 = vunpack.c.h.b16 %v5935
      %v6206 = vunpack.c.l.b16 %v5936
      %v6207 = vunpack.c.h.b16 %v5936
      %v6208 = vunpack.c.l.b16 %v5937
      %v6209 = vunpack.c.h.b16 %v5937
      %v6210 = vunpack.c.l.b16 %v5938
      %v6211 = vunpack.c.h.b16 %v5938
      %v6212 = vunpack.c.l.b16 %v5939
      %v6213 = vunpack.c.h.b16 %v5939
      %v6214 = vunpack.c.l.b16 %v5940
      %v6215 = vunpack.c.h.b16 %v5940
      %v6216 = vunpack.c.l.b16 %v5941
      %v6217 = vunpack.c.h.b16 %v5941
      %v6218 = vunpack.c.l.b16 %v5942
      %v6219 = vunpack.c.h.b16 %v5942
      %v6220 = vunpack.c.l.b16 %v5943
      %v6221 = vunpack.c.h.b16 %v5943
      %v6222 = vunpack.c.l.b16 %v5944
      %v6223 = vunpack.c.h.b16 %v5944
      %v6224 = vunpack.c.l.b16 %v5945
      %v6225 = vunpack.c.h.b16 %v5945
      %v6226 = vunpack.c.l.b16 %v5946
      %v6227 = vunpack.c.h.b16 %v5946
      %v6228 = vunpack.c.l.b16 %v5947
      %v6229 = vunpack.c.h.b16 %v5947
      %v6230 = vunpack.c.l.b16 %v5948
      %v6231 = vunpack.c.h.b16 %v5948
      %v6232 = vunpack.c.l.b16 %v5949
      %v6233 = vunpack.c.h.b16 %v5949
      %v6234 = vunpack.c.l.b16 %v5950
      %v6235 = vunpack.c.h.b16 %v5950
      %v6236 = vunpack.c.l.b16 %v5951
      %v6237 = vunpack.c.h.b16 %v5951
      %v6238 = vunpack.c.l.b16 %v5952
      %v6239 = vunpack.c.h.b16 %v5952
      %v6240 = vunpack.c.l.b16 %v5953
      %v6241 = vunpack.c.h.b16 %v5953
      %v6242 = vunpack.c.l.b16 %v5954
      %v6243 = vunpack.c.h.b16 %v5954
      %v6244 = vunpack.c.l.b16 %v5955
      %v6245 = vunpack.c.h.b16 %v5955
      %v6246 = vunpack.c.l.b16 %v5956
      %v6247 = vunpack.c.h.b16 %v5956
      %v6248 = vunpack.c.l.b16 %v5957
      %v6249 = vunpack.c.h.b16 %v5957
      %v6250 = vunpack.c.l.b16 %v5958
      %v6251 = vunpack.c.h.b16 %v5958
      %v6252 = vunpack.c.l.b16 %v5959
      %v6253 = vunpack.c.h.b16 %v5959
      %v6254 = vunpack.c.l.b16 %v5960
      %v6255 = vunpack.c.h.b16 %v5960
      %v6256 = vunpack.c.l.b16 %v5961
      %v6257 = vunpack.c.h.b16 %v5961
      %v6258 = vunpack.c.l.b16 %v5962
      %v6259 = vunpack.c.h.b16 %v5962
      %v6260 = vunpack.c.l.b16 %v5963
      %v6261 = vunpack.c.h.b16 %v5963
      %v6262 = vunpack.c.l.b16 %v5964
      %v6263 = vunpack.c.h.b16 %v5964
      %v6264 = vunpack.c.l.b16 %v5965
      %v6265 = vunpack.c.h.b16 %v5965
      %v6266 = vunpack.c.l.b16 %v5966
      %v6267 = vunpack.c.h.b16 %v5966
      %v6268 = vunpack.c.l.b16 %v5967
      %v6269 = vunpack.c.h.b16 %v5967
      %v6270 = vunpack.c.l.b16 %v5968
      %v6271 = vunpack.c.h.b16 %v5968
      %v6272 = vunpack.c.l.b16 %v5969
      %v6273 = vunpack.c.h.b16 %v5969
      %v6274 = vunpack.c.l.b16 %v5970
      %v6275 = vunpack.c.h.b16 %v5970
      %v6276 = vunpack.c.l.b16 %v5971
      %v6277 = vunpack.c.h.b16 %v5971
      %v6278 = vunpack.c.l.b16 %v5972
      %v6279 = vunpack.c.h.b16 %v5972
      %v6280 = vunpack.c.l.b16 %v5973
      %v6281 = vunpack.c.h.b16 %v5973
      %v6282 = vunpack.c.l.b16 %v5974
      %v6283 = vunpack.c.h.b16 %v5974
      %v6284 = vunpack.c.l.b16 %v5975
      %v6285 = vunpack.c.h.b16 %v5975
      %v6286 = vunpack.c.l.b16 %v5976
      %v6287 = vunpack.c.h.b16 %v5976
      %v6288 = vunpack.c.l.b16 %v5977
      %v6289 = vunpack.c.h.b16 %v5977
      %v6290 = vunpack.c.l.b16 %v5978
      %v6291 = vunpack.c.h.b16 %v5978
      %v6292 = vunpack.c.l.b16 %v5979
      %v6293 = vunpack.c.h.b16 %v5979
      %v6294 = vunpack.c.l.b16 %v5980
      %v6295 = vunpack.c.h.b16 %v5980
      %v6296 = vunpack.c.l.b16 %v5981
      %v6297 = vunpack.c.h.b16 %v5981
      %v6298 = vunpack.c.l.b16 %v5982
      %v6299 = vunpack.c.h.b16 %v5982
      %v6300 = vunpack.c.l.b16 %v5983
      %v6301 = vunpack.c.h.b16 %v5983
      %v6302 = vunpack.c.l.b16 %v5984
      %v6303 = vunpack.c.h.b16 %v5984
      %v6304 = vunpack.c.l.b16 %v5985
      %v6305 = vunpack.c.h.b16 %v5985
      %v6306 = vunpack.c.l.b16 %v5986
      %v6307 = vunpack.c.h.b16 %v5986
      %v6308 = vunpack.c.l.b16 %v5987
      %v6309 = vunpack.c.h.b16 %v5987
      %v6310 = vunpack.c.l.b16 %v5988
      %v6311 = vunpack.c.h.b16 %v5988
      %v6312 = vunpack.c.l.b16 %v5989
      %v6313 = vunpack.c.h.b16 %v5989
      %v6314 = vunpack.c.l.b16 %v5990
      %v6315 = vunpack.c.h.b16 %v5990
      %v6316 = vunpack.c.l.b16 %v5991
      %v6317 = vunpack.c.h.b16 %v5991
      %v6318 = vunpack.c.l.b16 %v5992
      %v6319 = vunpack.c.h.b16 %v5992
      %v6320 = vunpack.c.l.b16 %v5993
      %v6321 = vunpack.c.h.b16 %v5993
      %v6322 = vunpack.c.l.b16 %v5994
      %v6323 = vunpack.c.h.b16 %v5994
      %v6324 = vunpack.c.l.b16 %v5995
      %v6325 = vunpack.c.h.b16 %v5995
      %v6326 = vunpack.c.l.b16 %v5996
      %v6327 = vunpack.c.h.b16 %v5996
      %v6328 = vunpack.c.l.b16 %v5997
      %v6329 = vunpack.c.h.b16 %v5997
      %v6330 = vunpack.c.l.b16 %v5998
      %v6331 = vunpack.c.h.b16 %v5998
      %v6332 = vunpack.c.l.b16 %v5999
      %v6333 = vunpack.c.h.b16 %v5999
      %v6334 = vunpack.c.l.b16 %v6000
      %v6335 = vunpack.c.h.b16 %v6000
      %v6336 = vunpack.c.l.b16 %v6001
      %v6337 = vunpack.c.h.b16 %v6001
      %v6338 = vunpack.c.l.b16 %v6002
      %v6339 = vunpack.c.h.b16 %v6002
      %v6340 = vunpack.c.l.b16 %v6003
      %v6341 = vunpack.c.h.b16 %v6003
      %v6342 = vunpack.c.l.b16 %v6004
      %v6343 = vunpack.c.h.b16 %v6004
      %v6344 = vunpack.c.l.b16 %v6005
      %v6345 = vunpack.c.h.b16 %v6005
      %v6346 = vunpack.c.l.b16 %v6006
      %v6347 = vunpack.c.h.b16 %v6006
      %v6348 = vunpack.c.l.b16 %v6007
      %v6349 = vunpack.c.h.b16 %v6007
      %v6350 = vunpack.c.l.b16 %v6008
      %v6351 = vunpack.c.h.b16 %v6008
      %v6352 = vunpack.c.l.b16 %v6009
      %v6353 = vunpack.c.h.b16 %v6009
      %v6354 = vunpack.c.l.b16 %v6010
      %v6355 = vunpack.c.h.b16 %v6010
      %v6356 = vunpack.c.l.b16 %v6011
      %v6357 = vunpack.c.h.b16 %v6011
      %v6358 = vunpack.c.l.b16 %v6012
      %v6359 = vunpack.c.h.b16 %v6012
      %v6360 = vunpack.c.l.b16 %v6013
      %v6361 = vunpack.c.h.b16 %v6013
      %v6362 = vunpack.c.l.b16 %v6014
      %v6363 = vunpack.c.h.b16 %v6014
      %v6364 = vunpack.c.l.b16 %v6015
      %v6365 = vunpack.c.h.b16 %v6015
      %v6366 = vunpack.c.l.b16 %v6016
      %v6367 = vunpack.c.h.b16 %v6016
      %v6368 = vunpack.c.l.b16 %v6017
      %v6369 = vunpack.c.h.b16 %v6017
      %v6370 = vunpack.c.l.b16 %v6018
      %v6371 = vunpack.c.h.b16 %v6018
      %v6372 = vunpack.c.l.b16 %v6019
      %v6373 = vunpack.c.h.b16 %v6019
      %v6374 = vunpack.c.l.b16 %v6020
      %v6375 = vunpack.c.h.b16 %v6020
      %v6376 = vunpack.c.l.b16 %v6021
      %v6377 = vunpack.c.h.b16 %v6021
      %v6378 = vunpack.c.l.b16 %v6022
      %v6379 = vunpack.c.h.b16 %v6022
      %v6380 = vunpack.c.l.b16 %v6023
      %v6381 = vunpack.c.h.b16 %v6023
      %v6382 = vunpack.c.l.b16 %v6024
      %v6383 = vunpack.c.h.b16 %v6024
      %v6384 = vunpack.c.l.b16 %v6025
      %v6385 = vunpack.c.h.b16 %v6025
      %v6386 = vunpack.c.l.b16 %v6026
      %v6387 = vunpack.c.h.b16 %v6026
      %v6388 = vunpack.c.l.b16 %v6027
      %v6389 = vunpack.c.h.b16 %v6027
      %v6390 = vunpack.c.l.b16 %v6028
      %v6391 = vunpack.c.h.b16 %v6028
      %v6392 = vunpack.c.l.b16 %v6029
      %v6393 = vunpack.c.h.b16 %v6029
      %v6394 = vunpack.c.l.b16 %v6030
      %v6395 = vunpack.c.h.b16 %v6030
      %v6396 = vunpack.c.l.b16 %v6031
      %v6397 = vunpack.c.h.b16 %v6031
      %v6398 = vunpack.c.l.b16 %v6032
      %v6399 = vunpack.c.h.b16 %v6032
      %v6400 = vunpack.c.l.b16 %v6033
      %v6401 = vunpack.c.h.b16 %v6033
      %v6402 = vunpack.c.l.b16 %v6034
      %v6403 = vunpack.c.h.b16 %v6034
      %v6404 = vunpack.c.l.b16 %v6035
      %v6405 = vunpack.c.h.b16 %v6035
      %v6406 = vunpack.c.l.b16 %v6036
      %v6407 = vunpack.c.h.b16 %v6036
      %v6408 = vunpack.c.l.b16 %v6037
      %v6409 = vunpack.c.h.b16 %v6037
      %v6410 = vunpack.c.l.b16 %v6038
      %v6411 = vunpack.c.h.b16 %v6038
      %v6412 = vunpack.c.l.b16 %v6039
      %v6413 = vunpack.c.h.b16 %v6039
      %v6414 = vunpack.c.l.b16 %v6040
      %v6415 = vunpack.c.h.b16 %v6040
      %v6416 = vunpack.c.l.b16 %v6041
      %v6417 = vunpack.c.h.b16 %v6041
      %v6418 = vunpack.c.l.b16 %v6042
      %v6419 = vunpack.c.h.b16 %v6042
      %v6420 = vunpack.c.l.b16 %v6043
      %v6421 = vunpack.c.h.b16 %v6043
      %v6422 = vunpack.c.l.b16 %v6044
      %v6423 = vunpack.c.h.b16 %v6044
      %v6424 = vunpack.c.l.b16 %v6045
      %v6425 = vunpack.c.h.b16 %v6045
      %v6426 = vunpack.c.l.b16 %v6046
      %v6427 = vunpack.c.h.b16 %v6046
      %v6428 = vunpack.c.l.b16 %v6047
      %v6429 = vunpack.c.h.b16 %v6047
      %v6430 = vunpack.c.l.b16 %v6048
      %v6431 = vunpack.c.h.b16 %v6048
      %v6432 = vunpack.c.l.b16 %v6049
      %v6433 = vunpack.c.h.b16 %v6049
      %v6434 = vunpack.c.l.b16 %v6050
      %v6435 = vunpack.c.h.b16 %v6050
      %v6436 = vunpack.c.l.b16 %v6051
      %v6437 = vunpack.c.h.b16 %v6051
      %v6438 = vunpack.c.l.b16 %v6052
      %v6439 = vunpack.c.h.b16 %v6052
      %v6440 = vunpack.c.l.b16 %v6053
      %v6441 = vunpack.c.h.b16 %v6053
      %v6442 = vunpack.c.l.b16 %v6054
      %v6443 = vunpack.c.h.b16 %v6054
      %v6444 = vunpack.c.l.b16 %v6055
      %v6445 = vunpack.c.h.b16 %v6055
      %v6446 = vunpack.c.l.b16 %v6056
      %v6447 = vunpack.c.h.b16 %v6056
      %v6448 = vunpack.c.l.b16 %v6057
      %v6449 = vunpack.c.h.b16 %v6057
      %v6450 = vunpack.c.l.b16 %v6058
      %v6451 = vunpack.c.h.b16 %v6058
      %v6452 = vunpack.c.l.b16 %v6059
      %v6453 = vunpack.c.h.b16 %v6059
      %v6454 = vunpack.c.l.b16 %v6060
      %v6455 = vunpack.c.h.b16 %v6060
      %v6456 = vunpack.c.l.b16 %v6061
      %v6457 = vunpack.c.h.b16 %v6061
      %v6458 = vpack.c.b16 %v6204, %v6202
      %v6459 = vpack.c.b16 %v6205, %v6203
      %v6460 = vpack.c.b16 %v6208, %v6206
      %v6461 = vpack.c.b16 %v6209, %v6207
      %v6462 = vpack.c.b16 %v6212, %v6210
      %v6463 = vpack.c.b16 %v6213, %v6211
      %v6464 = vpack.c.b16 %v6216, %v6214
      %v6465 = vpack.c.b16 %v6217, %v6215
      %v6466 = vpack.c.b16 %v6220, %v6218
      %v6467 = vpack.c.b16 %v6221, %v6219
      %v6468 = vpack.c.b16 %v6224, %v6222
      %v6469 = vpack.c.b16 %v6225, %v6223
      %v6470 = vpack.c.b16 %v6228, %v6226
      %v6471 = vpack.c.b16 %v6229, %v6227
      %v6472 = vpack.c.b16 %v6232, %v6230
      %v6473 = vpack.c.b16 %v6233, %v6231
      %v6474 = vpack.c.b16 %v6236, %v6234
      %v6475 = vpack.c.b16 %v6237, %v6235
      %v6476 = vpack.c.b16 %v6240, %v6238
      %v6477 = vpack.c.b16 %v6241, %v6239
      %v6478 = vpack.c.b16 %v6244, %v6242
      %v6479 = vpack.c.b16 %v6245, %v6243
      %v6480 = vpack.c.b16 %v6248, %v6246
      %v6481 = vpack.c.b16 %v6249, %v6247
      %v6482 = vpack.c.b16 %v6252, %v6250
      %v6483 = vpack.c.b16 %v6253, %v6251
      %v6484 = vpack.c.b16 %v6256, %v6254
      %v6485 = vpack.c.b16 %v6257, %v6255
      %v6486 = vpack.c.b16 %v6260, %v6258
      %v6487 = vpack.c.b16 %v6261, %v6259
      %v6488 = vpack.c.b16 %v6264, %v6262
      %v6489 = vpack.c.b16 %v6265, %v6263
      %v6490 = vpack.c.b16 %v6268, %v6266
      %v6491 = vpack.c.b16 %v6269, %v6267
      %v6492 = vpack.c.b16 %v6272, %v6270
      %v6493 = vpack.c.b16 %v6273, %v6271
      %v6494 = vpack.c.b16 %v6276, %v6274
      %v6495 = vpack.c.b16 %v6277, %v6275
      %v6496 = vpack.c.b16 %v6280, %v6278
      %v6497 = vpack.c.b16 %v6281, %v6279
      %v6498 = vpack.c.b16 %v6284, %v6282
      %v6499 = vpack.c.b16 %v6285, %v6283
      %v6500 = vpack.c.b16 %v6288, %v6286
      %v6501 = vpack.c.b16 %v6289, %v6287
      %v6502 = vpack.c.b16 %v6292, %v6290
      %v6503 = vpack.c.b16 %v6293, %v6291
      %v6504 = vpack.c.b16 %v6296, %v6294
      %v6505 = vpack.c.b16 %v6297, %v6295
      %v6506 = vpack.c.b16 %v6300, %v6298
      %v6507 = vpack.c.b16 %v6301, %v6299
      %v6508 = vpack.c.b16 %v6304, %v6302
      %v6509 = vpack.c.b16 %v6305, %v6303
      %v6510 = vpack.c.b16 %v6308, %v6306
      %v6511 = vpack.c.b16 %v6309, %v6307
      %v6512 = vpack.c.b16 %v6312, %v6310
      %v6513 = vpack.c.b16 %v6313, %v6311
      %v6514 = vpack.c.b16 %v6316, %v6314
      %v6515 = vpack.c.b16 %v6317, %v6315
      %v6516 = vpack.c.b16 %v6320, %v6318
      %v6517 = vpack.c.b16 %v6321, %v6319
      %v6518 = vpack.c.b16 %v6324, %v6322
      %v6519 = vpack.c.b16 %v6325, %v6323
      %v6520 = vpack.c.b16 %v6328, %v6326
      %v6521 = vpack.c.b16 %v6329, %v6327
      %v6522 = vpack.c.b16 %v6332, %v6330
      %v6523 = vpack.c.b16 %v6333, %v6331
      %v6524 = vpack.c.b16 %v6336, %v6334
      %v6525 = vpack.c.b16 %v6337, %v6335
      %v6526 = vpack.c.b16 %v6340, %v6338
      %v6527 = vpack.c.b16 %v6341, %v6339
      %v6528 = vpack.c.b16 %v6344, %v6342
      %v6529 = vpack.c.b16 %v6345, %v6343
      %v6530 = vpack.c.b16 %v6348, %v6346
      %v6531 = vpack.c.b16 %v6349, %v6347
      %v6532 = vpack.c.b16 %v6352, %v6350
      %v6533 = vpack.c.b16 %v6353, %v6351
      %v6534 = vpack.c.b16 %v6356, %v6354
      %v6535 = vpack.c.b16 %v6357, %v6355
      %v6536 = vpack.c.b16 %v6360, %v6358
      %v6537 = vpack.c.b16 %v6361, %v6359
      %v6538 = vpack.c.b16 %v6364, %v6362
      %v6539 = vpack.c.b16 %v6365, %v6363
      %v6540 = vpack.c.b16 %v6368, %v6366
      %v6541 = vpack.c.b16 %v6369, %v6367
      %v6542 = vpack.c.b16 %v6372, %v6370
      %v6543 = vpack.c.b16 %v6373, %v6371
      %v6544 = vpack.c.b16 %v6376, %v6374
      %v6545 = vpack.c.b16 %v6377, %v6375
      %v6546 = vpack.c.b16 %v6380, %v6378
      %v6547 = vpack.c.b16 %v6381, %v6379
      %v6548 = vpack.c.b16 %v6384, %v6382
      %v6549 = vpack.c.b16 %v6385, %v6383
      %v6550 = vpack.c.b16 %v6388, %v6386
      %v6551 = vpack.c.b16 %v6389, %v6387
      %v6552 = vpack.c.b16 %v6392, %v6390
      %v6553 = vpack.c.b16 %v6393, %v6391
      %v6554 = vpack.c.b16 %v6396, %v6394
      %v6555 = vpack.c.b16 %v6397, %v6395
      %v6556 = vpack.c.b16 %v6400, %v6398
      %v6557 = vpack.c.b16 %v6401, %v6399
      %v6558 = vpack.c.b16 %v6404, %v6402
      %v6559 = vpack.c.b16 %v6405, %v6403
      %v6560 = vpack.c.b16 %v6408, %v6406
      %v6561 = vpack.c.b16 %v6409, %v6407
      %v6562 = vpack.c.b16 %v6412, %v6410
      %v6563 = vpack.c.b16 %v6413, %v6411
      %v6564 = vpack.c.b16 %v6416, %v6414
      %v6565 = vpack.c.b16 %v6417, %v6415
      %v6566 = vpack.c.b16 %v6420, %v6418
      %v6567 = vpack.c.b16 %v6421, %v6419
      %v6568 = vpack.c.b16 %v6424, %v6422
      %v6569 = vpack.c.b16 %v6425, %v6423
      %v6570 = vpack.c.b16 %v6428, %v6426
      %v6571 = vpack.c.b16 %v6429, %v6427
      %v6572 = vpack.c.b16 %v6432, %v6430
      %v6573 = vpack.c.b16 %v6433, %v6431
      %v6574 = vpack.c.b16 %v6436, %v6434
      %v6575 = vpack.c.b16 %v6437, %v6435
      %v6576 = vpack.c.b16 %v6440, %v6438
      %v6577 = vpack.c.b16 %v6441, %v6439
      %v6578 = vpack.c.b16 %v6444, %v6442
      %v6579 = vpack.c.b16 %v6445, %v6443
      %v6580 = vpack.c.b16 %v6448, %v6446
      %v6581 = vpack.c.b16 %v6449, %v6447
      %v6582 = vpack.c.b16 %v6452, %v6450
      %v6583 = vpack.c.b16 %v6453, %v6451
      %v6584 = vpack.c.b16 %v6456, %v6454
      %v6585 = vpack.c.b16 %v6457, %v6455
      %6714 = vmatprep.subr.bf16.mxu0 %v6459
      %6715 = vmatpush1.bf16.msra.mxu0 %v6458
      %6716 = vmatprep.subr.bf16.mxu0 %v6461
      %6717 = vmatpush1.bf16.msra.mxu0 %v6460
      %6718 = vmatprep.subr.bf16.mxu0 %v6463
      %6719 = vmatpush1.bf16.msra.mxu0 %v6462
      %6720 = vmatprep.subr.bf16.mxu0 %v6465
      %6721 = vmatpush1.bf16.msra.mxu0 %v6464
      %6722 = vmatprep.subr.bf16.mxu0 %v6467
      %6723 = vmatpush1.bf16.msra.mxu0 %v6466
      %6724 = vmatprep.subr.bf16.mxu0 %v6469
      %6725 = vmatpush1.bf16.msra.mxu0 %v6468
      %6726 = vmatprep.subr.bf16.mxu0 %v6471
      %6727 = vmatpush1.bf16.msra.mxu0 %v6470
      %6728 = vmatprep.subr.bf16.mxu0 %v6473
      %6729 = vmatpush1.bf16.msra.mxu0 %v6472
      %6730 = vmatprep.subr.bf16.mxu0 %v6475
      %6731 = vmatpush1.bf16.msra.mxu0 %v6474
      %6732 = vmatprep.subr.bf16.mxu0 %v6477
      %6733 = vmatpush1.bf16.msra.mxu0 %v6476
      %6734 = vmatprep.subr.bf16.mxu0 %v6479
      %6735 = vmatpush1.bf16.msra.mxu0 %v6478
      %6736 = vmatprep.subr.bf16.mxu0 %v6481
      %6737 = vmatpush1.bf16.msra.mxu0 %v6480
      %6738 = vmatprep.subr.bf16.mxu0 %v6483
      %6739 = vmatpush1.bf16.msra.mxu0 %v6482
      %6740 = vmatprep.subr.bf16.mxu0 %v6485
      %6741 = vmatpush1.bf16.msra.mxu0 %v6484
      %6742 = vmatprep.subr.bf16.mxu0 %v6487
      %6743 = vmatpush1.bf16.msra.mxu0 %v6486
      %6744 = vmatprep.subr.bf16.mxu0 %v6489
      %6745 = vmatpush1.bf16.msra.mxu0 %v6488
      %6746 = vmatprep.mubr.bf16.mxu0 %v5919
      %6747 = vmatmul.mubr.bf16.gmra.mrb[0].mxu0 %v5918
      %v6748 = vpop.f32.mrb[0].mxu0
      %v6749 = vadd.f32 %v6067, %v6748
      %v6750 = vpop.f32.mrb[0].mxu0
      %v6751 = vadd.f32 %v6071, %v6750
      %v6752 = vpop.f32.mrb[0].mxu0
      %v6753 = vadd.f32 %v6067, %v6752
      %v6754 = vpop.f32.mrb[0].mxu0
      %v6755 = vadd.f32 %v6071, %v6754
      %6756 = vmatprep.mubr.bf16.mxu0 %v5927
      %6757 = vmatmul.mubr.bf16.gmra.mrb[0].mxu0 %v5926
      %v6758 = vpop.f32.mrb[0].mxu0
      %v6759 = vadd.f32 %v6067, %v6758
      %v6760 = vpop.f32.mrb[0].mxu0
      %v6761 = vadd.f32 %v6071, %v6760
      %v6762 = vpop.f32.mrb[0].mxu0
      %v6763 = vadd.f32 %v6067, %v6762
      %v6764 = vpop.f32.mrb[0].mxu0
      %v6765 = vadd.f32 %v6071, %v6764
      %6766 = vdwg.mxu0
      %6767 = vmatprep.subr.bf16.mxu0 %v6491
      %6768 = vmatpush1.bf16.msra.mxu0 %v6490
      %6769 = vmatprep.subr.bf16.mxu0 %v6493
      %6770 = vmatpush1.bf16.msra.mxu0 %v6492
      %6771 = vmatprep.subr.bf16.mxu0 %v6495
      %6772 = vmatpush1.bf16.msra.mxu0 %v6494
      %6773 = vmatprep.subr.bf16.mxu0 %v6497
      %6774 = vmatpush1.bf16.msra.mxu0 %v6496
      %6775 = vmatprep.subr.bf16.mxu0 %v6499
      %6776 = vmatpush1.bf16.msra.mxu0 %v6498
      %6777 = vmatprep.subr.bf16.mxu0 %v6501
      %6778 = vmatpush1.bf16.msra.mxu0 %v6500
      %6779 = vmatprep.subr.bf16.mxu0 %v6503
      %6780 = vmatpush1.bf16.msra.mxu0 %v6502
      %6781 = vmatprep.subr.bf16.mxu0 %v6505
      %6782 = vmatpush1.bf16.msra.mxu0 %v6504
      %6783 = vmatprep.subr.bf16.mxu0 %v6507
      %6784 = vmatpush1.bf16.msra.mxu0 %v6506
      %6785 = vmatprep.subr.bf16.mxu0 %v6509
      %6786 = vmatpush1.bf16.msra.mxu0 %v6508
      %6787 = vmatprep.subr.bf16.mxu0 %v6511
      %6788 = vmatpush1.bf16.msra.mxu0 %v6510
      %6789 = vmatprep.subr.bf16.mxu0 %v6513
      %6790 = vmatpush1.bf16.msra.mxu0 %v6512
      %6791 = vmatprep.subr.bf16.mxu0 %v6515
      %6792 = vmatpush1.bf16.msra.mxu0 %v6514
      %6793 = vmatprep.subr.bf16.mxu0 %v6517
      %6794 = vmatpush1.bf16.msra.mxu0 %v6516
      %6795 = vmatprep.subr.bf16.mxu0 %v6519
      %6796 = vmatpush1.bf16.msra.mxu0 %v6518
      %6797 = vmatprep.subr.bf16.mxu0 %v6521
      %6798 = vmatpush1.bf16.msra.mxu0 %v6520
      %6799 = vmatprep.mubr.bf16.mxu0 %v5921
      %6800 = vmatmul.mubr.bf16.gmra.mrb[0].mxu0 %v5920
      %v6801 = vpop.f32.mrb[0].mxu0
      %v6802 = vadd.f32 %v6749, %v6801
      %v6803 = vpop.f32.mrb[0].mxu0
      %v6804 = vadd.f32 %v6751, %v6803
      %v6805 = vpop.f32.mrb[0].mxu0
      %v6806 = vadd.f32 %v6753, %v6805
      %v6807 = vpop.f32.mrb[0].mxu0
      %v6808 = vadd.f32 %v6755, %v6807
      %6809 = vmatprep.mubr.bf16.mxu0 %v5929
      %6810 = vmatmul.mubr.bf16.gmra.mrb[0].mxu0 %v5928
      %v6811 = vpop.f32.mrb[0].mxu0
      %v6812 = vadd.f32 %v6759, %v6811
      %v6813 = vpop.f32.mrb[0].mxu0
      %v6814 = vadd.f32 %v6761, %v6813
      %v6815 = vpop.f32.mrb[0].mxu0
      %v6816 = vadd.f32 %v6763, %v6815
      %v6817 = vpop.f32.mrb[0].mxu0
      %v6818 = vadd.f32 %v6765, %v6817
      %6819 = vdwg.mxu0
      %6820 = vmatprep.subr.bf16.mxu0 %v6523
      %6821 = vmatpush1.bf16.msra.mxu0 %v6522
      %6822 = vmatprep.subr.bf16.mxu0 %v6525
      %6823 = vmatpush1.bf16.msra.mxu0 %v6524
      %6824 = vmatprep.subr.bf16.mxu0 %v6527
      %6825 = vmatpush1.bf16.msra.mxu0 %v6526
      %6826 = vmatprep.subr.bf16.mxu0 %v6529
      %6827 = vmatpush1.bf16.msra.mxu0 %v6528
      %6828 = vmatprep.subr.bf16.mxu0 %v6531
      %6829 = vmatpush1.bf16.msra.mxu0 %v6530
      %6830 = vmatprep.subr.bf16.mxu0 %v6533
      %6831 = vmatpush1.bf16.msra.mxu0 %v6532
      %6832 = vmatprep.subr.bf16.mxu0 %v6535
      %6833 = vmatpush1.bf16.msra.mxu0 %v6534
      %6834 = vmatprep.subr.bf16.mxu0 %v6537
      %6835 = vmatpush1.bf16.msra.mxu0 %v6536
      %6836 = vmatprep.subr.bf16.mxu0 %v6539
      %6837 = vmatpush1.bf16.msra.mxu0 %v6538
      %6838 = vmatprep.subr.bf16.mxu0 %v6541
      %6839 = vmatpush1.bf16.msra.mxu0 %v6540
      %6840 = vmatprep.subr.bf16.mxu0 %v6543
      %6841 = vmatpush1.bf16.msra.mxu0 %v6542
      %6842 = vmatprep.subr.bf16.mxu0 %v6545
      %6843 = vmatpush1.bf16.msra.mxu0 %v6544
      %6844 = vmatprep.subr.bf16.mxu0 %v6547
      %6845 = vmatpush1.bf16.msra.mxu0 %v6546
      %6846 = vmatprep.subr.bf16.mxu0 %v6549
      %6847 = vmatpush1.bf16.msra.mxu0 %v6548
      %6848 = vmatprep.subr.bf16.mxu0 %v6551
      %6849 = vmatpush1.bf16.msra.mxu0 %v6550
      %6850 = vmatprep.subr.bf16.mxu0 %v6553
      %6851 = vmatpush1.bf16.msra.mxu0 %v6552
      %6852 = vmatprep.mubr.bf16.mxu0 %v5923
      %6853 = vmatmul.mubr.bf16.gmra.mrb[0].mxu0 %v5922
      %v6854 = vpop.f32.mrb[0].mxu0
      %v6855 = vadd.f32 %v6802, %v6854
      %v6856 = vpop.f32.mrb[0].mxu0
      %v6857 = vadd.f32 %v6804, %v6856
      %v6858 = vpop.f32.mrb[0].mxu0
      %v6859 = vadd.f32 %v6806, %v6858
      %v6860 = vpop.f32.mrb[0].mxu0
      %v6861 = vadd.f32 %v6808, %v6860
      %6862 = vmatprep.mubr.bf16.mxu0 %v5931
      %6863 = vmatmul.mubr.bf16.gmra.mrb[0].mxu0 %v5930
      %v6864 = vpop.f32.mrb[0].mxu0
      %v6865 = vadd.f32 %v6812, %v6864
      %v6866 = vpop.f32.mrb[0].mxu0
      %v6867 = vadd.f32 %v6814, %v6866
      %v6868 = vpop.f32.mrb[0].mxu0
      %v6869 = vadd.f32 %v6816, %v6868
      %v6870 = vpop.f32.mrb[0].mxu0
      %v6871 = vadd.f32 %v6818, %v6870
      %6872 = vdwg.mxu0
      %6873 = vmatprep.subr.bf16.mxu0 %v6555
      %6874 = vmatpush1.bf16.msra.mxu0 %v6554
      %6875 = vmatprep.subr.bf16.mxu0 %v6557
      %6876 = vmatpush1.bf16.msra.mxu0 %v6556
      %6877 = vmatprep.subr.bf16.mxu0 %v6559
      %6878 = vmatpush1.bf16.msra.mxu0 %v6558
      %6879 = vmatprep.subr.bf16.mxu0 %v6561
      %6880 = vmatpush1.bf16.msra.mxu0 %v6560
      %6881 = vmatprep.subr.bf16.mxu0 %v6563
      %6882 = vmatpush1.bf16.msra.mxu0 %v6562
      %6883 = vmatprep.subr.bf16.mxu0 %v6565
      %6884 = vmatpush1.bf16.msra.mxu0 %v6564
      %6885 = vmatprep.subr.bf16.mxu0 %v6567
      %6886 = vmatpush1.bf16.msra.mxu0 %v6566
      %6887 = vmatprep.subr.bf16.mxu0 %v6569
      %6888 = vmatpush1.bf16.msra.mxu0 %v6568
      %6889 = vmatprep.subr.bf16.mxu0 %v6571
      %6890 = vmatpush1.bf16.msra.mxu0 %v6570
      %6891 = vmatprep.subr.bf16.mxu0 %v6573
      %6892 = vmatpush1.bf16.msra.mxu0 %v6572
      %6893 = vmatprep.subr.bf16.mxu0 %v6575
      %6894 = vmatpush1.bf16.msra.mxu0 %v6574
      %6895 = vmatprep.subr.bf16.mxu0 %v6577
      %6896 = vmatpush1.bf16.msra.mxu0 %v6576
      %6897 = vmatprep.subr.bf16.mxu0 %v6579
      %6898 = vmatpush1.bf16.msra.mxu0 %v6578
      %6899 = vmatprep.subr.bf16.mxu0 %v6581
      %6900 = vmatpush1.bf16.msra.mxu0 %v6580
      %6901 = vmatprep.subr.bf16.mxu0 %v6583
      %6902 = vmatpush1.bf16.msra.mxu0 %v6582
      %6903 = vmatprep.subr.bf16.mxu0 %v6585
      %6904 = vmatpush1.bf16.msra.mxu0 %v6584
      %6905 = vmatprep.mubr.bf16.mxu0 %v5925
      %6906 = vmatmul.mubr.bf16.gmra.mrb[0].mxu0 %v5924
      %v6907 = vpop.f32.mrb[0].mxu0
      %v6908 = vadd.f32 %v6855, %v6907
      %v6909 = vpop.f32.mrb[0].mxu0
      %v6910 = vadd.f32 %v6857, %v6909
      %v6911 = vpop.f32.mrb[0].mxu0
      %v6912 = vadd.f32 %v6859, %v6911
      %v6913 = vpop.f32.mrb[0].mxu0
      %v6914 = vadd.f32 %v6861, %v6913
      %6915 = vmatprep.mubr.bf16.mxu0 %v5933
      %6916 = vmatmul.mubr.bf16.gmra.mrb[0].mxu0 %v5932
      %v6917 = vpop.f32.mrb[0].mxu0
      %v6918 = vadd.f32 %v6865, %v6917
      %v6919 = vpop.f32.mrb[0].mxu0
      %v6920 = vadd.f32 %v6867, %v6919
      %v6921 = vpop.f32.mrb[0].mxu0
      %v6922 = vadd.f32 %v6869, %v6921
      %v6923 = vpop.f32.mrb[0].mxu0
      %v6924 = vadd.f32 %v6871, %v6923
      %6925 = vdwg.mxu0
      %v6926 = vlaneseq
      %v6927 = vshrl.u32 %v6926, 7
      %v6928 = vsub.s32 5, %v6927
      %v6929 = vrot.slane %v569, %v6928
      %v6930 = vlaneseq
      %v6931 = vshrl.u32 %v6930, 7
      %v6932 = vsub.s32 5, %v6931
      %v6933 = vrot.slane %v570, %v6932
      %v6934 = vmul.f32 %v6929, %v6908
      %v6935 = vmul.f32 %v6933, %v6910
      %v6936 = vmul.f32 %v6929, %v6912
      %v6937 = vmul.f32 %v6933, %v6914
      %v6938 = vmul.f32 %v6929, %v6918
      %v6939 = vmul.f32 %v6933, %v6920
      %v6940 = vmul.f32 %v6929, %v6922
      %v6941 = vmul.f32 %v6933, %v6924
      %v6942 = vadd.f32 %v3924, %v6934
      %v6943 = vadd.f32 %v3925, %v6935
      %v6944 = vadd.f32 %v3926, %v6936
      %v6945 = vadd.f32 %v3927, %v6937
      %v6946 = vadd.f32 %v3928, %v6938
      %v6947 = vadd.f32 %v3929, %v6939
      %v6948 = vadd.f32 %v3930, %v6940
      %v6949 = vadd.f32 %v3931, %v6941
      %6950 = vst [vmem:[%s546] sm:$0xff] %v6942
      %6951 = vst [vmem:[%s546 + $0x8] sm:$0xff] %v6943
      %6952 = vst [vmem:[%s546 + $0x10] sm:$0xff] %v6944
      %6953 = vst [vmem:[%s546 + $0x18] sm:$0xff] %v6945
      %6954 = vst [vmem:[%s546 + $0x20] sm:$0xff] %v6946
      %6955 = vst [vmem:[%s546 + $0x28] sm:$0xff] %v6947
      %6956 = vst [vmem:[%s546 + $0x30] sm:$0xff] %v6948
      %6957 = vst [vmem:[%s546 + $0x38] sm:$0xff] %v6949
      %s6958 = smul.u32 2, %s25
      %p6959 = scmp.lt.s32.totalorder %s6958, 3
      %s6960 = scalar_select %p6959, %s6958, 3
      %s6961 = smul.addr %s6960, 4
      %s6962 = smul.addr %s6961, 8
      %s6963 = scalar_lea.vmem %s10, %s6962
      // Predicated region
      $region65: #{unified_bert_encoder.5} parent=59 // pred_check
        %p6964 = pneg %p311
      $region66: #{unified_bert_encoder.5} parent=59 // pred_check_branch
        %6966 = sbr.rel (%p6964) target = $region68
      $region67: #{unified_bert_encoder.5} parent=59 // pred_region
        %s6967 = smul.u32 2, %s25
      $region68: #{unified_bert_encoder.5} parent=59 // pred_fallthru
        _
    $region60: #{unified_bert_encoder.5} parent=5 // pred_fallthru
      _
    %p6968 = scmp.le.s32.totalorder 2, %s16
    // Predicated region
    $region69: #{unified_bert_encoder.5} parent=5 // pred_check
      %p6969 = pneg %p6968
    $region70: #{unified_bert_encoder.5} parent=5 // pred_check_branch
      %6971 = sbr.rel (%p6969) target = $region72
    $region71: #{unified_bert_encoder.5} parent=5 // pred_region
      %s6972 = ssub.s32 %s16, 2
      // Predicated region
      $region73: #{unified_bert_encoder.5} parent=71 // pred_check
        %p6973 = pneg %p317
      $region74: #{unified_bert_encoder.5} parent=71 // pred_check_branch
        %6975 = sbr.rel (%p6973) target = $region76
      $region75: #{unified_bert_encoder.5} parent=71 // pred_region
        %s6976 = smul.u32 2, %s27
        %p6977 = scmp.lt.s32.totalorder %s6976, 3
        %s6978 = scalar_select %p6977, %s6976, 3
        %s6979 = smul.addr %s6978, 4
        %s6980 = smul.addr %s6979, 8
        %s6981 = scalar_lea.vmem %s10, %s6980
      $region76: #{unified_bert_encoder.5} parent=71 // pred_fallthru
        _
    $region72: #{unified_bert_encoder.5} parent=5 // pred_fallthru
      _
  $region6: #{unified_bert_encoder.5} parent=0 // loop_footer
    %s20 = sadd.s32 1, %s16
  $region7: #{unified_bert_encoder.5} parent=0 // loop_footer_branch
    %15 = sbr.rel target = $region3
  $region8: #{unified_bert_encoder.5} parent=0 // loop_exit
    _

</llo_original>
